<compile_context>
chip_gen: v5e
topology: v5e:2x2
jax: 0.10.0
libtpu: 0.0.40
codegen_flags: <defaults>
</compile_context>

<pallas_src>
import jax
import jax.numpy as jnp
from jax.experimental import pallas as pl
from jax.experimental.pallas import tpu as pltpu

LEAKY_SLOPE = 0.01  # nn.LeakyReLU() default


def _leaky(v):
    return jnp.where(v >= 0, v, LEAKY_SLOPE * v)


# ---------------------------------------------------------------------------
# Fused `self.model` kernel (conv stack -> lane-dense mask)
# ---------------------------------------------------------------------------
def _build_model_kernel(H, W, Cin, C, R):
    def im2col3d(src_ref):
        # src_ref: zero-bordered (H+2, W+2, c) VMEM scratch.
        # Build the im2col slab once per conv; taps ordered (dy, dx) to match
        # the (3,3,Cin,Cout) -> (9*Cin, Cout) weight reshape.
        taps = [src_ref[dy:dy + H, dx:dx + W, :]
                for dy in range(3) for dx in range(3)]
        return jnp.concatenate(taps, axis=-1)            # (H, W, 9*c)

    def conv(src_ref, w_val, b_val, cin, cout, leaky, res_ref=None):
        p = im2col3d(src_ref).reshape(H * W, 9 * cin)    # big-K LHS
        y = jnp.dot(p, w_val, preferred_element_type=jnp.float32)
        y = y + b_val                                    # (1, cout) broadcast
        if leaky:
            y = _leaky(y)
        if res_ref is not None:                          # residual skip add
            y = y + res_ref[1:H + 1, 1:W + 1, :].reshape(H * W, cout)
        return y.reshape(H, W, cout)

    def body(x_ref, w0_ref, b0_ref, res_w, wl_ref, bl_ref, mask_ref,
             xp_s, a_s, b_s):
        # Zero the scratch once; the 1-pixel zero border implements SAME
        # padding for every conv in the stack (no wrapper-side jnp.pad).
        xp_s[...] = jnp.zeros_like(xp_s)
        a_s[...] = jnp.zeros_like(a_s)
        b_s[...] = jnp.zeros_like(b_s)
        xp_s[1:H + 1, 1:W + 1, :] = x_ref[0].astype(jnp.float32)

        # conv0: Cin -> C, + bias, LeakyReLU
        a_s[1:H + 1, 1:W + 1, :] = conv(xp_s, w0_ref[...], b0_ref[...],
                                        Cin, C, leaky=True)

        # residual blocks: x + conv(leaky(conv(x)))  -- all VMEM-resident
        if res_w is not None:
            rw1_ref, rb1_ref, rw2_ref, rb2_ref = res_w
            for r in range(R):
                b_s[1:H + 1, 1:W + 1, :] = conv(a_s, rw1_ref[r], rb1_ref[r],
                                                C, C, leaky=True)
                a_s[1:H + 1, 1:W + 1, :] = conv(b_s, rw2_ref[r], rb2_ref[r],
                                                C, C, leaky=False,
                                                res_ref=a_s)

        # final conv C -> 1: VPU multiply + lane reduce (no N=1 MXU matmul),
        # output lane-dense (H, W).
        p = im2col3d(a_s)                                # (H, W, 9*C)
        mask2d = jnp.sum(p * wl_ref[...], axis=-1) + bl_ref[...]
        mask_ref[0] = mask2d

    if R > 0:
        def kernel(x_ref, w0_ref, b0_ref, rw1_ref, rb1_ref, rw2_ref, rb2_ref,
                   wl_ref, bl_ref, mask_ref, xp_s, a_s, b_s):
            body(x_ref, w0_ref, b0_ref, (rw1_ref, rb1_ref, rw2_ref, rb2_ref),
                 wl_ref, bl_ref, mask_ref, xp_s, a_s, b_s)
    else:
        def kernel(x_ref, w0_ref, b0_ref, wl_ref, bl_ref, mask_ref,
                   xp_s, a_s, b_s):
            body(x_ref, w0_ref, b0_ref, None, wl_ref, bl_ref, mask_ref,
                 xp_s, a_s, b_s)
    return kernel


def model_mask_forward(params, x_nchw):
    """Run self.model; return the mask lane-dense as (B, H, W) float32."""
    B, Cin, H, W = x_nchw.shape
    x = jnp.transpose(x_nchw, (0, 2, 3, 1))              # channels -> lanes
    C = params['w0'].shape[-1]
    R = len(params['res'])
    f32 = jnp.float32

    # im2col weight layout: tap (dy, dx) occupies rows [(dy*3+dx)*Cin : +Cin)
    w0 = params['w0'].reshape(9 * Cin, C).astype(f32)
    b0 = params['b0'].reshape(1, C).astype(f32)
    wl = params['w_last'].reshape(1, 1, 9 * C).astype(f32)
    bl = params['b_last'].reshape(1, 1).astype(f32)

    in_specs = [
        pl.BlockSpec((1, H, W, Cin), lambda i: (i, 0, 0, 0)),
        pl.BlockSpec((9 * Cin, C), lambda i: (0, 0)),
        pl.BlockSpec((1, C), lambda i: (0, 0)),
    ]
    args = [x, w0, b0]
    if R > 0:
        rw1 = jnp.stack([rb['w1'].reshape(9 * C, C) for rb in params['res']]).astype(f32)
        rb1 = jnp.stack([rb['b1'].reshape(1, C) for rb in params['res']]).astype(f32)
        rw2 = jnp.stack([rb['w2'].reshape(9 * C, C) for rb in params['res']]).astype(f32)
        rb2 = jnp.stack([rb['b2'].reshape(1, C) for rb in params['res']]).astype(f32)
        in_specs += [
            pl.BlockSpec((R, 9 * C, C), lambda i: (0, 0, 0)),
            pl.BlockSpec((R, 1, C), lambda i: (0, 0, 0)),
            pl.BlockSpec((R, 9 * C, C), lambda i: (0, 0, 0)),
            pl.BlockSpec((R, 1, C), lambda i: (0, 0, 0)),
        ]
        args += [rw1, rb1, rw2, rb2]
    in_specs += [
        pl.BlockSpec((1, 1, 9 * C), lambda i: (0, 0, 0)),
        pl.BlockSpec((1, 1), lambda i: (0, 0)),
    ]
    args += [wl, bl]

    kernel = _build_model_kernel(H, W, Cin, C, R)
    return pl.pallas_call(
        kernel,
        out_shape=jax.ShapeDtypeStruct((B, H, W), f32),
        grid=(B,),
        in_specs=in_specs,
        out_specs=pl.BlockSpec((1, H, W), lambda i: (i, 0, 0)),
        scratch_shapes=[
            pltpu.VMEM((H + 2, W + 2, Cin), f32),   # padded input slab
            pltpu.VMEM((H + 2, W + 2, C), f32),     # activation A (zero border)
            pltpu.VMEM((H + 2, W + 2, C), f32),     # activation B (zero border)
        ],
        compiler_params=pltpu.CompilerParams(dimension_semantics=("parallel",)),
    )(*args)


# ---------------------------------------------------------------------------
# trans_mask_block (1x1 -> 16 -> 1) + pyramid multiply, lane-dense, fused
# ---------------------------------------------------------------------------
def _build_mask_mul_kernel(Hc, Wc, Cp, Chid):
    def kernel(m_ref, w1_ref, b1_ref, w2_ref, b2_ref, p_ref, mout_ref, rout_ref):
        m = m_ref[0]                                    # (Hc, Wc) lane-dense
        acc = jnp.zeros_like(m)
        # scalar expansion of the 1->16->1 MLP: pure full-width VPU work
        for k in range(Chid):
            t = w1_ref[k] * m + b1_ref[k]
            t = jnp.where(t >= 0, t, LEAKY_SLOPE * t)
            acc = acc + w2_ref[k] * t
        m2 = acc + b2_ref[0]
        mout_ref[0] = m2
        rout_ref[0] = p_ref[0] * m2[None, :, :]         # NCHW multiply
    return kernel


def trans_mask_and_mul(mask_bhw, mb, pyr_nchw):
    """mask_bhw: (B,H,W); mb: dict w1 (1,16), b1 (1,16), w2 (16,1), b2 (1,1);
    pyr_nchw: (B,Cp,H,W).  Returns (new_mask (B,H,W), result (B,Cp,H,W))."""
    B, Hc, Wc = mask_bhw.shape
    Cp = pyr_nchw.shape[1]
    Chid = mb['w1'].shape[-1]
    f32 = jnp.float32
    w1 = mb['w1'].reshape(Chid).astype(f32)
    b1 = mb['b1'].reshape(Chid).astype(f32)
    w2 = mb['w2'].reshape(Chid).astype(f32)
    b2 = mb['b2'].reshape(1).astype(f32)

    kernel = _build_mask_mul_kernel(Hc, Wc, Cp, Chid)
    return pl.pallas_call(
        kernel,
        out_shape=(jax.ShapeDtypeStruct((B, Hc, Wc), f32),
                   jax.ShapeDtypeStruct((B, Cp, Hc, Wc), f32)),
        grid=(B,),
        in_specs=[
            pl.BlockSpec((1, Hc, Wc), lambda i: (i, 0, 0)),
            pl.BlockSpec(memory_space=pltpu.MemorySpace.SMEM),
            pl.BlockSpec(memory_space=pltpu.MemorySpace.SMEM),
            pl.BlockSpec(memory_space=pltpu.MemorySpace.SMEM),
            pl.BlockSpec(memory_space=pltpu.MemorySpace.SMEM),
            pl.BlockSpec((1, Cp, Hc, Wc), lambda i: (i, 0, 0, 0)),
        ],
        out_specs=(pl.BlockSpec((1, Hc, Wc), lambda i: (i, 0, 0)),
                   pl.BlockSpec((1, Cp, Hc, Wc), lambda i: (i, 0, 0, 0))),
        compiler_params=pltpu.CompilerParams(dimension_semantics=("parallel",)),
    )(mask_bhw, w1, b1, w2, b2, pyr_nchw)


# ---------------------------------------------------------------------------
# Glue: nearest interpolate on the lane-dense (B, H, W) mask
# ---------------------------------------------------------------------------
def interp_nearest_bhw(x, out_h, out_w):
    B, H, W = x.shape
    rows = (jnp.arange(out_h) * H) // out_h
    cols = (jnp.arange(out_w) * W) // out_w
    return x[:, rows][:, :, cols]


# ---------------------------------------------------------------------------
# Parameters (deterministic, synthetic)
# ---------------------------------------------------------------------------
def init_params(key, num_residual_blocks, num_high):
    def nrm(k, shape, scale=0.1):
        return scale * jax.random.normal(k, shape, dtype=jnp.float32)

    keys = iter(jax.random.split(key, 8 + 4 * num_residual_blocks + 4 * num_high))
    p = {'w0': nrm(next(keys), (3, 3, 9, 64)), 'b0': nrm(next(keys), (64,)),
         'res': [], 'mask': [], 'w_last': None, 'b_last': None}
    for _ in range(num_residual_blocks):
        p['res'].append(dict(
            w1=nrm(next(keys), (3, 3, 64, 64)), b1=nrm(next(keys), (64,)),
            w2=nrm(next(keys), (3, 3, 64, 64)), b2=nrm(next(keys), (64,))))
    p['w_last'] = nrm(next(keys), (3, 3, 64, 1))
    p['b_last'] = nrm(next(keys), (1,))
    for _ in range(num_high):
        p['mask'].append(dict(
            w1=nrm(next(keys), (1, 16)), b1=nrm(next(keys), (1, 16)),
            w2=nrm(next(keys), (16, 1)), b2=nrm(next(keys), (1, 1))))
    return p


# ---------------------------------------------------------------------------
# Trans_high forward (NCHW in / NCHW out, like the PyTorch module)
# ---------------------------------------------------------------------------
def trans_high_forward(params, x_nchw, pyr_original, fake_low, num_high=2):
    mask = model_mask_forward(params, x_nchw)            # (B, H, W) lane-dense
    results = []
    for i in range(num_high):
        pyr = pyr_original[-2 - i]                       # stays NCHW
        mask = interp_nearest_bhw(mask, pyr.shape[2], pyr.shape[3])
        mask, res = trans_mask_and_mul(mask, params['mask'][i], pyr)
        results.append(res)                              # already NCHW
    pyr_result = [results[i] for i in reversed(range(num_high))]
    pyr_result.append(fake_low)
    return pyr_result


# ---------------------------------------------------------------------------
# Pure-JAX reference (for validation)
# ---------------------------------------------------------------------------
def _conv3x3_ref(x, w, b):
    y = jax.lax.conv_general_dilated(x, w, (1, 1), 'SAME',
                                     dimension_numbers=('NHWC', 'HWIO', 'NHWC'))
    return y + b.reshape(1, 1, 1, -1)


def trans_high_ref(params, x_nchw, pyr_original, fake_low, num_high=2):
    x = jnp.transpose(x_nchw, (0, 2, 3, 1))
    h = _leaky(_conv3x3_ref(x, params['w0'], params['b0']))
    for rb in params['res']:
        t = _leaky(_conv3x3_ref(h, rb['w1'], rb['b1']))
        h = h + _conv3x3_ref(t, rb['w2'], rb['b2'])
    mask = _conv3x3_ref(h, params['w_last'], params['b_last'])   # (B,H,W,1)
    results = []
    for i in range(num_high):
        p = pyr_original[-2 - i]
        th, tw = p.shape[2], p.shape[3]
        B, Hm, Wm, _ = mask.shape
        rows = (jnp.arange(th) * Hm) // th
        cols = (jnp.arange(tw) * Wm) // tw
        mask = mask[:, rows][:, :, cols]
        mb = params['mask'][i]
        hm = _leaky(mask @ mb['w1'] + mb['b1'].reshape(1, 1, 1, -1))
        mask = hm @ mb['w2'] + mb['b2'].reshape(1, 1, 1, -1)
        results.append(jnp.transpose(jnp.transpose(p, (0, 2, 3, 1)) * mask,
                                     (0, 3, 1, 2)))
    out = [results[i] for i in reversed(range(num_high))]
    out.append(fake_low)
    return out


if __name__ == "__main__":
    key = jax.random.PRNGKey(0)
    kp, kx, k1, k2, k3, kf = jax.random.split(key, 6)

    num_residual_blocks = 2
    num_high = 2
    B = 2

    params = init_params(kp, num_residual_blocks, num_high)

    # x = cat(high-freq, up(fake_low), up(orig_low)) -> 9 channels, at the
    # resolution of pyr_original[-2].
    x = jax.random.normal(kx, (B, 9, 16, 16), jnp.float32)
    pyr_original = [
        jax.random.normal(k1, (B, 3, 32, 32), jnp.float32),
        jax.random.normal(k2, (B, 3, 16, 16), jnp.float32),
        jax.random.normal(k3, (B, 3, 8, 8), jnp.float32),
    ]
    fake_low = jax.random.normal(kf, (B, 3, 8, 8), jnp.float32)

    out = trans_high_forward(params, x, pyr_original, fake_low, num_high)
    out = jax.block_until_ready(out)

    ref = trans_high_ref(params, x, pyr_original, fake_low, num_high)
    for a, r in zip(out, ref):
        assert a.shape == r.shape, (a.shape, r.shape)
        err = float(jnp.max(jnp.abs(a - r)))
        assert err < 2e-3, f"mismatch: {err}"

    print("KERNEL_OK")
</pallas_src>

<mosaic_0001>
module attributes {stable_mosaic.version = 11 : i64} {
  func.func @kernel(%arg0: i32, %arg1: memref<1x16x16x9xf32, #tpu.memory_space<vmem>>, %arg2: memref<81x64xf32, #tpu.memory_space<vmem>>, %arg3: memref<1x64xf32, #tpu.memory_space<vmem>>, %arg4: memref<2x576x64xf32, #tpu.memory_space<vmem>>, %arg5: memref<2x1x64xf32, #tpu.memory_space<vmem>>, %arg6: memref<2x576x64xf32, #tpu.memory_space<vmem>>, %arg7: memref<2x1x64xf32, #tpu.memory_space<vmem>>, %arg8: memref<1x1x576xf32, #tpu.memory_space<vmem>>, %arg9: memref<1x1xf32, #tpu.memory_space<vmem>>, %arg10: memref<1x16x16xf32, #tpu.memory_space<vmem>>, %arg11: memref<18x18x9xf32, #tpu.memory_space<vmem>>, %arg12: memref<18x18x64xf32, #tpu.memory_space<vmem>>, %arg13: memref<18x18x64xf32, #tpu.memory_space<vmem>>) attributes {dimension_semantics = [#tpu.dimension_semantics<parallel>], iteration_bounds = array<i64: 2>, scalar_prefetch = 0 : i64, scratch_operands = 3 : i64, tpu.core_type = #tpu.core_type<tc>, window_params = [{transform_indices = @transform_0, window_bounds = array<i64: 1, 16, 16, 9>}, {pipeline_mode = #tpu.pipeline_mode<synchronous>, transform_indices = @transform_1, window_bounds = array<i64: 81, 64>}, {pipeline_mode = #tpu.pipeline_mode<synchronous>, transform_indices = @transform_2, window_bounds = array<i64: 1, 64>}, {pipeline_mode = #tpu.pipeline_mode<synchronous>, transform_indices = @transform_3, window_bounds = array<i64: 2, 576, 64>}, {pipeline_mode = #tpu.pipeline_mode<synchronous>, transform_indices = @transform_4, window_bounds = array<i64: 2, 1, 64>}, {pipeline_mode = #tpu.pipeline_mode<synchronous>, transform_indices = @transform_5, window_bounds = array<i64: 2, 576, 64>}, {pipeline_mode = #tpu.pipeline_mode<synchronous>, transform_indices = @transform_6, window_bounds = array<i64: 2, 1, 64>}, {pipeline_mode = #tpu.pipeline_mode<synchronous>, transform_indices = @transform_7, window_bounds = array<i64: 1, 1, 576>}, {pipeline_mode = #tpu.pipeline_mode<synchronous>, transform_indices = @transform_8, window_bounds = array<i64: 1, 1>}, {transform_indices = @transform_9, window_bounds = array<i64: 1, 16, 16>}]} {
    %cst = arith.constant 0.000000e+00 : f32
    %0 = vector.broadcast %cst : f32 to vector<18x18x9xf32>
    %c0 = arith.constant 0 : index
    %c0_0 = arith.constant 0 : index
    %c0_1 = arith.constant 0 : index
    %1 = vector.load %arg11[%c0, %c0_0, %c0_1] : memref<18x18x9xf32, #tpu.memory_space<vmem>>, vector<18x18x9xf32>
    tpu.vector_store %arg11[%c0, %c0_0, %c0_1], %0 {strides = array<i32>} : memref<18x18x9xf32, #tpu.memory_space<vmem>>, vector<18x18x9xf32>,
    %cst_2 = arith.constant 0.000000e+00 : f32
    %2 = vector.broadcast %cst_2 : f32 to vector<18x18x64xf32>
    %c0_3 = arith.constant 0 : index
    %c0_4 = arith.constant 0 : index
    %c0_5 = arith.constant 0 : index
    %3 = vector.load %arg12[%c0_3, %c0_4, %c0_5] : memref<18x18x64xf32, #tpu.memory_space<vmem>>, vector<18x18x64xf32>
    tpu.vector_store %arg12[%c0_3, %c0_4, %c0_5], %2 {strides = array<i32>} : memref<18x18x64xf32, #tpu.memory_space<vmem>>, vector<18x18x64xf32>,
    %cst_6 = arith.constant 0.000000e+00 : f32
    %4 = vector.broadcast %cst_6 : f32 to vector<18x18x64xf32>
    %c0_7 = arith.constant 0 : index
    %c0_8 = arith.constant 0 : index
    %c0_9 = arith.constant 0 : index
    %5 = vector.load %arg13[%c0_7, %c0_8, %c0_9] : memref<18x18x64xf32, #tpu.memory_space<vmem>>, vector<18x18x64xf32>
    tpu.vector_store %arg13[%c0_7, %c0_8, %c0_9], %4 {strides = array<i32>} : memref<18x18x64xf32, #tpu.memory_space<vmem>>, vector<18x18x64xf32>,
    %c0_10 = arith.constant 0 : index
    %c0_11 = arith.constant 0 : index
    %c0_12 = arith.constant 0 : index
    %c0_13 = arith.constant 0 : index
    %6 = vector.load %arg1[%c0_10, %c0_11, %c0_12, %c0_13] : memref<1x16x16x9xf32, #tpu.memory_space<vmem>>, vector<1x16x16x9xf32>
    %7 = vector.shape_cast %6 : vector<1x16x16x9xf32> to vector<16x16x9xf32>
    %c1 = arith.constant 1 : index
    %c1_14 = arith.constant 1 : index
    %c0_15 = arith.constant 0 : index
    %8 = vector.load %arg11[%c1, %c1_14, %c0_15] : memref<18x18x9xf32, #tpu.memory_space<vmem>>, vector<16x16x9xf32>
    tpu.vector_store %arg11[%c1, %c1_14, %c0_15], %7 {strides = array<i32>} : memref<18x18x9xf32, #tpu.memory_space<vmem>>, vector<16x16x9xf32>,
    %c0_16 = arith.constant 0 : index
    %c0_17 = arith.constant 0 : index
    %9 = vector.load %arg2[%c0_16, %c0_17] : memref<81x64xf32, #tpu.memory_space<vmem>>, vector<81x64xf32>
    %c0_18 = arith.constant 0 : index
    %c0_19 = arith.constant 0 : index
    %10 = vector.load %arg3[%c0_18, %c0_19] : memref<1x64xf32, #tpu.memory_space<vmem>>, vector<1x64xf32>
    %c0_20 = arith.constant 0 : index
    %c0_21 = arith.constant 0 : index
    %c0_22 = arith.constant 0 : index
    %11 = vector.load %arg11[%c0_20, %c0_21, %c0_22] : memref<18x18x9xf32, #tpu.memory_space<vmem>>, vector<16x16x9xf32>
    %c0_23 = arith.constant 0 : index
    %c1_24 = arith.constant 1 : index
    %c0_25 = arith.constant 0 : index
    %12 = vector.load %arg11[%c0_23, %c1_24, %c0_25] : memref<18x18x9xf32, #tpu.memory_space<vmem>>, vector<16x16x9xf32>
    %c0_26 = arith.constant 0 : index
    %c2 = arith.constant 2 : index
    %c0_27 = arith.constant 0 : index
    %13 = vector.load %arg11[%c0_26, %c2, %c0_27] : memref<18x18x9xf32, #tpu.memory_space<vmem>>, vector<16x16x9xf32>
    %c1_28 = arith.constant 1 : index
    %c0_29 = arith.constant 0 : index
    %c0_30 = arith.constant 0 : index
    %14 = vector.load %arg11[%c1_28, %c0_29, %c0_30] : memref<18x18x9xf32, #tpu.memory_space<vmem>>, vector<16x16x9xf32>
    %c1_31 = arith.constant 1 : index
    %c1_32 = arith.constant 1 : index
    %c0_33 = arith.constant 0 : index
    %15 = vector.load %arg11[%c1_31, %c1_32, %c0_33] : memref<18x18x9xf32, #tpu.memory_space<vmem>>, vector<16x16x9xf32>
    %c1_34 = arith.constant 1 : index
    %c2_35 = arith.constant 2 : index
    %c0_36 = arith.constant 0 : index
    %16 = vector.load %arg11[%c1_34, %c2_35, %c0_36] : memref<18x18x9xf32, #tpu.memory_space<vmem>>, vector<16x16x9xf32>
    %c2_37 = arith.constant 2 : index
    %c0_38 = arith.constant 0 : index
    %c0_39 = arith.constant 0 : index
    %17 = vector.load %arg11[%c2_37, %c0_38, %c0_39] : memref<18x18x9xf32, #tpu.memory_space<vmem>>, vector<16x16x9xf32>
    %c2_40 = arith.constant 2 : index
    %c1_41 = arith.constant 1 : index
    %c0_42 = arith.constant 0 : index
    %18 = vector.load %arg11[%c2_40, %c1_41, %c0_42] : memref<18x18x9xf32, #tpu.memory_space<vmem>>, vector<16x16x9xf32>
    %c2_43 = arith.constant 2 : index
    %c2_44 = arith.constant 2 : index
    %c0_45 = arith.constant 0 : index
    %19 = vector.load %arg11[%c2_43, %c2_44, %c0_45] : memref<18x18x9xf32, #tpu.memory_space<vmem>>, vector<16x16x9xf32>
    %20 = tpu.concatenate %11, %12, %13, %14, %15, %16, %17, %18, %19 in 2 : vector<16x16x9xf32>, vector<16x16x9xf32>, vector<16x16x9xf32>, vector<16x16x9xf32>, vector<16x16x9xf32>, vector<16x16x9xf32>, vector<16x16x9xf32>, vector<16x16x9xf32>, vector<16x16x9xf32> -> vector<16x16x81xf32>
    %21 = vector.shape_cast %20 : vector<16x16x81xf32> to vector<256x81xf32>
    %cst_46 = arith.constant dense<0.000000e+00> : vector<256x64xf32>
    %22 = tpu.matmul %21, %9, %cst_46 {dimension_numbers = #tpu.dot_dimension_numbers<[1], [0], [0], [1], [0, 0, 1, 1], [], []>} : vector<256x81xf32>, vector<81x64xf32>, vector<256x64xf32> -> vector<256x64xf32>
    %23 = vector.broadcast %10 : vector<1x64xf32> to vector<256x64xf32>
    %24 = arith.addf %22, %23 : vector<256x64xf32>
    %cst_47 = arith.constant 0.000000e+00 : f32
    %25 = vector.broadcast %cst_47 : f32 to vector<256x64xf32>
    %26 = arith.cmpf oge, %24, %25 : vector<256x64xf32>
    %cst_48 = arith.constant 0.00999999977 : f32
    %27 = vector.broadcast %cst_48 : f32 to vector<256x64xf32>
    %28 = arith.mulf %27, %24 : vector<256x64xf32>
    %29 = arith.select %26, %24, %28 : vector<256x64xi1>, vector<256x64xf32>
    %30 = vector.shape_cast %29 : vector<256x64xf32> to vector<16x16x64xf32>
    %c1_49 = arith.constant 1 : index
    %c1_50 = arith.constant 1 : index
    %c0_51 = arith.constant 0 : index
    %31 = vector.load %arg12[%c1_49, %c1_50, %c0_51] : memref<18x18x64xf32, #tpu.memory_space<vmem>>, vector<16x16x64xf32>
    tpu.vector_store %arg12[%c1_49, %c1_50, %c0_51], %30 {strides = array<i32>} : memref<18x18x64xf32, #tpu.memory_space<vmem>>, vector<16x16x64xf32>,
    %c0_52 = arith.constant 0 : index
    %c0_53 = arith.constant 0 : index
    %c0_54 = arith.constant 0 : index
    %32 = vector.load %arg4[%c0_52, %c0_53, %c0_54] : memref<2x576x64xf32, #tpu.memory_space<vmem>>, vector<1x576x64xf32>
    %33 = vector.shape_cast %32 : vector<1x576x64xf32> to vector<576x64xf32>
    %c0_55 = arith.constant 0 : index
    %c0_56 = arith.constant 0 : index
    %c0_57 = arith.constant 0 : index
    %34 = vector.load %arg5[%c0_55, %c0_56, %c0_57] : memref<2x1x64xf32, #tpu.memory_space<vmem>>, vector<1x1x64xf32>
    %35 = vector.shape_cast %34 : vector<1x1x64xf32> to vector<1x64xf32>
    %c0_58 = arith.constant 0 : index
    %c0_59 = arith.constant 0 : index
    %c0_60 = arith.constant 0 : index
    %36 = vector.load %arg12[%c0_58, %c0_59, %c0_60] : memref<18x18x64xf32, #tpu.memory_space<vmem>>, vector<16x16x64xf32>
    %c0_61 = arith.constant 0 : index
    %c1_62 = arith.constant 1 : index
    %c0_63 = arith.constant 0 : index
    %37 = vector.load %arg12[%c0_61, %c1_62, %c0_63] : memref<18x18x64xf32, #tpu.memory_space<vmem>>, vector<16x16x64xf32>
    %c0_64 = arith.constant 0 : index
    %c2_65 = arith.constant 2 : index
    %c0_66 = arith.constant 0 : index
    %38 = vector.load %arg12[%c0_64, %c2_65, %c0_66] : memref<18x18x64xf32, #tpu.memory_space<vmem>>, vector<16x16x64xf32>
    %c1_67 = arith.constant 1 : index
    %c0_68 = arith.constant 0 : index
    %c0_69 = arith.constant 0 : index
    %39 = vector.load %arg12[%c1_67, %c0_68, %c0_69] : memref<18x18x64xf32, #tpu.memory_space<vmem>>, vector<16x16x64xf32>
    %c1_70 = arith.constant 1 : index
    %c1_71 = arith.constant 1 : index
    %c0_72 = arith.constant 0 : index
    %40 = vector.load %arg12[%c1_70, %c1_71, %c0_72] : memref<18x18x64xf32, #tpu.memory_space<vmem>>, vector<16x16x64xf32>
    %c1_73 = arith.constant 1 : index
    %c2_74 = arith.constant 2 : index
    %c0_75 = arith.constant 0 : index
    %41 = vector.load %arg12[%c1_73, %c2_74, %c0_75] : memref<18x18x64xf32, #tpu.memory_space<vmem>>, vector<16x16x64xf32>
    %c2_76 = arith.constant 2 : index
    %c0_77 = arith.constant 0 : index
    %c0_78 = arith.constant 0 : index
    %42 = vector.load %arg12[%c2_76, %c0_77, %c0_78] : memref<18x18x64xf32, #tpu.memory_space<vmem>>, vector<16x16x64xf32>
    %c2_79 = arith.constant 2 : index
    %c1_80 = arith.constant 1 : index
    %c0_81 = arith.constant 0 : index
    %43 = vector.load %arg12[%c2_79, %c1_80, %c0_81] : memref<18x18x64xf32, #tpu.memory_space<vmem>>, vector<16x16x64xf32>
    %c2_82 = arith.constant 2 : index
    %c2_83 = arith.constant 2 : index
    %c0_84 = arith.constant 0 : index
    %44 = vector.load %arg12[%c2_82, %c2_83, %c0_84] : memref<18x18x64xf32, #tpu.memory_space<vmem>>, vector<16x16x64xf32>
    %45 = tpu.concatenate %36, %37, %38, %39, %40, %41, %42, %43, %44 in 2 : vector<16x16x64xf32>, vector<16x16x64xf32>, vector<16x16x64xf32>, vector<16x16x64xf32>, vector<16x16x64xf32>, vector<16x16x64xf32>, vector<16x16x64xf32>, vector<16x16x64xf32>, vector<16x16x64xf32> -> vector<16x16x576xf32>
    %46 = vector.shape_cast %45 : vector<16x16x576xf32> to vector<256x576xf32>
    %cst_85 = arith.constant dense<0.000000e+00> : vector<256x64xf32>
    %47 = tpu.matmul %46, %33, %cst_85 {dimension_numbers = #tpu.dot_dimension_numbers<[1], [0], [0], [1], [0, 0, 1, 1], [], []>} : vector<256x576xf32>, vector<576x64xf32>, vector<256x64xf32> -> vector<256x64xf32>
    %48 = vector.broadcast %35 : vector<1x64xf32> to vector<256x64xf32>
    %49 = arith.addf %47, %48 : vector<256x64xf32>
    %cst_86 = arith.constant 0.000000e+00 : f32
    %50 = vector.broadcast %cst_86 : f32 to vector<256x64xf32>
    %51 = arith.cmpf oge, %49, %50 : vector<256x64xf32>
    %cst_87 = arith.constant 0.00999999977 : f32
    %52 = vector.broadcast %cst_87 : f32 to vector<256x64xf32>
    %53 = arith.mulf %52, %49 : vector<256x64xf32>
    %54 = arith.select %51, %49, %53 : vector<256x64xi1>, vector<256x64xf32>
    %55 = vector.shape_cast %54 : vector<256x64xf32> to vector<16x16x64xf32>
    %c1_88 = arith.constant 1 : index
    %c1_89 = arith.constant 1 : index
    %c0_90 = arith.constant 0 : index
    %56 = vector.load %arg13[%c1_88, %c1_89, %c0_90] : memref<18x18x64xf32, #tpu.memory_space<vmem>>, vector<16x16x64xf32>
    tpu.vector_store %arg13[%c1_88, %c1_89, %c0_90], %55 {strides = array<i32>} : memref<18x18x64xf32, #tpu.memory_space<vmem>>, vector<16x16x64xf32>,
    %c0_91 = arith.constant 0 : index
    %c0_92 = arith.constant 0 : index
    %c0_93 = arith.constant 0 : index
    %57 = vector.load %arg6[%c0_91, %c0_92, %c0_93] : memref<2x576x64xf32, #tpu.memory_space<vmem>>, vector<1x576x64xf32>
    %58 = vector.shape_cast %57 : vector<1x576x64xf32> to vector<576x64xf32>
    %c0_94 = arith.constant 0 : index
    %c0_95 = arith.constant 0 : index
    %c0_96 = arith.constant 0 : index
    %59 = vector.load %arg7[%c0_94, %c0_95, %c0_96] : memref<2x1x64xf32, #tpu.memory_space<vmem>>, vector<1x1x64xf32>
    %60 = vector.shape_cast %59 : vector<1x1x64xf32> to vector<1x64xf32>
    %c0_97 = arith.constant 0 : index
    %c0_98 = arith.constant 0 : index
    %c0_99 = arith.constant 0 : index
    %61 = vector.load %arg13[%c0_97, %c0_98, %c0_99] : memref<18x18x64xf32, #tpu.memory_space<vmem>>, vector<16x16x64xf32>
    %c0_100 = arith.constant 0 : index
    %c1_101 = arith.constant 1 : index
    %c0_102 = arith.constant 0 : index
    %62 = vector.load %arg13[%c0_100, %c1_101, %c0_102] : memref<18x18x64xf32, #tpu.memory_space<vmem>>, vector<16x16x64xf32>
    %c0_103 = arith.constant 0 : index
    %c2_104 = arith.constant 2 : index
    %c0_105 = arith.constant 0 : index
    %63 = vector.load %arg13[%c0_103, %c2_104, %c0_105] : memref<18x18x64xf32, #tpu.memory_space<vmem>>, vector<16x16x64xf32>
    %c1_106 = arith.constant 1 : index
    %c0_107 = arith.constant 0 : index
    %c0_108 = arith.constant 0 : index
    %64 = vector.load %arg13[%c1_106, %c0_107, %c0_108] : memref<18x18x64xf32, #tpu.memory_space<vmem>>, vector<16x16x64xf32>
    %c1_109 = arith.constant 1 : index
    %c1_110 = arith.constant 1 : index
    %c0_111 = arith.constant 0 : index
    %65 = vector.load %arg13[%c1_109, %c1_110, %c0_111] : memref<18x18x64xf32, #tpu.memory_space<vmem>>, vector<16x16x64xf32>
    %c1_112 = arith.constant 1 : index
    %c2_113 = arith.constant 2 : index
    %c0_114 = arith.constant 0 : index
    %66 = vector.load %arg13[%c1_112, %c2_113, %c0_114] : memref<18x18x64xf32, #tpu.memory_space<vmem>>, vector<16x16x64xf32>
    %c2_115 = arith.constant 2 : index
    %c0_116 = arith.constant 0 : index
    %c0_117 = arith.constant 0 : index
    %67 = vector.load %arg13[%c2_115, %c0_116, %c0_117] : memref<18x18x64xf32, #tpu.memory_space<vmem>>, vector<16x16x64xf32>
    %c2_118 = arith.constant 2 : index
    %c1_119 = arith.constant 1 : index
    %c0_120 = arith.constant 0 : index
    %68 = vector.load %arg13[%c2_118, %c1_119, %c0_120] : memref<18x18x64xf32, #tpu.memory_space<vmem>>, vector<16x16x64xf32>
    %c2_121 = arith.constant 2 : index
    %c2_122 = arith.constant 2 : index
    %c0_123 = arith.constant 0 : index
    %69 = vector.load %arg13[%c2_121, %c2_122, %c0_123] : memref<18x18x64xf32, #tpu.memory_space<vmem>>, vector<16x16x64xf32>
    %70 = tpu.concatenate %61, %62, %63, %64, %65, %66, %67, %68, %69 in 2 : vector<16x16x64xf32>, vector<16x16x64xf32>, vector<16x16x64xf32>, vector<16x16x64xf32>, vector<16x16x64xf32>, vector<16x16x64xf32>, vector<16x16x64xf32>, vector<16x16x64xf32>, vector<16x16x64xf32> -> vector<16x16x576xf32>
    %71 = vector.shape_cast %70 : vector<16x16x576xf32> to vector<256x576xf32>
    %cst_124 = arith.constant dense<0.000000e+00> : vector<256x64xf32>
    %72 = tpu.matmul %71, %58, %cst_124 {dimension_numbers = #tpu.dot_dimension_numbers<[1], [0], [0], [1], [0, 0, 1, 1], [], []>} : vector<256x576xf32>, vector<576x64xf32>, vector<256x64xf32> -> vector<256x64xf32>
    %73 = vector.broadcast %60 : vector<1x64xf32> to vector<256x64xf32>
    %74 = arith.addf %72, %73 : vector<256x64xf32>
    %c1_125 = arith.constant 1 : index
    %c1_126 = arith.constant 1 : index
    %c0_127 = arith.constant 0 : index
    %75 = vector.load %arg12[%c1_125, %c1_126, %c0_127] : memref<18x18x64xf32, #tpu.memory_space<vmem>>, vector<16x16x64xf32>
    %76 = vector.shape_cast %75 : vector<16x16x64xf32> to vector<256x64xf32>
    %77 = arith.addf %74, %76 : vector<256x64xf32>
    %78 = vector.shape_cast %77 : vector<256x64xf32> to vector<16x16x64xf32>
    %c1_128 = arith.constant 1 : index
    %c1_129 = arith.constant 1 : index
    %c0_130 = arith.constant 0 : index
    %79 = vector.load %arg12[%c1_128, %c1_129, %c0_130] : memref<18x18x64xf32, #tpu.memory_space<vmem>>, vector<16x16x64xf32>
    tpu.vector_store %arg12[%c1_128, %c1_129, %c0_130], %78 {strides = array<i32>} : memref<18x18x64xf32, #tpu.memory_space<vmem>>, vector<16x16x64xf32>,
    %c1_131 = arith.constant 1 : index
    %c0_132 = arith.constant 0 : index
    %c0_133 = arith.constant 0 : index
    %80 = vector.load %arg4[%c1_131, %c0_132, %c0_133] : memref<2x576x64xf32, #tpu.memory_space<vmem>>, vector<1x576x64xf32>
    %81 = vector.shape_cast %80 : vector<1x576x64xf32> to vector<576x64xf32>
    %c1_134 = arith.constant 1 : index
    %c0_135 = arith.constant 0 : index
    %c0_136 = arith.constant 0 : index
    %82 = vector.load %arg5[%c1_134, %c0_135, %c0_136] : memref<2x1x64xf32, #tpu.memory_space<vmem>>, vector<1x1x64xf32>
    %83 = vector.shape_cast %82 : vector<1x1x64xf32> to vector<1x64xf32>
    %c0_137 = arith.constant 0 : index
    %c0_138 = arith.constant 0 : index
    %c0_139 = arith.constant 0 : index
    %84 = vector.load %arg12[%c0_137, %c0_138, %c0_139] : memref<18x18x64xf32, #tpu.memory_space<vmem>>, vector<16x16x64xf32>
    %c0_140 = arith.constant 0 : index
    %c1_141 = arith.constant 1 : index
    %c0_142 = arith.constant 0 : index
    %85 = vector.load %arg12[%c0_140, %c1_141, %c0_142] : memref<18x18x64xf32, #tpu.memory_space<vmem>>, vector<16x16x64xf32>
    %c0_143 = arith.constant 0 : index
    %c2_144 = arith.constant 2 : index
    %c0_145 = arith.constant 0 : index
    %86 = vector.load %arg12[%c0_143, %c2_144, %c0_145] : memref<18x18x64xf32, #tpu.memory_space<vmem>>, vector<16x16x64xf32>
    %c1_146 = arith.constant 1 : index
    %c0_147 = arith.constant 0 : index
    %c0_148 = arith.constant 0 : index
    %87 = vector.load %arg12[%c1_146, %c0_147, %c0_148] : memref<18x18x64xf32, #tpu.memory_space<vmem>>, vector<16x16x64xf32>
    %c1_149 = arith.constant 1 : index
    %c1_150 = arith.constant 1 : index
    %c0_151 = arith.constant 0 : index
    %88 = vector.load %arg12[%c1_149, %c1_150, %c0_151] : memref<18x18x64xf32, #tpu.memory_space<vmem>>, vector<16x16x64xf32>
    %c1_152 = arith.constant 1 : index
    %c2_153 = arith.constant 2 : index
    %c0_154 = arith.constant 0 : index
    %89 = vector.load %arg12[%c1_152, %c2_153, %c0_154] : memref<18x18x64xf32, #tpu.memory_space<vmem>>, vector<16x16x64xf32>
    %c2_155 = arith.constant 2 : index
    %c0_156 = arith.constant 0 : index
    %c0_157 = arith.constant 0 : index
    %90 = vector.load %arg12[%c2_155, %c0_156, %c0_157] : memref<18x18x64xf32, #tpu.memory_space<vmem>>, vector<16x16x64xf32>
    %c2_158 = arith.constant 2 : index
    %c1_159 = arith.constant 1 : index
    %c0_160 = arith.constant 0 : index
    %91 = vector.load %arg12[%c2_158, %c1_159, %c0_160] : memref<18x18x64xf32, #tpu.memory_space<vmem>>, vector<16x16x64xf32>
    %c2_161 = arith.constant 2 : index
    %c2_162 = arith.constant 2 : index
    %c0_163 = arith.constant 0 : index
    %92 = vector.load %arg12[%c2_161, %c2_162, %c0_163] : memref<18x18x64xf32, #tpu.memory_space<vmem>>, vector<16x16x64xf32>
    %93 = tpu.concatenate %84, %85, %86, %87, %88, %89, %90, %91, %92 in 2 : vector<16x16x64xf32>, vector<16x16x64xf32>, vector<16x16x64xf32>, vector<16x16x64xf32>, vector<16x16x64xf32>, vector<16x16x64xf32>, vector<16x16x64xf32>, vector<16x16x64xf32>, vector<16x16x64xf32> -> vector<16x16x576xf32>
    %94 = vector.shape_cast %93 : vector<16x16x576xf32> to vector<256x576xf32>
    %cst_164 = arith.constant dense<0.000000e+00> : vector<256x64xf32>
    %95 = tpu.matmul %94, %81, %cst_164 {dimension_numbers = #tpu.dot_dimension_numbers<[1], [0], [0], [1], [0, 0, 1, 1], [], []>} : vector<256x576xf32>, vector<576x64xf32>, vector<256x64xf32> -> vector<256x64xf32>
    %96 = vector.broadcast %83 : vector<1x64xf32> to vector<256x64xf32>
    %97 = arith.addf %95, %96 : vector<256x64xf32>
    %cst_165 = arith.constant 0.000000e+00 : f32
    %98 = vector.broadcast %cst_165 : f32 to vector<256x64xf32>
    %99 = arith.cmpf oge, %97, %98 : vector<256x64xf32>
    %cst_166 = arith.constant 0.00999999977 : f32
    %100 = vector.broadcast %cst_166 : f32 to vector<256x64xf32>
    %101 = arith.mulf %100, %97 : vector<256x64xf32>
    %102 = arith.select %99, %97, %101 : vector<256x64xi1>, vector<256x64xf32>
    %103 = vector.shape_cast %102 : vector<256x64xf32> to vector<16x16x64xf32>
    %c1_167 = arith.constant 1 : index
    %c1_168 = arith.constant 1 : index
    %c0_169 = arith.constant 0 : index
    %104 = vector.load %arg13[%c1_167, %c1_168, %c0_169] : memref<18x18x64xf32, #tpu.memory_space<vmem>>, vector<16x16x64xf32>
    tpu.vector_store %arg13[%c1_167, %c1_168, %c0_169], %103 {strides = array<i32>} : memref<18x18x64xf32, #tpu.memory_space<vmem>>, vector<16x16x64xf32>,
    %c1_170 = arith.constant 1 : index
    %c0_171 = arith.constant 0 : index
    %c0_172 = arith.constant 0 : index
    %105 = vector.load %arg6[%c1_170, %c0_171, %c0_172] : memref<2x576x64xf32, #tpu.memory_space<vmem>>, vector<1x576x64xf32>
    %106 = vector.shape_cast %105 : vector<1x576x64xf32> to vector<576x64xf32>
    %c1_173 = arith.constant 1 : index
    %c0_174 = arith.constant 0 : index
    %c0_175 = arith.constant 0 : index
    %107 = vector.load %arg7[%c1_173, %c0_174, %c0_175] : memref<2x1x64xf32, #tpu.memory_space<vmem>>, vector<1x1x64xf32>
    %108 = vector.shape_cast %107 : vector<1x1x64xf32> to vector<1x64xf32>
    %c0_176 = arith.constant 0 : index
    %c0_177 = arith.constant 0 : index
    %c0_178 = arith.constant 0 : index
    %109 = vector.load %arg13[%c0_176, %c0_177, %c0_178] : memref<18x18x64xf32, #tpu.memory_space<vmem>>, vector<16x16x64xf32>
    %c0_179 = arith.constant 0 : index
    %c1_180 = arith.constant 1 : index
    %c0_181 = arith.constant 0 : index
    %110 = vector.load %arg13[%c0_179, %c1_180, %c0_181] : memref<18x18x64xf32, #tpu.memory_space<vmem>>, vector<16x16x64xf32>
    %c0_182 = arith.constant 0 : index
    %c2_183 = arith.constant 2 : index
    %c0_184 = arith.constant 0 : index
    %111 = vector.load %arg13[%c0_182, %c2_183, %c0_184] : memref<18x18x64xf32, #tpu.memory_space<vmem>>, vector<16x16x64xf32>
    %c1_185 = arith.constant 1 : index
    %c0_186 = arith.constant 0 : index
    %c0_187 = arith.constant 0 : index
    %112 = vector.load %arg13[%c1_185, %c0_186, %c0_187] : memref<18x18x64xf32, #tpu.memory_space<vmem>>, vector<16x16x64xf32>
    %c1_188 = arith.constant 1 : index
    %c1_189 = arith.constant 1 : index
    %c0_190 = arith.constant 0 : index
    %113 = vector.load %arg13[%c1_188, %c1_189, %c0_190] : memref<18x18x64xf32, #tpu.memory_space<vmem>>, vector<16x16x64xf32>
    %c1_191 = arith.constant 1 : index
    %c2_192 = arith.constant 2 : index
    %c0_193 = arith.constant 0 : index
    %114 = vector.load %arg13[%c1_191, %c2_192, %c0_193] : memref<18x18x64xf32, #tpu.memory_space<vmem>>, vector<16x16x64xf32>
    %c2_194 = arith.constant 2 : index
    %c0_195 = arith.constant 0 : index
    %c0_196 = arith.constant 0 : index
    %115 = vector.load %arg13[%c2_194, %c0_195, %c0_196] : memref<18x18x64xf32, #tpu.memory_space<vmem>>, vector<16x16x64xf32>
    %c2_197 = arith.constant 2 : index
    %c1_198 = arith.constant 1 : index
    %c0_199 = arith.constant 0 : index
    %116 = vector.load %arg13[%c2_197, %c1_198, %c0_199] : memref<18x18x64xf32, #tpu.memory_space<vmem>>, vector<16x16x64xf32>
    %c2_200 = arith.constant 2 : index
    %c2_201 = arith.constant 2 : index
    %c0_202 = arith.constant 0 : index
    %117 = vector.load %arg13[%c2_200, %c2_201, %c0_202] : memref<18x18x64xf32, #tpu.memory_space<vmem>>, vector<16x16x64xf32>
    %118 = tpu.concatenate %109, %110, %111, %112, %113, %114, %115, %116, %117 in 2 : vector<16x16x64xf32>, vector<16x16x64xf32>, vector<16x16x64xf32>, vector<16x16x64xf32>, vector<16x16x64xf32>, vector<16x16x64xf32>, vector<16x16x64xf32>, vector<16x16x64xf32>, vector<16x16x64xf32> -> vector<16x16x576xf32>
    %119 = vector.shape_cast %118 : vector<16x16x576xf32> to vector<256x576xf32>
    %cst_203 = arith.constant dense<0.000000e+00> : vector<256x64xf32>
    %120 = tpu.matmul %119, %106, %cst_203 {dimension_numbers = #tpu.dot_dimension_numbers<[1], [0], [0], [1], [0, 0, 1, 1], [], []>} : vector<256x576xf32>, vector<576x64xf32>, vector<256x64xf32> -> vector<256x64xf32>
    %121 = vector.broadcast %108 : vector<1x64xf32> to vector<256x64xf32>
    %122 = arith.addf %120, %121 : vector<256x64xf32>
    %c1_204 = arith.constant 1 : index
    %c1_205 = arith.constant 1 : index
    %c0_206 = arith.constant 0 : index
    %123 = vector.load %arg12[%c1_204, %c1_205, %c0_206] : memref<18x18x64xf32, #tpu.memory_space<vmem>>, vector<16x16x64xf32>
    %124 = vector.shape_cast %123 : vector<16x16x64xf32> to vector<256x64xf32>
    %125 = arith.addf %122, %124 : vector<256x64xf32>
    %126 = vector.shape_cast %125 : vector<256x64xf32> to vector<16x16x64xf32>
    %c1_207 = arith.constant 1 : index
    %c1_208 = arith.constant 1 : index
    %c0_209 = arith.constant 0 : index
    %127 = vector.load %arg12[%c1_207, %c1_208, %c0_209] : memref<18x18x64xf32, #tpu.memory_space<vmem>>, vector<16x16x64xf32>
    tpu.vector_store %arg12[%c1_207, %c1_208, %c0_209], %126 {strides = array<i32>} : memref<18x18x64xf32, #tpu.memory_space<vmem>>, vector<16x16x64xf32>,
    %c0_210 = arith.constant 0 : index
    %c0_211 = arith.constant 0 : index
    %c0_212 = arith.constant 0 : index
    %128 = vector.load %arg12[%c0_210, %c0_211, %c0_212] : memref<18x18x64xf32, #tpu.memory_space<vmem>>, vector<16x16x64xf32>
    %c0_213 = arith.constant 0 : index
    %c1_214 = arith.constant 1 : index
    %c0_215 = arith.constant 0 : index
    %129 = vector.load %arg12[%c0_213, %c1_214, %c0_215] : memref<18x18x64xf32, #tpu.memory_space<vmem>>, vector<16x16x64xf32>
    %c0_216 = arith.constant 0 : index
    %c2_217 = arith.constant 2 : index
    %c0_218 = arith.constant 0 : index
    %130 = vector.load %arg12[%c0_216, %c2_217, %c0_218] : memref<18x18x64xf32, #tpu.memory_space<vmem>>, vector<16x16x64xf32>
    %c1_219 = arith.constant 1 : index
    %c0_220 = arith.constant 0 : index
    %c0_221 = arith.constant 0 : index
    %131 = vector.load %arg12[%c1_219, %c0_220, %c0_221] : memref<18x18x64xf32, #tpu.memory_space<vmem>>, vector<16x16x64xf32>
    %c1_222 = arith.constant 1 : index
    %c1_223 = arith.constant 1 : index
    %c0_224 = arith.constant 0 : index
    %132 = vector.load %arg12[%c1_222, %c1_223, %c0_224] : memref<18x18x64xf32, #tpu.memory_space<vmem>>, vector<16x16x64xf32>
    %c1_225 = arith.constant 1 : index
    %c2_226 = arith.constant 2 : index
    %c0_227 = arith.constant 0 : index
    %133 = vector.load %arg12[%c1_225, %c2_226, %c0_227] : memref<18x18x64xf32, #tpu.memory_space<vmem>>, vector<16x16x64xf32>
    %c2_228 = arith.constant 2 : index
    %c0_229 = arith.constant 0 : index
    %c0_230 = arith.constant 0 : index
    %134 = vector.load %arg12[%c2_228, %c0_229, %c0_230] : memref<18x18x64xf32, #tpu.memory_space<vmem>>, vector<16x16x64xf32>
    %c2_231 = arith.constant 2 : index
    %c1_232 = arith.constant 1 : index
    %c0_233 = arith.constant 0 : index
    %135 = vector.load %arg12[%c2_231, %c1_232, %c0_233] : memref<18x18x64xf32, #tpu.memory_space<vmem>>, vector<16x16x64xf32>
    %c2_234 = arith.constant 2 : index
    %c2_235 = arith.constant 2 : index
    %c0_236 = arith.constant 0 : index
    %136 = vector.load %arg12[%c2_234, %c2_235, %c0_236] : memref<18x18x64xf32, #tpu.memory_space<vmem>>, vector<16x16x64xf32>
    %137 = tpu.concatenate %128, %129, %130, %131, %132, %133, %134, %135, %136 in 2 : vector<16x16x64xf32>, vector<16x16x64xf32>, vector<16x16x64xf32>, vector<16x16x64xf32>, vector<16x16x64xf32>, vector<16x16x64xf32>, vector<16x16x64xf32>, vector<16x16x64xf32>, vector<16x16x64xf32> -> vector<16x16x576xf32>
    %c0_237 = arith.constant 0 : index
    %c0_238 = arith.constant 0 : index
    %c0_239 = arith.constant 0 : index
    %138 = vector.load %arg8[%c0_237, %c0_238, %c0_239] : memref<1x1x576xf32, #tpu.memory_space<vmem>>, vector<1x1x576xf32>
    %139 = vector.broadcast %138 : vector<1x1x576xf32> to vector<16x16x576xf32>
    %140 = arith.mulf %137, %139 : vector<16x16x576xf32>
    %cst_240 = arith.constant dense<0.000000e+00> : vector<16x16xf32>
    %141 = vector.multi_reduction <add>, %140, %cst_240 [2] : vector<16x16x576xf32> to vector<16x16xf32>
    %c0_241 = arith.constant 0 : index
    %c0_242 = arith.constant 0 : index
    %142 = vector.load %arg9[%c0_241, %c0_242] : memref<1x1xf32, #tpu.memory_space<vmem>>, vector<1x1xf32>
    %143 = vector.broadcast %142 : vector<1x1xf32> to vector<16x16xf32>
    %144 = arith.addf %141, %143 : vector<16x16xf32>
    %c0_243 = arith.constant 0 : index
    %c0_244 = arith.constant 0 : index
    %c0_245 = arith.constant 0 : index
    %145 = vector.load %arg10[%c0_243, %c0_244, %c0_245] : memref<1x16x16xf32, #tpu.memory_space<vmem>>, vector<1x16x16xf32>
    %146 = vector.shape_cast %145 : vector<1x16x16xf32> to vector<16x16xf32>
    %147 = vector.shape_cast %144 : vector<16x16xf32> to vector<1x16x16xf32>
    tpu.vector_store %arg10[%c0_243, %c0_244, %c0_245], %147 {strides = array<i32>} : memref<1x16x16xf32, #tpu.memory_space<vmem>>, vector<1x16x16xf32>,
    return
  }
  func.func @transform_0(%arg0: i32) -> (i32, i32, i32, i32) {
    %c0_i32 = arith.constant 0 : i32
    %c0_i32_0 = arith.constant 0 : i32
    %c0_i32_1 = arith.constant 0 : i32
    %c0_i32_2 = arith.constant 0 : i32
    return %arg0, %c0_i32, %c0_i32_0, %c0_i32_1 : i32, i32, i32, i32
  }
  func.func @transform_1(%arg0: i32) -> (i32, i32) {
    %c0_i32 = arith.constant 0 : i32
    %c0_i32_0 = arith.constant 0 : i32
    %c0_i32_1 = arith.constant 0 : i32
    return %c0_i32, %c0_i32_0 : i32, i32
  }
  func.func @transform_2(%arg0: i32) -> (i32, i32) {
    %c0_i32 = arith.constant 0 : i32
    %c0_i32_0 = arith.constant 0 : i32
    %c0_i32_1 = arith.constant 0 : i32
    return %c0_i32, %c0_i32_0 : i32, i32
  }
  func.func @transform_3(%arg0: i32) -> (i32, i32, i32) {
    %c0_i32 = arith.constant 0 : i32
    %c0_i32_0 = arith.constant 0 : i32
    %c0_i32_1 = arith.constant 0 : i32
    %c0_i32_2 = arith.constant 0 : i32
    return %c0_i32, %c0_i32_0, %c0_i32_1 : i32, i32, i32
  }
  func.func @transform_4(%arg0: i32) -> (i32, i32, i32) {
    %c0_i32 = arith.constant 0 : i32
    %c0_i32_0 = arith.constant 0 : i32
    %c0_i32_1 = arith.constant 0 : i32
    %c0_i32_2 = arith.constant 0 : i32
    return %c0_i32, %c0_i32_0, %c0_i32_1 : i32, i32, i32
  }
  func.func @transform_5(%arg0: i32) -> (i32, i32, i32) {
    %c0_i32 = arith.constant 0 : i32
    %c0_i32_0 = arith.constant 0 : i32
    %c0_i32_1 = arith.constant 0 : i32
    %c0_i32_2 = arith.constant 0 : i32
    return %c0_i32, %c0_i32_0, %c0_i32_1 : i32, i32, i32
  }
  func.func @transform_6(%arg0: i32) -> (i32, i32, i32) {
    %c0_i32 = arith.constant 0 : i32
    %c0_i32_0 = arith.constant 0 : i32
    %c0_i32_1 = arith.constant 0 : i32
    %c0_i32_2 = arith.constant 0 : i32
    return %c0_i32, %c0_i32_0, %c0_i32_1 : i32, i32, i32
  }
  func.func @transform_7(%arg0: i32) -> (i32, i32, i32) {
    %c0_i32 = arith.constant 0 : i32
    %c0_i32_0 = arith.constant 0 : i32
    %c0_i32_1 = arith.constant 0 : i32
    %c0_i32_2 = arith.constant 0 : i32
    return %c0_i32, %c0_i32_0, %c0_i32_1 : i32, i32, i32
  }
  func.func @transform_8(%arg0: i32) -> (i32, i32) {
    %c0_i32 = arith.constant 0 : i32
    %c0_i32_0 = arith.constant 0 : i32
    %c0_i32_1 = arith.constant 0 : i32
    return %c0_i32, %c0_i32_0 : i32, i32
  }
  func.func @transform_9(%arg0: i32) -> (i32, i32, i32) {
    %c0_i32 = arith.constant 0 : i32
    %c0_i32_0 = arith.constant 0 : i32
    %c0_i32_1 = arith.constant 0 : i32
    return %arg0, %c0_i32, %c0_i32_0 : i32, i32, i32
  }
}

</mosaic_0001>

<llo_original>
// kernel: tpu_custom_call.1
$region0: #{tpu_custom_call.1}
  #allocation0 [shape = 'u32[]', space=smem, size = 0x4, offset = 0x4, fixed_abs, tag = 'smem constant byte address 0x4 - core index']
  #allocation1 [shape = 'u32[72,128]{1,0:T(1,128)}', space=vmem, size = 0x9000, scoped, tag = 'internal scratch']
  #allocation2 [shape = 'f32[18,18,9]{2,1,0:T(8,128)}', space=vmem, size = 0x36000, scoped, tag = 'scratch operand']
  #allocation3 [shape = 'f32[18,18,64]{2,1,0:T(8,128)}', space=vmem, size = 0x36000, scoped, tag = 'scratch operand']
  #allocation4 [shape = 'f32[18,18,64]{2,1,0:T(8,128)}', space=vmem, size = 0x36000, scoped, tag = 'scratch operand']
  #allocation5 [shape = 'f32[1,1]{1,0:T(1,128)S(1)}', space=vmem, size = 0x200, scoped, tag = 'scoped memory for tpu_custom_call.1']
  %s0 = inlined_call_operand.vmem [shape: f32[2,16,16,9], index: 0, kind: input, shape index: {}]
  %s1 = inlined_call_operand.vmem [shape: f32[81,64], index: 1, kind: input, shape index: {}]
  %s2 = inlined_call_operand.vmem [shape: f32[1,64], index: 2, kind: input, shape index: {}]
  %s3 = inlined_call_operand.vmem [shape: f32[2,576,64], index: 3, kind: input, shape index: {}]
  %s4 = inlined_call_operand.vmem [shape: f32[2,1,64], index: 4, kind: input, shape index: {}]
  %s5 = inlined_call_operand.vmem [shape: f32[2,576,64], index: 5, kind: input, shape index: {}]
  %s6 = inlined_call_operand.vmem [shape: f32[2,1,64], index: 6, kind: input, shape index: {}]
  %s7 = inlined_call_operand.vmem [shape: f32[1,1,576], index: 7, kind: input, shape index: {}]
  %s8 = inlined_call_operand.<no memory space> [shape: f32[1,1], index: 8, kind: input, shape index: {}]
  %s9 = inlined_call_operand.hbm [shape: f32[2,16,16], index: 9, kind: output, shape index: {}]
  %s10 = sld [smem:[#allocation0]]
  $region69: #{tpu_custom_call.1} parent=0
    _
  %s12 = ssub.s32 1, %s10
  %s13 = scalar_select 0, %s12, %s10
  %v14 = vstv %s8
  %15 = vst [vmem:[#allocation5] sm:$0x1] %v14
  $region1: #{tpu_custom_call.1} parent=0
    #allocation6 [shape = 'u8[16384]{0}', space=vmem, size = 0x4000, scoped, tag = 'output window, operand 0']
    #allocation7 [shape = 's32[2]{0}', space=sflag, size = 0x8, scoped, tag = 'scoped memory for tpu_custom_call.1']
    %16 = vsyncpa [#allocation7], 0
    %s17 = scalar_lea.sflag [#allocation7], 1
    %18 = vsyncpa %s17, 0
    loop: start=0, step=1, limit=4
    $region2: #{tpu_custom_call.1} parent=1 // loop_pre_header
      _
    $region3: #{tpu_custom_call.1} parent=1 // loop_header
      %s20 = sphi 0, %s24
      %p21 = scmp.ge.s32.totalorder %s20, 4
      %s30 = sphi 0, %s32
      %s33 = sphi 0, %s30
      %s34 = sphi 0, %s33
      %s50 = sphi 0, %s34
      %s54 = sphi 0, %s54
      %s56 = sphi 0, %s54
      %s57 = sphi 0, %s56
      %s71 = sphi 0, %s57
      %s75 = sphi 0, %s75
      %s77 = sphi 0, %s75
      %s78 = sphi 0, %s77
      %s92 = sphi 0, %s78
      %s96 = sphi 0, %s96
      %s98 = sphi 0, %s96
      %s99 = sphi 0, %s98
      %s113 = sphi 0, %s99
      %s117 = sphi 0, %s117
      %s119 = sphi 0, %s117
      %s120 = sphi 0, %s119
      %s134 = sphi 0, %s120
      %s138 = sphi 0, %s138
      %s140 = sphi 0, %s138
      %s141 = sphi 0, %s140
      %s155 = sphi 0, %s141
      %s159 = sphi 0, %s159
      %s161 = sphi 0, %s159
      %s162 = sphi 0, %s161
      %s176 = sphi 0, %s162
      %s180 = sphi 0, %s180
      %s182 = sphi 0, %s180
      %s183 = sphi 0, %s182
      %s197 = sphi 0, %s183
      %s201 = sphi 0, %s201
      %s203 = sphi 0, %s201
      %s204 = sphi 0, %s203
      %s218 = sphi 0, %s204
      %s224 = sphi 0, %s226
      %s227 = sphi 0, %s224
      %s228 = sphi 0, %s227
      %s244 = sphi 0, %s228
    $region4: #{tpu_custom_call.1} parent=1 // loop_header_branch
      %23 = sbr.rel (%p21) target = $region8
    $region5: #{tpu_custom_call.1} parent=1 // loop_body
      %s25 = ssub.s32 %s20, 1
      %s26 = ssub.s32 %s20, 2
      %s27 = sadd.s32 %s20, 1
      %s28 = ssub.s32 %s20, %s27
      %p29 = scmp.eq.s32.totalorder %s28, 0
      %s31 = sadd.s32 %s30, 1
      %s32 = scalar_select %p29, %s30, %s31
      %p35 = pneg %p29
      %p36 = scmp.eq.s32.totalorder %s20, 1
      %p37 = por %p35, %p36
      %p38 = scmp.ne.s32.totalorder %s30, %s33
      %p39 = scmp.eq.s32.totalorder %s20, 0
      %p40 = por %p38, %p39
      %p41 = scmp.ne.s32.totalorder %s30, %s33
      %p42 = scmp.eq.s32.totalorder %s25, 1
      %p43 = por %p41, %p42
      %p44 = scmp.ne.s32.totalorder %s33, %s34
      %p45 = scmp.eq.s32.totalorder %s25, 0
      %p46 = por %p44, %p45
      %p47 = scmp.ne.s32.totalorder %s33, %s34
      %p48 = scmp.eq.s32.totalorder %s26, 1
      %p49 = por %p47, %p48
      %p51 = scmp.ne.s32.totalorder %s34, %s50
      %p52 = scmp.eq.s32.totalorder %s26, 0
      %p53 = por %p51, %p52
      %s55 = sadd.s32 %s54, 1
      %p58 = scmp.eq.s32.totalorder %s20, 1
      %p59 = scmp.ne.s32.totalorder %s54, %s56
      %p60 = scmp.eq.s32.totalorder %s20, 0
      %p61 = por %p59, %p60
      %p62 = scmp.ne.s32.totalorder %s54, %s56
      %p63 = scmp.eq.s32.totalorder %s25, 1
      %p64 = por %p62, %p63
      %p65 = scmp.ne.s32.totalorder %s56, %s57
      %p66 = scmp.eq.s32.totalorder %s25, 0
      %p67 = por %p65, %p66
      %p68 = scmp.ne.s32.totalorder %s56, %s57
      %p69 = scmp.eq.s32.totalorder %s26, 1
      %p70 = por %p68, %p69
      %p72 = scmp.ne.s32.totalorder %s57, %s71
      %p73 = scmp.eq.s32.totalorder %s26, 0
      %p74 = por %p72, %p73
      %s76 = sadd.s32 %s75, 1
      %p79 = scmp.eq.s32.totalorder %s20, 1
      %p80 = scmp.ne.s32.totalorder %s75, %s77
      %p81 = scmp.eq.s32.totalorder %s20, 0
      %p82 = por %p80, %p81
      %p83 = scmp.ne.s32.totalorder %s75, %s77
      %p84 = scmp.eq.s32.totalorder %s25, 1
      %p85 = por %p83, %p84
      %p86 = scmp.ne.s32.totalorder %s77, %s78
      %p87 = scmp.eq.s32.totalorder %s25, 0
      %p88 = por %p86, %p87
      %p89 = scmp.ne.s32.totalorder %s77, %s78
      %p90 = scmp.eq.s32.totalorder %s26, 1
      %p91 = por %p89, %p90
      %p93 = scmp.ne.s32.totalorder %s78, %s92
      %p94 = scmp.eq.s32.totalorder %s26, 0
      %p95 = por %p93, %p94
      %s97 = sadd.s32 %s96, 1
      %p100 = scmp.eq.s32.totalorder %s20, 1
      %p101 = scmp.ne.s32.totalorder %s96, %s98
      %p102 = scmp.eq.s32.totalorder %s20, 0
      %p103 = por %p101, %p102
      %p104 = scmp.ne.s32.totalorder %s96, %s98
      %p105 = scmp.eq.s32.totalorder %s25, 1
      %p106 = por %p104, %p105
      %p107 = scmp.ne.s32.totalorder %s98, %s99
      %p108 = scmp.eq.s32.totalorder %s25, 0
      %p109 = por %p107, %p108
      %p110 = scmp.ne.s32.totalorder %s98, %s99
      %p111 = scmp.eq.s32.totalorder %s26, 1
      %p112 = por %p110, %p111
      %p114 = scmp.ne.s32.totalorder %s99, %s113
      %p115 = scmp.eq.s32.totalorder %s26, 0
      %p116 = por %p114, %p115
      %s118 = sadd.s32 %s117, 1
      %p121 = scmp.eq.s32.totalorder %s20, 1
      %p122 = scmp.ne.s32.totalorder %s117, %s119
      %p123 = scmp.eq.s32.totalorder %s20, 0
      %p124 = por %p122, %p123
      %p125 = scmp.ne.s32.totalorder %s117, %s119
      %p126 = scmp.eq.s32.totalorder %s25, 1
      %p127 = por %p125, %p126
      %p128 = scmp.ne.s32.totalorder %s119, %s120
      %p129 = scmp.eq.s32.totalorder %s25, 0
      %p130 = por %p128, %p129
      %p131 = scmp.ne.s32.totalorder %s119, %s120
      %p132 = scmp.eq.s32.totalorder %s26, 1
      %p133 = por %p131, %p132
      %p135 = scmp.ne.s32.totalorder %s120, %s134
      %p136 = scmp.eq.s32.totalorder %s26, 0
      %p137 = por %p135, %p136
      %s139 = sadd.s32 %s138, 1
      %p142 = scmp.eq.s32.totalorder %s20, 1
      %p143 = scmp.ne.s32.totalorder %s138, %s140
      %p144 = scmp.eq.s32.totalorder %s20, 0
      %p145 = por %p143, %p144
      %p146 = scmp.ne.s32.totalorder %s138, %s140
      %p147 = scmp.eq.s32.totalorder %s25, 1
      %p148 = por %p146, %p147
      %p149 = scmp.ne.s32.totalorder %s140, %s141
      %p150 = scmp.eq.s32.totalorder %s25, 0
      %p151 = por %p149, %p150
      %p152 = scmp.ne.s32.totalorder %s140, %s141
      %p153 = scmp.eq.s32.totalorder %s26, 1
      %p154 = por %p152, %p153
      %p156 = scmp.ne.s32.totalorder %s141, %s155
      %p157 = scmp.eq.s32.totalorder %s26, 0
      %p158 = por %p156, %p157
      %s160 = sadd.s32 %s159, 1
      %p163 = scmp.eq.s32.totalorder %s20, 1
      %p164 = scmp.ne.s32.totalorder %s159, %s161
      %p165 = scmp.eq.s32.totalorder %s20, 0
      %p166 = por %p164, %p165
      %p167 = scmp.ne.s32.totalorder %s159, %s161
      %p168 = scmp.eq.s32.totalorder %s25, 1
      %p169 = por %p167, %p168
      %p170 = scmp.ne.s32.totalorder %s161, %s162
      %p171 = scmp.eq.s32.totalorder %s25, 0
      %p172 = por %p170, %p171
      %p173 = scmp.ne.s32.totalorder %s161, %s162
      %p174 = scmp.eq.s32.totalorder %s26, 1
      %p175 = por %p173, %p174
      %p177 = scmp.ne.s32.totalorder %s162, %s176
      %p178 = scmp.eq.s32.totalorder %s26, 0
      %p179 = por %p177, %p178
      %s181 = sadd.s32 %s180, 1
      %p184 = scmp.eq.s32.totalorder %s20, 1
      %p185 = scmp.ne.s32.totalorder %s180, %s182
      %p186 = scmp.eq.s32.totalorder %s20, 0
      %p187 = por %p185, %p186
      %p188 = scmp.ne.s32.totalorder %s180, %s182
      %p189 = scmp.eq.s32.totalorder %s25, 1
      %p190 = por %p188, %p189
      %p191 = scmp.ne.s32.totalorder %s182, %s183
      %p192 = scmp.eq.s32.totalorder %s25, 0
      %p193 = por %p191, %p192
      %p194 = scmp.ne.s32.totalorder %s182, %s183
      %p195 = scmp.eq.s32.totalorder %s26, 1
      %p196 = por %p194, %p195
      %p198 = scmp.ne.s32.totalorder %s183, %s197
      %p199 = scmp.eq.s32.totalorder %s26, 0
      %p200 = por %p198, %p199
      %s202 = sadd.s32 %s201, 1
      %p205 = scmp.eq.s32.totalorder %s20, 1
      %p206 = scmp.ne.s32.totalorder %s201, %s203
      %p207 = scmp.eq.s32.totalorder %s20, 0
      %p208 = por %p206, %p207
      %p209 = scmp.ne.s32.totalorder %s201, %s203
      %p210 = scmp.eq.s32.totalorder %s25, 1
      %p211 = por %p209, %p210
      %p212 = scmp.ne.s32.totalorder %s203, %s204
      %p213 = scmp.eq.s32.totalorder %s25, 0
      %p214 = por %p212, %p213
      %p215 = scmp.ne.s32.totalorder %s203, %s204
      %p216 = scmp.eq.s32.totalorder %s26, 1
      %p217 = por %p215, %p216
      %p219 = scmp.ne.s32.totalorder %s204, %s218
      %p220 = scmp.eq.s32.totalorder %s26, 0
      %p221 = por %p219, %p220
      %s222 = ssub.s32 %s20, %s27
      %p223 = scmp.eq.s32.totalorder %s222, 0
      %s225 = sadd.s32 %s224, 1
      %s226 = scalar_select %p223, %s224, %s225
      %p229 = pneg %p223
      %p230 = scmp.eq.s32.totalorder %s20, 1
      %p231 = por %p229, %p230
      %p232 = scmp.ne.s32.totalorder %s224, %s227
      %p233 = scmp.eq.s32.totalorder %s20, 0
      %p234 = por %p232, %p233
      %p235 = scmp.ne.s32.totalorder %s224, %s227
      %p236 = scmp.eq.s32.totalorder %s25, 1
      %p237 = por %p235, %p236
      %p238 = scmp.ne.s32.totalorder %s227, %s228
      %p239 = scmp.eq.s32.totalorder %s25, 0
      %p240 = por %p238, %p239
      %p241 = scmp.ne.s32.totalorder %s227, %s228
      %p242 = scmp.eq.s32.totalorder %s26, 1
      %p243 = por %p241, %p242
      %p245 = scmp.ne.s32.totalorder %s228, %s244
      %p246 = scmp.eq.s32.totalorder %s26, 0
      %p247 = por %p245, %p246
      %p248 = scmp.le.s32.totalorder 1, %s20
      %p249 = scmp.lt.s32.totalorder %s20, 3
      %p250 = pnand %p248, %p249
      %p251 = pneg %p250
      // Predicated region
      $region9: #{tpu_custom_call.1} parent=5 // pred_check
        _
      $region10: #{tpu_custom_call.1} parent=5 // pred_check_branch
        %253 = sbr.rel (%p250) target = $region12
      $region11: #{tpu_custom_call.1} parent=5 // pred_region
        %s254 = ssub.s32 %s20, 1
        // Predicated region
        $region13: #{tpu_custom_call.1} parent=11 // pred_check
          %p255 = pneg %p67
        $region14: #{tpu_custom_call.1} parent=11 // pred_check_branch
          %257 = sbr.rel (%p255) target = $region16
        $region15: #{tpu_custom_call.1} parent=11 // pred_region
          _
        $region16: #{tpu_custom_call.1} parent=11 // pred_fallthru
          _
        // Predicated region
        $region17: #{tpu_custom_call.1} parent=11 // pred_check
          %p258 = pneg %p88
        $region18: #{tpu_custom_call.1} parent=11 // pred_check_branch
          %260 = sbr.rel (%p258) target = $region20
        $region19: #{tpu_custom_call.1} parent=11 // pred_region
          _
        $region20: #{tpu_custom_call.1} parent=11 // pred_fallthru
          _
        // Predicated region
        $region21: #{tpu_custom_call.1} parent=11 // pred_check
          %p261 = pneg %p109
        $region22: #{tpu_custom_call.1} parent=11 // pred_check_branch
          %263 = sbr.rel (%p261) target = $region24
        $region23: #{tpu_custom_call.1} parent=11 // pred_region
          _
        $region24: #{tpu_custom_call.1} parent=11 // pred_fallthru
          _
        // Predicated region
        $region25: #{tpu_custom_call.1} parent=11 // pred_check
          %p264 = pneg %p130
        $region26: #{tpu_custom_call.1} parent=11 // pred_check_branch
          %266 = sbr.rel (%p264) target = $region28
        $region27: #{tpu_custom_call.1} parent=11 // pred_region
          _
        $region28: #{tpu_custom_call.1} parent=11 // pred_fallthru
          _
        // Predicated region
        $region29: #{tpu_custom_call.1} parent=11 // pred_check
          %p267 = pneg %p151
        $region30: #{tpu_custom_call.1} parent=11 // pred_check_branch
          %269 = sbr.rel (%p267) target = $region32
        $region31: #{tpu_custom_call.1} parent=11 // pred_region
          _
        $region32: #{tpu_custom_call.1} parent=11 // pred_fallthru
          _
        // Predicated region
        $region33: #{tpu_custom_call.1} parent=11 // pred_check
          %p270 = pneg %p172
        $region34: #{tpu_custom_call.1} parent=11 // pred_check_branch
          %272 = sbr.rel (%p270) target = $region36
        $region35: #{tpu_custom_call.1} parent=11 // pred_region
          _
        $region36: #{tpu_custom_call.1} parent=11 // pred_fallthru
          _
        // Predicated region
        $region37: #{tpu_custom_call.1} parent=11 // pred_check
          %p273 = pneg %p193
        $region38: #{tpu_custom_call.1} parent=11 // pred_check_branch
          %275 = sbr.rel (%p273) target = $region40
        $region39: #{tpu_custom_call.1} parent=11 // pred_region
          _
        $region40: #{tpu_custom_call.1} parent=11 // pred_fallthru
          _
        // Predicated region
        $region41: #{tpu_custom_call.1} parent=11 // pred_check
          %p276 = pneg %p214
        $region42: #{tpu_custom_call.1} parent=11 // pred_check_branch
          %278 = sbr.rel (%p276) target = $region44
        $region43: #{tpu_custom_call.1} parent=11 // pred_region
          _
        $region44: #{tpu_custom_call.1} parent=11 // pred_fallthru
          _
      $region12: #{tpu_custom_call.1} parent=5 // pred_fallthru
        _
      %p279 = scmp.lt.s32.totalorder %s20, 2
      // Predicated region
      $region45: #{tpu_custom_call.1} parent=5 // pred_check
        %p280 = pneg %p279
      $region46: #{tpu_custom_call.1} parent=5 // pred_check_branch
        %282 = sbr.rel (%p280) target = $region48
      $region47: #{tpu_custom_call.1} parent=5 // pred_region
        // Predicated region
        $region49: #{tpu_custom_call.1} parent=47 // pred_check
          %p283 = pneg %p40
        $region50: #{tpu_custom_call.1} parent=47 // pred_check_branch
          %285 = sbr.rel (%p283) target = $region52
        $region51: #{tpu_custom_call.1} parent=47 // pred_region
          %p286 = scmp.lt.s32.totalorder %s20, 1
          %s287 = scalar_select %p286, %s20, 1
          %s288 = smul.addr %s287, 32
          %s289 = smul.addr %s288, 8
          %s290 = scalar_lea.vmem %s0, %s289
        $region52: #{tpu_custom_call.1} parent=47 // pred_fallthru
          _
      $region48: #{tpu_custom_call.1} parent=5 // pred_fallthru
        _
      %p291 = scmp.le.s32.totalorder 1, %s20
      %p292 = scmp.lt.s32.totalorder %s20, 3
      %p293 = pnand %p291, %p292
      %p294 = pneg %p293
      // Predicated region
      $region53: #{tpu_custom_call.1} parent=5 // pred_check
        _
      $region54: #{tpu_custom_call.1} parent=5 // pred_check_branch
        %296 = sbr.rel (%p293) target = $region56
      $region55: #{tpu_custom_call.1} parent=5 // pred_region
        %s297 = ssub.s32 %s20, 1
        %p298 = scmp.lt.s32.totalorder %s25, 1
        %s299 = scalar_select %p298, %s25, 1
        %s300 = smul.addr %s299, 32
        %s301 = smul.addr %s300, 8
        %s302 = scalar_lea.vmem %s0, %s301
        %p303 = pneg %p46
        %p304 = pneg %p43
        %p305 = pneg %p67
        %p306 = pneg %p64
        %p307 = pneg %p88
        %p308 = pneg %p85
        %p309 = pneg %p109
        %p310 = pneg %p106
        %p311 = pneg %p130
        %p312 = pneg %p127
        %p313 = pneg %p151
        %p314 = pneg %p148
        %p315 = pneg %p172
        %p316 = pneg %p169
        %p317 = pneg %p193
        %p318 = pneg %p190
        %p319 = pneg %p214
        %p320 = pneg %p211
        %p321 = pneg %p240
        %p322 = pneg %p237
        %s323 = sand.u32 %s227, 1
        %s324 = scalar_lea.sflag [#allocation7], %s323
        %s325 = sand.u32 %s227, 1
        %s326 = smul.addr %s325, 16
        %s327 = scalar_lea.vmem [#allocation6], %s326
        %p328 = scmp.lt.s32.totalorder %s25, 1
        %s329 = scalar_select %p328, %s25, 1
        %s330 = smul.addr %s329, 32
        %s331 = smul.addr %s330, 8
        %s332 = scalar_lea.vmem %s0, %s331
        %vm333 = vcmask 72704
        %334 = vst.msk [vmem:[#allocation2] sm:$0xff] %vm333, 0.0
        %335 = vst.msk [vmem:[#allocation2 + $0x8] sm:$0xff] %vm333, 0.0
        %vm336 = vcmask 66560
        %337 = vst.msk [vmem:[#allocation2 + $0x10] sm:$0x3] %vm336, 0.0
        %338 = vst.msk [vmem:[#allocation2 + $0x18] sm:$0xff] %vm333, 0.0
        %339 = vst.msk [vmem:[#allocation2 + $0x20] sm:$0xff] %vm333, 0.0
        %340 = vst.msk [vmem:[#allocation2 + $0x28] sm:$0x3] %vm336, 0.0
        %341 = vst.msk [vmem:[#allocation2 + $0x30] sm:$0xff] %vm333, 0.0
        %342 = vst.msk [vmem:[#allocation2 + $0x38] sm:$0xff] %vm333, 0.0
        %343 = vst.msk [vmem:[#allocation2 + $0x40] sm:$0x3] %vm336, 0.0
        %344 = vst.msk [vmem:[#allocation2 + $0x48] sm:$0xff] %vm333, 0.0
        %345 = vst.msk [vmem:[#allocation2 + $0x50] sm:$0xff] %vm333, 0.0
        %346 = vst.msk [vmem:[#allocation2 + $0x58] sm:$0x3] %vm336, 0.0
        %347 = vst.msk [vmem:[#allocation2 + $0x60] sm:$0xff] %vm333, 0.0
        %348 = vst.msk [vmem:[#allocation2 + $0x68] sm:$0xff] %vm333, 0.0
        %349 = vst.msk [vmem:[#allocation2 + $0x70] sm:$0x3] %vm336, 0.0
        %350 = vst.msk [vmem:[#allocation2 + $0x78] sm:$0xff] %vm333, 0.0
        %351 = vst.msk [vmem:[#allocation2 + $0x80] sm:$0xff] %vm333, 0.0
        %352 = vst.msk [vmem:[#allocation2 + $0x88] sm:$0x3] %vm336, 0.0
        %353 = vst.msk [vmem:[#allocation2 + $0x90] sm:$0xff] %vm333, 0.0
        %354 = vst.msk [vmem:[#allocation2 + $0x98] sm:$0xff] %vm333, 0.0
        %355 = vst.msk [vmem:[#allocation2 + $0xa0] sm:$0x3] %vm336, 0.0
        %356 = vst.msk [vmem:[#allocation2 + $0xa8] sm:$0xff] %vm333, 0.0
        %357 = vst.msk [vmem:[#allocation2 + $0xb0] sm:$0xff] %vm333, 0.0
        %358 = vst.msk [vmem:[#allocation2 + $0xb8] sm:$0x3] %vm336, 0.0
        %359 = vst.msk [vmem:[#allocation2 + $0xc0] sm:$0xff] %vm333, 0.0
        %360 = vst.msk [vmem:[#allocation2 + $0xc8] sm:$0xff] %vm333, 0.0
        %361 = vst.msk [vmem:[#allocation2 + $0xd0] sm:$0x3] %vm336, 0.0
        %362 = vst.msk [vmem:[#allocation2 + $0xd8] sm:$0xff] %vm333, 0.0
        %363 = vst.msk [vmem:[#allocation2 + $0xe0] sm:$0xff] %vm333, 0.0
        %364 = vst.msk [vmem:[#allocation2 + $0xe8] sm:$0x3] %vm336, 0.0
        %365 = vst.msk [vmem:[#allocation2 + $0xf0] sm:$0xff] %vm333, 0.0
        %366 = vst.msk [vmem:[#allocation2 + $0xf8] sm:$0xff] %vm333, 0.0
        %367 = vst.msk [vmem:[#allocation2 + $0x100] sm:$0x3] %vm336, 0.0
        %368 = vst.msk [vmem:[#allocation2 + $0x108] sm:$0xff] %vm333, 0.0
        %369 = vst.msk [vmem:[#allocation2 + $0x110] sm:$0xff] %vm333, 0.0
        %370 = vst.msk [vmem:[#allocation2 + $0x118] sm:$0x3] %vm336, 0.0
        %371 = vst.msk [vmem:[#allocation2 + $0x120] sm:$0xff] %vm333, 0.0
        %372 = vst.msk [vmem:[#allocation2 + $0x128] sm:$0xff] %vm333, 0.0
        %373 = vst.msk [vmem:[#allocation2 + $0x130] sm:$0x3] %vm336, 0.0
        %374 = vst.msk [vmem:[#allocation2 + $0x138] sm:$0xff] %vm333, 0.0
        %375 = vst.msk [vmem:[#allocation2 + $0x140] sm:$0xff] %vm333, 0.0
        %376 = vst.msk [vmem:[#allocation2 + $0x148] sm:$0x3] %vm336, 0.0
        %377 = vst.msk [vmem:[#allocation2 + $0x150] sm:$0xff] %vm333, 0.0
        %378 = vst.msk [vmem:[#allocation2 + $0x158] sm:$0xff] %vm333, 0.0
        %379 = vst.msk [vmem:[#allocation2 + $0x160] sm:$0x3] %vm336, 0.0
        %380 = vst.msk [vmem:[#allocation2 + $0x168] sm:$0xff] %vm333, 0.0
        %381 = vst.msk [vmem:[#allocation2 + $0x170] sm:$0xff] %vm333, 0.0
        %382 = vst.msk [vmem:[#allocation2 + $0x178] sm:$0x3] %vm336, 0.0
        %383 = vst.msk [vmem:[#allocation2 + $0x180] sm:$0xff] %vm333, 0.0
        %384 = vst.msk [vmem:[#allocation2 + $0x188] sm:$0xff] %vm333, 0.0
        %385 = vst.msk [vmem:[#allocation2 + $0x190] sm:$0x3] %vm336, 0.0
        %386 = vst.msk [vmem:[#allocation2 + $0x198] sm:$0xff] %vm333, 0.0
        %387 = vst.msk [vmem:[#allocation2 + $0x1a0] sm:$0xff] %vm333, 0.0
        %388 = vst.msk [vmem:[#allocation2 + $0x1a8] sm:$0x3] %vm336, 0.0
        %vm389 = vcmask 523264
        %390 = vst.msk [vmem:[#allocation3] sm:$0xff] %vm389, 0.0
        %391 = vst.msk [vmem:[#allocation3 + $0x8] sm:$0xff] %vm389, 0.0
        %vm392 = vcmask 517120
        %393 = vst.msk [vmem:[#allocation3 + $0x10] sm:$0x3] %vm392, 0.0
        %394 = vst.msk [vmem:[#allocation3 + $0x18] sm:$0xff] %vm389, 0.0
        %395 = vst.msk [vmem:[#allocation3 + $0x20] sm:$0xff] %vm389, 0.0
        %396 = vst.msk [vmem:[#allocation3 + $0x28] sm:$0x3] %vm392, 0.0
        %397 = vst.msk [vmem:[#allocation3 + $0x30] sm:$0xff] %vm389, 0.0
        %398 = vst.msk [vmem:[#allocation3 + $0x38] sm:$0xff] %vm389, 0.0
        %399 = vst.msk [vmem:[#allocation3 + $0x40] sm:$0x3] %vm392, 0.0
        %400 = vst.msk [vmem:[#allocation3 + $0x48] sm:$0xff] %vm389, 0.0
        %401 = vst.msk [vmem:[#allocation3 + $0x50] sm:$0xff] %vm389, 0.0
        %402 = vst.msk [vmem:[#allocation3 + $0x58] sm:$0x3] %vm392, 0.0
        %403 = vst.msk [vmem:[#allocation3 + $0x60] sm:$0xff] %vm389, 0.0
        %404 = vst.msk [vmem:[#allocation3 + $0x68] sm:$0xff] %vm389, 0.0
        %405 = vst.msk [vmem:[#allocation3 + $0x70] sm:$0x3] %vm392, 0.0
        %406 = vst.msk [vmem:[#allocation3 + $0x78] sm:$0xff] %vm389, 0.0
        %407 = vst.msk [vmem:[#allocation3 + $0x80] sm:$0xff] %vm389, 0.0
        %408 = vst.msk [vmem:[#allocation3 + $0x88] sm:$0x3] %vm392, 0.0
        %409 = vst.msk [vmem:[#allocation3 + $0x90] sm:$0xff] %vm389, 0.0
        %410 = vst.msk [vmem:[#allocation3 + $0x98] sm:$0xff] %vm389, 0.0
        %411 = vst.msk [vmem:[#allocation3 + $0xa0] sm:$0x3] %vm392, 0.0
        %412 = vst.msk [vmem:[#allocation3 + $0xa8] sm:$0xff] %vm389, 0.0
        %413 = vst.msk [vmem:[#allocation3 + $0xb0] sm:$0xff] %vm389, 0.0
        %414 = vst.msk [vmem:[#allocation3 + $0xb8] sm:$0x3] %vm392, 0.0
        %415 = vst.msk [vmem:[#allocation3 + $0xc0] sm:$0xff] %vm389, 0.0
        %416 = vst.msk [vmem:[#allocation3 + $0xc8] sm:$0xff] %vm389, 0.0
        %417 = vst.msk [vmem:[#allocation3 + $0xd0] sm:$0x3] %vm392, 0.0
        %418 = vst.msk [vmem:[#allocation3 + $0xd8] sm:$0xff] %vm389, 0.0
        %419 = vst.msk [vmem:[#allocation3 + $0xe0] sm:$0xff] %vm389, 0.0
        %420 = vst.msk [vmem:[#allocation3 + $0xe8] sm:$0x3] %vm392, 0.0
        %421 = vst.msk [vmem:[#allocation3 + $0xf0] sm:$0xff] %vm389, 0.0
        %422 = vst.msk [vmem:[#allocation3 + $0xf8] sm:$0xff] %vm389, 0.0
        %423 = vst.msk [vmem:[#allocation3 + $0x100] sm:$0x3] %vm392, 0.0
        %424 = vst.msk [vmem:[#allocation3 + $0x108] sm:$0xff] %vm389, 0.0
        %425 = vst.msk [vmem:[#allocation3 + $0x110] sm:$0xff] %vm389, 0.0
        %426 = vst.msk [vmem:[#allocation3 + $0x118] sm:$0x3] %vm392, 0.0
        %427 = vst.msk [vmem:[#allocation3 + $0x120] sm:$0xff] %vm389, 0.0
        %428 = vst.msk [vmem:[#allocation3 + $0x128] sm:$0xff] %vm389, 0.0
        %429 = vst.msk [vmem:[#allocation3 + $0x130] sm:$0x3] %vm392, 0.0
        %430 = vst.msk [vmem:[#allocation3 + $0x138] sm:$0xff] %vm389, 0.0
        %431 = vst.msk [vmem:[#allocation3 + $0x140] sm:$0xff] %vm389, 0.0
        %432 = vst.msk [vmem:[#allocation3 + $0x148] sm:$0x3] %vm392, 0.0
        %433 = vst.msk [vmem:[#allocation3 + $0x150] sm:$0xff] %vm389, 0.0
        %434 = vst.msk [vmem:[#allocation3 + $0x158] sm:$0xff] %vm389, 0.0
        %435 = vst.msk [vmem:[#allocation3 + $0x160] sm:$0x3] %vm392, 0.0
        %436 = vst.msk [vmem:[#allocation3 + $0x168] sm:$0xff] %vm389, 0.0
        %437 = vst.msk [vmem:[#allocation3 + $0x170] sm:$0xff] %vm389, 0.0
        %438 = vst.msk [vmem:[#allocation3 + $0x178] sm:$0x3] %vm392, 0.0
        %439 = vst.msk [vmem:[#allocation3 + $0x180] sm:$0xff] %vm389, 0.0
        %440 = vst.msk [vmem:[#allocation3 + $0x188] sm:$0xff] %vm389, 0.0
        %441 = vst.msk [vmem:[#allocation3 + $0x190] sm:$0x3] %vm392, 0.0
        %442 = vst.msk [vmem:[#allocation3 + $0x198] sm:$0xff] %vm389, 0.0
        %443 = vst.msk [vmem:[#allocation3 + $0x1a0] sm:$0xff] %vm389, 0.0
        %444 = vst.msk [vmem:[#allocation3 + $0x1a8] sm:$0x3] %vm392, 0.0
        %445 = vst.msk [vmem:[#allocation4] sm:$0xff] %vm389, 0.0
        %446 = vst.msk [vmem:[#allocation4 + $0x8] sm:$0xff] %vm389, 0.0
        %447 = vst.msk [vmem:[#allocation4 + $0x10] sm:$0x3] %vm392, 0.0
        %448 = vst.msk [vmem:[#allocation4 + $0x18] sm:$0xff] %vm389, 0.0
        %449 = vst.msk [vmem:[#allocation4 + $0x20] sm:$0xff] %vm389, 0.0
        %450 = vst.msk [vmem:[#allocation4 + $0x28] sm:$0x3] %vm392, 0.0
        %451 = vst.msk [vmem:[#allocation4 + $0x30] sm:$0xff] %vm389, 0.0
        %452 = vst.msk [vmem:[#allocation4 + $0x38] sm:$0xff] %vm389, 0.0
        %453 = vst.msk [vmem:[#allocation4 + $0x40] sm:$0x3] %vm392, 0.0
        %454 = vst.msk [vmem:[#allocation4 + $0x48] sm:$0xff] %vm389, 0.0
        %455 = vst.msk [vmem:[#allocation4 + $0x50] sm:$0xff] %vm389, 0.0
        %456 = vst.msk [vmem:[#allocation4 + $0x58] sm:$0x3] %vm392, 0.0
        %457 = vst.msk [vmem:[#allocation4 + $0x60] sm:$0xff] %vm389, 0.0
        %458 = vst.msk [vmem:[#allocation4 + $0x68] sm:$0xff] %vm389, 0.0
        %459 = vst.msk [vmem:[#allocation4 + $0x70] sm:$0x3] %vm392, 0.0
        %460 = vst.msk [vmem:[#allocation4 + $0x78] sm:$0xff] %vm389, 0.0
        %461 = vst.msk [vmem:[#allocation4 + $0x80] sm:$0xff] %vm389, 0.0
        %462 = vst.msk [vmem:[#allocation4 + $0x88] sm:$0x3] %vm392, 0.0
        %463 = vst.msk [vmem:[#allocation4 + $0x90] sm:$0xff] %vm389, 0.0
        %464 = vst.msk [vmem:[#allocation4 + $0x98] sm:$0xff] %vm389, 0.0
        %465 = vst.msk [vmem:[#allocation4 + $0xa0] sm:$0x3] %vm392, 0.0
        %466 = vst.msk [vmem:[#allocation4 + $0xa8] sm:$0xff] %vm389, 0.0
        %467 = vst.msk [vmem:[#allocation4 + $0xb0] sm:$0xff] %vm389, 0.0
        %468 = vst.msk [vmem:[#allocation4 + $0xb8] sm:$0x3] %vm392, 0.0
        %469 = vst.msk [vmem:[#allocation4 + $0xc0] sm:$0xff] %vm389, 0.0
        %470 = vst.msk [vmem:[#allocation4 + $0xc8] sm:$0xff] %vm389, 0.0
        %471 = vst.msk [vmem:[#allocation4 + $0xd0] sm:$0x3] %vm392, 0.0
        %472 = vst.msk [vmem:[#allocation4 + $0xd8] sm:$0xff] %vm389, 0.0
        %473 = vst.msk [vmem:[#allocation4 + $0xe0] sm:$0xff] %vm389, 0.0
        %474 = vst.msk [vmem:[#allocation4 + $0xe8] sm:$0x3] %vm392, 0.0
        %475 = vst.msk [vmem:[#allocation4 + $0xf0] sm:$0xff] %vm389, 0.0
        %476 = vst.msk [vmem:[#allocation4 + $0xf8] sm:$0xff] %vm389, 0.0
        %477 = vst.msk [vmem:[#allocation4 + $0x100] sm:$0x3] %vm392, 0.0
        %478 = vst.msk [vmem:[#allocation4 + $0x108] sm:$0xff] %vm389, 0.0
        %479 = vst.msk [vmem:[#allocation4 + $0x110] sm:$0xff] %vm389, 0.0
        %480 = vst.msk [vmem:[#allocation4 + $0x118] sm:$0x3] %vm392, 0.0
        %481 = vst.msk [vmem:[#allocation4 + $0x120] sm:$0xff] %vm389, 0.0
        %482 = vst.msk [vmem:[#allocation4 + $0x128] sm:$0xff] %vm389, 0.0
        %483 = vst.msk [vmem:[#allocation4 + $0x130] sm:$0x3] %vm392, 0.0
        %484 = vst.msk [vmem:[#allocation4 + $0x138] sm:$0xff] %vm389, 0.0
        %485 = vst.msk [vmem:[#allocation4 + $0x140] sm:$0xff] %vm389, 0.0
        %486 = vst.msk [vmem:[#allocation4 + $0x148] sm:$0x3] %vm392, 0.0
        %487 = vst.msk [vmem:[#allocation4 + $0x150] sm:$0xff] %vm389, 0.0
        %488 = vst.msk [vmem:[#allocation4 + $0x158] sm:$0xff] %vm389, 0.0
        %489 = vst.msk [vmem:[#allocation4 + $0x160] sm:$0x3] %vm392, 0.0
        %490 = vst.msk [vmem:[#allocation4 + $0x168] sm:$0xff] %vm389, 0.0
        %491 = vst.msk [vmem:[#allocation4 + $0x170] sm:$0xff] %vm389, 0.0
        %492 = vst.msk [vmem:[#allocation4 + $0x178] sm:$0x3] %vm392, 0.0
        %493 = vst.msk [vmem:[#allocation4 + $0x180] sm:$0xff] %vm389, 0.0
        %494 = vst.msk [vmem:[#allocation4 + $0x188] sm:$0xff] %vm389, 0.0
        %495 = vst.msk [vmem:[#allocation4 + $0x190] sm:$0x3] %vm392, 0.0
        %496 = vst.msk [vmem:[#allocation4 + $0x198] sm:$0xff] %vm389, 0.0
        %497 = vst.msk [vmem:[#allocation4 + $0x1a0] sm:$0xff] %vm389, 0.0
        %498 = vst.msk [vmem:[#allocation4 + $0x1a8] sm:$0x3] %vm392, 0.0
        %v499 = vld [vmem:[%s332] sm:$0xff]
        %v500 = vld [vmem:[%s332 + $0x8] sm:$0xff]
        %v501 = vld [vmem:[%s332 + $0x10] sm:$0xff]
        %v502 = vld [vmem:[%s332 + $0x18] sm:$0xff]
        %v503 = vld [vmem:[%s332 + $0x20] sm:$0xff]
        %v504 = vld [vmem:[%s332 + $0x28] sm:$0xff]
        %v505 = vld [vmem:[%s332 + $0x30] sm:$0xff]
        %v506 = vld [vmem:[%s332 + $0x38] sm:$0xff]
        %v507 = vld [vmem:[%s332 + $0x40] sm:$0xff]
        %v508 = vld [vmem:[%s332 + $0x48] sm:$0xff]
        %v509 = vld [vmem:[%s332 + $0x50] sm:$0xff]
        %v510 = vld [vmem:[%s332 + $0x58] sm:$0xff]
        %v511 = vld [vmem:[%s332 + $0x60] sm:$0xff]
        %v512 = vld [vmem:[%s332 + $0x68] sm:$0xff]
        %v513 = vld [vmem:[%s332 + $0x70] sm:$0xff]
        %v514 = vld [vmem:[%s332 + $0x78] sm:$0xff]
        %v515 = vld [vmem:[%s332 + $0x80] sm:$0xff]
        %v516 = vld [vmem:[%s332 + $0x88] sm:$0xff]
        %v517 = vld [vmem:[%s332 + $0x90] sm:$0xff]
        %v518 = vld [vmem:[%s332 + $0x98] sm:$0xff]
        %v519 = vld [vmem:[%s332 + $0xa0] sm:$0xff]
        %v520 = vld [vmem:[%s332 + $0xa8] sm:$0xff]
        %v521 = vld [vmem:[%s332 + $0xb0] sm:$0xff]
        %v522 = vld [vmem:[%s332 + $0xb8] sm:$0xff]
        %v523 = vld [vmem:[%s332 + $0xc0] sm:$0xff]
        %v524 = vld [vmem:[%s332 + $0xc8] sm:$0xff]
        %v525 = vld [vmem:[%s332 + $0xd0] sm:$0xff]
        %v526 = vld [vmem:[%s332 + $0xd8] sm:$0xff]
        %v527 = vld [vmem:[%s332 + $0xe0] sm:$0xff]
        %v528 = vld [vmem:[%s332 + $0xe8] sm:$0xff]
        %v529 = vld [vmem:[%s332 + $0xf0] sm:$0xff]
        %v530 = vld [vmem:[%s332 + $0xf8] sm:$0xff]
        %s531 = scalar_lea.vmem [#allocation2], 24
        %532 = vst.msk [vmem:[%s531 + $0x1] sm:$0xff] %vm333, %v499
        %533 = vst.msk [vmem:[%s531 + $0x9] sm:$0xff] %vm333, %v500
        %534 = vst.msk [vmem:[%s531 + $0x19] sm:$0xff] %vm333, %v501
        %535 = vst.msk [vmem:[%s531 + $0x21] sm:$0xff] %vm333, %v502
        %536 = vst.msk [vmem:[%s531 + $0x31] sm:$0xff] %vm333, %v503
        %537 = vst.msk [vmem:[%s531 + $0x39] sm:$0xff] %vm333, %v504
        %538 = vst.msk [vmem:[%s531 + $0x49] sm:$0xff] %vm333, %v505
        %539 = vst.msk [vmem:[%s531 + $0x51] sm:$0xff] %vm333, %v506
        %540 = vst.msk [vmem:[%s531 + $0x61] sm:$0xff] %vm333, %v507
        %541 = vst.msk [vmem:[%s531 + $0x69] sm:$0xff] %vm333, %v508
        %542 = vst.msk [vmem:[%s531 + $0x79] sm:$0xff] %vm333, %v509
        %543 = vst.msk [vmem:[%s531 + $0x81] sm:$0xff] %vm333, %v510
        %544 = vst.msk [vmem:[%s531 + $0x91] sm:$0xff] %vm333, %v511
        %545 = vst.msk [vmem:[%s531 + $0x99] sm:$0xff] %vm333, %v512
        %546 = vst.msk [vmem:[%s531 + $0xa9] sm:$0xff] %vm333, %v513
        %547 = vst.msk [vmem:[%s531 + $0xb1] sm:$0xff] %vm333, %v514
        %548 = vst.msk [vmem:[%s531 + $0xc1] sm:$0xff] %vm333, %v515
        %549 = vst.msk [vmem:[%s531 + $0xc9] sm:$0xff] %vm333, %v516
        %550 = vst.msk [vmem:[%s531 + $0xd9] sm:$0xff] %vm333, %v517
        %551 = vst.msk [vmem:[%s531 + $0xe1] sm:$0xff] %vm333, %v518
        %552 = vst.msk [vmem:[%s531 + $0xf1] sm:$0xff] %vm333, %v519
        %553 = vst.msk [vmem:[%s531 + $0xf9] sm:$0xff] %vm333, %v520
        %554 = vst.msk [vmem:[%s531 + $0x109] sm:$0xff] %vm333, %v521
        %555 = vst.msk [vmem:[%s531 + $0x111] sm:$0xff] %vm333, %v522
        %556 = vst.msk [vmem:[%s531 + $0x121] sm:$0xff] %vm333, %v523
        %557 = vst.msk [vmem:[%s531 + $0x129] sm:$0xff] %vm333, %v524
        %558 = vst.msk [vmem:[%s531 + $0x139] sm:$0xff] %vm333, %v525
        %559 = vst.msk [vmem:[%s531 + $0x141] sm:$0xff] %vm333, %v526
        %560 = vst.msk [vmem:[%s531 + $0x151] sm:$0xff] %vm333, %v527
        %561 = vst.msk [vmem:[%s531 + $0x159] sm:$0xff] %vm333, %v528
        %562 = vst.msk [vmem:[%s531 + $0x169] sm:$0xff] %vm333, %v529
        %563 = vst.msk [vmem:[%s531 + $0x171] sm:$0xff] %vm333, %v530
        %v564 = vld [vmem:[%s1] sm:$0xff]
        %v565 = vld [vmem:[%s1 + $0x8] sm:$0xff]
        %v566 = vld [vmem:[%s1 + $0x10] sm:$0xff]
        %v567 = vld [vmem:[%s1 + $0x18] sm:$0xff]
        %v568 = vld [vmem:[%s1 + $0x20] sm:$0xff]
        %v569 = vld [vmem:[%s1 + $0x28] sm:$0xff]
        %v570 = vld [vmem:[%s1 + $0x30] sm:$0xff]
        %v571 = vld [vmem:[%s1 + $0x38] sm:$0xff]
        %v572 = vld [vmem:[%s1 + $0x40] sm:$0xff]
        %v573 = vld [vmem:[%s1 + $0x48] sm:$0xff]
        %v574 = vld [vmem:[%s1 + $0x50] sm:$0x1]
        %v575 = vld [vmem:[%s2] sm:$0x1]
        %v576 = vld [vmem:[#allocation2] sm:$0xff]
        %v577 = vld [vmem:[#allocation2 + $0x8] sm:$0xff]
        %v578 = vld [vmem:[#allocation2 + $0x18] sm:$0xff]
        %v579 = vld [vmem:[#allocation2 + $0x20] sm:$0xff]
        %v580 = vld [vmem:[#allocation2 + $0x30] sm:$0xff]
        %v581 = vld [vmem:[#allocation2 + $0x38] sm:$0xff]
        %v582 = vld [vmem:[#allocation2 + $0x48] sm:$0xff]
        %v583 = vld [vmem:[#allocation2 + $0x50] sm:$0xff]
        %v584 = vld [vmem:[#allocation2 + $0x60] sm:$0xff]
        %v585 = vld [vmem:[#allocation2 + $0x68] sm:$0xff]
        %v586 = vld [vmem:[#allocation2 + $0x78] sm:$0xff]
        %v587 = vld [vmem:[#allocation2 + $0x80] sm:$0xff]
        %v588 = vld [vmem:[#allocation2 + $0x90] sm:$0xff]
        %v589 = vld [vmem:[#allocation2 + $0x98] sm:$0xff]
        %v590 = vld [vmem:[#allocation2 + $0xa8] sm:$0xff]
        %v591 = vld [vmem:[#allocation2 + $0xb0] sm:$0xff]
        %v592 = vld [vmem:[#allocation2 + $0xc0] sm:$0xff]
        %v593 = vld [vmem:[#allocation2 + $0xc8] sm:$0xff]
        %v594 = vld [vmem:[#allocation2 + $0xd8] sm:$0xff]
        %v595 = vld [vmem:[#allocation2 + $0xe0] sm:$0xff]
        %v596 = vld [vmem:[#allocation2 + $0xf0] sm:$0xff]
        %v597 = vld [vmem:[#allocation2 + $0xf8] sm:$0xff]
        %v598 = vld [vmem:[#allocation2 + $0x108] sm:$0xff]
        %v599 = vld [vmem:[#allocation2 + $0x110] sm:$0xff]
        %v600 = vld [vmem:[#allocation2 + $0x120] sm:$0xff]
        %v601 = vld [vmem:[#allocation2 + $0x128] sm:$0xff]
        %v602 = vld [vmem:[#allocation2 + $0x138] sm:$0xff]
        %v603 = vld [vmem:[#allocation2 + $0x140] sm:$0xff]
        %v604 = vld [vmem:[#allocation2 + $0x150] sm:$0xff]
        %v605 = vld [vmem:[#allocation2 + $0x158] sm:$0xff]
        %v606 = vld [vmem:[#allocation2 + $0x168] sm:$0xff]
        %v607 = vld [vmem:[#allocation2 + $0x170] sm:$0xff]
        %v608 = vld [vmem:[#allocation2 + $0x1] sm:$0xff]
        %v609 = vld [vmem:[#allocation2 + $0x9] sm:$0xff]
        %v610 = vld [vmem:[#allocation2 + $0x19] sm:$0xff]
        %v611 = vld [vmem:[#allocation2 + $0x21] sm:$0xff]
        %v612 = vld [vmem:[#allocation2 + $0x31] sm:$0xff]
        %v613 = vld [vmem:[#allocation2 + $0x39] sm:$0xff]
        %v614 = vld [vmem:[#allocation2 + $0x49] sm:$0xff]
        %v615 = vld [vmem:[#allocation2 + $0x51] sm:$0xff]
        %v616 = vld [vmem:[#allocation2 + $0x61] sm:$0xff]
        %v617 = vld [vmem:[#allocation2 + $0x69] sm:$0xff]
        %v618 = vld [vmem:[#allocation2 + $0x79] sm:$0xff]
        %v619 = vld [vmem:[#allocation2 + $0x81] sm:$0xff]
        %v620 = vld [vmem:[#allocation2 + $0x91] sm:$0xff]
        %v621 = vld [vmem:[#allocation2 + $0x99] sm:$0xff]
        %v622 = vld [vmem:[#allocation2 + $0xa9] sm:$0xff]
        %v623 = vld [vmem:[#allocation2 + $0xb1] sm:$0xff]
        %v624 = vld [vmem:[#allocation2 + $0xc1] sm:$0xff]
        %v625 = vld [vmem:[#allocation2 + $0xc9] sm:$0xff]
        %v626 = vld [vmem:[#allocation2 + $0xd9] sm:$0xff]
        %v627 = vld [vmem:[#allocation2 + $0xe1] sm:$0xff]
        %v628 = vld [vmem:[#allocation2 + $0xf1] sm:$0xff]
        %v629 = vld [vmem:[#allocation2 + $0xf9] sm:$0xff]
        %v630 = vld [vmem:[#allocation2 + $0x109] sm:$0xff]
        %v631 = vld [vmem:[#allocation2 + $0x111] sm:$0xff]
        %v632 = vld [vmem:[#allocation2 + $0x121] sm:$0xff]
        %v633 = vld [vmem:[#allocation2 + $0x129] sm:$0xff]
        %v634 = vld [vmem:[#allocation2 + $0x139] sm:$0xff]
        %v635 = vld [vmem:[#allocation2 + $0x141] sm:$0xff]
        %v636 = vld [vmem:[#allocation2 + $0x151] sm:$0xff]
        %v637 = vld [vmem:[#allocation2 + $0x159] sm:$0xff]
        %v638 = vld [vmem:[#allocation2 + $0x169] sm:$0xff]
        %v639 = vld [vmem:[#allocation2 + $0x171] sm:$0xff]
        %v640 = vld [vmem:[#allocation2 + $0x2] sm:$0xff]
        %v641 = vld [vmem:[#allocation2 + $0xa] sm:$0xff]
        %v642 = vld [vmem:[#allocation2 + $0x1a] sm:$0xff]
        %v643 = vld [vmem:[#allocation2 + $0x22] sm:$0xff]
        %v644 = vld [vmem:[#allocation2 + $0x32] sm:$0xff]
        %v645 = vld [vmem:[#allocation2 + $0x3a] sm:$0xff]
        %v646 = vld [vmem:[#allocation2 + $0x4a] sm:$0xff]
        %v647 = vld [vmem:[#allocation2 + $0x52] sm:$0xff]
        %v648 = vld [vmem:[#allocation2 + $0x62] sm:$0xff]
        %v649 = vld [vmem:[#allocation2 + $0x6a] sm:$0xff]
        %v650 = vld [vmem:[#allocation2 + $0x7a] sm:$0xff]
        %v651 = vld [vmem:[#allocation2 + $0x82] sm:$0xff]
        %v652 = vld [vmem:[#allocation2 + $0x92] sm:$0xff]
        %v653 = vld [vmem:[#allocation2 + $0x9a] sm:$0xff]
        %v654 = vld [vmem:[#allocation2 + $0xaa] sm:$0xff]
        %v655 = vld [vmem:[#allocation2 + $0xb2] sm:$0xff]
        %v656 = vld [vmem:[#allocation2 + $0xc2] sm:$0xff]
        %v657 = vld [vmem:[#allocation2 + $0xca] sm:$0xff]
        %v658 = vld [vmem:[#allocation2 + $0xda] sm:$0xff]
        %v659 = vld [vmem:[#allocation2 + $0xe2] sm:$0xff]
        %v660 = vld [vmem:[#allocation2 + $0xf2] sm:$0xff]
        %v661 = vld [vmem:[#allocation2 + $0xfa] sm:$0xff]
        %v662 = vld [vmem:[#allocation2 + $0x10a] sm:$0xff]
        %v663 = vld [vmem:[#allocation2 + $0x112] sm:$0xff]
        %v664 = vld [vmem:[#allocation2 + $0x122] sm:$0xff]
        %v665 = vld [vmem:[#allocation2 + $0x12a] sm:$0xff]
        %v666 = vld [vmem:[#allocation2 + $0x13a] sm:$0xff]
        %v667 = vld [vmem:[#allocation2 + $0x142] sm:$0xff]
        %v668 = vld [vmem:[#allocation2 + $0x152] sm:$0xff]
        %v669 = vld [vmem:[#allocation2 + $0x15a] sm:$0xff]
        %v670 = vld [vmem:[#allocation2 + $0x16a] sm:$0xff]
        %v671 = vld [vmem:[#allocation2 + $0x172] sm:$0xff]
        %v672 = vld [vmem:[%s531] sm:$0xff]
        %v673 = vld [vmem:[%s531 + $0x8] sm:$0xff]
        %v674 = vld [vmem:[%s531 + $0x18] sm:$0xff]
        %v675 = vld [vmem:[%s531 + $0x20] sm:$0xff]
        %v676 = vld [vmem:[%s531 + $0x30] sm:$0xff]
        %v677 = vld [vmem:[%s531 + $0x38] sm:$0xff]
        %v678 = vld [vmem:[%s531 + $0x48] sm:$0xff]
        %v679 = vld [vmem:[%s531 + $0x50] sm:$0xff]
        %v680 = vld [vmem:[%s531 + $0x60] sm:$0xff]
        %v681 = vld [vmem:[%s531 + $0x68] sm:$0xff]
        %v682 = vld [vmem:[%s531 + $0x78] sm:$0xff]
        %v683 = vld [vmem:[%s531 + $0x80] sm:$0xff]
        %v684 = vld [vmem:[%s531 + $0x90] sm:$0xff]
        %v685 = vld [vmem:[%s531 + $0x98] sm:$0xff]
        %v686 = vld [vmem:[%s531 + $0xa8] sm:$0xff]
        %v687 = vld [vmem:[%s531 + $0xb0] sm:$0xff]
        %v688 = vld [vmem:[%s531 + $0xc0] sm:$0xff]
        %v689 = vld [vmem:[%s531 + $0xc8] sm:$0xff]
        %v690 = vld [vmem:[%s531 + $0xd8] sm:$0xff]
        %v691 = vld [vmem:[%s531 + $0xe0] sm:$0xff]
        %v692 = vld [vmem:[%s531 + $0xf0] sm:$0xff]
        %v693 = vld [vmem:[%s531 + $0xf8] sm:$0xff]
        %v694 = vld [vmem:[%s531 + $0x108] sm:$0xff]
        %v695 = vld [vmem:[%s531 + $0x110] sm:$0xff]
        %v696 = vld [vmem:[%s531 + $0x120] sm:$0xff]
        %v697 = vld [vmem:[%s531 + $0x128] sm:$0xff]
        %v698 = vld [vmem:[%s531 + $0x138] sm:$0xff]
        %v699 = vld [vmem:[%s531 + $0x140] sm:$0xff]
        %v700 = vld [vmem:[%s531 + $0x150] sm:$0xff]
        %v701 = vld [vmem:[%s531 + $0x158] sm:$0xff]
        %v702 = vld [vmem:[%s531 + $0x168] sm:$0xff]
        %v703 = vld [vmem:[%s531 + $0x170] sm:$0xff]
        %v704 = vld [vmem:[%s531 + $0x1] sm:$0xff]
        %v705 = vld [vmem:[%s531 + $0x9] sm:$0xff]
        %v706 = vld [vmem:[%s531 + $0x19] sm:$0xff]
        %v707 = vld [vmem:[%s531 + $0x21] sm:$0xff]
        %v708 = vld [vmem:[%s531 + $0x31] sm:$0xff]
        %v709 = vld [vmem:[%s531 + $0x39] sm:$0xff]
        %v710 = vld [vmem:[%s531 + $0x49] sm:$0xff]
        %v711 = vld [vmem:[%s531 + $0x51] sm:$0xff]
        %v712 = vld [vmem:[%s531 + $0x61] sm:$0xff]
        %v713 = vld [vmem:[%s531 + $0x69] sm:$0xff]
        %v714 = vld [vmem:[%s531 + $0x79] sm:$0xff]
        %v715 = vld [vmem:[%s531 + $0x81] sm:$0xff]
        %v716 = vld [vmem:[%s531 + $0x91] sm:$0xff]
        %v717 = vld [vmem:[%s531 + $0x99] sm:$0xff]
        %v718 = vld [vmem:[%s531 + $0xa9] sm:$0xff]
        %v719 = vld [vmem:[%s531 + $0xb1] sm:$0xff]
        %v720 = vld [vmem:[%s531 + $0xc1] sm:$0xff]
        %v721 = vld [vmem:[%s531 + $0xc9] sm:$0xff]
        %v722 = vld [vmem:[%s531 + $0xd9] sm:$0xff]
        %v723 = vld [vmem:[%s531 + $0xe1] sm:$0xff]
        %v724 = vld [vmem:[%s531 + $0xf1] sm:$0xff]
        %v725 = vld [vmem:[%s531 + $0xf9] sm:$0xff]
        %v726 = vld [vmem:[%s531 + $0x109] sm:$0xff]
        %v727 = vld [vmem:[%s531 + $0x111] sm:$0xff]
        %v728 = vld [vmem:[%s531 + $0x121] sm:$0xff]
        %v729 = vld [vmem:[%s531 + $0x129] sm:$0xff]
        %v730 = vld [vmem:[%s531 + $0x139] sm:$0xff]
        %v731 = vld [vmem:[%s531 + $0x141] sm:$0xff]
        %v732 = vld [vmem:[%s531 + $0x151] sm:$0xff]
        %v733 = vld [vmem:[%s531 + $0x159] sm:$0xff]
        %v734 = vld [vmem:[%s531 + $0x169] sm:$0xff]
        %v735 = vld [vmem:[%s531 + $0x171] sm:$0xff]
        %v736 = vld [vmem:[%s531 + $0x2] sm:$0xff]
        %v737 = vld [vmem:[%s531 + $0xa] sm:$0xff]
        %v738 = vld [vmem:[%s531 + $0x1a] sm:$0xff]
        %v739 = vld [vmem:[%s531 + $0x22] sm:$0xff]
        %v740 = vld [vmem:[%s531 + $0x32] sm:$0xff]
        %v741 = vld [vmem:[%s531 + $0x3a] sm:$0xff]
        %v742 = vld [vmem:[%s531 + $0x4a] sm:$0xff]
        %v743 = vld [vmem:[%s531 + $0x52] sm:$0xff]
        %v744 = vld [vmem:[%s531 + $0x62] sm:$0xff]
        %v745 = vld [vmem:[%s531 + $0x6a] sm:$0xff]
        %v746 = vld [vmem:[%s531 + $0x7a] sm:$0xff]
        %v747 = vld [vmem:[%s531 + $0x82] sm:$0xff]
        %v748 = vld [vmem:[%s531 + $0x92] sm:$0xff]
        %v749 = vld [vmem:[%s531 + $0x9a] sm:$0xff]
        %v750 = vld [vmem:[%s531 + $0xaa] sm:$0xff]
        %v751 = vld [vmem:[%s531 + $0xb2] sm:$0xff]
        %v752 = vld [vmem:[%s531 + $0xc2] sm:$0xff]
        %v753 = vld [vmem:[%s531 + $0xca] sm:$0xff]
        %v754 = vld [vmem:[%s531 + $0xda] sm:$0xff]
        %v755 = vld [vmem:[%s531 + $0xe2] sm:$0xff]
        %v756 = vld [vmem:[%s531 + $0xf2] sm:$0xff]
        %v757 = vld [vmem:[%s531 + $0xfa] sm:$0xff]
        %v758 = vld [vmem:[%s531 + $0x10a] sm:$0xff]
        %v759 = vld [vmem:[%s531 + $0x112] sm:$0xff]
        %v760 = vld [vmem:[%s531 + $0x122] sm:$0xff]
        %v761 = vld [vmem:[%s531 + $0x12a] sm:$0xff]
        %v762 = vld [vmem:[%s531 + $0x13a] sm:$0xff]
        %v763 = vld [vmem:[%s531 + $0x142] sm:$0xff]
        %v764 = vld [vmem:[%s531 + $0x152] sm:$0xff]
        %v765 = vld [vmem:[%s531 + $0x15a] sm:$0xff]
        %v766 = vld [vmem:[%s531 + $0x16a] sm:$0xff]
        %v767 = vld [vmem:[%s531 + $0x172] sm:$0xff]
        %s768 = scalar_lea.vmem [#allocation2], 48
        %v769 = vld [vmem:[%s768] sm:$0xff]
        %v770 = vld [vmem:[%s768 + $0x8] sm:$0xff]
        %v771 = vld [vmem:[%s768 + $0x18] sm:$0xff]
        %v772 = vld [vmem:[%s768 + $0x20] sm:$0xff]
        %v773 = vld [vmem:[%s768 + $0x30] sm:$0xff]
        %v774 = vld [vmem:[%s768 + $0x38] sm:$0xff]
        %v775 = vld [vmem:[%s768 + $0x48] sm:$0xff]
        %v776 = vld [vmem:[%s768 + $0x50] sm:$0xff]
        %v777 = vld [vmem:[%s768 + $0x60] sm:$0xff]
        %v778 = vld [vmem:[%s768 + $0x68] sm:$0xff]
        %v779 = vld [vmem:[%s768 + $0x78] sm:$0xff]
        %v780 = vld [vmem:[%s768 + $0x80] sm:$0xff]
        %v781 = vld [vmem:[%s768 + $0x90] sm:$0xff]
        %v782 = vld [vmem:[%s768 + $0x98] sm:$0xff]
        %v783 = vld [vmem:[%s768 + $0xa8] sm:$0xff]
        %v784 = vld [vmem:[%s768 + $0xb0] sm:$0xff]
        %v785 = vld [vmem:[%s768 + $0xc0] sm:$0xff]
        %v786 = vld [vmem:[%s768 + $0xc8] sm:$0xff]
        %v787 = vld [vmem:[%s768 + $0xd8] sm:$0xff]
        %v788 = vld [vmem:[%s768 + $0xe0] sm:$0xff]
        %v789 = vld [vmem:[%s768 + $0xf0] sm:$0xff]
        %v790 = vld [vmem:[%s768 + $0xf8] sm:$0xff]
        %v791 = vld [vmem:[%s768 + $0x108] sm:$0xff]
        %v792 = vld [vmem:[%s768 + $0x110] sm:$0xff]
        %v793 = vld [vmem:[%s768 + $0x120] sm:$0xff]
        %v794 = vld [vmem:[%s768 + $0x128] sm:$0xff]
        %v795 = vld [vmem:[%s768 + $0x138] sm:$0xff]
        %v796 = vld [vmem:[%s768 + $0x140] sm:$0xff]
        %v797 = vld [vmem:[%s768 + $0x150] sm:$0xff]
        %v798 = vld [vmem:[%s768 + $0x158] sm:$0xff]
        %v799 = vld [vmem:[%s768 + $0x168] sm:$0xff]
        %v800 = vld [vmem:[%s768 + $0x170] sm:$0xff]
        %v801 = vld [vmem:[%s768 + $0x1] sm:$0xff]
        %v802 = vld [vmem:[%s768 + $0x9] sm:$0xff]
        %v803 = vld [vmem:[%s768 + $0x19] sm:$0xff]
        %v804 = vld [vmem:[%s768 + $0x21] sm:$0xff]
        %v805 = vld [vmem:[%s768 + $0x31] sm:$0xff]
        %v806 = vld [vmem:[%s768 + $0x39] sm:$0xff]
        %v807 = vld [vmem:[%s768 + $0x49] sm:$0xff]
        %v808 = vld [vmem:[%s768 + $0x51] sm:$0xff]
        %v809 = vld [vmem:[%s768 + $0x61] sm:$0xff]
        %v810 = vld [vmem:[%s768 + $0x69] sm:$0xff]
        %v811 = vld [vmem:[%s768 + $0x79] sm:$0xff]
        %v812 = vld [vmem:[%s768 + $0x81] sm:$0xff]
        %v813 = vld [vmem:[%s768 + $0x91] sm:$0xff]
        %v814 = vld [vmem:[%s768 + $0x99] sm:$0xff]
        %v815 = vld [vmem:[%s768 + $0xa9] sm:$0xff]
        %v816 = vld [vmem:[%s768 + $0xb1] sm:$0xff]
        %v817 = vld [vmem:[%s768 + $0xc1] sm:$0xff]
        %v818 = vld [vmem:[%s768 + $0xc9] sm:$0xff]
        %v819 = vld [vmem:[%s768 + $0xd9] sm:$0xff]
        %v820 = vld [vmem:[%s768 + $0xe1] sm:$0xff]
        %v821 = vld [vmem:[%s768 + $0xf1] sm:$0xff]
        %v822 = vld [vmem:[%s768 + $0xf9] sm:$0xff]
        %v823 = vld [vmem:[%s768 + $0x109] sm:$0xff]
        %v824 = vld [vmem:[%s768 + $0x111] sm:$0xff]
        %v825 = vld [vmem:[%s768 + $0x121] sm:$0xff]
        %v826 = vld [vmem:[%s768 + $0x129] sm:$0xff]
        %v827 = vld [vmem:[%s768 + $0x139] sm:$0xff]
        %v828 = vld [vmem:[%s768 + $0x141] sm:$0xff]
        %v829 = vld [vmem:[%s768 + $0x151] sm:$0xff]
        %v830 = vld [vmem:[%s768 + $0x159] sm:$0xff]
        %v831 = vld [vmem:[%s768 + $0x169] sm:$0xff]
        %v832 = vld [vmem:[%s768 + $0x171] sm:$0xff]
        %v833 = vld [vmem:[%s768 + $0x2] sm:$0xff]
        %v834 = vld [vmem:[%s768 + $0xa] sm:$0xff]
        %v835 = vld [vmem:[%s768 + $0x1a] sm:$0xff]
        %v836 = vld [vmem:[%s768 + $0x22] sm:$0xff]
        %v837 = vld [vmem:[%s768 + $0x32] sm:$0xff]
        %v838 = vld [vmem:[%s768 + $0x3a] sm:$0xff]
        %v839 = vld [vmem:[%s768 + $0x4a] sm:$0xff]
        %v840 = vld [vmem:[%s768 + $0x52] sm:$0xff]
        %v841 = vld [vmem:[%s768 + $0x62] sm:$0xff]
        %v842 = vld [vmem:[%s768 + $0x6a] sm:$0xff]
        %v843 = vld [vmem:[%s768 + $0x7a] sm:$0xff]
        %v844 = vld [vmem:[%s768 + $0x82] sm:$0xff]
        %v845 = vld [vmem:[%s768 + $0x92] sm:$0xff]
        %v846 = vld [vmem:[%s768 + $0x9a] sm:$0xff]
        %v847 = vld [vmem:[%s768 + $0xaa] sm:$0xff]
        %v848 = vld [vmem:[%s768 + $0xb2] sm:$0xff]
        %v849 = vld [vmem:[%s768 + $0xc2] sm:$0xff]
        %v850 = vld [vmem:[%s768 + $0xca] sm:$0xff]
        %v851 = vld [vmem:[%s768 + $0xda] sm:$0xff]
        %v852 = vld [vmem:[%s768 + $0xe2] sm:$0xff]
        %v853 = vld [vmem:[%s768 + $0xf2] sm:$0xff]
        %v854 = vld [vmem:[%s768 + $0xfa] sm:$0xff]
        %v855 = vld [vmem:[%s768 + $0x10a] sm:$0xff]
        %v856 = vld [vmem:[%s768 + $0x112] sm:$0xff]
        %v857 = vld [vmem:[%s768 + $0x122] sm:$0xff]
        %v858 = vld [vmem:[%s768 + $0x12a] sm:$0xff]
        %v859 = vld [vmem:[%s768 + $0x13a] sm:$0xff]
        %v860 = vld [vmem:[%s768 + $0x142] sm:$0xff]
        %v861 = vld [vmem:[%s768 + $0x152] sm:$0xff]
        %v862 = vld [vmem:[%s768 + $0x15a] sm:$0xff]
        %v863 = vld [vmem:[%s768 + $0x16a] sm:$0xff]
        %v864 = vld [vmem:[%s768 + $0x172] sm:$0xff]
        %897 = vrot.lane.b32.xlu0 %v608, 9
        %v898 = vpop.permute.xlu0 %897
        %899 = vrot.lane.b32.xlu0 %v609, 9
        %v900 = vpop.permute.xlu0 %899
        %901 = vrot.lane.b32.xlu0 %v610, 9
        %v902 = vpop.permute.xlu0 %901
        %903 = vrot.lane.b32.xlu0 %v611, 9
        %v904 = vpop.permute.xlu0 %903
        %905 = vrot.lane.b32.xlu0 %v612, 9
        %v906 = vpop.permute.xlu0 %905
        %907 = vrot.lane.b32.xlu0 %v613, 9
        %v908 = vpop.permute.xlu0 %907
        %909 = vrot.lane.b32.xlu0 %v614, 9
        %v910 = vpop.permute.xlu0 %909
        %911 = vrot.lane.b32.xlu0 %v615, 9
        %v912 = vpop.permute.xlu0 %911
        %913 = vrot.lane.b32.xlu0 %v616, 9
        %v914 = vpop.permute.xlu0 %913
        %915 = vrot.lane.b32.xlu0 %v617, 9
        %v916 = vpop.permute.xlu0 %915
        %917 = vrot.lane.b32.xlu0 %v618, 9
        %v918 = vpop.permute.xlu0 %917
        %919 = vrot.lane.b32.xlu0 %v619, 9
        %v920 = vpop.permute.xlu0 %919
        %921 = vrot.lane.b32.xlu0 %v620, 9
        %v922 = vpop.permute.xlu0 %921
        %923 = vrot.lane.b32.xlu0 %v621, 9
        %v924 = vpop.permute.xlu0 %923
        %925 = vrot.lane.b32.xlu0 %v622, 9
        %v926 = vpop.permute.xlu0 %925
        %927 = vrot.lane.b32.xlu0 %v623, 9
        %v928 = vpop.permute.xlu0 %927
        %929 = vrot.lane.b32.xlu0 %v624, 9
        %v930 = vpop.permute.xlu0 %929
        %931 = vrot.lane.b32.xlu0 %v625, 9
        %v932 = vpop.permute.xlu0 %931
        %933 = vrot.lane.b32.xlu0 %v626, 9
        %v934 = vpop.permute.xlu0 %933
        %935 = vrot.lane.b32.xlu0 %v627, 9
        %v936 = vpop.permute.xlu0 %935
        %937 = vrot.lane.b32.xlu0 %v628, 9
        %v938 = vpop.permute.xlu0 %937
        %939 = vrot.lane.b32.xlu0 %v629, 9
        %v940 = vpop.permute.xlu0 %939
        %941 = vrot.lane.b32.xlu0 %v630, 9
        %v942 = vpop.permute.xlu0 %941
        %943 = vrot.lane.b32.xlu0 %v631, 9
        %v944 = vpop.permute.xlu0 %943
        %945 = vrot.lane.b32.xlu0 %v632, 9
        %v946 = vpop.permute.xlu0 %945
        %947 = vrot.lane.b32.xlu0 %v633, 9
        %v948 = vpop.permute.xlu0 %947
        %949 = vrot.lane.b32.xlu0 %v634, 9
        %v950 = vpop.permute.xlu0 %949
        %951 = vrot.lane.b32.xlu0 %v635, 9
        %v952 = vpop.permute.xlu0 %951
        %953 = vrot.lane.b32.xlu0 %v636, 9
        %v954 = vpop.permute.xlu0 %953
        %955 = vrot.lane.b32.xlu0 %v637, 9
        %v956 = vpop.permute.xlu0 %955
        %957 = vrot.lane.b32.xlu0 %v638, 9
        %v958 = vpop.permute.xlu0 %957
        %959 = vrot.lane.b32.xlu0 %v639, 9
        %v960 = vpop.permute.xlu0 %959
        %1025 = vrot.lane.b32.xlu0 %v640, 18
        %v1026 = vpop.permute.xlu0 %1025
        %1027 = vrot.lane.b32.xlu0 %v641, 18
        %v1028 = vpop.permute.xlu0 %1027
        %1029 = vrot.lane.b32.xlu0 %v642, 18
        %v1030 = vpop.permute.xlu0 %1029
        %1031 = vrot.lane.b32.xlu0 %v643, 18
        %v1032 = vpop.permute.xlu0 %1031
        %1033 = vrot.lane.b32.xlu0 %v644, 18
        %v1034 = vpop.permute.xlu0 %1033
        %1035 = vrot.lane.b32.xlu0 %v645, 18
        %v1036 = vpop.permute.xlu0 %1035
        %1037 = vrot.lane.b32.xlu0 %v646, 18
        %v1038 = vpop.permute.xlu0 %1037
        %1039 = vrot.lane.b32.xlu0 %v647, 18
        %v1040 = vpop.permute.xlu0 %1039
        %1041 = vrot.lane.b32.xlu0 %v648, 18
        %v1042 = vpop.permute.xlu0 %1041
        %1043 = vrot.lane.b32.xlu0 %v649, 18
        %v1044 = vpop.permute.xlu0 %1043
        %1045 = vrot.lane.b32.xlu0 %v650, 18
        %v1046 = vpop.permute.xlu0 %1045
        %1047 = vrot.lane.b32.xlu0 %v651, 18
        %v1048 = vpop.permute.xlu0 %1047
        %1049 = vrot.lane.b32.xlu0 %v652, 18
        %v1050 = vpop.permute.xlu0 %1049
        %1051 = vrot.lane.b32.xlu0 %v653, 18
        %v1052 = vpop.permute.xlu0 %1051
        %1053 = vrot.lane.b32.xlu0 %v654, 18
        %v1054 = vpop.permute.xlu0 %1053
        %1055 = vrot.lane.b32.xlu0 %v655, 18
        %v1056 = vpop.permute.xlu0 %1055
        %1057 = vrot.lane.b32.xlu0 %v656, 18
        %v1058 = vpop.permute.xlu0 %1057
        %1059 = vrot.lane.b32.xlu0 %v657, 18
        %v1060 = vpop.permute.xlu0 %1059
        %1061 = vrot.lane.b32.xlu0 %v658, 18
        %v1062 = vpop.permute.xlu0 %1061
        %1063 = vrot.lane.b32.xlu0 %v659, 18
        %v1064 = vpop.permute.xlu0 %1063
        %1065 = vrot.lane.b32.xlu0 %v660, 18
        %v1066 = vpop.permute.xlu0 %1065
        %1067 = vrot.lane.b32.xlu0 %v661, 18
        %v1068 = vpop.permute.xlu0 %1067
        %1069 = vrot.lane.b32.xlu0 %v662, 18
        %v1070 = vpop.permute.xlu0 %1069
        %1071 = vrot.lane.b32.xlu0 %v663, 18
        %v1072 = vpop.permute.xlu0 %1071
        %1073 = vrot.lane.b32.xlu0 %v664, 18
        %v1074 = vpop.permute.xlu0 %1073
        %1075 = vrot.lane.b32.xlu0 %v665, 18
        %v1076 = vpop.permute.xlu0 %1075
        %1077 = vrot.lane.b32.xlu0 %v666, 18
        %v1078 = vpop.permute.xlu0 %1077
        %1079 = vrot.lane.b32.xlu0 %v667, 18
        %v1080 = vpop.permute.xlu0 %1079
        %1081 = vrot.lane.b32.xlu0 %v668, 18
        %v1082 = vpop.permute.xlu0 %1081
        %1083 = vrot.lane.b32.xlu0 %v669, 18
        %v1084 = vpop.permute.xlu0 %1083
        %1085 = vrot.lane.b32.xlu0 %v670, 18
        %v1086 = vpop.permute.xlu0 %1085
        %1087 = vrot.lane.b32.xlu0 %v671, 18
        %v1088 = vpop.permute.xlu0 %1087
        %1153 = vrot.lane.b32.xlu0 %v672, 27
        %v1154 = vpop.permute.xlu0 %1153
        %1155 = vrot.lane.b32.xlu0 %v673, 27
        %v1156 = vpop.permute.xlu0 %1155
        %1157 = vrot.lane.b32.xlu0 %v674, 27
        %v1158 = vpop.permute.xlu0 %1157
        %1159 = vrot.lane.b32.xlu0 %v675, 27
        %v1160 = vpop.permute.xlu0 %1159
        %1161 = vrot.lane.b32.xlu0 %v676, 27
        %v1162 = vpop.permute.xlu0 %1161
        %1163 = vrot.lane.b32.xlu0 %v677, 27
        %v1164 = vpop.permute.xlu0 %1163
        %1165 = vrot.lane.b32.xlu0 %v678, 27
        %v1166 = vpop.permute.xlu0 %1165
        %1167 = vrot.lane.b32.xlu0 %v679, 27
        %v1168 = vpop.permute.xlu0 %1167
        %1169 = vrot.lane.b32.xlu0 %v680, 27
        %v1170 = vpop.permute.xlu0 %1169
        %1171 = vrot.lane.b32.xlu0 %v681, 27
        %v1172 = vpop.permute.xlu0 %1171
        %1173 = vrot.lane.b32.xlu0 %v682, 27
        %v1174 = vpop.permute.xlu0 %1173
        %1175 = vrot.lane.b32.xlu0 %v683, 27
        %v1176 = vpop.permute.xlu0 %1175
        %1177 = vrot.lane.b32.xlu0 %v684, 27
        %v1178 = vpop.permute.xlu0 %1177
        %1179 = vrot.lane.b32.xlu0 %v685, 27
        %v1180 = vpop.permute.xlu0 %1179
        %1181 = vrot.lane.b32.xlu0 %v686, 27
        %v1182 = vpop.permute.xlu0 %1181
        %1183 = vrot.lane.b32.xlu0 %v687, 27
        %v1184 = vpop.permute.xlu0 %1183
        %1185 = vrot.lane.b32.xlu0 %v688, 27
        %v1186 = vpop.permute.xlu0 %1185
        %1187 = vrot.lane.b32.xlu0 %v689, 27
        %v1188 = vpop.permute.xlu0 %1187
        %1189 = vrot.lane.b32.xlu0 %v690, 27
        %v1190 = vpop.permute.xlu0 %1189
        %1191 = vrot.lane.b32.xlu0 %v691, 27
        %v1192 = vpop.permute.xlu0 %1191
        %1193 = vrot.lane.b32.xlu0 %v692, 27
        %v1194 = vpop.permute.xlu0 %1193
        %1195 = vrot.lane.b32.xlu0 %v693, 27
        %v1196 = vpop.permute.xlu0 %1195
        %1197 = vrot.lane.b32.xlu0 %v694, 27
        %v1198 = vpop.permute.xlu0 %1197
        %1199 = vrot.lane.b32.xlu0 %v695, 27
        %v1200 = vpop.permute.xlu0 %1199
        %1201 = vrot.lane.b32.xlu0 %v696, 27
        %v1202 = vpop.permute.xlu0 %1201
        %1203 = vrot.lane.b32.xlu0 %v697, 27
        %v1204 = vpop.permute.xlu0 %1203
        %1205 = vrot.lane.b32.xlu0 %v698, 27
        %v1206 = vpop.permute.xlu0 %1205
        %1207 = vrot.lane.b32.xlu0 %v699, 27
        %v1208 = vpop.permute.xlu0 %1207
        %1209 = vrot.lane.b32.xlu0 %v700, 27
        %v1210 = vpop.permute.xlu0 %1209
        %1211 = vrot.lane.b32.xlu0 %v701, 27
        %v1212 = vpop.permute.xlu0 %1211
        %1213 = vrot.lane.b32.xlu0 %v702, 27
        %v1214 = vpop.permute.xlu0 %1213
        %1215 = vrot.lane.b32.xlu0 %v703, 27
        %v1216 = vpop.permute.xlu0 %1215
        %1281 = vrot.lane.b32.xlu0 %v704, 36
        %v1282 = vpop.permute.xlu0 %1281
        %1283 = vrot.lane.b32.xlu0 %v705, 36
        %v1284 = vpop.permute.xlu0 %1283
        %1285 = vrot.lane.b32.xlu0 %v706, 36
        %v1286 = vpop.permute.xlu0 %1285
        %1287 = vrot.lane.b32.xlu0 %v707, 36
        %v1288 = vpop.permute.xlu0 %1287
        %1289 = vrot.lane.b32.xlu0 %v708, 36
        %v1290 = vpop.permute.xlu0 %1289
        %1291 = vrot.lane.b32.xlu0 %v709, 36
        %v1292 = vpop.permute.xlu0 %1291
        %1293 = vrot.lane.b32.xlu0 %v710, 36
        %v1294 = vpop.permute.xlu0 %1293
        %1295 = vrot.lane.b32.xlu0 %v711, 36
        %v1296 = vpop.permute.xlu0 %1295
        %1297 = vrot.lane.b32.xlu0 %v712, 36
        %v1298 = vpop.permute.xlu0 %1297
        %1299 = vrot.lane.b32.xlu0 %v713, 36
        %v1300 = vpop.permute.xlu0 %1299
        %1301 = vrot.lane.b32.xlu0 %v714, 36
        %v1302 = vpop.permute.xlu0 %1301
        %1303 = vrot.lane.b32.xlu0 %v715, 36
        %v1304 = vpop.permute.xlu0 %1303
        %1305 = vrot.lane.b32.xlu0 %v716, 36
        %v1306 = vpop.permute.xlu0 %1305
        %1307 = vrot.lane.b32.xlu0 %v717, 36
        %v1308 = vpop.permute.xlu0 %1307
        %1309 = vrot.lane.b32.xlu0 %v718, 36
        %v1310 = vpop.permute.xlu0 %1309
        %1311 = vrot.lane.b32.xlu0 %v719, 36
        %v1312 = vpop.permute.xlu0 %1311
        %1313 = vrot.lane.b32.xlu0 %v720, 36
        %v1314 = vpop.permute.xlu0 %1313
        %1315 = vrot.lane.b32.xlu0 %v721, 36
        %v1316 = vpop.permute.xlu0 %1315
        %1317 = vrot.lane.b32.xlu0 %v722, 36
        %v1318 = vpop.permute.xlu0 %1317
        %1319 = vrot.lane.b32.xlu0 %v723, 36
        %v1320 = vpop.permute.xlu0 %1319
        %1321 = vrot.lane.b32.xlu0 %v724, 36
        %v1322 = vpop.permute.xlu0 %1321
        %1323 = vrot.lane.b32.xlu0 %v725, 36
        %v1324 = vpop.permute.xlu0 %1323
        %1325 = vrot.lane.b32.xlu0 %v726, 36
        %v1326 = vpop.permute.xlu0 %1325
        %1327 = vrot.lane.b32.xlu0 %v727, 36
        %v1328 = vpop.permute.xlu0 %1327
        %1329 = vrot.lane.b32.xlu0 %v728, 36
        %v1330 = vpop.permute.xlu0 %1329
        %1331 = vrot.lane.b32.xlu0 %v729, 36
        %v1332 = vpop.permute.xlu0 %1331
        %1333 = vrot.lane.b32.xlu0 %v730, 36
        %v1334 = vpop.permute.xlu0 %1333
        %1335 = vrot.lane.b32.xlu0 %v731, 36
        %v1336 = vpop.permute.xlu0 %1335
        %1337 = vrot.lane.b32.xlu0 %v732, 36
        %v1338 = vpop.permute.xlu0 %1337
        %1339 = vrot.lane.b32.xlu0 %v733, 36
        %v1340 = vpop.permute.xlu0 %1339
        %1341 = vrot.lane.b32.xlu0 %v734, 36
        %v1342 = vpop.permute.xlu0 %1341
        %1343 = vrot.lane.b32.xlu0 %v735, 36
        %v1344 = vpop.permute.xlu0 %1343
        %1409 = vrot.lane.b32.xlu0 %v736, 45
        %v1410 = vpop.permute.xlu0 %1409
        %1411 = vrot.lane.b32.xlu0 %v737, 45
        %v1412 = vpop.permute.xlu0 %1411
        %1413 = vrot.lane.b32.xlu0 %v738, 45
        %v1414 = vpop.permute.xlu0 %1413
        %1415 = vrot.lane.b32.xlu0 %v739, 45
        %v1416 = vpop.permute.xlu0 %1415
        %1417 = vrot.lane.b32.xlu0 %v740, 45
        %v1418 = vpop.permute.xlu0 %1417
        %1419 = vrot.lane.b32.xlu0 %v741, 45
        %v1420 = vpop.permute.xlu0 %1419
        %1421 = vrot.lane.b32.xlu0 %v742, 45
        %v1422 = vpop.permute.xlu0 %1421
        %1423 = vrot.lane.b32.xlu0 %v743, 45
        %v1424 = vpop.permute.xlu0 %1423
        %1425 = vrot.lane.b32.xlu0 %v744, 45
        %v1426 = vpop.permute.xlu0 %1425
        %1427 = vrot.lane.b32.xlu0 %v745, 45
        %v1428 = vpop.permute.xlu0 %1427
        %1429 = vrot.lane.b32.xlu0 %v746, 45
        %v1430 = vpop.permute.xlu0 %1429
        %1431 = vrot.lane.b32.xlu0 %v747, 45
        %v1432 = vpop.permute.xlu0 %1431
        %1433 = vrot.lane.b32.xlu0 %v748, 45
        %v1434 = vpop.permute.xlu0 %1433
        %1435 = vrot.lane.b32.xlu0 %v749, 45
        %v1436 = vpop.permute.xlu0 %1435
        %1437 = vrot.lane.b32.xlu0 %v750, 45
        %v1438 = vpop.permute.xlu0 %1437
        %1439 = vrot.lane.b32.xlu0 %v751, 45
        %v1440 = vpop.permute.xlu0 %1439
        %1441 = vrot.lane.b32.xlu0 %v752, 45
        %v1442 = vpop.permute.xlu0 %1441
        %1443 = vrot.lane.b32.xlu0 %v753, 45
        %v1444 = vpop.permute.xlu0 %1443
        %1445 = vrot.lane.b32.xlu0 %v754, 45
        %v1446 = vpop.permute.xlu0 %1445
        %1447 = vrot.lane.b32.xlu0 %v755, 45
        %v1448 = vpop.permute.xlu0 %1447
        %1449 = vrot.lane.b32.xlu0 %v756, 45
        %v1450 = vpop.permute.xlu0 %1449
        %1451 = vrot.lane.b32.xlu0 %v757, 45
        %v1452 = vpop.permute.xlu0 %1451
        %1453 = vrot.lane.b32.xlu0 %v758, 45
        %v1454 = vpop.permute.xlu0 %1453
        %1455 = vrot.lane.b32.xlu0 %v759, 45
        %v1456 = vpop.permute.xlu0 %1455
        %1457 = vrot.lane.b32.xlu0 %v760, 45
        %v1458 = vpop.permute.xlu0 %1457
        %1459 = vrot.lane.b32.xlu0 %v761, 45
        %v1460 = vpop.permute.xlu0 %1459
        %1461 = vrot.lane.b32.xlu0 %v762, 45
        %v1462 = vpop.permute.xlu0 %1461
        %1463 = vrot.lane.b32.xlu0 %v763, 45
        %v1464 = vpop.permute.xlu0 %1463
        %1465 = vrot.lane.b32.xlu0 %v764, 45
        %v1466 = vpop.permute.xlu0 %1465
        %1467 = vrot.lane.b32.xlu0 %v765, 45
        %v1468 = vpop.permute.xlu0 %1467
        %1469 = vrot.lane.b32.xlu0 %v766, 45
        %v1470 = vpop.permute.xlu0 %1469
        %1471 = vrot.lane.b32.xlu0 %v767, 45
        %v1472 = vpop.permute.xlu0 %1471
        %1537 = vrot.lane.b32.xlu0 %v769, 54
        %v1538 = vpop.permute.xlu0 %1537
        %1539 = vrot.lane.b32.xlu0 %v770, 54
        %v1540 = vpop.permute.xlu0 %1539
        %1541 = vrot.lane.b32.xlu0 %v771, 54
        %v1542 = vpop.permute.xlu0 %1541
        %1543 = vrot.lane.b32.xlu0 %v772, 54
        %v1544 = vpop.permute.xlu0 %1543
        %1545 = vrot.lane.b32.xlu0 %v773, 54
        %v1546 = vpop.permute.xlu0 %1545
        %1547 = vrot.lane.b32.xlu0 %v774, 54
        %v1548 = vpop.permute.xlu0 %1547
        %1549 = vrot.lane.b32.xlu0 %v775, 54
        %v1550 = vpop.permute.xlu0 %1549
        %1551 = vrot.lane.b32.xlu0 %v776, 54
        %v1552 = vpop.permute.xlu0 %1551
        %1553 = vrot.lane.b32.xlu0 %v777, 54
        %v1554 = vpop.permute.xlu0 %1553
        %1555 = vrot.lane.b32.xlu0 %v778, 54
        %v1556 = vpop.permute.xlu0 %1555
        %1557 = vrot.lane.b32.xlu0 %v779, 54
        %v1558 = vpop.permute.xlu0 %1557
        %1559 = vrot.lane.b32.xlu0 %v780, 54
        %v1560 = vpop.permute.xlu0 %1559
        %1561 = vrot.lane.b32.xlu0 %v781, 54
        %v1562 = vpop.permute.xlu0 %1561
        %1563 = vrot.lane.b32.xlu0 %v782, 54
        %v1564 = vpop.permute.xlu0 %1563
        %1565 = vrot.lane.b32.xlu0 %v783, 54
        %v1566 = vpop.permute.xlu0 %1565
        %1567 = vrot.lane.b32.xlu0 %v784, 54
        %v1568 = vpop.permute.xlu0 %1567
        %1569 = vrot.lane.b32.xlu0 %v785, 54
        %v1570 = vpop.permute.xlu0 %1569
        %1571 = vrot.lane.b32.xlu0 %v786, 54
        %v1572 = vpop.permute.xlu0 %1571
        %1573 = vrot.lane.b32.xlu0 %v787, 54
        %v1574 = vpop.permute.xlu0 %1573
        %1575 = vrot.lane.b32.xlu0 %v788, 54
        %v1576 = vpop.permute.xlu0 %1575
        %1577 = vrot.lane.b32.xlu0 %v789, 54
        %v1578 = vpop.permute.xlu0 %1577
        %1579 = vrot.lane.b32.xlu0 %v790, 54
        %v1580 = vpop.permute.xlu0 %1579
        %1581 = vrot.lane.b32.xlu0 %v791, 54
        %v1582 = vpop.permute.xlu0 %1581
        %1583 = vrot.lane.b32.xlu0 %v792, 54
        %v1584 = vpop.permute.xlu0 %1583
        %1585 = vrot.lane.b32.xlu0 %v793, 54
        %v1586 = vpop.permute.xlu0 %1585
        %1587 = vrot.lane.b32.xlu0 %v794, 54
        %v1588 = vpop.permute.xlu0 %1587
        %1589 = vrot.lane.b32.xlu0 %v795, 54
        %v1590 = vpop.permute.xlu0 %1589
        %1591 = vrot.lane.b32.xlu0 %v796, 54
        %v1592 = vpop.permute.xlu0 %1591
        %1593 = vrot.lane.b32.xlu0 %v797, 54
        %v1594 = vpop.permute.xlu0 %1593
        %1595 = vrot.lane.b32.xlu0 %v798, 54
        %v1596 = vpop.permute.xlu0 %1595
        %1597 = vrot.lane.b32.xlu0 %v799, 54
        %v1598 = vpop.permute.xlu0 %1597
        %1599 = vrot.lane.b32.xlu0 %v800, 54
        %v1600 = vpop.permute.xlu0 %1599
        %1665 = vrot.lane.b32.xlu0 %v801, 63
        %v1666 = vpop.permute.xlu0 %1665
        %1667 = vrot.lane.b32.xlu0 %v802, 63
        %v1668 = vpop.permute.xlu0 %1667
        %1669 = vrot.lane.b32.xlu0 %v803, 63
        %v1670 = vpop.permute.xlu0 %1669
        %1671 = vrot.lane.b32.xlu0 %v804, 63
        %v1672 = vpop.permute.xlu0 %1671
        %1673 = vrot.lane.b32.xlu0 %v805, 63
        %v1674 = vpop.permute.xlu0 %1673
        %1675 = vrot.lane.b32.xlu0 %v806, 63
        %v1676 = vpop.permute.xlu0 %1675
        %1677 = vrot.lane.b32.xlu0 %v807, 63
        %v1678 = vpop.permute.xlu0 %1677
        %1679 = vrot.lane.b32.xlu0 %v808, 63
        %v1680 = vpop.permute.xlu0 %1679
        %1681 = vrot.lane.b32.xlu0 %v809, 63
        %v1682 = vpop.permute.xlu0 %1681
        %1683 = vrot.lane.b32.xlu0 %v810, 63
        %v1684 = vpop.permute.xlu0 %1683
        %1685 = vrot.lane.b32.xlu0 %v811, 63
        %v1686 = vpop.permute.xlu0 %1685
        %1687 = vrot.lane.b32.xlu0 %v812, 63
        %v1688 = vpop.permute.xlu0 %1687
        %1689 = vrot.lane.b32.xlu0 %v813, 63
        %v1690 = vpop.permute.xlu0 %1689
        %1691 = vrot.lane.b32.xlu0 %v814, 63
        %v1692 = vpop.permute.xlu0 %1691
        %1693 = vrot.lane.b32.xlu0 %v815, 63
        %v1694 = vpop.permute.xlu0 %1693
        %1695 = vrot.lane.b32.xlu0 %v816, 63
        %v1696 = vpop.permute.xlu0 %1695
        %1697 = vrot.lane.b32.xlu0 %v817, 63
        %v1698 = vpop.permute.xlu0 %1697
        %1699 = vrot.lane.b32.xlu0 %v818, 63
        %v1700 = vpop.permute.xlu0 %1699
        %1701 = vrot.lane.b32.xlu0 %v819, 63
        %v1702 = vpop.permute.xlu0 %1701
        %1703 = vrot.lane.b32.xlu0 %v820, 63
        %v1704 = vpop.permute.xlu0 %1703
        %1705 = vrot.lane.b32.xlu0 %v821, 63
        %v1706 = vpop.permute.xlu0 %1705
        %1707 = vrot.lane.b32.xlu0 %v822, 63
        %v1708 = vpop.permute.xlu0 %1707
        %1709 = vrot.lane.b32.xlu0 %v823, 63
        %v1710 = vpop.permute.xlu0 %1709
        %1711 = vrot.lane.b32.xlu0 %v824, 63
        %v1712 = vpop.permute.xlu0 %1711
        %1713 = vrot.lane.b32.xlu0 %v825, 63
        %v1714 = vpop.permute.xlu0 %1713
        %1715 = vrot.lane.b32.xlu0 %v826, 63
        %v1716 = vpop.permute.xlu0 %1715
        %1717 = vrot.lane.b32.xlu0 %v827, 63
        %v1718 = vpop.permute.xlu0 %1717
        %1719 = vrot.lane.b32.xlu0 %v828, 63
        %v1720 = vpop.permute.xlu0 %1719
        %1721 = vrot.lane.b32.xlu0 %v829, 63
        %v1722 = vpop.permute.xlu0 %1721
        %1723 = vrot.lane.b32.xlu0 %v830, 63
        %v1724 = vpop.permute.xlu0 %1723
        %1725 = vrot.lane.b32.xlu0 %v831, 63
        %v1726 = vpop.permute.xlu0 %1725
        %1727 = vrot.lane.b32.xlu0 %v832, 63
        %v1728 = vpop.permute.xlu0 %1727
        %1793 = vrot.lane.b32.xlu0 %v833, 72
        %v1794 = vpop.permute.xlu0 %1793
        %1795 = vrot.lane.b32.xlu0 %v834, 72
        %v1796 = vpop.permute.xlu0 %1795
        %1797 = vrot.lane.b32.xlu0 %v835, 72
        %v1798 = vpop.permute.xlu0 %1797
        %1799 = vrot.lane.b32.xlu0 %v836, 72
        %v1800 = vpop.permute.xlu0 %1799
        %1801 = vrot.lane.b32.xlu0 %v837, 72
        %v1802 = vpop.permute.xlu0 %1801
        %1803 = vrot.lane.b32.xlu0 %v838, 72
        %v1804 = vpop.permute.xlu0 %1803
        %1805 = vrot.lane.b32.xlu0 %v839, 72
        %v1806 = vpop.permute.xlu0 %1805
        %1807 = vrot.lane.b32.xlu0 %v840, 72
        %v1808 = vpop.permute.xlu0 %1807
        %1809 = vrot.lane.b32.xlu0 %v841, 72
        %v1810 = vpop.permute.xlu0 %1809
        %1811 = vrot.lane.b32.xlu0 %v842, 72
        %v1812 = vpop.permute.xlu0 %1811
        %1813 = vrot.lane.b32.xlu0 %v843, 72
        %v1814 = vpop.permute.xlu0 %1813
        %1815 = vrot.lane.b32.xlu0 %v844, 72
        %v1816 = vpop.permute.xlu0 %1815
        %1817 = vrot.lane.b32.xlu0 %v845, 72
        %v1818 = vpop.permute.xlu0 %1817
        %1819 = vrot.lane.b32.xlu0 %v846, 72
        %v1820 = vpop.permute.xlu0 %1819
        %1821 = vrot.lane.b32.xlu0 %v847, 72
        %v1822 = vpop.permute.xlu0 %1821
        %1823 = vrot.lane.b32.xlu0 %v848, 72
        %v1824 = vpop.permute.xlu0 %1823
        %1825 = vrot.lane.b32.xlu0 %v849, 72
        %v1826 = vpop.permute.xlu0 %1825
        %1827 = vrot.lane.b32.xlu0 %v850, 72
        %v1828 = vpop.permute.xlu0 %1827
        %1829 = vrot.lane.b32.xlu0 %v851, 72
        %v1830 = vpop.permute.xlu0 %1829
        %1831 = vrot.lane.b32.xlu0 %v852, 72
        %v1832 = vpop.permute.xlu0 %1831
        %1833 = vrot.lane.b32.xlu0 %v853, 72
        %v1834 = vpop.permute.xlu0 %1833
        %1835 = vrot.lane.b32.xlu0 %v854, 72
        %v1836 = vpop.permute.xlu0 %1835
        %1837 = vrot.lane.b32.xlu0 %v855, 72
        %v1838 = vpop.permute.xlu0 %1837
        %1839 = vrot.lane.b32.xlu0 %v856, 72
        %v1840 = vpop.permute.xlu0 %1839
        %1841 = vrot.lane.b32.xlu0 %v857, 72
        %v1842 = vpop.permute.xlu0 %1841
        %1843 = vrot.lane.b32.xlu0 %v858, 72
        %v1844 = vpop.permute.xlu0 %1843
        %1845 = vrot.lane.b32.xlu0 %v859, 72
        %v1846 = vpop.permute.xlu0 %1845
        %1847 = vrot.lane.b32.xlu0 %v860, 72
        %v1848 = vpop.permute.xlu0 %1847
        %1849 = vrot.lane.b32.xlu0 %v861, 72
        %v1850 = vpop.permute.xlu0 %1849
        %1851 = vrot.lane.b32.xlu0 %v862, 72
        %v1852 = vpop.permute.xlu0 %1851
        %1853 = vrot.lane.b32.xlu0 %v863, 72
        %v1854 = vpop.permute.xlu0 %1853
        %1855 = vrot.lane.b32.xlu0 %v864, 72
        %v1856 = vpop.permute.xlu0 %1855
        %v1889 = vsel %vm333, %v576, %v898
        %v1890 = vsel %vm333, %v577, %v900
        %v1891 = vsel %vm333, %v578, %v902
        %v1892 = vsel %vm333, %v579, %v904
        %v1893 = vsel %vm333, %v580, %v906
        %v1894 = vsel %vm333, %v581, %v908
        %v1895 = vsel %vm333, %v582, %v910
        %v1896 = vsel %vm333, %v583, %v912
        %v1897 = vsel %vm333, %v584, %v914
        %v1898 = vsel %vm333, %v585, %v916
        %v1899 = vsel %vm333, %v586, %v918
        %v1900 = vsel %vm333, %v587, %v920
        %v1901 = vsel %vm333, %v588, %v922
        %v1902 = vsel %vm333, %v589, %v924
        %v1903 = vsel %vm333, %v590, %v926
        %v1904 = vsel %vm333, %v591, %v928
        %v1905 = vsel %vm333, %v592, %v930
        %v1906 = vsel %vm333, %v593, %v932
        %v1907 = vsel %vm333, %v594, %v934
        %v1908 = vsel %vm333, %v595, %v936
        %v1909 = vsel %vm333, %v596, %v938
        %v1910 = vsel %vm333, %v597, %v940
        %v1911 = vsel %vm333, %v598, %v942
        %v1912 = vsel %vm333, %v599, %v944
        %v1913 = vsel %vm333, %v600, %v946
        %v1914 = vsel %vm333, %v601, %v948
        %v1915 = vsel %vm333, %v602, %v950
        %v1916 = vsel %vm333, %v603, %v952
        %v1917 = vsel %vm333, %v604, %v954
        %v1918 = vsel %vm333, %v605, %v956
        %v1919 = vsel %vm333, %v606, %v958
        %v1920 = vsel %vm333, %v607, %v960
        %vm1921 = vcmask 146432
        %v1922 = vsel %vm1921, %v1889, %v1026
        %v1923 = vsel %vm1921, %v1890, %v1028
        %v1924 = vsel %vm1921, %v1891, %v1030
        %v1925 = vsel %vm1921, %v1892, %v1032
        %v1926 = vsel %vm1921, %v1893, %v1034
        %v1927 = vsel %vm1921, %v1894, %v1036
        %v1928 = vsel %vm1921, %v1895, %v1038
        %v1929 = vsel %vm1921, %v1896, %v1040
        %v1930 = vsel %vm1921, %v1897, %v1042
        %v1931 = vsel %vm1921, %v1898, %v1044
        %v1932 = vsel %vm1921, %v1899, %v1046
        %v1933 = vsel %vm1921, %v1900, %v1048
        %v1934 = vsel %vm1921, %v1901, %v1050
        %v1935 = vsel %vm1921, %v1902, %v1052
        %v1936 = vsel %vm1921, %v1903, %v1054
        %v1937 = vsel %vm1921, %v1904, %v1056
        %v1938 = vsel %vm1921, %v1905, %v1058
        %v1939 = vsel %vm1921, %v1906, %v1060
        %v1940 = vsel %vm1921, %v1907, %v1062
        %v1941 = vsel %vm1921, %v1908, %v1064
        %v1942 = vsel %vm1921, %v1909, %v1066
        %v1943 = vsel %vm1921, %v1910, %v1068
        %v1944 = vsel %vm1921, %v1911, %v1070
        %v1945 = vsel %vm1921, %v1912, %v1072
        %v1946 = vsel %vm1921, %v1913, %v1074
        %v1947 = vsel %vm1921, %v1914, %v1076
        %v1948 = vsel %vm1921, %v1915, %v1078
        %v1949 = vsel %vm1921, %v1916, %v1080
        %v1950 = vsel %vm1921, %v1917, %v1082
        %v1951 = vsel %vm1921, %v1918, %v1084
        %v1952 = vsel %vm1921, %v1919, %v1086
        %v1953 = vsel %vm1921, %v1920, %v1088
        %vm1954 = vcmask 220160
        %v1955 = vsel %vm1954, %v1922, %v1154
        %v1956 = vsel %vm1954, %v1923, %v1156
        %v1957 = vsel %vm1954, %v1924, %v1158
        %v1958 = vsel %vm1954, %v1925, %v1160
        %v1959 = vsel %vm1954, %v1926, %v1162
        %v1960 = vsel %vm1954, %v1927, %v1164
        %v1961 = vsel %vm1954, %v1928, %v1166
        %v1962 = vsel %vm1954, %v1929, %v1168
        %v1963 = vsel %vm1954, %v1930, %v1170
        %v1964 = vsel %vm1954, %v1931, %v1172
        %v1965 = vsel %vm1954, %v1932, %v1174
        %v1966 = vsel %vm1954, %v1933, %v1176
        %v1967 = vsel %vm1954, %v1934, %v1178
        %v1968 = vsel %vm1954, %v1935, %v1180
        %v1969 = vsel %vm1954, %v1936, %v1182
        %v1970 = vsel %vm1954, %v1937, %v1184
        %v1971 = vsel %vm1954, %v1938, %v1186
        %v1972 = vsel %vm1954, %v1939, %v1188
        %v1973 = vsel %vm1954, %v1940, %v1190
        %v1974 = vsel %vm1954, %v1941, %v1192
        %v1975 = vsel %vm1954, %v1942, %v1194
        %v1976 = vsel %vm1954, %v1943, %v1196
        %v1977 = vsel %vm1954, %v1944, %v1198
        %v1978 = vsel %vm1954, %v1945, %v1200
        %v1979 = vsel %vm1954, %v1946, %v1202
        %v1980 = vsel %vm1954, %v1947, %v1204
        %v1981 = vsel %vm1954, %v1948, %v1206
        %v1982 = vsel %vm1954, %v1949, %v1208
        %v1983 = vsel %vm1954, %v1950, %v1210
        %v1984 = vsel %vm1954, %v1951, %v1212
        %v1985 = vsel %vm1954, %v1952, %v1214
        %v1986 = vsel %vm1954, %v1953, %v1216
        %vm1987 = vcmask 293888
        %v1988 = vsel %vm1987, %v1955, %v1282
        %v1989 = vsel %vm1987, %v1956, %v1284
        %v1990 = vsel %vm1987, %v1957, %v1286
        %v1991 = vsel %vm1987, %v1958, %v1288
        %v1992 = vsel %vm1987, %v1959, %v1290
        %v1993 = vsel %vm1987, %v1960, %v1292
        %v1994 = vsel %vm1987, %v1961, %v1294
        %v1995 = vsel %vm1987, %v1962, %v1296
        %v1996 = vsel %vm1987, %v1963, %v1298
        %v1997 = vsel %vm1987, %v1964, %v1300
        %v1998 = vsel %vm1987, %v1965, %v1302
        %v1999 = vsel %vm1987, %v1966, %v1304
        %v2000 = vsel %vm1987, %v1967, %v1306
        %v2001 = vsel %vm1987, %v1968, %v1308
        %v2002 = vsel %vm1987, %v1969, %v1310
        %v2003 = vsel %vm1987, %v1970, %v1312
        %v2004 = vsel %vm1987, %v1971, %v1314
        %v2005 = vsel %vm1987, %v1972, %v1316
        %v2006 = vsel %vm1987, %v1973, %v1318
        %v2007 = vsel %vm1987, %v1974, %v1320
        %v2008 = vsel %vm1987, %v1975, %v1322
        %v2009 = vsel %vm1987, %v1976, %v1324
        %v2010 = vsel %vm1987, %v1977, %v1326
        %v2011 = vsel %vm1987, %v1978, %v1328
        %v2012 = vsel %vm1987, %v1979, %v1330
        %v2013 = vsel %vm1987, %v1980, %v1332
        %v2014 = vsel %vm1987, %v1981, %v1334
        %v2015 = vsel %vm1987, %v1982, %v1336
        %v2016 = vsel %vm1987, %v1983, %v1338
        %v2017 = vsel %vm1987, %v1984, %v1340
        %v2018 = vsel %vm1987, %v1985, %v1342
        %v2019 = vsel %vm1987, %v1986, %v1344
        %vm2020 = vcmask 367616
        %v2021 = vsel %vm2020, %v1988, %v1410
        %v2022 = vsel %vm2020, %v1989, %v1412
        %v2023 = vsel %vm2020, %v1990, %v1414
        %v2024 = vsel %vm2020, %v1991, %v1416
        %v2025 = vsel %vm2020, %v1992, %v1418
        %v2026 = vsel %vm2020, %v1993, %v1420
        %v2027 = vsel %vm2020, %v1994, %v1422
        %v2028 = vsel %vm2020, %v1995, %v1424
        %v2029 = vsel %vm2020, %v1996, %v1426
        %v2030 = vsel %vm2020, %v1997, %v1428
        %v2031 = vsel %vm2020, %v1998, %v1430
        %v2032 = vsel %vm2020, %v1999, %v1432
        %v2033 = vsel %vm2020, %v2000, %v1434
        %v2034 = vsel %vm2020, %v2001, %v1436
        %v2035 = vsel %vm2020, %v2002, %v1438
        %v2036 = vsel %vm2020, %v2003, %v1440
        %v2037 = vsel %vm2020, %v2004, %v1442
        %v2038 = vsel %vm2020, %v2005, %v1444
        %v2039 = vsel %vm2020, %v2006, %v1446
        %v2040 = vsel %vm2020, %v2007, %v1448
        %v2041 = vsel %vm2020, %v2008, %v1450
        %v2042 = vsel %vm2020, %v2009, %v1452
        %v2043 = vsel %vm2020, %v2010, %v1454
        %v2044 = vsel %vm2020, %v2011, %v1456
        %v2045 = vsel %vm2020, %v2012, %v1458
        %v2046 = vsel %vm2020, %v2013, %v1460
        %v2047 = vsel %vm2020, %v2014, %v1462
        %v2048 = vsel %vm2020, %v2015, %v1464
        %v2049 = vsel %vm2020, %v2016, %v1466
        %v2050 = vsel %vm2020, %v2017, %v1468
        %v2051 = vsel %vm2020, %v2018, %v1470
        %v2052 = vsel %vm2020, %v2019, %v1472
        %vm2053 = vcmask 441344
        %v2054 = vsel %vm2053, %v2021, %v1538
        %v2055 = vsel %vm2053, %v2022, %v1540
        %v2056 = vsel %vm2053, %v2023, %v1542
        %v2057 = vsel %vm2053, %v2024, %v1544
        %v2058 = vsel %vm2053, %v2025, %v1546
        %v2059 = vsel %vm2053, %v2026, %v1548
        %v2060 = vsel %vm2053, %v2027, %v1550
        %v2061 = vsel %vm2053, %v2028, %v1552
        %v2062 = vsel %vm2053, %v2029, %v1554
        %v2063 = vsel %vm2053, %v2030, %v1556
        %v2064 = vsel %vm2053, %v2031, %v1558
        %v2065 = vsel %vm2053, %v2032, %v1560
        %v2066 = vsel %vm2053, %v2033, %v1562
        %v2067 = vsel %vm2053, %v2034, %v1564
        %v2068 = vsel %vm2053, %v2035, %v1566
        %v2069 = vsel %vm2053, %v2036, %v1568
        %v2070 = vsel %vm2053, %v2037, %v1570
        %v2071 = vsel %vm2053, %v2038, %v1572
        %v2072 = vsel %vm2053, %v2039, %v1574
        %v2073 = vsel %vm2053, %v2040, %v1576
        %v2074 = vsel %vm2053, %v2041, %v1578
        %v2075 = vsel %vm2053, %v2042, %v1580
        %v2076 = vsel %vm2053, %v2043, %v1582
        %v2077 = vsel %vm2053, %v2044, %v1584
        %v2078 = vsel %vm2053, %v2045, %v1586
        %v2079 = vsel %vm2053, %v2046, %v1588
        %v2080 = vsel %vm2053, %v2047, %v1590
        %v2081 = vsel %vm2053, %v2048, %v1592
        %v2082 = vsel %vm2053, %v2049, %v1594
        %v2083 = vsel %vm2053, %v2050, %v1596
        %v2084 = vsel %vm2053, %v2051, %v1598
        %v2085 = vsel %vm2053, %v2052, %v1600
        %vm2086 = vcmask 515072
        %v2087 = vsel %vm2086, %v2054, %v1666
        %v2088 = vsel %vm2086, %v2055, %v1668
        %v2089 = vsel %vm2086, %v2056, %v1670
        %v2090 = vsel %vm2086, %v2057, %v1672
        %v2091 = vsel %vm2086, %v2058, %v1674
        %v2092 = vsel %vm2086, %v2059, %v1676
        %v2093 = vsel %vm2086, %v2060, %v1678
        %v2094 = vsel %vm2086, %v2061, %v1680
        %v2095 = vsel %vm2086, %v2062, %v1682
        %v2096 = vsel %vm2086, %v2063, %v1684
        %v2097 = vsel %vm2086, %v2064, %v1686
        %v2098 = vsel %vm2086, %v2065, %v1688
        %v2099 = vsel %vm2086, %v2066, %v1690
        %v2100 = vsel %vm2086, %v2067, %v1692
        %v2101 = vsel %vm2086, %v2068, %v1694
        %v2102 = vsel %vm2086, %v2069, %v1696
        %v2103 = vsel %vm2086, %v2070, %v1698
        %v2104 = vsel %vm2086, %v2071, %v1700
        %v2105 = vsel %vm2086, %v2072, %v1702
        %v2106 = vsel %vm2086, %v2073, %v1704
        %v2107 = vsel %vm2086, %v2074, %v1706
        %v2108 = vsel %vm2086, %v2075, %v1708
        %v2109 = vsel %vm2086, %v2076, %v1710
        %v2110 = vsel %vm2086, %v2077, %v1712
        %v2111 = vsel %vm2086, %v2078, %v1714
        %v2112 = vsel %vm2086, %v2079, %v1716
        %v2113 = vsel %vm2086, %v2080, %v1718
        %v2114 = vsel %vm2086, %v2081, %v1720
        %v2115 = vsel %vm2086, %v2082, %v1722
        %v2116 = vsel %vm2086, %v2083, %v1724
        %v2117 = vsel %vm2086, %v2084, %v1726
        %v2118 = vsel %vm2086, %v2085, %v1728
        %vm2119 = vcmask 588800
        %v2120 = vsel %vm2119, %v2087, %v1794
        %v2121 = vsel %vm2119, %v2088, %v1796
        %v2122 = vsel %vm2119, %v2089, %v1798
        %v2123 = vsel %vm2119, %v2090, %v1800
        %v2124 = vsel %vm2119, %v2091, %v1802
        %v2125 = vsel %vm2119, %v2092, %v1804
        %v2126 = vsel %vm2119, %v2093, %v1806
        %v2127 = vsel %vm2119, %v2094, %v1808
        %v2128 = vsel %vm2119, %v2095, %v1810
        %v2129 = vsel %vm2119, %v2096, %v1812
        %v2130 = vsel %vm2119, %v2097, %v1814
        %v2131 = vsel %vm2119, %v2098, %v1816
        %v2132 = vsel %vm2119, %v2099, %v1818
        %v2133 = vsel %vm2119, %v2100, %v1820
        %v2134 = vsel %vm2119, %v2101, %v1822
        %v2135 = vsel %vm2119, %v2102, %v1824
        %v2136 = vsel %vm2119, %v2103, %v1826
        %v2137 = vsel %vm2119, %v2104, %v1828
        %v2138 = vsel %vm2119, %v2105, %v1830
        %v2139 = vsel %vm2119, %v2106, %v1832
        %v2140 = vsel %vm2119, %v2107, %v1834
        %v2141 = vsel %vm2119, %v2108, %v1836
        %v2142 = vsel %vm2119, %v2109, %v1838
        %v2143 = vsel %vm2119, %v2110, %v1840
        %v2144 = vsel %vm2119, %v2111, %v1842
        %v2145 = vsel %vm2119, %v2112, %v1844
        %v2146 = vsel %vm2119, %v2113, %v1846
        %v2147 = vsel %vm2119, %v2114, %v1848
        %v2148 = vsel %vm2119, %v2115, %v1850
        %v2149 = vsel %vm2119, %v2116, %v1852
        %v2150 = vsel %vm2119, %v2117, %v1854
        %v2151 = vsel %vm2119, %v2118, %v1856
        %v2153 = vperm.slane %v575, 0
        %vm2155 = vcmask 662528
        %v2157 = vsel %vm2155, %v2120, 0
        %v2160 = vsel %vm2155, %v2121, 0
        %v2163 = vsel %vm2155, %v2122, 0
        %v2166 = vsel %vm2155, %v2123, 0
        %v2169 = vsel %vm2155, %v2124, 0
        %v2172 = vsel %vm2155, %v2125, 0
        %v2175 = vsel %vm2155, %v2126, 0
        %v2178 = vsel %vm2155, %v2127, 0
        %v2181 = vsel %vm2155, %v2128, 0
        %v2184 = vsel %vm2155, %v2129, 0
        %v2187 = vsel %vm2155, %v2130, 0
        %v2190 = vsel %vm2155, %v2131, 0
        %v2193 = vsel %vm2155, %v2132, 0
        %v2196 = vsel %vm2155, %v2133, 0
        %v2199 = vsel %vm2155, %v2134, 0
        %v2202 = vsel %vm2155, %v2135, 0
        %v2205 = vsel %vm2155, %v2136, 0
        %v2208 = vsel %vm2155, %v2137, 0
        %v2211 = vsel %vm2155, %v2138, 0
        %v2214 = vsel %vm2155, %v2139, 0
        %v2217 = vsel %vm2155, %v2140, 0
        %v2220 = vsel %vm2155, %v2141, 0
        %v2223 = vsel %vm2155, %v2142, 0
        %v2226 = vsel %vm2155, %v2143, 0
        %v2229 = vsel %vm2155, %v2144, 0
        %v2232 = vsel %vm2155, %v2145, 0
        %v2235 = vsel %vm2155, %v2146, 0
        %v2238 = vsel %vm2155, %v2147, 0
        %v2241 = vsel %vm2155, %v2148, 0
        %v2244 = vsel %vm2155, %v2149, 0
        %v2247 = vsel %vm2155, %v2150, 0
        %v2250 = vsel %vm2155, %v2151, 0
        %vm2252 = vcmask 1040384
        %v2254 = vsel %vm2252, %v574, 0
        %2256 = vmatpush.msra.mxu0 0.0
        %2257 = vmatpush.msra.mxu0 0.0
        %2258 = vmatpush.msra.mxu0 0.0
        %2259 = vmatpush.msra.mxu0 0.0
        %2260 = vmatpush.msra.mxu0 0.0
        %2261 = vmatpush.msra.mxu0 %v2254
        %2262 = vmatpush.msra.mxu0 %v573
        %2263 = vmatpush.msra.mxu0 %v572
        %2264 = vmatpush.msra.mxu0 %v571
        %2265 = vmatpush.msra.mxu0 %v570
        %2266 = vmatpush.msra.mxu0 %v569
        %2267 = vmatpush.msra.mxu0 %v568
        %2268 = vmatpush.msra.mxu0 %v567
        %2269 = vmatpush.msra.mxu0 %v566
        %2270 = vmatpush.msra.mxu0 %v565
        %2271 = vmatpush.msra.mxu0 %v564
        %2272 = vmatmul.f32.gmra.mxu0 %v2157
        %v2273 = vpop.f32.mrf.mxu0
        %v2274 = vadd.f32 %v2153, %v2273
        %2275 = vmatmul.f32.gmra.mxu0 %v2160
        %v2276 = vpop.f32.mrf.mxu0
        %v2277 = vadd.f32 %v2153, %v2276
        %2278 = vmatmul.f32.gmra.mxu0 %v2163
        %v2279 = vpop.f32.mrf.mxu0
        %v2280 = vadd.f32 %v2153, %v2279
        %2281 = vmatmul.f32.gmra.mxu0 %v2166
        %v2282 = vpop.f32.mrf.mxu0
        %v2283 = vadd.f32 %v2153, %v2282
        %2284 = vmatmul.f32.gmra.mxu0 %v2169
        %v2285 = vpop.f32.mrf.mxu0
        %v2286 = vadd.f32 %v2153, %v2285
        %2287 = vmatmul.f32.gmra.mxu0 %v2172
        %v2288 = vpop.f32.mrf.mxu0
        %v2289 = vadd.f32 %v2153, %v2288
        %2290 = vmatmul.f32.gmra.mxu0 %v2175
        %v2291 = vpop.f32.mrf.mxu0
        %v2292 = vadd.f32 %v2153, %v2291
        %2293 = vmatmul.f32.gmra.mxu0 %v2178
        %v2294 = vpop.f32.mrf.mxu0
        %v2295 = vadd.f32 %v2153, %v2294
        %2296 = vmatmul.f32.gmra.mxu0 %v2181
        %v2297 = vpop.f32.mrf.mxu0
        %v2298 = vadd.f32 %v2153, %v2297
        %2299 = vmatmul.f32.gmra.mxu0 %v2184
        %v2300 = vpop.f32.mrf.mxu0
        %v2301 = vadd.f32 %v2153, %v2300
        %2302 = vmatmul.f32.gmra.mxu0 %v2187
        %v2303 = vpop.f32.mrf.mxu0
        %v2304 = vadd.f32 %v2153, %v2303
        %2305 = vmatmul.f32.gmra.mxu0 %v2190
        %v2306 = vpop.f32.mrf.mxu0
        %v2307 = vadd.f32 %v2153, %v2306
        %2308 = vmatmul.f32.gmra.mxu0 %v2193
        %v2309 = vpop.f32.mrf.mxu0
        %v2310 = vadd.f32 %v2153, %v2309
        %2311 = vmatmul.f32.gmra.mxu0 %v2196
        %v2312 = vpop.f32.mrf.mxu0
        %v2313 = vadd.f32 %v2153, %v2312
        %2314 = vmatmul.f32.gmra.mxu0 %v2199
        %v2315 = vpop.f32.mrf.mxu0
        %v2316 = vadd.f32 %v2153, %v2315
        %2317 = vmatmul.f32.gmra.mxu0 %v2202
        %v2318 = vpop.f32.mrf.mxu0
        %v2319 = vadd.f32 %v2153, %v2318
        %2320 = vmatmul.f32.gmra.mxu0 %v2205
        %v2321 = vpop.f32.mrf.mxu0
        %v2322 = vadd.f32 %v2153, %v2321
        %2323 = vmatmul.f32.gmra.mxu0 %v2208
        %v2324 = vpop.f32.mrf.mxu0
        %v2325 = vadd.f32 %v2153, %v2324
        %2326 = vmatmul.f32.gmra.mxu0 %v2211
        %v2327 = vpop.f32.mrf.mxu0
        %v2328 = vadd.f32 %v2153, %v2327
        %2329 = vmatmul.f32.gmra.mxu0 %v2214
        %v2330 = vpop.f32.mrf.mxu0
        %v2331 = vadd.f32 %v2153, %v2330
        %2332 = vmatmul.f32.gmra.mxu0 %v2217
        %v2333 = vpop.f32.mrf.mxu0
        %v2334 = vadd.f32 %v2153, %v2333
        %2335 = vmatmul.f32.gmra.mxu0 %v2220
        %v2336 = vpop.f32.mrf.mxu0
        %v2337 = vadd.f32 %v2153, %v2336
        %2338 = vmatmul.f32.gmra.mxu0 %v2223
        %v2339 = vpop.f32.mrf.mxu0
        %v2340 = vadd.f32 %v2153, %v2339
        %2341 = vmatmul.f32.gmra.mxu0 %v2226
        %v2342 = vpop.f32.mrf.mxu0
        %v2343 = vadd.f32 %v2153, %v2342
        %2344 = vmatmul.f32.gmra.mxu0 %v2229
        %v2345 = vpop.f32.mrf.mxu0
        %v2346 = vadd.f32 %v2153, %v2345
        %2347 = vmatmul.f32.gmra.mxu0 %v2232
        %v2348 = vpop.f32.mrf.mxu0
        %v2349 = vadd.f32 %v2153, %v2348
        %2350 = vmatmul.f32.gmra.mxu0 %v2235
        %v2351 = vpop.f32.mrf.mxu0
        %v2352 = vadd.f32 %v2153, %v2351
        %2353 = vmatmul.f32.gmra.mxu0 %v2238
        %v2354 = vpop.f32.mrf.mxu0
        %v2355 = vadd.f32 %v2153, %v2354
        %2356 = vmatmul.f32.gmra.mxu0 %v2241
        %v2357 = vpop.f32.mrf.mxu0
        %v2358 = vadd.f32 %v2153, %v2357
        %2359 = vmatmul.f32.gmra.mxu0 %v2244
        %v2360 = vpop.f32.mrf.mxu0
        %v2361 = vadd.f32 %v2153, %v2360
        %2362 = vmatmul.f32.gmra.mxu0 %v2247
        %v2363 = vpop.f32.mrf.mxu0
        %v2364 = vadd.f32 %v2153, %v2363
        %2365 = vmatmul.f32.gmra.mxu0 %v2250
        %v2366 = vpop.f32.mrf.mxu0
        %v2367 = vadd.f32 %v2153, %v2366
        %2368 = vdwg.mxu0
        %vm2369 = vcmp.ge.f32.partialorder %v2274, 0.0
        %vm2370 = vcmp.ge.f32.partialorder %v2277, 0.0
        %vm2371 = vcmp.ge.f32.partialorder %v2280, 0.0
        %vm2372 = vcmp.ge.f32.partialorder %v2283, 0.0
        %vm2373 = vcmp.ge.f32.partialorder %v2286, 0.0
        %vm2374 = vcmp.ge.f32.partialorder %v2289, 0.0
        %vm2375 = vcmp.ge.f32.partialorder %v2292, 0.0
        %vm2376 = vcmp.ge.f32.partialorder %v2295, 0.0
        %vm2377 = vcmp.ge.f32.partialorder %v2298, 0.0
        %vm2378 = vcmp.ge.f32.partialorder %v2301, 0.0
        %vm2379 = vcmp.ge.f32.partialorder %v2304, 0.0
        %vm2380 = vcmp.ge.f32.partialorder %v2307, 0.0
        %vm2381 = vcmp.ge.f32.partialorder %v2310, 0.0
        %vm2382 = vcmp.ge.f32.partialorder %v2313, 0.0
        %vm2383 = vcmp.ge.f32.partialorder %v2316, 0.0
        %vm2384 = vcmp.ge.f32.partialorder %v2319, 0.0
        %vm2385 = vcmp.ge.f32.partialorder %v2322, 0.0
        %vm2386 = vcmp.ge.f32.partialorder %v2325, 0.0
        %vm2387 = vcmp.ge.f32.partialorder %v2328, 0.0
        %vm2388 = vcmp.ge.f32.partialorder %v2331, 0.0
        %vm2389 = vcmp.ge.f32.partialorder %v2334, 0.0
        %vm2390 = vcmp.ge.f32.partialorder %v2337, 0.0
        %vm2391 = vcmp.ge.f32.partialorder %v2340, 0.0
        %vm2392 = vcmp.ge.f32.partialorder %v2343, 0.0
        %vm2393 = vcmp.ge.f32.partialorder %v2346, 0.0
        %vm2394 = vcmp.ge.f32.partialorder %v2349, 0.0
        %vm2395 = vcmp.ge.f32.partialorder %v2352, 0.0
        %vm2396 = vcmp.ge.f32.partialorder %v2355, 0.0
        %vm2397 = vcmp.ge.f32.partialorder %v2358, 0.0
        %vm2398 = vcmp.ge.f32.partialorder %v2361, 0.0
        %vm2399 = vcmp.ge.f32.partialorder %v2364, 0.0
        %vm2400 = vcmp.ge.f32.partialorder %v2367, 0.0
        %v2401 = vmul.f32 %v2274, 0.01
        %v2402 = vmul.f32 %v2277, 0.01
        %v2403 = vmul.f32 %v2280, 0.01
        %v2404 = vmul.f32 %v2283, 0.01
        %v2405 = vmul.f32 %v2286, 0.01
        %v2406 = vmul.f32 %v2289, 0.01
        %v2407 = vmul.f32 %v2292, 0.01
        %v2408 = vmul.f32 %v2295, 0.01
        %v2409 = vmul.f32 %v2298, 0.01
        %v2410 = vmul.f32 %v2301, 0.01
        %v2411 = vmul.f32 %v2304, 0.01
        %v2412 = vmul.f32 %v2307, 0.01
        %v2413 = vmul.f32 %v2310, 0.01
        %v2414 = vmul.f32 %v2313, 0.01
        %v2415 = vmul.f32 %v2316, 0.01
        %v2416 = vmul.f32 %v2319, 0.01
        %v2417 = vmul.f32 %v2322, 0.01
        %v2418 = vmul.f32 %v2325, 0.01
        %v2419 = vmul.f32 %v2328, 0.01
        %v2420 = vmul.f32 %v2331, 0.01
        %v2421 = vmul.f32 %v2334, 0.01
        %v2422 = vmul.f32 %v2337, 0.01
        %v2423 = vmul.f32 %v2340, 0.01
        %v2424 = vmul.f32 %v2343, 0.01
        %v2425 = vmul.f32 %v2346, 0.01
        %v2426 = vmul.f32 %v2349, 0.01
        %v2427 = vmul.f32 %v2352, 0.01
        %v2428 = vmul.f32 %v2355, 0.01
        %v2429 = vmul.f32 %v2358, 0.01
        %v2430 = vmul.f32 %v2361, 0.01
        %v2431 = vmul.f32 %v2364, 0.01
        %v2432 = vmul.f32 %v2367, 0.01
        %v2433 = vsel %vm2369, %v2274, %v2401
        %v2434 = vsel %vm2370, %v2277, %v2402
        %v2435 = vsel %vm2371, %v2280, %v2403
        %v2436 = vsel %vm2372, %v2283, %v2404
        %v2437 = vsel %vm2373, %v2286, %v2405
        %v2438 = vsel %vm2374, %v2289, %v2406
        %v2439 = vsel %vm2375, %v2292, %v2407
        %v2440 = vsel %vm2376, %v2295, %v2408
        %v2441 = vsel %vm2377, %v2298, %v2409
        %v2442 = vsel %vm2378, %v2301, %v2410
        %v2443 = vsel %vm2379, %v2304, %v2411
        %v2444 = vsel %vm2380, %v2307, %v2412
        %v2445 = vsel %vm2381, %v2310, %v2413
        %v2446 = vsel %vm2382, %v2313, %v2414
        %v2447 = vsel %vm2383, %v2316, %v2415
        %v2448 = vsel %vm2384, %v2319, %v2416
        %v2449 = vsel %vm2385, %v2322, %v2417
        %v2450 = vsel %vm2386, %v2325, %v2418
        %v2451 = vsel %vm2387, %v2328, %v2419
        %v2452 = vsel %vm2388, %v2331, %v2420
        %v2453 = vsel %vm2389, %v2334, %v2421
        %v2454 = vsel %vm2390, %v2337, %v2422
        %v2455 = vsel %vm2391, %v2340, %v2423
        %v2456 = vsel %vm2392, %v2343, %v2424
        %v2457 = vsel %vm2393, %v2346, %v2425
        %v2458 = vsel %vm2394, %v2349, %v2426
        %v2459 = vsel %vm2395, %v2352, %v2427
        %v2460 = vsel %vm2396, %v2355, %v2428
        %v2461 = vsel %vm2397, %v2358, %v2429
        %v2462 = vsel %vm2398, %v2361, %v2430
        %v2463 = vsel %vm2399, %v2364, %v2431
        %v2464 = vsel %vm2400, %v2367, %v2432
        %s2465 = scalar_lea.vmem [#allocation3], 24
        %2466 = vst.msk [vmem:[%s2465 + $0x1] sm:$0xff] %vm389, %v2433
        %2467 = vst.msk [vmem:[%s2465 + $0x9] sm:$0xff] %vm389, %v2434
        %2468 = vst.msk [vmem:[%s2465 + $0x19] sm:$0xff] %vm389, %v2435
        %2469 = vst.msk [vmem:[%s2465 + $0x21] sm:$0xff] %vm389, %v2436
        %2470 = vst.msk [vmem:[%s2465 + $0x31] sm:$0xff] %vm389, %v2437
        %2471 = vst.msk [vmem:[%s2465 + $0x39] sm:$0xff] %vm389, %v2438
        %2472 = vst.msk [vmem:[%s2465 + $0x49] sm:$0xff] %vm389, %v2439
        %2473 = vst.msk [vmem:[%s2465 + $0x51] sm:$0xff] %vm389, %v2440
        %2474 = vst.msk [vmem:[%s2465 + $0x61] sm:$0xff] %vm389, %v2441
        %2475 = vst.msk [vmem:[%s2465 + $0x69] sm:$0xff] %vm389, %v2442
        %2476 = vst.msk [vmem:[%s2465 + $0x79] sm:$0xff] %vm389, %v2443
        %2477 = vst.msk [vmem:[%s2465 + $0x81] sm:$0xff] %vm389, %v2444
        %2478 = vst.msk [vmem:[%s2465 + $0x91] sm:$0xff] %vm389, %v2445
        %2479 = vst.msk [vmem:[%s2465 + $0x99] sm:$0xff] %vm389, %v2446
        %2480 = vst.msk [vmem:[%s2465 + $0xa9] sm:$0xff] %vm389, %v2447
        %2481 = vst.msk [vmem:[%s2465 + $0xb1] sm:$0xff] %vm389, %v2448
        %2482 = vst.msk [vmem:[%s2465 + $0xc1] sm:$0xff] %vm389, %v2449
        %2483 = vst.msk [vmem:[%s2465 + $0xc9] sm:$0xff] %vm389, %v2450
        %2484 = vst.msk [vmem:[%s2465 + $0xd9] sm:$0xff] %vm389, %v2451
        %2485 = vst.msk [vmem:[%s2465 + $0xe1] sm:$0xff] %vm389, %v2452
        %2486 = vst.msk [vmem:[%s2465 + $0xf1] sm:$0xff] %vm389, %v2453
        %2487 = vst.msk [vmem:[%s2465 + $0xf9] sm:$0xff] %vm389, %v2454
        %2488 = vst.msk [vmem:[%s2465 + $0x109] sm:$0xff] %vm389, %v2455
        %2489 = vst.msk [vmem:[%s2465 + $0x111] sm:$0xff] %vm389, %v2456
        %2490 = vst.msk [vmem:[%s2465 + $0x121] sm:$0xff] %vm389, %v2457
        %2491 = vst.msk [vmem:[%s2465 + $0x129] sm:$0xff] %vm389, %v2458
        %2492 = vst.msk [vmem:[%s2465 + $0x139] sm:$0xff] %vm389, %v2459
        %2493 = vst.msk [vmem:[%s2465 + $0x141] sm:$0xff] %vm389, %v2460
        %2494 = vst.msk [vmem:[%s2465 + $0x151] sm:$0xff] %vm389, %v2461
        %2495 = vst.msk [vmem:[%s2465 + $0x159] sm:$0xff] %vm389, %v2462
        %2496 = vst.msk [vmem:[%s2465 + $0x169] sm:$0xff] %vm389, %v2463
        %2497 = vst.msk [vmem:[%s2465 + $0x171] sm:$0xff] %vm389, %v2464
        %v2498 = vld [vmem:[%s3] sm:$0xff]
        %v2499 = vld [vmem:[%s3 + $0x8] sm:$0xff]
        %v2500 = vld [vmem:[%s3 + $0x10] sm:$0xff]
        %v2501 = vld [vmem:[%s3 + $0x18] sm:$0xff]
        %v2502 = vld [vmem:[%s3 + $0x20] sm:$0xff]
        %v2503 = vld [vmem:[%s3 + $0x28] sm:$0xff]
        %v2504 = vld [vmem:[%s3 + $0x30] sm:$0xff]
        %v2505 = vld [vmem:[%s3 + $0x38] sm:$0xff]
        %v2506 = vld [vmem:[%s3 + $0x40] sm:$0xff]
        %v2507 = vld [vmem:[%s3 + $0x48] sm:$0xff]
        %v2508 = vld [vmem:[%s3 + $0x50] sm:$0xff]
        %v2509 = vld [vmem:[%s3 + $0x58] sm:$0xff]
        %v2510 = vld [vmem:[%s3 + $0x60] sm:$0xff]
        %v2511 = vld [vmem:[%s3 + $0x68] sm:$0xff]
        %v2512 = vld [vmem:[%s3 + $0x70] sm:$0xff]
        %v2513 = vld [vmem:[%s3 + $0x78] sm:$0xff]
        %v2514 = vld [vmem:[%s3 + $0x80] sm:$0xff]
        %v2515 = vld [vmem:[%s3 + $0x88] sm:$0xff]
        %v2516 = vld [vmem:[%s3 + $0x90] sm:$0xff]
        %v2517 = vld [vmem:[%s3 + $0x98] sm:$0xff]
        %v2518 = vld [vmem:[%s3 + $0xa0] sm:$0xff]
        %v2519 = vld [vmem:[%s3 + $0xa8] sm:$0xff]
        %v2520 = vld [vmem:[%s3 + $0xb0] sm:$0xff]
        %v2521 = vld [vmem:[%s3 + $0xb8] sm:$0xff]
        %v2522 = vld [vmem:[%s3 + $0xc0] sm:$0xff]
        %v2523 = vld [vmem:[%s3 + $0xc8] sm:$0xff]
        %v2524 = vld [vmem:[%s3 + $0xd0] sm:$0xff]
        %v2525 = vld [vmem:[%s3 + $0xd8] sm:$0xff]
        %v2526 = vld [vmem:[%s3 + $0xe0] sm:$0xff]
        %v2527 = vld [vmem:[%s3 + $0xe8] sm:$0xff]
        %v2528 = vld [vmem:[%s3 + $0xf0] sm:$0xff]
        %v2529 = vld [vmem:[%s3 + $0xf8] sm:$0xff]
        %v2530 = vld [vmem:[%s3 + $0x100] sm:$0xff]
        %v2531 = vld [vmem:[%s3 + $0x108] sm:$0xff]
        %v2532 = vld [vmem:[%s3 + $0x110] sm:$0xff]
        %v2533 = vld [vmem:[%s3 + $0x118] sm:$0xff]
        %v2534 = vld [vmem:[%s3 + $0x120] sm:$0xff]
        %v2535 = vld [vmem:[%s3 + $0x128] sm:$0xff]
        %v2536 = vld [vmem:[%s3 + $0x130] sm:$0xff]
        %v2537 = vld [vmem:[%s3 + $0x138] sm:$0xff]
        %v2538 = vld [vmem:[%s3 + $0x140] sm:$0xff]
        %v2539 = vld [vmem:[%s3 + $0x148] sm:$0xff]
        %v2540 = vld [vmem:[%s3 + $0x150] sm:$0xff]
        %v2541 = vld [vmem:[%s3 + $0x158] sm:$0xff]
        %v2542 = vld [vmem:[%s3 + $0x160] sm:$0xff]
        %v2543 = vld [vmem:[%s3 + $0x168] sm:$0xff]
        %v2544 = vld [vmem:[%s3 + $0x170] sm:$0xff]
        %v2545 = vld [vmem:[%s3 + $0x178] sm:$0xff]
        %v2546 = vld [vmem:[%s3 + $0x180] sm:$0xff]
        %v2547 = vld [vmem:[%s3 + $0x188] sm:$0xff]
        %v2548 = vld [vmem:[%s3 + $0x190] sm:$0xff]
        %v2549 = vld [vmem:[%s3 + $0x198] sm:$0xff]
        %v2550 = vld [vmem:[%s3 + $0x1a0] sm:$0xff]
        %v2551 = vld [vmem:[%s3 + $0x1a8] sm:$0xff]
        %v2552 = vld [vmem:[%s3 + $0x1b0] sm:$0xff]
        %v2553 = vld [vmem:[%s3 + $0x1b8] sm:$0xff]
        %v2554 = vld [vmem:[%s3 + $0x1c0] sm:$0xff]
        %v2555 = vld [vmem:[%s3 + $0x1c8] sm:$0xff]
        %v2556 = vld [vmem:[%s3 + $0x1d0] sm:$0xff]
        %v2557 = vld [vmem:[%s3 + $0x1d8] sm:$0xff]
        %v2558 = vld [vmem:[%s3 + $0x1e0] sm:$0xff]
        %v2559 = vld [vmem:[%s3 + $0x1e8] sm:$0xff]
        %v2560 = vld [vmem:[%s3 + $0x1f0] sm:$0xff]
        %v2561 = vld [vmem:[%s3 + $0x1f8] sm:$0xff]
        %v2562 = vld [vmem:[%s3 + $0x200] sm:$0xff]
        %v2563 = vld [vmem:[%s3 + $0x208] sm:$0xff]
        %v2564 = vld [vmem:[%s3 + $0x210] sm:$0xff]
        %v2565 = vld [vmem:[%s3 + $0x218] sm:$0xff]
        %v2566 = vld [vmem:[%s3 + $0x220] sm:$0xff]
        %v2567 = vld [vmem:[%s3 + $0x228] sm:$0xff]
        %v2568 = vld [vmem:[%s3 + $0x230] sm:$0xff]
        %v2569 = vld [vmem:[%s3 + $0x238] sm:$0xff]
        %v2570 = vld [vmem:[%s4] sm:$0x1]
        %v2571 = vld [vmem:[#allocation3] sm:$0xff]
        %v2572 = vld [vmem:[#allocation3 + $0x8] sm:$0xff]
        %v2573 = vld [vmem:[#allocation3 + $0x18] sm:$0xff]
        %v2574 = vld [vmem:[#allocation3 + $0x20] sm:$0xff]
        %v2575 = vld [vmem:[#allocation3 + $0x30] sm:$0xff]
        %v2576 = vld [vmem:[#allocation3 + $0x38] sm:$0xff]
        %v2577 = vld [vmem:[#allocation3 + $0x48] sm:$0xff]
        %v2578 = vld [vmem:[#allocation3 + $0x50] sm:$0xff]
        %v2579 = vld [vmem:[#allocation3 + $0x60] sm:$0xff]
        %v2580 = vld [vmem:[#allocation3 + $0x68] sm:$0xff]
        %v2581 = vld [vmem:[#allocation3 + $0x78] sm:$0xff]
        %v2582 = vld [vmem:[#allocation3 + $0x80] sm:$0xff]
        %v2583 = vld [vmem:[#allocation3 + $0x90] sm:$0xff]
        %v2584 = vld [vmem:[#allocation3 + $0x98] sm:$0xff]
        %v2585 = vld [vmem:[#allocation3 + $0xa8] sm:$0xff]
        %v2586 = vld [vmem:[#allocation3 + $0xb0] sm:$0xff]
        %v2587 = vld [vmem:[#allocation3 + $0xc0] sm:$0xff]
        %v2588 = vld [vmem:[#allocation3 + $0xc8] sm:$0xff]
        %v2589 = vld [vmem:[#allocation3 + $0xd8] sm:$0xff]
        %v2590 = vld [vmem:[#allocation3 + $0xe0] sm:$0xff]
        %v2591 = vld [vmem:[#allocation3 + $0xf0] sm:$0xff]
        %v2592 = vld [vmem:[#allocation3 + $0xf8] sm:$0xff]
        %v2593 = vld [vmem:[#allocation3 + $0x108] sm:$0xff]
        %v2594 = vld [vmem:[#allocation3 + $0x110] sm:$0xff]
        %v2595 = vld [vmem:[#allocation3 + $0x120] sm:$0xff]
        %v2596 = vld [vmem:[#allocation3 + $0x128] sm:$0xff]
        %v2597 = vld [vmem:[#allocation3 + $0x138] sm:$0xff]
        %v2598 = vld [vmem:[#allocation3 + $0x140] sm:$0xff]
        %v2599 = vld [vmem:[#allocation3 + $0x150] sm:$0xff]
        %v2600 = vld [vmem:[#allocation3 + $0x158] sm:$0xff]
        %v2601 = vld [vmem:[#allocation3 + $0x168] sm:$0xff]
        %v2602 = vld [vmem:[#allocation3 + $0x170] sm:$0xff]
        %v2603 = vld [vmem:[#allocation3 + $0x1] sm:$0xff]
        %v2604 = vld [vmem:[#allocation3 + $0x9] sm:$0xff]
        %v2605 = vld [vmem:[#allocation3 + $0x19] sm:$0xff]
        %v2606 = vld [vmem:[#allocation3 + $0x21] sm:$0xff]
        %v2607 = vld [vmem:[#allocation3 + $0x31] sm:$0xff]
        %v2608 = vld [vmem:[#allocation3 + $0x39] sm:$0xff]
        %v2609 = vld [vmem:[#allocation3 + $0x49] sm:$0xff]
        %v2610 = vld [vmem:[#allocation3 + $0x51] sm:$0xff]
        %v2611 = vld [vmem:[#allocation3 + $0x61] sm:$0xff]
        %v2612 = vld [vmem:[#allocation3 + $0x69] sm:$0xff]
        %v2613 = vld [vmem:[#allocation3 + $0x79] sm:$0xff]
        %v2614 = vld [vmem:[#allocation3 + $0x81] sm:$0xff]
        %v2615 = vld [vmem:[#allocation3 + $0x91] sm:$0xff]
        %v2616 = vld [vmem:[#allocation3 + $0x99] sm:$0xff]
        %v2617 = vld [vmem:[#allocation3 + $0xa9] sm:$0xff]
        %v2618 = vld [vmem:[#allocation3 + $0xb1] sm:$0xff]
        %v2619 = vld [vmem:[#allocation3 + $0xc1] sm:$0xff]
        %v2620 = vld [vmem:[#allocation3 + $0xc9] sm:$0xff]
        %v2621 = vld [vmem:[#allocation3 + $0xd9] sm:$0xff]
        %v2622 = vld [vmem:[#allocation3 + $0xe1] sm:$0xff]
        %v2623 = vld [vmem:[#allocation3 + $0xf1] sm:$0xff]
        %v2624 = vld [vmem:[#allocation3 + $0xf9] sm:$0xff]
        %v2625 = vld [vmem:[#allocation3 + $0x109] sm:$0xff]
        %v2626 = vld [vmem:[#allocation3 + $0x111] sm:$0xff]
        %v2627 = vld [vmem:[#allocation3 + $0x121] sm:$0xff]
        %v2628 = vld [vmem:[#allocation3 + $0x129] sm:$0xff]
        %v2629 = vld [vmem:[#allocation3 + $0x139] sm:$0xff]
        %v2630 = vld [vmem:[#allocation3 + $0x141] sm:$0xff]
        %v2631 = vld [vmem:[#allocation3 + $0x151] sm:$0xff]
        %v2632 = vld [vmem:[#allocation3 + $0x159] sm:$0xff]
        %v2633 = vld [vmem:[#allocation3 + $0x169] sm:$0xff]
        %v2634 = vld [vmem:[#allocation3 + $0x171] sm:$0xff]
        %v2635 = vld [vmem:[#allocation3 + $0x2] sm:$0xff]
        %v2636 = vld [vmem:[#allocation3 + $0xa] sm:$0xff]
        %v2637 = vld [vmem:[#allocation3 + $0x1a] sm:$0xff]
        %v2638 = vld [vmem:[#allocation3 + $0x22] sm:$0xff]
        %v2639 = vld [vmem:[#allocation3 + $0x32] sm:$0xff]
        %v2640 = vld [vmem:[#allocation3 + $0x3a] sm:$0xff]
        %v2641 = vld [vmem:[#allocation3 + $0x4a] sm:$0xff]
        %v2642 = vld [vmem:[#allocation3 + $0x52] sm:$0xff]
        %v2643 = vld [vmem:[#allocation3 + $0x62] sm:$0xff]
        %v2644 = vld [vmem:[#allocation3 + $0x6a] sm:$0xff]
        %v2645 = vld [vmem:[#allocation3 + $0x7a] sm:$0xff]
        %v2646 = vld [vmem:[#allocation3 + $0x82] sm:$0xff]
        %v2647 = vld [vmem:[#allocation3 + $0x92] sm:$0xff]
        %v2648 = vld [vmem:[#allocation3 + $0x9a] sm:$0xff]
        %v2649 = vld [vmem:[#allocation3 + $0xaa] sm:$0xff]
        %v2650 = vld [vmem:[#allocation3 + $0xb2] sm:$0xff]
        %v2651 = vld [vmem:[#allocation3 + $0xc2] sm:$0xff]
        %v2652 = vld [vmem:[#allocation3 + $0xca] sm:$0xff]
        %v2653 = vld [vmem:[#allocation3 + $0xda] sm:$0xff]
        %v2654 = vld [vmem:[#allocation3 + $0xe2] sm:$0xff]
        %v2655 = vld [vmem:[#allocation3 + $0xf2] sm:$0xff]
        %v2656 = vld [vmem:[#allocation3 + $0xfa] sm:$0xff]
        %v2657 = vld [vmem:[#allocation3 + $0x10a] sm:$0xff]
        %v2658 = vld [vmem:[#allocation3 + $0x112] sm:$0xff]
        %v2659 = vld [vmem:[#allocation3 + $0x122] sm:$0xff]
        %v2660 = vld [vmem:[#allocation3 + $0x12a] sm:$0xff]
        %v2661 = vld [vmem:[#allocation3 + $0x13a] sm:$0xff]
        %v2662 = vld [vmem:[#allocation3 + $0x142] sm:$0xff]
        %v2663 = vld [vmem:[#allocation3 + $0x152] sm:$0xff]
        %v2664 = vld [vmem:[#allocation3 + $0x15a] sm:$0xff]
        %v2665 = vld [vmem:[#allocation3 + $0x16a] sm:$0xff]
        %v2666 = vld [vmem:[#allocation3 + $0x172] sm:$0xff]
        %v2667 = vld [vmem:[%s2465] sm:$0xff]
        %v2668 = vld [vmem:[%s2465 + $0x8] sm:$0xff]
        %v2669 = vld [vmem:[%s2465 + $0x18] sm:$0xff]
        %v2670 = vld [vmem:[%s2465 + $0x20] sm:$0xff]
        %v2671 = vld [vmem:[%s2465 + $0x30] sm:$0xff]
        %v2672 = vld [vmem:[%s2465 + $0x38] sm:$0xff]
        %v2673 = vld [vmem:[%s2465 + $0x48] sm:$0xff]
        %v2674 = vld [vmem:[%s2465 + $0x50] sm:$0xff]
        %v2675 = vld [vmem:[%s2465 + $0x60] sm:$0xff]
        %v2676 = vld [vmem:[%s2465 + $0x68] sm:$0xff]
        %v2677 = vld [vmem:[%s2465 + $0x78] sm:$0xff]
        %v2678 = vld [vmem:[%s2465 + $0x80] sm:$0xff]
        %v2679 = vld [vmem:[%s2465 + $0x90] sm:$0xff]
        %v2680 = vld [vmem:[%s2465 + $0x98] sm:$0xff]
        %v2681 = vld [vmem:[%s2465 + $0xa8] sm:$0xff]
        %v2682 = vld [vmem:[%s2465 + $0xb0] sm:$0xff]
        %v2683 = vld [vmem:[%s2465 + $0xc0] sm:$0xff]
        %v2684 = vld [vmem:[%s2465 + $0xc8] sm:$0xff]
        %v2685 = vld [vmem:[%s2465 + $0xd8] sm:$0xff]
        %v2686 = vld [vmem:[%s2465 + $0xe0] sm:$0xff]
        %v2687 = vld [vmem:[%s2465 + $0xf0] sm:$0xff]
        %v2688 = vld [vmem:[%s2465 + $0xf8] sm:$0xff]
        %v2689 = vld [vmem:[%s2465 + $0x108] sm:$0xff]
        %v2690 = vld [vmem:[%s2465 + $0x110] sm:$0xff]
        %v2691 = vld [vmem:[%s2465 + $0x120] sm:$0xff]
        %v2692 = vld [vmem:[%s2465 + $0x128] sm:$0xff]
        %v2693 = vld [vmem:[%s2465 + $0x138] sm:$0xff]
        %v2694 = vld [vmem:[%s2465 + $0x140] sm:$0xff]
        %v2695 = vld [vmem:[%s2465 + $0x150] sm:$0xff]
        %v2696 = vld [vmem:[%s2465 + $0x158] sm:$0xff]
        %v2697 = vld [vmem:[%s2465 + $0x168] sm:$0xff]
        %v2698 = vld [vmem:[%s2465 + $0x170] sm:$0xff]
        %v2699 = vld [vmem:[%s2465 + $0x1] sm:$0xff]
        %v2700 = vld [vmem:[%s2465 + $0x9] sm:$0xff]
        %v2701 = vld [vmem:[%s2465 + $0x19] sm:$0xff]
        %v2702 = vld [vmem:[%s2465 + $0x21] sm:$0xff]
        %v2703 = vld [vmem:[%s2465 + $0x31] sm:$0xff]
        %v2704 = vld [vmem:[%s2465 + $0x39] sm:$0xff]
        %v2705 = vld [vmem:[%s2465 + $0x49] sm:$0xff]
        %v2706 = vld [vmem:[%s2465 + $0x51] sm:$0xff]
        %v2707 = vld [vmem:[%s2465 + $0x61] sm:$0xff]
        %v2708 = vld [vmem:[%s2465 + $0x69] sm:$0xff]
        %v2709 = vld [vmem:[%s2465 + $0x79] sm:$0xff]
        %v2710 = vld [vmem:[%s2465 + $0x81] sm:$0xff]
        %v2711 = vld [vmem:[%s2465 + $0x91] sm:$0xff]
        %v2712 = vld [vmem:[%s2465 + $0x99] sm:$0xff]
        %v2713 = vld [vmem:[%s2465 + $0xa9] sm:$0xff]
        %v2714 = vld [vmem:[%s2465 + $0xb1] sm:$0xff]
        %v2715 = vld [vmem:[%s2465 + $0xc1] sm:$0xff]
        %v2716 = vld [vmem:[%s2465 + $0xc9] sm:$0xff]
        %v2717 = vld [vmem:[%s2465 + $0xd9] sm:$0xff]
        %v2718 = vld [vmem:[%s2465 + $0xe1] sm:$0xff]
        %v2719 = vld [vmem:[%s2465 + $0xf1] sm:$0xff]
        %v2720 = vld [vmem:[%s2465 + $0xf9] sm:$0xff]
        %v2721 = vld [vmem:[%s2465 + $0x109] sm:$0xff]
        %v2722 = vld [vmem:[%s2465 + $0x111] sm:$0xff]
        %v2723 = vld [vmem:[%s2465 + $0x121] sm:$0xff]
        %v2724 = vld [vmem:[%s2465 + $0x129] sm:$0xff]
        %v2725 = vld [vmem:[%s2465 + $0x139] sm:$0xff]
        %v2726 = vld [vmem:[%s2465 + $0x141] sm:$0xff]
        %v2727 = vld [vmem:[%s2465 + $0x151] sm:$0xff]
        %v2728 = vld [vmem:[%s2465 + $0x159] sm:$0xff]
        %v2729 = vld [vmem:[%s2465 + $0x169] sm:$0xff]
        %v2730 = vld [vmem:[%s2465 + $0x171] sm:$0xff]
        %v2731 = vld [vmem:[%s2465 + $0x2] sm:$0xff]
        %v2732 = vld [vmem:[%s2465 + $0xa] sm:$0xff]
        %v2733 = vld [vmem:[%s2465 + $0x1a] sm:$0xff]
        %v2734 = vld [vmem:[%s2465 + $0x22] sm:$0xff]
        %v2735 = vld [vmem:[%s2465 + $0x32] sm:$0xff]
        %v2736 = vld [vmem:[%s2465 + $0x3a] sm:$0xff]
        %v2737 = vld [vmem:[%s2465 + $0x4a] sm:$0xff]
        %v2738 = vld [vmem:[%s2465 + $0x52] sm:$0xff]
        %v2739 = vld [vmem:[%s2465 + $0x62] sm:$0xff]
        %v2740 = vld [vmem:[%s2465 + $0x6a] sm:$0xff]
        %v2741 = vld [vmem:[%s2465 + $0x7a] sm:$0xff]
        %v2742 = vld [vmem:[%s2465 + $0x82] sm:$0xff]
        %v2743 = vld [vmem:[%s2465 + $0x92] sm:$0xff]
        %v2744 = vld [vmem:[%s2465 + $0x9a] sm:$0xff]
        %v2745 = vld [vmem:[%s2465 + $0xaa] sm:$0xff]
        %v2746 = vld [vmem:[%s2465 + $0xb2] sm:$0xff]
        %v2747 = vld [vmem:[%s2465 + $0xc2] sm:$0xff]
        %v2748 = vld [vmem:[%s2465 + $0xca] sm:$0xff]
        %v2749 = vld [vmem:[%s2465 + $0xda] sm:$0xff]
        %v2750 = vld [vmem:[%s2465 + $0xe2] sm:$0xff]
        %v2751 = vld [vmem:[%s2465 + $0xf2] sm:$0xff]
        %v2752 = vld [vmem:[%s2465 + $0xfa] sm:$0xff]
        %v2753 = vld [vmem:[%s2465 + $0x10a] sm:$0xff]
        %v2754 = vld [vmem:[%s2465 + $0x112] sm:$0xff]
        %v2755 = vld [vmem:[%s2465 + $0x122] sm:$0xff]
        %v2756 = vld [vmem:[%s2465 + $0x12a] sm:$0xff]
        %v2757 = vld [vmem:[%s2465 + $0x13a] sm:$0xff]
        %v2758 = vld [vmem:[%s2465 + $0x142] sm:$0xff]
        %v2759 = vld [vmem:[%s2465 + $0x152] sm:$0xff]
        %v2760 = vld [vmem:[%s2465 + $0x15a] sm:$0xff]
        %v2761 = vld [vmem:[%s2465 + $0x16a] sm:$0xff]
        %v2762 = vld [vmem:[%s2465 + $0x172] sm:$0xff]
        %s2763 = scalar_lea.vmem [#allocation3], 48
        %v2764 = vld [vmem:[%s2763] sm:$0xff]
        %v2765 = vld [vmem:[%s2763 + $0x8] sm:$0xff]
        %v2766 = vld [vmem:[%s2763 + $0x18] sm:$0xff]
        %v2767 = vld [vmem:[%s2763 + $0x20] sm:$0xff]
        %v2768 = vld [vmem:[%s2763 + $0x30] sm:$0xff]
        %v2769 = vld [vmem:[%s2763 + $0x38] sm:$0xff]
        %v2770 = vld [vmem:[%s2763 + $0x48] sm:$0xff]
        %v2771 = vld [vmem:[%s2763 + $0x50] sm:$0xff]
        %v2772 = vld [vmem:[%s2763 + $0x60] sm:$0xff]
        %v2773 = vld [vmem:[%s2763 + $0x68] sm:$0xff]
        %v2774 = vld [vmem:[%s2763 + $0x78] sm:$0xff]
        %v2775 = vld [vmem:[%s2763 + $0x80] sm:$0xff]
        %v2776 = vld [vmem:[%s2763 + $0x90] sm:$0xff]
        %v2777 = vld [vmem:[%s2763 + $0x98] sm:$0xff]
        %v2778 = vld [vmem:[%s2763 + $0xa8] sm:$0xff]
        %v2779 = vld [vmem:[%s2763 + $0xb0] sm:$0xff]
        %v2780 = vld [vmem:[%s2763 + $0xc0] sm:$0xff]
        %v2781 = vld [vmem:[%s2763 + $0xc8] sm:$0xff]
        %v2782 = vld [vmem:[%s2763 + $0xd8] sm:$0xff]
        %v2783 = vld [vmem:[%s2763 + $0xe0] sm:$0xff]
        %v2784 = vld [vmem:[%s2763 + $0xf0] sm:$0xff]
        %v2785 = vld [vmem:[%s2763 + $0xf8] sm:$0xff]
        %v2786 = vld [vmem:[%s2763 + $0x108] sm:$0xff]
        %v2787 = vld [vmem:[%s2763 + $0x110] sm:$0xff]
        %v2788 = vld [vmem:[%s2763 + $0x120] sm:$0xff]
        %v2789 = vld [vmem:[%s2763 + $0x128] sm:$0xff]
        %v2790 = vld [vmem:[%s2763 + $0x138] sm:$0xff]
        %v2791 = vld [vmem:[%s2763 + $0x140] sm:$0xff]
        %v2792 = vld [vmem:[%s2763 + $0x150] sm:$0xff]
        %v2793 = vld [vmem:[%s2763 + $0x158] sm:$0xff]
        %v2794 = vld [vmem:[%s2763 + $0x168] sm:$0xff]
        %v2795 = vld [vmem:[%s2763 + $0x170] sm:$0xff]
        %v2796 = vld [vmem:[%s2763 + $0x1] sm:$0xff]
        %v2797 = vld [vmem:[%s2763 + $0x9] sm:$0xff]
        %v2798 = vld [vmem:[%s2763 + $0x19] sm:$0xff]
        %v2799 = vld [vmem:[%s2763 + $0x21] sm:$0xff]
        %v2800 = vld [vmem:[%s2763 + $0x31] sm:$0xff]
        %v2801 = vld [vmem:[%s2763 + $0x39] sm:$0xff]
        %v2802 = vld [vmem:[%s2763 + $0x49] sm:$0xff]
        %v2803 = vld [vmem:[%s2763 + $0x51] sm:$0xff]
        %v2804 = vld [vmem:[%s2763 + $0x61] sm:$0xff]
        %v2805 = vld [vmem:[%s2763 + $0x69] sm:$0xff]
        %v2806 = vld [vmem:[%s2763 + $0x79] sm:$0xff]
        %v2807 = vld [vmem:[%s2763 + $0x81] sm:$0xff]
        %v2808 = vld [vmem:[%s2763 + $0x91] sm:$0xff]
        %v2809 = vld [vmem:[%s2763 + $0x99] sm:$0xff]
        %v2810 = vld [vmem:[%s2763 + $0xa9] sm:$0xff]
        %v2811 = vld [vmem:[%s2763 + $0xb1] sm:$0xff]
        %v2812 = vld [vmem:[%s2763 + $0xc1] sm:$0xff]
        %v2813 = vld [vmem:[%s2763 + $0xc9] sm:$0xff]
        %v2814 = vld [vmem:[%s2763 + $0xd9] sm:$0xff]
        %v2815 = vld [vmem:[%s2763 + $0xe1] sm:$0xff]
        %v2816 = vld [vmem:[%s2763 + $0xf1] sm:$0xff]
        %v2817 = vld [vmem:[%s2763 + $0xf9] sm:$0xff]
        %v2818 = vld [vmem:[%s2763 + $0x109] sm:$0xff]
        %v2819 = vld [vmem:[%s2763 + $0x111] sm:$0xff]
        %v2820 = vld [vmem:[%s2763 + $0x121] sm:$0xff]
        %v2821 = vld [vmem:[%s2763 + $0x129] sm:$0xff]
        %v2822 = vld [vmem:[%s2763 + $0x139] sm:$0xff]
        %v2823 = vld [vmem:[%s2763 + $0x141] sm:$0xff]
        %v2824 = vld [vmem:[%s2763 + $0x151] sm:$0xff]
        %v2825 = vld [vmem:[%s2763 + $0x159] sm:$0xff]
        %v2826 = vld [vmem:[%s2763 + $0x169] sm:$0xff]
        %v2827 = vld [vmem:[%s2763 + $0x171] sm:$0xff]
        %v2828 = vld [vmem:[%s2763 + $0x2] sm:$0xff]
        %v2829 = vld [vmem:[%s2763 + $0xa] sm:$0xff]
        %v2830 = vld [vmem:[%s2763 + $0x1a] sm:$0xff]
        %v2831 = vld [vmem:[%s2763 + $0x22] sm:$0xff]
        %v2832 = vld [vmem:[%s2763 + $0x32] sm:$0xff]
        %v2833 = vld [vmem:[%s2763 + $0x3a] sm:$0xff]
        %v2834 = vld [vmem:[%s2763 + $0x4a] sm:$0xff]
        %v2835 = vld [vmem:[%s2763 + $0x52] sm:$0xff]
        %v2836 = vld [vmem:[%s2763 + $0x62] sm:$0xff]
        %v2837 = vld [vmem:[%s2763 + $0x6a] sm:$0xff]
        %v2838 = vld [vmem:[%s2763 + $0x7a] sm:$0xff]
        %v2839 = vld [vmem:[%s2763 + $0x82] sm:$0xff]
        %v2840 = vld [vmem:[%s2763 + $0x92] sm:$0xff]
        %v2841 = vld [vmem:[%s2763 + $0x9a] sm:$0xff]
        %v2842 = vld [vmem:[%s2763 + $0xaa] sm:$0xff]
        %v2843 = vld [vmem:[%s2763 + $0xb2] sm:$0xff]
        %v2844 = vld [vmem:[%s2763 + $0xc2] sm:$0xff]
        %v2845 = vld [vmem:[%s2763 + $0xca] sm:$0xff]
        %v2846 = vld [vmem:[%s2763 + $0xda] sm:$0xff]
        %v2847 = vld [vmem:[%s2763 + $0xe2] sm:$0xff]
        %v2848 = vld [vmem:[%s2763 + $0xf2] sm:$0xff]
        %v2849 = vld [vmem:[%s2763 + $0xfa] sm:$0xff]
        %v2850 = vld [vmem:[%s2763 + $0x10a] sm:$0xff]
        %v2851 = vld [vmem:[%s2763 + $0x112] sm:$0xff]
        %v2852 = vld [vmem:[%s2763 + $0x122] sm:$0xff]
        %v2853 = vld [vmem:[%s2763 + $0x12a] sm:$0xff]
        %v2854 = vld [vmem:[%s2763 + $0x13a] sm:$0xff]
        %v2855 = vld [vmem:[%s2763 + $0x142] sm:$0xff]
        %v2856 = vld [vmem:[%s2763 + $0x152] sm:$0xff]
        %v2857 = vld [vmem:[%s2763 + $0x15a] sm:$0xff]
        %v2858 = vld [vmem:[%s2763 + $0x16a] sm:$0xff]
        %v2859 = vld [vmem:[%s2763 + $0x172] sm:$0xff]
        %2892 = vrot.lane.b32.xlu0 %v2603, 64
        %v2893 = vpop.permute.xlu0 %2892
        %2894 = vrot.lane.b32.xlu0 %v2604, 64
        %v2895 = vpop.permute.xlu0 %2894
        %2896 = vrot.lane.b32.xlu0 %v2605, 64
        %v2897 = vpop.permute.xlu0 %2896
        %2898 = vrot.lane.b32.xlu0 %v2606, 64
        %v2899 = vpop.permute.xlu0 %2898
        %2900 = vrot.lane.b32.xlu0 %v2607, 64
        %v2901 = vpop.permute.xlu0 %2900
        %2902 = vrot.lane.b32.xlu0 %v2608, 64
        %v2903 = vpop.permute.xlu0 %2902
        %2904 = vrot.lane.b32.xlu0 %v2609, 64
        %v2905 = vpop.permute.xlu0 %2904
        %2906 = vrot.lane.b32.xlu0 %v2610, 64
        %v2907 = vpop.permute.xlu0 %2906
        %2908 = vrot.lane.b32.xlu0 %v2611, 64
        %v2909 = vpop.permute.xlu0 %2908
        %2910 = vrot.lane.b32.xlu0 %v2612, 64
        %v2911 = vpop.permute.xlu0 %2910
        %2912 = vrot.lane.b32.xlu0 %v2613, 64
        %v2913 = vpop.permute.xlu0 %2912
        %2914 = vrot.lane.b32.xlu0 %v2614, 64
        %v2915 = vpop.permute.xlu0 %2914
        %2916 = vrot.lane.b32.xlu0 %v2615, 64
        %v2917 = vpop.permute.xlu0 %2916
        %2918 = vrot.lane.b32.xlu0 %v2616, 64
        %v2919 = vpop.permute.xlu0 %2918
        %2920 = vrot.lane.b32.xlu0 %v2617, 64
        %v2921 = vpop.permute.xlu0 %2920
        %2922 = vrot.lane.b32.xlu0 %v2618, 64
        %v2923 = vpop.permute.xlu0 %2922
        %2924 = vrot.lane.b32.xlu0 %v2619, 64
        %v2925 = vpop.permute.xlu0 %2924
        %2926 = vrot.lane.b32.xlu0 %v2620, 64
        %v2927 = vpop.permute.xlu0 %2926
        %2928 = vrot.lane.b32.xlu0 %v2621, 64
        %v2929 = vpop.permute.xlu0 %2928
        %2930 = vrot.lane.b32.xlu0 %v2622, 64
        %v2931 = vpop.permute.xlu0 %2930
        %2932 = vrot.lane.b32.xlu0 %v2623, 64
        %v2933 = vpop.permute.xlu0 %2932
        %2934 = vrot.lane.b32.xlu0 %v2624, 64
        %v2935 = vpop.permute.xlu0 %2934
        %2936 = vrot.lane.b32.xlu0 %v2625, 64
        %v2937 = vpop.permute.xlu0 %2936
        %2938 = vrot.lane.b32.xlu0 %v2626, 64
        %v2939 = vpop.permute.xlu0 %2938
        %2940 = vrot.lane.b32.xlu0 %v2627, 64
        %v2941 = vpop.permute.xlu0 %2940
        %2942 = vrot.lane.b32.xlu0 %v2628, 64
        %v2943 = vpop.permute.xlu0 %2942
        %2944 = vrot.lane.b32.xlu0 %v2629, 64
        %v2945 = vpop.permute.xlu0 %2944
        %2946 = vrot.lane.b32.xlu0 %v2630, 64
        %v2947 = vpop.permute.xlu0 %2946
        %2948 = vrot.lane.b32.xlu0 %v2631, 64
        %v2949 = vpop.permute.xlu0 %2948
        %2950 = vrot.lane.b32.xlu0 %v2632, 64
        %v2951 = vpop.permute.xlu0 %2950
        %2952 = vrot.lane.b32.xlu0 %v2633, 64
        %v2953 = vpop.permute.xlu0 %2952
        %2954 = vrot.lane.b32.xlu0 %v2634, 64
        %v2955 = vpop.permute.xlu0 %2954
        %3020 = vrot.lane.b32.xlu0 %v2667, 64
        %v3021 = vpop.permute.xlu0 %3020
        %3022 = vrot.lane.b32.xlu0 %v2668, 64
        %v3023 = vpop.permute.xlu0 %3022
        %3024 = vrot.lane.b32.xlu0 %v2669, 64
        %v3025 = vpop.permute.xlu0 %3024
        %3026 = vrot.lane.b32.xlu0 %v2670, 64
        %v3027 = vpop.permute.xlu0 %3026
        %3028 = vrot.lane.b32.xlu0 %v2671, 64
        %v3029 = vpop.permute.xlu0 %3028
        %3030 = vrot.lane.b32.xlu0 %v2672, 64
        %v3031 = vpop.permute.xlu0 %3030
        %3032 = vrot.lane.b32.xlu0 %v2673, 64
        %v3033 = vpop.permute.xlu0 %3032
        %3034 = vrot.lane.b32.xlu0 %v2674, 64
        %v3035 = vpop.permute.xlu0 %3034
        %3036 = vrot.lane.b32.xlu0 %v2675, 64
        %v3037 = vpop.permute.xlu0 %3036
        %3038 = vrot.lane.b32.xlu0 %v2676, 64
        %v3039 = vpop.permute.xlu0 %3038
        %3040 = vrot.lane.b32.xlu0 %v2677, 64
        %v3041 = vpop.permute.xlu0 %3040
        %3042 = vrot.lane.b32.xlu0 %v2678, 64
        %v3043 = vpop.permute.xlu0 %3042
        %3044 = vrot.lane.b32.xlu0 %v2679, 64
        %v3045 = vpop.permute.xlu0 %3044
        %3046 = vrot.lane.b32.xlu0 %v2680, 64
        %v3047 = vpop.permute.xlu0 %3046
        %3048 = vrot.lane.b32.xlu0 %v2681, 64
        %v3049 = vpop.permute.xlu0 %3048
        %3050 = vrot.lane.b32.xlu0 %v2682, 64
        %v3051 = vpop.permute.xlu0 %3050
        %3052 = vrot.lane.b32.xlu0 %v2683, 64
        %v3053 = vpop.permute.xlu0 %3052
        %3054 = vrot.lane.b32.xlu0 %v2684, 64
        %v3055 = vpop.permute.xlu0 %3054
        %3056 = vrot.lane.b32.xlu0 %v2685, 64
        %v3057 = vpop.permute.xlu0 %3056
        %3058 = vrot.lane.b32.xlu0 %v2686, 64
        %v3059 = vpop.permute.xlu0 %3058
        %3060 = vrot.lane.b32.xlu0 %v2687, 64
        %v3061 = vpop.permute.xlu0 %3060
        %3062 = vrot.lane.b32.xlu0 %v2688, 64
        %v3063 = vpop.permute.xlu0 %3062
        %3064 = vrot.lane.b32.xlu0 %v2689, 64
        %v3065 = vpop.permute.xlu0 %3064
        %3066 = vrot.lane.b32.xlu0 %v2690, 64
        %v3067 = vpop.permute.xlu0 %3066
        %3068 = vrot.lane.b32.xlu0 %v2691, 64
        %v3069 = vpop.permute.xlu0 %3068
        %3070 = vrot.lane.b32.xlu0 %v2692, 64
        %v3071 = vpop.permute.xlu0 %3070
        %3072 = vrot.lane.b32.xlu0 %v2693, 64
        %v3073 = vpop.permute.xlu0 %3072
        %3074 = vrot.lane.b32.xlu0 %v2694, 64
        %v3075 = vpop.permute.xlu0 %3074
        %3076 = vrot.lane.b32.xlu0 %v2695, 64
        %v3077 = vpop.permute.xlu0 %3076
        %3078 = vrot.lane.b32.xlu0 %v2696, 64
        %v3079 = vpop.permute.xlu0 %3078
        %3080 = vrot.lane.b32.xlu0 %v2697, 64
        %v3081 = vpop.permute.xlu0 %3080
        %3082 = vrot.lane.b32.xlu0 %v2698, 64
        %v3083 = vpop.permute.xlu0 %3082
        %3148 = vrot.lane.b32.xlu0 %v2731, 64
        %v3149 = vpop.permute.xlu0 %3148
        %3150 = vrot.lane.b32.xlu0 %v2732, 64
        %v3151 = vpop.permute.xlu0 %3150
        %3152 = vrot.lane.b32.xlu0 %v2733, 64
        %v3153 = vpop.permute.xlu0 %3152
        %3154 = vrot.lane.b32.xlu0 %v2734, 64
        %v3155 = vpop.permute.xlu0 %3154
        %3156 = vrot.lane.b32.xlu0 %v2735, 64
        %v3157 = vpop.permute.xlu0 %3156
        %3158 = vrot.lane.b32.xlu0 %v2736, 64
        %v3159 = vpop.permute.xlu0 %3158
        %3160 = vrot.lane.b32.xlu0 %v2737, 64
        %v3161 = vpop.permute.xlu0 %3160
        %3162 = vrot.lane.b32.xlu0 %v2738, 64
        %v3163 = vpop.permute.xlu0 %3162
        %3164 = vrot.lane.b32.xlu0 %v2739, 64
        %v3165 = vpop.permute.xlu0 %3164
        %3166 = vrot.lane.b32.xlu0 %v2740, 64
        %v3167 = vpop.permute.xlu0 %3166
        %3168 = vrot.lane.b32.xlu0 %v2741, 64
        %v3169 = vpop.permute.xlu0 %3168
        %3170 = vrot.lane.b32.xlu0 %v2742, 64
        %v3171 = vpop.permute.xlu0 %3170
        %3172 = vrot.lane.b32.xlu0 %v2743, 64
        %v3173 = vpop.permute.xlu0 %3172
        %3174 = vrot.lane.b32.xlu0 %v2744, 64
        %v3175 = vpop.permute.xlu0 %3174
        %3176 = vrot.lane.b32.xlu0 %v2745, 64
        %v3177 = vpop.permute.xlu0 %3176
        %3178 = vrot.lane.b32.xlu0 %v2746, 64
        %v3179 = vpop.permute.xlu0 %3178
        %3180 = vrot.lane.b32.xlu0 %v2747, 64
        %v3181 = vpop.permute.xlu0 %3180
        %3182 = vrot.lane.b32.xlu0 %v2748, 64
        %v3183 = vpop.permute.xlu0 %3182
        %3184 = vrot.lane.b32.xlu0 %v2749, 64
        %v3185 = vpop.permute.xlu0 %3184
        %3186 = vrot.lane.b32.xlu0 %v2750, 64
        %v3187 = vpop.permute.xlu0 %3186
        %3188 = vrot.lane.b32.xlu0 %v2751, 64
        %v3189 = vpop.permute.xlu0 %3188
        %3190 = vrot.lane.b32.xlu0 %v2752, 64
        %v3191 = vpop.permute.xlu0 %3190
        %3192 = vrot.lane.b32.xlu0 %v2753, 64
        %v3193 = vpop.permute.xlu0 %3192
        %3194 = vrot.lane.b32.xlu0 %v2754, 64
        %v3195 = vpop.permute.xlu0 %3194
        %3196 = vrot.lane.b32.xlu0 %v2755, 64
        %v3197 = vpop.permute.xlu0 %3196
        %3198 = vrot.lane.b32.xlu0 %v2756, 64
        %v3199 = vpop.permute.xlu0 %3198
        %3200 = vrot.lane.b32.xlu0 %v2757, 64
        %v3201 = vpop.permute.xlu0 %3200
        %3202 = vrot.lane.b32.xlu0 %v2758, 64
        %v3203 = vpop.permute.xlu0 %3202
        %3204 = vrot.lane.b32.xlu0 %v2759, 64
        %v3205 = vpop.permute.xlu0 %3204
        %3206 = vrot.lane.b32.xlu0 %v2760, 64
        %v3207 = vpop.permute.xlu0 %3206
        %3208 = vrot.lane.b32.xlu0 %v2761, 64
        %v3209 = vpop.permute.xlu0 %3208
        %3210 = vrot.lane.b32.xlu0 %v2762, 64
        %v3211 = vpop.permute.xlu0 %3210
        %3276 = vrot.lane.b32.xlu0 %v2796, 64
        %v3277 = vpop.permute.xlu0 %3276
        %3278 = vrot.lane.b32.xlu0 %v2797, 64
        %v3279 = vpop.permute.xlu0 %3278
        %3280 = vrot.lane.b32.xlu0 %v2798, 64
        %v3281 = vpop.permute.xlu0 %3280
        %3282 = vrot.lane.b32.xlu0 %v2799, 64
        %v3283 = vpop.permute.xlu0 %3282
        %3284 = vrot.lane.b32.xlu0 %v2800, 64
        %v3285 = vpop.permute.xlu0 %3284
        %3286 = vrot.lane.b32.xlu0 %v2801, 64
        %v3287 = vpop.permute.xlu0 %3286
        %3288 = vrot.lane.b32.xlu0 %v2802, 64
        %v3289 = vpop.permute.xlu0 %3288
        %3290 = vrot.lane.b32.xlu0 %v2803, 64
        %v3291 = vpop.permute.xlu0 %3290
        %3292 = vrot.lane.b32.xlu0 %v2804, 64
        %v3293 = vpop.permute.xlu0 %3292
        %3294 = vrot.lane.b32.xlu0 %v2805, 64
        %v3295 = vpop.permute.xlu0 %3294
        %3296 = vrot.lane.b32.xlu0 %v2806, 64
        %v3297 = vpop.permute.xlu0 %3296
        %3298 = vrot.lane.b32.xlu0 %v2807, 64
        %v3299 = vpop.permute.xlu0 %3298
        %3300 = vrot.lane.b32.xlu0 %v2808, 64
        %v3301 = vpop.permute.xlu0 %3300
        %3302 = vrot.lane.b32.xlu0 %v2809, 64
        %v3303 = vpop.permute.xlu0 %3302
        %3304 = vrot.lane.b32.xlu0 %v2810, 64
        %v3305 = vpop.permute.xlu0 %3304
        %3306 = vrot.lane.b32.xlu0 %v2811, 64
        %v3307 = vpop.permute.xlu0 %3306
        %3308 = vrot.lane.b32.xlu0 %v2812, 64
        %v3309 = vpop.permute.xlu0 %3308
        %3310 = vrot.lane.b32.xlu0 %v2813, 64
        %v3311 = vpop.permute.xlu0 %3310
        %3312 = vrot.lane.b32.xlu0 %v2814, 64
        %v3313 = vpop.permute.xlu0 %3312
        %3314 = vrot.lane.b32.xlu0 %v2815, 64
        %v3315 = vpop.permute.xlu0 %3314
        %3316 = vrot.lane.b32.xlu0 %v2816, 64
        %v3317 = vpop.permute.xlu0 %3316
        %3318 = vrot.lane.b32.xlu0 %v2817, 64
        %v3319 = vpop.permute.xlu0 %3318
        %3320 = vrot.lane.b32.xlu0 %v2818, 64
        %v3321 = vpop.permute.xlu0 %3320
        %3322 = vrot.lane.b32.xlu0 %v2819, 64
        %v3323 = vpop.permute.xlu0 %3322
        %3324 = vrot.lane.b32.xlu0 %v2820, 64
        %v3325 = vpop.permute.xlu0 %3324
        %3326 = vrot.lane.b32.xlu0 %v2821, 64
        %v3327 = vpop.permute.xlu0 %3326
        %3328 = vrot.lane.b32.xlu0 %v2822, 64
        %v3329 = vpop.permute.xlu0 %3328
        %3330 = vrot.lane.b32.xlu0 %v2823, 64
        %v3331 = vpop.permute.xlu0 %3330
        %3332 = vrot.lane.b32.xlu0 %v2824, 64
        %v3333 = vpop.permute.xlu0 %3332
        %3334 = vrot.lane.b32.xlu0 %v2825, 64
        %v3335 = vpop.permute.xlu0 %3334
        %3336 = vrot.lane.b32.xlu0 %v2826, 64
        %v3337 = vpop.permute.xlu0 %3336
        %3338 = vrot.lane.b32.xlu0 %v2827, 64
        %v3339 = vpop.permute.xlu0 %3338
        %v3372 = vsel %vm389, %v2571, %v2893
        %v3373 = vsel %vm389, %v2572, %v2895
        %v3374 = vsel %vm389, %v2573, %v2897
        %v3375 = vsel %vm389, %v2574, %v2899
        %v3376 = vsel %vm389, %v2575, %v2901
        %v3377 = vsel %vm389, %v2576, %v2903
        %v3378 = vsel %vm389, %v2577, %v2905
        %v3379 = vsel %vm389, %v2578, %v2907
        %v3380 = vsel %vm389, %v2579, %v2909
        %v3381 = vsel %vm389, %v2580, %v2911
        %v3382 = vsel %vm389, %v2581, %v2913
        %v3383 = vsel %vm389, %v2582, %v2915
        %v3384 = vsel %vm389, %v2583, %v2917
        %v3385 = vsel %vm389, %v2584, %v2919
        %v3386 = vsel %vm389, %v2585, %v2921
        %v3387 = vsel %vm389, %v2586, %v2923
        %v3388 = vsel %vm389, %v2587, %v2925
        %v3389 = vsel %vm389, %v2588, %v2927
        %v3390 = vsel %vm389, %v2589, %v2929
        %v3391 = vsel %vm389, %v2590, %v2931
        %v3392 = vsel %vm389, %v2591, %v2933
        %v3393 = vsel %vm389, %v2592, %v2935
        %v3394 = vsel %vm389, %v2593, %v2937
        %v3395 = vsel %vm389, %v2594, %v2939
        %v3396 = vsel %vm389, %v2595, %v2941
        %v3397 = vsel %vm389, %v2596, %v2943
        %v3398 = vsel %vm389, %v2597, %v2945
        %v3399 = vsel %vm389, %v2598, %v2947
        %v3400 = vsel %vm389, %v2599, %v2949
        %v3401 = vsel %vm389, %v2600, %v2951
        %v3402 = vsel %vm389, %v2601, %v2953
        %v3403 = vsel %vm389, %v2602, %v2955
        %v3404 = vsel %vm389, %v2635, %v3021
        %v3405 = vsel %vm389, %v2636, %v3023
        %v3406 = vsel %vm389, %v2637, %v3025
        %v3407 = vsel %vm389, %v2638, %v3027
        %v3408 = vsel %vm389, %v2639, %v3029
        %v3409 = vsel %vm389, %v2640, %v3031
        %v3410 = vsel %vm389, %v2641, %v3033
        %v3411 = vsel %vm389, %v2642, %v3035
        %v3412 = vsel %vm389, %v2643, %v3037
        %v3413 = vsel %vm389, %v2644, %v3039
        %v3414 = vsel %vm389, %v2645, %v3041
        %v3415 = vsel %vm389, %v2646, %v3043
        %v3416 = vsel %vm389, %v2647, %v3045
        %v3417 = vsel %vm389, %v2648, %v3047
        %v3418 = vsel %vm389, %v2649, %v3049
        %v3419 = vsel %vm389, %v2650, %v3051
        %v3420 = vsel %vm389, %v2651, %v3053
        %v3421 = vsel %vm389, %v2652, %v3055
        %v3422 = vsel %vm389, %v2653, %v3057
        %v3423 = vsel %vm389, %v2654, %v3059
        %v3424 = vsel %vm389, %v2655, %v3061
        %v3425 = vsel %vm389, %v2656, %v3063
        %v3426 = vsel %vm389, %v2657, %v3065
        %v3427 = vsel %vm389, %v2658, %v3067
        %v3428 = vsel %vm389, %v2659, %v3069
        %v3429 = vsel %vm389, %v2660, %v3071
        %v3430 = vsel %vm389, %v2661, %v3073
        %v3431 = vsel %vm389, %v2662, %v3075
        %v3432 = vsel %vm389, %v2663, %v3077
        %v3433 = vsel %vm389, %v2664, %v3079
        %v3434 = vsel %vm389, %v2665, %v3081
        %v3435 = vsel %vm389, %v2666, %v3083
        %v3436 = vsel %vm389, %v2699, %v3149
        %v3437 = vsel %vm389, %v2700, %v3151
        %v3438 = vsel %vm389, %v2701, %v3153
        %v3439 = vsel %vm389, %v2702, %v3155
        %v3440 = vsel %vm389, %v2703, %v3157
        %v3441 = vsel %vm389, %v2704, %v3159
        %v3442 = vsel %vm389, %v2705, %v3161
        %v3443 = vsel %vm389, %v2706, %v3163
        %v3444 = vsel %vm389, %v2707, %v3165
        %v3445 = vsel %vm389, %v2708, %v3167
        %v3446 = vsel %vm389, %v2709, %v3169
        %v3447 = vsel %vm389, %v2710, %v3171
        %v3448 = vsel %vm389, %v2711, %v3173
        %v3449 = vsel %vm389, %v2712, %v3175
        %v3450 = vsel %vm389, %v2713, %v3177
        %v3451 = vsel %vm389, %v2714, %v3179
        %v3452 = vsel %vm389, %v2715, %v3181
        %v3453 = vsel %vm389, %v2716, %v3183
        %v3454 = vsel %vm389, %v2717, %v3185
        %v3455 = vsel %vm389, %v2718, %v3187
        %v3456 = vsel %vm389, %v2719, %v3189
        %v3457 = vsel %vm389, %v2720, %v3191
        %v3458 = vsel %vm389, %v2721, %v3193
        %v3459 = vsel %vm389, %v2722, %v3195
        %v3460 = vsel %vm389, %v2723, %v3197
        %v3461 = vsel %vm389, %v2724, %v3199
        %v3462 = vsel %vm389, %v2725, %v3201
        %v3463 = vsel %vm389, %v2726, %v3203
        %v3464 = vsel %vm389, %v2727, %v3205
        %v3465 = vsel %vm389, %v2728, %v3207
        %v3466 = vsel %vm389, %v2729, %v3209
        %v3467 = vsel %vm389, %v2730, %v3211
        %v3468 = vsel %vm389, %v2764, %v3277
        %v3469 = vsel %vm389, %v2765, %v3279
        %v3470 = vsel %vm389, %v2766, %v3281
        %v3471 = vsel %vm389, %v2767, %v3283
        %v3472 = vsel %vm389, %v2768, %v3285
        %v3473 = vsel %vm389, %v2769, %v3287
        %v3474 = vsel %vm389, %v2770, %v3289
        %v3475 = vsel %vm389, %v2771, %v3291
        %v3476 = vsel %vm389, %v2772, %v3293
        %v3477 = vsel %vm389, %v2773, %v3295
        %v3478 = vsel %vm389, %v2774, %v3297
        %v3479 = vsel %vm389, %v2775, %v3299
        %v3480 = vsel %vm389, %v2776, %v3301
        %v3481 = vsel %vm389, %v2777, %v3303
        %v3482 = vsel %vm389, %v2778, %v3305
        %v3483 = vsel %vm389, %v2779, %v3307
        %v3484 = vsel %vm389, %v2780, %v3309
        %v3485 = vsel %vm389, %v2781, %v3311
        %v3486 = vsel %vm389, %v2782, %v3313
        %v3487 = vsel %vm389, %v2783, %v3315
        %v3488 = vsel %vm389, %v2784, %v3317
        %v3489 = vsel %vm389, %v2785, %v3319
        %v3490 = vsel %vm389, %v2786, %v3321
        %v3491 = vsel %vm389, %v2787, %v3323
        %v3492 = vsel %vm389, %v2788, %v3325
        %v3493 = vsel %vm389, %v2789, %v3327
        %v3494 = vsel %vm389, %v2790, %v3329
        %v3495 = vsel %vm389, %v2791, %v3331
        %v3496 = vsel %vm389, %v2792, %v3333
        %v3497 = vsel %vm389, %v2793, %v3335
        %v3498 = vsel %vm389, %v2794, %v3337
        %v3499 = vsel %vm389, %v2795, %v3339
        %v3501 = vperm.slane %v2570, 0
        %v3504 = vsel %vm389, %v2828, 0
        %v3507 = vsel %vm389, %v2829, 0
        %v3510 = vsel %vm389, %v2830, 0
        %v3513 = vsel %vm389, %v2831, 0
        %v3516 = vsel %vm389, %v2832, 0
        %v3519 = vsel %vm389, %v2833, 0
        %v3522 = vsel %vm389, %v2834, 0
        %v3525 = vsel %vm389, %v2835, 0
        %v3528 = vsel %vm389, %v2836, 0
        %v3531 = vsel %vm389, %v2837, 0
        %v3534 = vsel %vm389, %v2838, 0
        %v3537 = vsel %vm389, %v2839, 0
        %v3540 = vsel %vm389, %v2840, 0
        %v3543 = vsel %vm389, %v2841, 0
        %v3546 = vsel %vm389, %v2842, 0
        %v3549 = vsel %vm389, %v2843, 0
        %v3552 = vsel %vm389, %v2844, 0
        %v3555 = vsel %vm389, %v2845, 0
        %v3558 = vsel %vm389, %v2846, 0
        %v3561 = vsel %vm389, %v2847, 0
        %v3564 = vsel %vm389, %v2848, 0
        %v3567 = vsel %vm389, %v2849, 0
        %v3570 = vsel %vm389, %v2850, 0
        %v3573 = vsel %vm389, %v2851, 0
        %v3576 = vsel %vm389, %v2852, 0
        %v3579 = vsel %vm389, %v2853, 0
        %v3582 = vsel %vm389, %v2854, 0
        %v3585 = vsel %vm389, %v2855, 0
        %v3588 = vsel %vm389, %v2856, 0
        %v3591 = vsel %vm389, %v2857, 0
        %v3594 = vsel %vm389, %v2858, 0
        %v3597 = vsel %vm389, %v2859, 0
        %3599 = vmatpush.msra.mxu0 %v2513
        %3600 = vmatpush.msra.mxu0 %v2512
        %3601 = vmatpush.msra.mxu0 %v2511
        %3602 = vmatpush.msra.mxu0 %v2510
        %3603 = vmatpush.msra.mxu0 %v2509
        %3604 = vmatpush.msra.mxu0 %v2508
        %3605 = vmatpush.msra.mxu0 %v2507
        %3606 = vmatpush.msra.mxu0 %v2506
        %3607 = vmatpush.msra.mxu0 %v2505
        %3608 = vmatpush.msra.mxu0 %v2504
        %3609 = vmatpush.msra.mxu0 %v2503
        %3610 = vmatpush.msra.mxu0 %v2502
        %3611 = vmatpush.msra.mxu0 %v2501
        %3612 = vmatpush.msra.mxu0 %v2500
        %3613 = vmatpush.msra.mxu0 %v2499
        %3614 = vmatpush.msra.mxu0 %v2498
        %3615 = vmatmul.f32.gmra.mxu0 %v3372
        %v3616 = vpop.f32.mrf.mxu0
        %v3617 = vadd.f32 %v3501, %v3616
        %3618 = vmatmul.f32.gmra.mxu0 %v3373
        %v3619 = vpop.f32.mrf.mxu0
        %v3620 = vadd.f32 %v3501, %v3619
        %3621 = vmatmul.f32.gmra.mxu0 %v3374
        %v3622 = vpop.f32.mrf.mxu0
        %v3623 = vadd.f32 %v3501, %v3622
        %3624 = vmatmul.f32.gmra.mxu0 %v3375
        %v3625 = vpop.f32.mrf.mxu0
        %v3626 = vadd.f32 %v3501, %v3625
        %3627 = vmatmul.f32.gmra.mxu0 %v3376
        %v3628 = vpop.f32.mrf.mxu0
        %v3629 = vadd.f32 %v3501, %v3628
        %3630 = vmatmul.f32.gmra.mxu0 %v3377
        %v3631 = vpop.f32.mrf.mxu0
        %v3632 = vadd.f32 %v3501, %v3631
        %3633 = vmatmul.f32.gmra.mxu0 %v3378
        %v3634 = vpop.f32.mrf.mxu0
        %v3635 = vadd.f32 %v3501, %v3634
        %3636 = vmatmul.f32.gmra.mxu0 %v3379
        %v3637 = vpop.f32.mrf.mxu0
        %v3638 = vadd.f32 %v3501, %v3637
        %3639 = vmatmul.f32.gmra.mxu0 %v3380
        %v3640 = vpop.f32.mrf.mxu0
        %v3641 = vadd.f32 %v3501, %v3640
        %3642 = vmatmul.f32.gmra.mxu0 %v3381
        %v3643 = vpop.f32.mrf.mxu0
        %v3644 = vadd.f32 %v3501, %v3643
        %3645 = vmatmul.f32.gmra.mxu0 %v3382
        %v3646 = vpop.f32.mrf.mxu0
        %v3647 = vadd.f32 %v3501, %v3646
        %3648 = vmatmul.f32.gmra.mxu0 %v3383
        %v3649 = vpop.f32.mrf.mxu0
        %v3650 = vadd.f32 %v3501, %v3649
        %3651 = vmatmul.f32.gmra.mxu0 %v3384
        %v3652 = vpop.f32.mrf.mxu0
        %v3653 = vadd.f32 %v3501, %v3652
        %3654 = vmatmul.f32.gmra.mxu0 %v3385
        %v3655 = vpop.f32.mrf.mxu0
        %v3656 = vadd.f32 %v3501, %v3655
        %3657 = vmatmul.f32.gmra.mxu0 %v3386
        %v3658 = vpop.f32.mrf.mxu0
        %v3659 = vadd.f32 %v3501, %v3658
        %3660 = vmatmul.f32.gmra.mxu0 %v3387
        %v3661 = vpop.f32.mrf.mxu0
        %v3662 = vadd.f32 %v3501, %v3661
        %3663 = vmatmul.f32.gmra.mxu0 %v3388
        %v3664 = vpop.f32.mrf.mxu0
        %v3665 = vadd.f32 %v3501, %v3664
        %3666 = vmatmul.f32.gmra.mxu0 %v3389
        %v3667 = vpop.f32.mrf.mxu0
        %v3668 = vadd.f32 %v3501, %v3667
        %3669 = vmatmul.f32.gmra.mxu0 %v3390
        %v3670 = vpop.f32.mrf.mxu0
        %v3671 = vadd.f32 %v3501, %v3670
        %3672 = vmatmul.f32.gmra.mxu0 %v3391
        %v3673 = vpop.f32.mrf.mxu0
        %v3674 = vadd.f32 %v3501, %v3673
        %3675 = vmatmul.f32.gmra.mxu0 %v3392
        %v3676 = vpop.f32.mrf.mxu0
        %v3677 = vadd.f32 %v3501, %v3676
        %3678 = vmatmul.f32.gmra.mxu0 %v3393
        %v3679 = vpop.f32.mrf.mxu0
        %v3680 = vadd.f32 %v3501, %v3679
        %3681 = vmatmul.f32.gmra.mxu0 %v3394
        %v3682 = vpop.f32.mrf.mxu0
        %v3683 = vadd.f32 %v3501, %v3682
        %3684 = vmatmul.f32.gmra.mxu0 %v3395
        %v3685 = vpop.f32.mrf.mxu0
        %v3686 = vadd.f32 %v3501, %v3685
        %3687 = vmatmul.f32.gmra.mxu0 %v3396
        %v3688 = vpop.f32.mrf.mxu0
        %v3689 = vadd.f32 %v3501, %v3688
        %3690 = vmatmul.f32.gmra.mxu0 %v3397
        %v3691 = vpop.f32.mrf.mxu0
        %v3692 = vadd.f32 %v3501, %v3691
        %3693 = vmatmul.f32.gmra.mxu0 %v3398
        %v3694 = vpop.f32.mrf.mxu0
        %v3695 = vadd.f32 %v3501, %v3694
        %3696 = vmatmul.f32.gmra.mxu0 %v3399
        %v3697 = vpop.f32.mrf.mxu0
        %v3698 = vadd.f32 %v3501, %v3697
        %3699 = vmatmul.f32.gmra.mxu0 %v3400
        %v3700 = vpop.f32.mrf.mxu0
        %v3701 = vadd.f32 %v3501, %v3700
        %3702 = vmatmul.f32.gmra.mxu0 %v3401
        %v3703 = vpop.f32.mrf.mxu0
        %v3704 = vadd.f32 %v3501, %v3703
        %3705 = vmatmul.f32.gmra.mxu0 %v3402
        %v3706 = vpop.f32.mrf.mxu0
        %v3707 = vadd.f32 %v3501, %v3706
        %3708 = vmatmul.f32.gmra.mxu0 %v3403
        %v3709 = vpop.f32.mrf.mxu0
        %v3710 = vadd.f32 %v3501, %v3709
        %3711 = vdwg.mxu0
        %3712 = vmatpush.msra.mxu0 %v2529
        %3713 = vmatpush.msra.mxu0 %v2528
        %3714 = vmatpush.msra.mxu0 %v2527
        %3715 = vmatpush.msra.mxu0 %v2526
        %3716 = vmatpush.msra.mxu0 %v2525
        %3717 = vmatpush.msra.mxu0 %v2524
        %3718 = vmatpush.msra.mxu0 %v2523
        %3719 = vmatpush.msra.mxu0 %v2522
        %3720 = vmatpush.msra.mxu0 %v2521
        %3721 = vmatpush.msra.mxu0 %v2520
        %3722 = vmatpush.msra.mxu0 %v2519
        %3723 = vmatpush.msra.mxu0 %v2518
        %3724 = vmatpush.msra.mxu0 %v2517
        %3725 = vmatpush.msra.mxu0 %v2516
        %3726 = vmatpush.msra.mxu0 %v2515
        %3727 = vmatpush.msra.mxu0 %v2514
        %3728 = vmatmul.f32.gmra.mxu0 %v3404
        %v3729 = vpop.f32.mrf.mxu0
        %v3730 = vadd.f32 %v3617, %v3729
        %3731 = vmatmul.f32.gmra.mxu0 %v3405
        %v3732 = vpop.f32.mrf.mxu0
        %v3733 = vadd.f32 %v3620, %v3732
        %3734 = vmatmul.f32.gmra.mxu0 %v3406
        %v3735 = vpop.f32.mrf.mxu0
        %v3736 = vadd.f32 %v3623, %v3735
        %3737 = vmatmul.f32.gmra.mxu0 %v3407
        %v3738 = vpop.f32.mrf.mxu0
        %v3739 = vadd.f32 %v3626, %v3738
        %3740 = vmatmul.f32.gmra.mxu0 %v3408
        %v3741 = vpop.f32.mrf.mxu0
        %v3742 = vadd.f32 %v3629, %v3741
        %3743 = vmatmul.f32.gmra.mxu0 %v3409
        %v3744 = vpop.f32.mrf.mxu0
        %v3745 = vadd.f32 %v3632, %v3744
        %3746 = vmatmul.f32.gmra.mxu0 %v3410
        %v3747 = vpop.f32.mrf.mxu0
        %v3748 = vadd.f32 %v3635, %v3747
        %3749 = vmatmul.f32.gmra.mxu0 %v3411
        %v3750 = vpop.f32.mrf.mxu0
        %v3751 = vadd.f32 %v3638, %v3750
        %3752 = vmatmul.f32.gmra.mxu0 %v3412
        %v3753 = vpop.f32.mrf.mxu0
        %v3754 = vadd.f32 %v3641, %v3753
        %3755 = vmatmul.f32.gmra.mxu0 %v3413
        %v3756 = vpop.f32.mrf.mxu0
        %v3757 = vadd.f32 %v3644, %v3756
        %3758 = vmatmul.f32.gmra.mxu0 %v3414
        %v3759 = vpop.f32.mrf.mxu0
        %v3760 = vadd.f32 %v3647, %v3759
        %3761 = vmatmul.f32.gmra.mxu0 %v3415
        %v3762 = vpop.f32.mrf.mxu0
        %v3763 = vadd.f32 %v3650, %v3762
        %3764 = vmatmul.f32.gmra.mxu0 %v3416
        %v3765 = vpop.f32.mrf.mxu0
        %v3766 = vadd.f32 %v3653, %v3765
        %3767 = vmatmul.f32.gmra.mxu0 %v3417
        %v3768 = vpop.f32.mrf.mxu0
        %v3769 = vadd.f32 %v3656, %v3768
        %3770 = vmatmul.f32.gmra.mxu0 %v3418
        %v3771 = vpop.f32.mrf.mxu0
        %v3772 = vadd.f32 %v3659, %v3771
        %3773 = vmatmul.f32.gmra.mxu0 %v3419
        %v3774 = vpop.f32.mrf.mxu0
        %v3775 = vadd.f32 %v3662, %v3774
        %3776 = vmatmul.f32.gmra.mxu0 %v3420
        %v3777 = vpop.f32.mrf.mxu0
        %v3778 = vadd.f32 %v3665, %v3777
        %3779 = vmatmul.f32.gmra.mxu0 %v3421
        %v3780 = vpop.f32.mrf.mxu0
        %v3781 = vadd.f32 %v3668, %v3780
        %3782 = vmatmul.f32.gmra.mxu0 %v3422
        %v3783 = vpop.f32.mrf.mxu0
        %v3784 = vadd.f32 %v3671, %v3783
        %3785 = vmatmul.f32.gmra.mxu0 %v3423
        %v3786 = vpop.f32.mrf.mxu0
        %v3787 = vadd.f32 %v3674, %v3786
        %3788 = vmatmul.f32.gmra.mxu0 %v3424
        %v3789 = vpop.f32.mrf.mxu0
        %v3790 = vadd.f32 %v3677, %v3789
        %3791 = vmatmul.f32.gmra.mxu0 %v3425
        %v3792 = vpop.f32.mrf.mxu0
        %v3793 = vadd.f32 %v3680, %v3792
        %3794 = vmatmul.f32.gmra.mxu0 %v3426
        %v3795 = vpop.f32.mrf.mxu0
        %v3796 = vadd.f32 %v3683, %v3795
        %3797 = vmatmul.f32.gmra.mxu0 %v3427
        %v3798 = vpop.f32.mrf.mxu0
        %v3799 = vadd.f32 %v3686, %v3798
        %3800 = vmatmul.f32.gmra.mxu0 %v3428
        %v3801 = vpop.f32.mrf.mxu0
        %v3802 = vadd.f32 %v3689, %v3801
        %3803 = vmatmul.f32.gmra.mxu0 %v3429
        %v3804 = vpop.f32.mrf.mxu0
        %v3805 = vadd.f32 %v3692, %v3804
        %3806 = vmatmul.f32.gmra.mxu0 %v3430
        %v3807 = vpop.f32.mrf.mxu0
        %v3808 = vadd.f32 %v3695, %v3807
        %3809 = vmatmul.f32.gmra.mxu0 %v3431
        %v3810 = vpop.f32.mrf.mxu0
        %v3811 = vadd.f32 %v3698, %v3810
        %3812 = vmatmul.f32.gmra.mxu0 %v3432
        %v3813 = vpop.f32.mrf.mxu0
        %v3814 = vadd.f32 %v3701, %v3813
        %3815 = vmatmul.f32.gmra.mxu0 %v3433
        %v3816 = vpop.f32.mrf.mxu0
        %v3817 = vadd.f32 %v3704, %v3816
        %3818 = vmatmul.f32.gmra.mxu0 %v3434
        %v3819 = vpop.f32.mrf.mxu0
        %v3820 = vadd.f32 %v3707, %v3819
        %3821 = vmatmul.f32.gmra.mxu0 %v3435
        %v3822 = vpop.f32.mrf.mxu0
        %v3823 = vadd.f32 %v3710, %v3822
        %3824 = vdwg.mxu0
        %3825 = vmatpush.msra.mxu0 %v2545
        %3826 = vmatpush.msra.mxu0 %v2544
        %3827 = vmatpush.msra.mxu0 %v2543
        %3828 = vmatpush.msra.mxu0 %v2542
        %3829 = vmatpush.msra.mxu0 %v2541
        %3830 = vmatpush.msra.mxu0 %v2540
        %3831 = vmatpush.msra.mxu0 %v2539
        %3832 = vmatpush.msra.mxu0 %v2538
        %3833 = vmatpush.msra.mxu0 %v2537
        %3834 = vmatpush.msra.mxu0 %v2536
        %3835 = vmatpush.msra.mxu0 %v2535
        %3836 = vmatpush.msra.mxu0 %v2534
        %3837 = vmatpush.msra.mxu0 %v2533
        %3838 = vmatpush.msra.mxu0 %v2532
        %3839 = vmatpush.msra.mxu0 %v2531
        %3840 = vmatpush.msra.mxu0 %v2530
        %3841 = vmatmul.f32.gmra.mxu0 %v3436
        %v3842 = vpop.f32.mrf.mxu0
        %v3843 = vadd.f32 %v3730, %v3842
        %3844 = vmatmul.f32.gmra.mxu0 %v3437
        %v3845 = vpop.f32.mrf.mxu0
        %v3846 = vadd.f32 %v3733, %v3845
        %3847 = vmatmul.f32.gmra.mxu0 %v3438
        %v3848 = vpop.f32.mrf.mxu0
        %v3849 = vadd.f32 %v3736, %v3848
        %3850 = vmatmul.f32.gmra.mxu0 %v3439
        %v3851 = vpop.f32.mrf.mxu0
        %v3852 = vadd.f32 %v3739, %v3851
        %3853 = vmatmul.f32.gmra.mxu0 %v3440
        %v3854 = vpop.f32.mrf.mxu0
        %v3855 = vadd.f32 %v3742, %v3854
        %3856 = vmatmul.f32.gmra.mxu0 %v3441
        %v3857 = vpop.f32.mrf.mxu0
        %v3858 = vadd.f32 %v3745, %v3857
        %3859 = vmatmul.f32.gmra.mxu0 %v3442
        %v3860 = vpop.f32.mrf.mxu0
        %v3861 = vadd.f32 %v3748, %v3860
        %3862 = vmatmul.f32.gmra.mxu0 %v3443
        %v3863 = vpop.f32.mrf.mxu0
        %v3864 = vadd.f32 %v3751, %v3863
        %3865 = vmatmul.f32.gmra.mxu0 %v3444
        %v3866 = vpop.f32.mrf.mxu0
        %v3867 = vadd.f32 %v3754, %v3866
        %3868 = vmatmul.f32.gmra.mxu0 %v3445
        %v3869 = vpop.f32.mrf.mxu0
        %v3870 = vadd.f32 %v3757, %v3869
        %3871 = vmatmul.f32.gmra.mxu0 %v3446
        %v3872 = vpop.f32.mrf.mxu0
        %v3873 = vadd.f32 %v3760, %v3872
        %3874 = vmatmul.f32.gmra.mxu0 %v3447
        %v3875 = vpop.f32.mrf.mxu0
        %v3876 = vadd.f32 %v3763, %v3875
        %3877 = vmatmul.f32.gmra.mxu0 %v3448
        %v3878 = vpop.f32.mrf.mxu0
        %v3879 = vadd.f32 %v3766, %v3878
        %3880 = vmatmul.f32.gmra.mxu0 %v3449
        %v3881 = vpop.f32.mrf.mxu0
        %v3882 = vadd.f32 %v3769, %v3881
        %3883 = vmatmul.f32.gmra.mxu0 %v3450
        %v3884 = vpop.f32.mrf.mxu0
        %v3885 = vadd.f32 %v3772, %v3884
        %3886 = vmatmul.f32.gmra.mxu0 %v3451
        %v3887 = vpop.f32.mrf.mxu0
        %v3888 = vadd.f32 %v3775, %v3887
        %3889 = vmatmul.f32.gmra.mxu0 %v3452
        %v3890 = vpop.f32.mrf.mxu0
        %v3891 = vadd.f32 %v3778, %v3890
        %3892 = vmatmul.f32.gmra.mxu0 %v3453
        %v3893 = vpop.f32.mrf.mxu0
        %v3894 = vadd.f32 %v3781, %v3893
        %3895 = vmatmul.f32.gmra.mxu0 %v3454
        %v3896 = vpop.f32.mrf.mxu0
        %v3897 = vadd.f32 %v3784, %v3896
        %3898 = vmatmul.f32.gmra.mxu0 %v3455
        %v3899 = vpop.f32.mrf.mxu0
        %v3900 = vadd.f32 %v3787, %v3899
        %3901 = vmatmul.f32.gmra.mxu0 %v3456
        %v3902 = vpop.f32.mrf.mxu0
        %v3903 = vadd.f32 %v3790, %v3902
        %3904 = vmatmul.f32.gmra.mxu0 %v3457
        %v3905 = vpop.f32.mrf.mxu0
        %v3906 = vadd.f32 %v3793, %v3905
        %3907 = vmatmul.f32.gmra.mxu0 %v3458
        %v3908 = vpop.f32.mrf.mxu0
        %v3909 = vadd.f32 %v3796, %v3908
        %3910 = vmatmul.f32.gmra.mxu0 %v3459
        %v3911 = vpop.f32.mrf.mxu0
        %v3912 = vadd.f32 %v3799, %v3911
        %3913 = vmatmul.f32.gmra.mxu0 %v3460
        %v3914 = vpop.f32.mrf.mxu0
        %v3915 = vadd.f32 %v3802, %v3914
        %3916 = vmatmul.f32.gmra.mxu0 %v3461
        %v3917 = vpop.f32.mrf.mxu0
        %v3918 = vadd.f32 %v3805, %v3917
        %3919 = vmatmul.f32.gmra.mxu0 %v3462
        %v3920 = vpop.f32.mrf.mxu0
        %v3921 = vadd.f32 %v3808, %v3920
        %3922 = vmatmul.f32.gmra.mxu0 %v3463
        %v3923 = vpop.f32.mrf.mxu0
        %v3924 = vadd.f32 %v3811, %v3923
        %3925 = vmatmul.f32.gmra.mxu0 %v3464
        %v3926 = vpop.f32.mrf.mxu0
        %v3927 = vadd.f32 %v3814, %v3926
        %3928 = vmatmul.f32.gmra.mxu0 %v3465
        %v3929 = vpop.f32.mrf.mxu0
        %v3930 = vadd.f32 %v3817, %v3929
        %3931 = vmatmul.f32.gmra.mxu0 %v3466
        %v3932 = vpop.f32.mrf.mxu0
        %v3933 = vadd.f32 %v3820, %v3932
        %3934 = vmatmul.f32.gmra.mxu0 %v3467
        %v3935 = vpop.f32.mrf.mxu0
        %v3936 = vadd.f32 %v3823, %v3935
        %3937 = vdwg.mxu0
        %3938 = vmatpush.msra.mxu0 %v2561
        %3939 = vmatpush.msra.mxu0 %v2560
        %3940 = vmatpush.msra.mxu0 %v2559
        %3941 = vmatpush.msra.mxu0 %v2558
        %3942 = vmatpush.msra.mxu0 %v2557
        %3943 = vmatpush.msra.mxu0 %v2556
        %3944 = vmatpush.msra.mxu0 %v2555
        %3945 = vmatpush.msra.mxu0 %v2554
        %3946 = vmatpush.msra.mxu0 %v2553
        %3947 = vmatpush.msra.mxu0 %v2552
        %3948 = vmatpush.msra.mxu0 %v2551
        %3949 = vmatpush.msra.mxu0 %v2550
        %3950 = vmatpush.msra.mxu0 %v2549
        %3951 = vmatpush.msra.mxu0 %v2548
        %3952 = vmatpush.msra.mxu0 %v2547
        %3953 = vmatpush.msra.mxu0 %v2546
        %3954 = vmatmul.f32.gmra.mxu0 %v3468
        %v3955 = vpop.f32.mrf.mxu0
        %v3956 = vadd.f32 %v3843, %v3955
        %3957 = vmatmul.f32.gmra.mxu0 %v3469
        %v3958 = vpop.f32.mrf.mxu0
        %v3959 = vadd.f32 %v3846, %v3958
        %3960 = vmatmul.f32.gmra.mxu0 %v3470
        %v3961 = vpop.f32.mrf.mxu0
        %v3962 = vadd.f32 %v3849, %v3961
        %3963 = vmatmul.f32.gmra.mxu0 %v3471
        %v3964 = vpop.f32.mrf.mxu0
        %v3965 = vadd.f32 %v3852, %v3964
        %3966 = vmatmul.f32.gmra.mxu0 %v3472
        %v3967 = vpop.f32.mrf.mxu0
        %v3968 = vadd.f32 %v3855, %v3967
        %3969 = vmatmul.f32.gmra.mxu0 %v3473
        %v3970 = vpop.f32.mrf.mxu0
        %v3971 = vadd.f32 %v3858, %v3970
        %3972 = vmatmul.f32.gmra.mxu0 %v3474
        %v3973 = vpop.f32.mrf.mxu0
        %v3974 = vadd.f32 %v3861, %v3973
        %3975 = vmatmul.f32.gmra.mxu0 %v3475
        %v3976 = vpop.f32.mrf.mxu0
        %v3977 = vadd.f32 %v3864, %v3976
        %3978 = vmatmul.f32.gmra.mxu0 %v3476
        %v3979 = vpop.f32.mrf.mxu0
        %v3980 = vadd.f32 %v3867, %v3979
        %3981 = vmatmul.f32.gmra.mxu0 %v3477
        %v3982 = vpop.f32.mrf.mxu0
        %v3983 = vadd.f32 %v3870, %v3982
        %3984 = vmatmul.f32.gmra.mxu0 %v3478
        %v3985 = vpop.f32.mrf.mxu0
        %v3986 = vadd.f32 %v3873, %v3985
        %3987 = vmatmul.f32.gmra.mxu0 %v3479
        %v3988 = vpop.f32.mrf.mxu0
        %v3989 = vadd.f32 %v3876, %v3988
        %3990 = vmatmul.f32.gmra.mxu0 %v3480
        %v3991 = vpop.f32.mrf.mxu0
        %v3992 = vadd.f32 %v3879, %v3991
        %3993 = vmatmul.f32.gmra.mxu0 %v3481
        %v3994 = vpop.f32.mrf.mxu0
        %v3995 = vadd.f32 %v3882, %v3994
        %3996 = vmatmul.f32.gmra.mxu0 %v3482
        %v3997 = vpop.f32.mrf.mxu0
        %v3998 = vadd.f32 %v3885, %v3997
        %3999 = vmatmul.f32.gmra.mxu0 %v3483
        %v4000 = vpop.f32.mrf.mxu0
        %v4001 = vadd.f32 %v3888, %v4000
        %4002 = vmatmul.f32.gmra.mxu0 %v3484
        %v4003 = vpop.f32.mrf.mxu0
        %v4004 = vadd.f32 %v3891, %v4003
        %4005 = vmatmul.f32.gmra.mxu0 %v3485
        %v4006 = vpop.f32.mrf.mxu0
        %v4007 = vadd.f32 %v3894, %v4006
        %4008 = vmatmul.f32.gmra.mxu0 %v3486
        %v4009 = vpop.f32.mrf.mxu0
        %v4010 = vadd.f32 %v3897, %v4009
        %4011 = vmatmul.f32.gmra.mxu0 %v3487
        %v4012 = vpop.f32.mrf.mxu0
        %v4013 = vadd.f32 %v3900, %v4012
        %4014 = vmatmul.f32.gmra.mxu0 %v3488
        %v4015 = vpop.f32.mrf.mxu0
        %v4016 = vadd.f32 %v3903, %v4015
        %4017 = vmatmul.f32.gmra.mxu0 %v3489
        %v4018 = vpop.f32.mrf.mxu0
        %v4019 = vadd.f32 %v3906, %v4018
        %4020 = vmatmul.f32.gmra.mxu0 %v3490
        %v4021 = vpop.f32.mrf.mxu0
        %v4022 = vadd.f32 %v3909, %v4021
        %4023 = vmatmul.f32.gmra.mxu0 %v3491
        %v4024 = vpop.f32.mrf.mxu0
        %v4025 = vadd.f32 %v3912, %v4024
        %4026 = vmatmul.f32.gmra.mxu0 %v3492
        %v4027 = vpop.f32.mrf.mxu0
        %v4028 = vadd.f32 %v3915, %v4027
        %4029 = vmatmul.f32.gmra.mxu0 %v3493
        %v4030 = vpop.f32.mrf.mxu0
        %v4031 = vadd.f32 %v3918, %v4030
        %4032 = vmatmul.f32.gmra.mxu0 %v3494
        %v4033 = vpop.f32.mrf.mxu0
        %v4034 = vadd.f32 %v3921, %v4033
        %4035 = vmatmul.f32.gmra.mxu0 %v3495
        %v4036 = vpop.f32.mrf.mxu0
        %v4037 = vadd.f32 %v3924, %v4036
        %4038 = vmatmul.f32.gmra.mxu0 %v3496
        %v4039 = vpop.f32.mrf.mxu0
        %v4040 = vadd.f32 %v3927, %v4039
        %4041 = vmatmul.f32.gmra.mxu0 %v3497
        %v4042 = vpop.f32.mrf.mxu0
        %v4043 = vadd.f32 %v3930, %v4042
        %4044 = vmatmul.f32.gmra.mxu0 %v3498
        %v4045 = vpop.f32.mrf.mxu0
        %v4046 = vadd.f32 %v3933, %v4045
        %4047 = vmatmul.f32.gmra.mxu0 %v3499
        %v4048 = vpop.f32.mrf.mxu0
        %v4049 = vadd.f32 %v3936, %v4048
        %4050 = vdwg.mxu0
        %4051 = vmatpush.msra.mxu0 0.0
        %4052 = vmatpush.msra.mxu0 0.0
        %4053 = vmatpush.msra.mxu0 0.0
        %4054 = vmatpush.msra.mxu0 0.0
        %4055 = vmatpush.msra.mxu0 0.0
        %4056 = vmatpush.msra.mxu0 0.0
        %4057 = vmatpush.msra.mxu0 0.0
        %4058 = vmatpush.msra.mxu0 0.0
        %4059 = vmatpush.msra.mxu0 %v2569
        %4060 = vmatpush.msra.mxu0 %v2568
        %4061 = vmatpush.msra.mxu0 %v2567
        %4062 = vmatpush.msra.mxu0 %v2566
        %4063 = vmatpush.msra.mxu0 %v2565
        %4064 = vmatpush.msra.mxu0 %v2564
        %4065 = vmatpush.msra.mxu0 %v2563
        %4066 = vmatpush.msra.mxu0 %v2562
        %4067 = vmatmul.f32.gmra.mxu0 %v3504
        %v4068 = vpop.f32.mrf.mxu0
        %v4069 = vadd.f32 %v3956, %v4068
        %4070 = vmatmul.f32.gmra.mxu0 %v3507
        %v4071 = vpop.f32.mrf.mxu0
        %v4072 = vadd.f32 %v3959, %v4071
        %4073 = vmatmul.f32.gmra.mxu0 %v3510
        %v4074 = vpop.f32.mrf.mxu0
        %v4075 = vadd.f32 %v3962, %v4074
        %4076 = vmatmul.f32.gmra.mxu0 %v3513
        %v4077 = vpop.f32.mrf.mxu0
        %v4078 = vadd.f32 %v3965, %v4077
        %4079 = vmatmul.f32.gmra.mxu0 %v3516
        %v4080 = vpop.f32.mrf.mxu0
        %v4081 = vadd.f32 %v3968, %v4080
        %4082 = vmatmul.f32.gmra.mxu0 %v3519
        %v4083 = vpop.f32.mrf.mxu0
        %v4084 = vadd.f32 %v3971, %v4083
        %4085 = vmatmul.f32.gmra.mxu0 %v3522
        %v4086 = vpop.f32.mrf.mxu0
        %v4087 = vadd.f32 %v3974, %v4086
        %4088 = vmatmul.f32.gmra.mxu0 %v3525
        %v4089 = vpop.f32.mrf.mxu0
        %v4090 = vadd.f32 %v3977, %v4089
        %4091 = vmatmul.f32.gmra.mxu0 %v3528
        %v4092 = vpop.f32.mrf.mxu0
        %v4093 = vadd.f32 %v3980, %v4092
        %4094 = vmatmul.f32.gmra.mxu0 %v3531
        %v4095 = vpop.f32.mrf.mxu0
        %v4096 = vadd.f32 %v3983, %v4095
        %4097 = vmatmul.f32.gmra.mxu0 %v3534
        %v4098 = vpop.f32.mrf.mxu0
        %v4099 = vadd.f32 %v3986, %v4098
        %4100 = vmatmul.f32.gmra.mxu0 %v3537
        %v4101 = vpop.f32.mrf.mxu0
        %v4102 = vadd.f32 %v3989, %v4101
        %4103 = vmatmul.f32.gmra.mxu0 %v3540
        %v4104 = vpop.f32.mrf.mxu0
        %v4105 = vadd.f32 %v3992, %v4104
        %4106 = vmatmul.f32.gmra.mxu0 %v3543
        %v4107 = vpop.f32.mrf.mxu0
        %v4108 = vadd.f32 %v3995, %v4107
        %4109 = vmatmul.f32.gmra.mxu0 %v3546
        %v4110 = vpop.f32.mrf.mxu0
        %v4111 = vadd.f32 %v3998, %v4110
        %4112 = vmatmul.f32.gmra.mxu0 %v3549
        %v4113 = vpop.f32.mrf.mxu0
        %v4114 = vadd.f32 %v4001, %v4113
        %4115 = vmatmul.f32.gmra.mxu0 %v3552
        %v4116 = vpop.f32.mrf.mxu0
        %v4117 = vadd.f32 %v4004, %v4116
        %4118 = vmatmul.f32.gmra.mxu0 %v3555
        %v4119 = vpop.f32.mrf.mxu0
        %v4120 = vadd.f32 %v4007, %v4119
        %4121 = vmatmul.f32.gmra.mxu0 %v3558
        %v4122 = vpop.f32.mrf.mxu0
        %v4123 = vadd.f32 %v4010, %v4122
        %4124 = vmatmul.f32.gmra.mxu0 %v3561
        %v4125 = vpop.f32.mrf.mxu0
        %v4126 = vadd.f32 %v4013, %v4125
        %4127 = vmatmul.f32.gmra.mxu0 %v3564
        %v4128 = vpop.f32.mrf.mxu0
        %v4129 = vadd.f32 %v4016, %v4128
        %4130 = vmatmul.f32.gmra.mxu0 %v3567
        %v4131 = vpop.f32.mrf.mxu0
        %v4132 = vadd.f32 %v4019, %v4131
        %4133 = vmatmul.f32.gmra.mxu0 %v3570
        %v4134 = vpop.f32.mrf.mxu0
        %v4135 = vadd.f32 %v4022, %v4134
        %4136 = vmatmul.f32.gmra.mxu0 %v3573
        %v4137 = vpop.f32.mrf.mxu0
        %v4138 = vadd.f32 %v4025, %v4137
        %4139 = vmatmul.f32.gmra.mxu0 %v3576
        %v4140 = vpop.f32.mrf.mxu0
        %v4141 = vadd.f32 %v4028, %v4140
        %4142 = vmatmul.f32.gmra.mxu0 %v3579
        %v4143 = vpop.f32.mrf.mxu0
        %v4144 = vadd.f32 %v4031, %v4143
        %4145 = vmatmul.f32.gmra.mxu0 %v3582
        %v4146 = vpop.f32.mrf.mxu0
        %v4147 = vadd.f32 %v4034, %v4146
        %4148 = vmatmul.f32.gmra.mxu0 %v3585
        %v4149 = vpop.f32.mrf.mxu0
        %v4150 = vadd.f32 %v4037, %v4149
        %4151 = vmatmul.f32.gmra.mxu0 %v3588
        %v4152 = vpop.f32.mrf.mxu0
        %v4153 = vadd.f32 %v4040, %v4152
        %4154 = vmatmul.f32.gmra.mxu0 %v3591
        %v4155 = vpop.f32.mrf.mxu0
        %v4156 = vadd.f32 %v4043, %v4155
        %4157 = vmatmul.f32.gmra.mxu0 %v3594
        %v4158 = vpop.f32.mrf.mxu0
        %v4159 = vadd.f32 %v4046, %v4158
        %4160 = vmatmul.f32.gmra.mxu0 %v3597
        %v4161 = vpop.f32.mrf.mxu0
        %v4162 = vadd.f32 %v4049, %v4161
        %4163 = vdwg.mxu0
        %vm4164 = vcmp.ge.f32.partialorder %v4069, 0.0
        %vm4165 = vcmp.ge.f32.partialorder %v4072, 0.0
        %vm4166 = vcmp.ge.f32.partialorder %v4075, 0.0
        %vm4167 = vcmp.ge.f32.partialorder %v4078, 0.0
        %vm4168 = vcmp.ge.f32.partialorder %v4081, 0.0
        %vm4169 = vcmp.ge.f32.partialorder %v4084, 0.0
        %vm4170 = vcmp.ge.f32.partialorder %v4087, 0.0
        %vm4171 = vcmp.ge.f32.partialorder %v4090, 0.0
        %vm4172 = vcmp.ge.f32.partialorder %v4093, 0.0
        %vm4173 = vcmp.ge.f32.partialorder %v4096, 0.0
        %vm4174 = vcmp.ge.f32.partialorder %v4099, 0.0
        %vm4175 = vcmp.ge.f32.partialorder %v4102, 0.0
        %vm4176 = vcmp.ge.f32.partialorder %v4105, 0.0
        %vm4177 = vcmp.ge.f32.partialorder %v4108, 0.0
        %vm4178 = vcmp.ge.f32.partialorder %v4111, 0.0
        %vm4179 = vcmp.ge.f32.partialorder %v4114, 0.0
        %vm4180 = vcmp.ge.f32.partialorder %v4117, 0.0
        %vm4181 = vcmp.ge.f32.partialorder %v4120, 0.0
        %vm4182 = vcmp.ge.f32.partialorder %v4123, 0.0
        %vm4183 = vcmp.ge.f32.partialorder %v4126, 0.0
        %vm4184 = vcmp.ge.f32.partialorder %v4129, 0.0
        %vm4185 = vcmp.ge.f32.partialorder %v4132, 0.0
        %vm4186 = vcmp.ge.f32.partialorder %v4135, 0.0
        %vm4187 = vcmp.ge.f32.partialorder %v4138, 0.0
        %vm4188 = vcmp.ge.f32.partialorder %v4141, 0.0
        %vm4189 = vcmp.ge.f32.partialorder %v4144, 0.0
        %vm4190 = vcmp.ge.f32.partialorder %v4147, 0.0
        %vm4191 = vcmp.ge.f32.partialorder %v4150, 0.0
        %vm4192 = vcmp.ge.f32.partialorder %v4153, 0.0
        %vm4193 = vcmp.ge.f32.partialorder %v4156, 0.0
        %vm4194 = vcmp.ge.f32.partialorder %v4159, 0.0
        %vm4195 = vcmp.ge.f32.partialorder %v4162, 0.0
        %v4196 = vmul.f32 %v4069, 0.01
        %v4197 = vmul.f32 %v4072, 0.01
        %v4198 = vmul.f32 %v4075, 0.01
        %v4199 = vmul.f32 %v4078, 0.01
        %v4200 = vmul.f32 %v4081, 0.01
        %v4201 = vmul.f32 %v4084, 0.01
        %v4202 = vmul.f32 %v4087, 0.01
        %v4203 = vmul.f32 %v4090, 0.01
        %v4204 = vmul.f32 %v4093, 0.01
        %v4205 = vmul.f32 %v4096, 0.01
        %v4206 = vmul.f32 %v4099, 0.01
        %v4207 = vmul.f32 %v4102, 0.01
        %v4208 = vmul.f32 %v4105, 0.01
        %v4209 = vmul.f32 %v4108, 0.01
        %v4210 = vmul.f32 %v4111, 0.01
        %v4211 = vmul.f32 %v4114, 0.01
        %v4212 = vmul.f32 %v4117, 0.01
        %v4213 = vmul.f32 %v4120, 0.01
        %v4214 = vmul.f32 %v4123, 0.01
        %v4215 = vmul.f32 %v4126, 0.01
        %v4216 = vmul.f32 %v4129, 0.01
        %v4217 = vmul.f32 %v4132, 0.01
        %v4218 = vmul.f32 %v4135, 0.01
        %v4219 = vmul.f32 %v4138, 0.01
        %v4220 = vmul.f32 %v4141, 0.01
        %v4221 = vmul.f32 %v4144, 0.01
        %v4222 = vmul.f32 %v4147, 0.01
        %v4223 = vmul.f32 %v4150, 0.01
        %v4224 = vmul.f32 %v4153, 0.01
        %v4225 = vmul.f32 %v4156, 0.01
        %v4226 = vmul.f32 %v4159, 0.01
        %v4227 = vmul.f32 %v4162, 0.01
        %v4228 = vsel %vm4164, %v4069, %v4196
        %v4229 = vsel %vm4165, %v4072, %v4197
        %v4230 = vsel %vm4166, %v4075, %v4198
        %v4231 = vsel %vm4167, %v4078, %v4199
        %v4232 = vsel %vm4168, %v4081, %v4200
        %v4233 = vsel %vm4169, %v4084, %v4201
        %v4234 = vsel %vm4170, %v4087, %v4202
        %v4235 = vsel %vm4171, %v4090, %v4203
        %v4236 = vsel %vm4172, %v4093, %v4204
        %v4237 = vsel %vm4173, %v4096, %v4205
        %v4238 = vsel %vm4174, %v4099, %v4206
        %v4239 = vsel %vm4175, %v4102, %v4207
        %v4240 = vsel %vm4176, %v4105, %v4208
        %v4241 = vsel %vm4177, %v4108, %v4209
        %v4242 = vsel %vm4178, %v4111, %v4210
        %v4243 = vsel %vm4179, %v4114, %v4211
        %v4244 = vsel %vm4180, %v4117, %v4212
        %v4245 = vsel %vm4181, %v4120, %v4213
        %v4246 = vsel %vm4182, %v4123, %v4214
        %v4247 = vsel %vm4183, %v4126, %v4215
        %v4248 = vsel %vm4184, %v4129, %v4216
        %v4249 = vsel %vm4185, %v4132, %v4217
        %v4250 = vsel %vm4186, %v4135, %v4218
        %v4251 = vsel %vm4187, %v4138, %v4219
        %v4252 = vsel %vm4188, %v4141, %v4220
        %v4253 = vsel %vm4189, %v4144, %v4221
        %v4254 = vsel %vm4190, %v4147, %v4222
        %v4255 = vsel %vm4191, %v4150, %v4223
        %v4256 = vsel %vm4192, %v4153, %v4224
        %v4257 = vsel %vm4193, %v4156, %v4225
        %v4258 = vsel %vm4194, %v4159, %v4226
        %v4259 = vsel %vm4195, %v4162, %v4227
        %s4260 = scalar_lea.vmem [#allocation4], 24
        %4261 = vst.msk [vmem:[%s4260 + $0x1] sm:$0xff] %vm389, %v4228
        %4262 = vst.msk [vmem:[%s4260 + $0x9] sm:$0xff] %vm389, %v4229
        %4263 = vst.msk [vmem:[%s4260 + $0x19] sm:$0xff] %vm389, %v4230
        %4264 = vst.msk [vmem:[%s4260 + $0x21] sm:$0xff] %vm389, %v4231
        %4265 = vst.msk [vmem:[%s4260 + $0x31] sm:$0xff] %vm389, %v4232
        %4266 = vst.msk [vmem:[%s4260 + $0x39] sm:$0xff] %vm389, %v4233
        %4267 = vst.msk [vmem:[%s4260 + $0x49] sm:$0xff] %vm389, %v4234
        %4268 = vst.msk [vmem:[%s4260 + $0x51] sm:$0xff] %vm389, %v4235
        %4269 = vst.msk [vmem:[%s4260 + $0x61] sm:$0xff] %vm389, %v4236
        %4270 = vst.msk [vmem:[%s4260 + $0x69] sm:$0xff] %vm389, %v4237
        %4271 = vst.msk [vmem:[%s4260 + $0x79] sm:$0xff] %vm389, %v4238
        %4272 = vst.msk [vmem:[%s4260 + $0x81] sm:$0xff] %vm389, %v4239
        %4273 = vst.msk [vmem:[%s4260 + $0x91] sm:$0xff] %vm389, %v4240
        %4274 = vst.msk [vmem:[%s4260 + $0x99] sm:$0xff] %vm389, %v4241
        %4275 = vst.msk [vmem:[%s4260 + $0xa9] sm:$0xff] %vm389, %v4242
        %4276 = vst.msk [vmem:[%s4260 + $0xb1] sm:$0xff] %vm389, %v4243
        %4277 = vst.msk [vmem:[%s4260 + $0xc1] sm:$0xff] %vm389, %v4244
        %4278 = vst.msk [vmem:[%s4260 + $0xc9] sm:$0xff] %vm389, %v4245
        %4279 = vst.msk [vmem:[%s4260 + $0xd9] sm:$0xff] %vm389, %v4246
        %4280 = vst.msk [vmem:[%s4260 + $0xe1] sm:$0xff] %vm389, %v4247
        %4281 = vst.msk [vmem:[%s4260 + $0xf1] sm:$0xff] %vm389, %v4248
        %4282 = vst.msk [vmem:[%s4260 + $0xf9] sm:$0xff] %vm389, %v4249
        %4283 = vst.msk [vmem:[%s4260 + $0x109] sm:$0xff] %vm389, %v4250
        %4284 = vst.msk [vmem:[%s4260 + $0x111] sm:$0xff] %vm389, %v4251
        %4285 = vst.msk [vmem:[%s4260 + $0x121] sm:$0xff] %vm389, %v4252
        %4286 = vst.msk [vmem:[%s4260 + $0x129] sm:$0xff] %vm389, %v4253
        %4287 = vst.msk [vmem:[%s4260 + $0x139] sm:$0xff] %vm389, %v4254
        %4288 = vst.msk [vmem:[%s4260 + $0x141] sm:$0xff] %vm389, %v4255
        %4289 = vst.msk [vmem:[%s4260 + $0x151] sm:$0xff] %vm389, %v4256
        %4290 = vst.msk [vmem:[%s4260 + $0x159] sm:$0xff] %vm389, %v4257
        %4291 = vst.msk [vmem:[%s4260 + $0x169] sm:$0xff] %vm389, %v4258
        %4292 = vst.msk [vmem:[%s4260 + $0x171] sm:$0xff] %vm389, %v4259
        %v4293 = vld [vmem:[%s5] sm:$0xff]
        %v4294 = vld [vmem:[%s5 + $0x8] sm:$0xff]
        %v4295 = vld [vmem:[%s5 + $0x10] sm:$0xff]
        %v4296 = vld [vmem:[%s5 + $0x18] sm:$0xff]
        %v4297 = vld [vmem:[%s5 + $0x20] sm:$0xff]
        %v4298 = vld [vmem:[%s5 + $0x28] sm:$0xff]
        %v4299 = vld [vmem:[%s5 + $0x30] sm:$0xff]
        %v4300 = vld [vmem:[%s5 + $0x38] sm:$0xff]
        %v4301 = vld [vmem:[%s5 + $0x40] sm:$0xff]
        %v4302 = vld [vmem:[%s5 + $0x48] sm:$0xff]
        %v4303 = vld [vmem:[%s5 + $0x50] sm:$0xff]
        %v4304 = vld [vmem:[%s5 + $0x58] sm:$0xff]
        %v4305 = vld [vmem:[%s5 + $0x60] sm:$0xff]
        %v4306 = vld [vmem:[%s5 + $0x68] sm:$0xff]
        %v4307 = vld [vmem:[%s5 + $0x70] sm:$0xff]
        %v4308 = vld [vmem:[%s5 + $0x78] sm:$0xff]
        %v4309 = vld [vmem:[%s5 + $0x80] sm:$0xff]
        %v4310 = vld [vmem:[%s5 + $0x88] sm:$0xff]
        %v4311 = vld [vmem:[%s5 + $0x90] sm:$0xff]
        %v4312 = vld [vmem:[%s5 + $0x98] sm:$0xff]
        %v4313 = vld [vmem:[%s5 + $0xa0] sm:$0xff]
        %v4314 = vld [vmem:[%s5 + $0xa8] sm:$0xff]
        %v4315 = vld [vmem:[%s5 + $0xb0] sm:$0xff]
        %v4316 = vld [vmem:[%s5 + $0xb8] sm:$0xff]
        %v4317 = vld [vmem:[%s5 + $0xc0] sm:$0xff]
        %v4318 = vld [vmem:[%s5 + $0xc8] sm:$0xff]
        %v4319 = vld [vmem:[%s5 + $0xd0] sm:$0xff]
        %v4320 = vld [vmem:[%s5 + $0xd8] sm:$0xff]
        %v4321 = vld [vmem:[%s5 + $0xe0] sm:$0xff]
        %v4322 = vld [vmem:[%s5 + $0xe8] sm:$0xff]
        %v4323 = vld [vmem:[%s5 + $0xf0] sm:$0xff]
        %v4324 = vld [vmem:[%s5 + $0xf8] sm:$0xff]
        %v4325 = vld [vmem:[%s5 + $0x100] sm:$0xff]
        %v4326 = vld [vmem:[%s5 + $0x108] sm:$0xff]
        %v4327 = vld [vmem:[%s5 + $0x110] sm:$0xff]
        %v4328 = vld [vmem:[%s5 + $0x118] sm:$0xff]
        %v4329 = vld [vmem:[%s5 + $0x120] sm:$0xff]
        %v4330 = vld [vmem:[%s5 + $0x128] sm:$0xff]
        %v4331 = vld [vmem:[%s5 + $0x130] sm:$0xff]
        %v4332 = vld [vmem:[%s5 + $0x138] sm:$0xff]
        %v4333 = vld [vmem:[%s5 + $0x140] sm:$0xff]
        %v4334 = vld [vmem:[%s5 + $0x148] sm:$0xff]
        %v4335 = vld [vmem:[%s5 + $0x150] sm:$0xff]
        %v4336 = vld [vmem:[%s5 + $0x158] sm:$0xff]
        %v4337 = vld [vmem:[%s5 + $0x160] sm:$0xff]
        %v4338 = vld [vmem:[%s5 + $0x168] sm:$0xff]
        %v4339 = vld [vmem:[%s5 + $0x170] sm:$0xff]
        %v4340 = vld [vmem:[%s5 + $0x178] sm:$0xff]
        %v4341 = vld [vmem:[%s5 + $0x180] sm:$0xff]
        %v4342 = vld [vmem:[%s5 + $0x188] sm:$0xff]
        %v4343 = vld [vmem:[%s5 + $0x190] sm:$0xff]
        %v4344 = vld [vmem:[%s5 + $0x198] sm:$0xff]
        %v4345 = vld [vmem:[%s5 + $0x1a0] sm:$0xff]
        %v4346 = vld [vmem:[%s5 + $0x1a8] sm:$0xff]
        %v4347 = vld [vmem:[%s5 + $0x1b0] sm:$0xff]
        %v4348 = vld [vmem:[%s5 + $0x1b8] sm:$0xff]
        %v4349 = vld [vmem:[%s5 + $0x1c0] sm:$0xff]
        %v4350 = vld [vmem:[%s5 + $0x1c8] sm:$0xff]
        %v4351 = vld [vmem:[%s5 + $0x1d0] sm:$0xff]
        %v4352 = vld [vmem:[%s5 + $0x1d8] sm:$0xff]
        %v4353 = vld [vmem:[%s5 + $0x1e0] sm:$0xff]
        %v4354 = vld [vmem:[%s5 + $0x1e8] sm:$0xff]
        %v4355 = vld [vmem:[%s5 + $0x1f0] sm:$0xff]
        %v4356 = vld [vmem:[%s5 + $0x1f8] sm:$0xff]
        %v4357 = vld [vmem:[%s5 + $0x200] sm:$0xff]
        %v4358 = vld [vmem:[%s5 + $0x208] sm:$0xff]
        %v4359 = vld [vmem:[%s5 + $0x210] sm:$0xff]
        %v4360 = vld [vmem:[%s5 + $0x218] sm:$0xff]
        %v4361 = vld [vmem:[%s5 + $0x220] sm:$0xff]
        %v4362 = vld [vmem:[%s5 + $0x228] sm:$0xff]
        %v4363 = vld [vmem:[%s5 + $0x230] sm:$0xff]
        %v4364 = vld [vmem:[%s5 + $0x238] sm:$0xff]
        %v4365 = vld [vmem:[%s6] sm:$0x1]
        %v4366 = vld [vmem:[#allocation4] sm:$0xff]
        %v4367 = vld [vmem:[#allocation4 + $0x8] sm:$0xff]
        %v4368 = vld [vmem:[#allocation4 + $0x18] sm:$0xff]
        %v4369 = vld [vmem:[#allocation4 + $0x20] sm:$0xff]
        %v4370 = vld [vmem:[#allocation4 + $0x30] sm:$0xff]
        %v4371 = vld [vmem:[#allocation4 + $0x38] sm:$0xff]
        %v4372 = vld [vmem:[#allocation4 + $0x48] sm:$0xff]
        %v4373 = vld [vmem:[#allocation4 + $0x50] sm:$0xff]
        %v4374 = vld [vmem:[#allocation4 + $0x60] sm:$0xff]
        %v4375 = vld [vmem:[#allocation4 + $0x68] sm:$0xff]
        %v4376 = vld [vmem:[#allocation4 + $0x78] sm:$0xff]
        %v4377 = vld [vmem:[#allocation4 + $0x80] sm:$0xff]
        %v4378 = vld [vmem:[#allocation4 + $0x90] sm:$0xff]
        %v4379 = vld [vmem:[#allocation4 + $0x98] sm:$0xff]
        %v4380 = vld [vmem:[#allocation4 + $0xa8] sm:$0xff]
        %v4381 = vld [vmem:[#allocation4 + $0xb0] sm:$0xff]
        %v4382 = vld [vmem:[#allocation4 + $0xc0] sm:$0xff]
        %v4383 = vld [vmem:[#allocation4 + $0xc8] sm:$0xff]
        %v4384 = vld [vmem:[#allocation4 + $0xd8] sm:$0xff]
        %v4385 = vld [vmem:[#allocation4 + $0xe0] sm:$0xff]
        %v4386 = vld [vmem:[#allocation4 + $0xf0] sm:$0xff]
        %v4387 = vld [vmem:[#allocation4 + $0xf8] sm:$0xff]
        %v4388 = vld [vmem:[#allocation4 + $0x108] sm:$0xff]
        %v4389 = vld [vmem:[#allocation4 + $0x110] sm:$0xff]
        %v4390 = vld [vmem:[#allocation4 + $0x120] sm:$0xff]
        %v4391 = vld [vmem:[#allocation4 + $0x128] sm:$0xff]
        %v4392 = vld [vmem:[#allocation4 + $0x138] sm:$0xff]
        %v4393 = vld [vmem:[#allocation4 + $0x140] sm:$0xff]
        %v4394 = vld [vmem:[#allocation4 + $0x150] sm:$0xff]
        %v4395 = vld [vmem:[#allocation4 + $0x158] sm:$0xff]
        %v4396 = vld [vmem:[#allocation4 + $0x168] sm:$0xff]
        %v4397 = vld [vmem:[#allocation4 + $0x170] sm:$0xff]
        %v4398 = vld [vmem:[#allocation4 + $0x1] sm:$0xff]
        %v4399 = vld [vmem:[#allocation4 + $0x9] sm:$0xff]
        %v4400 = vld [vmem:[#allocation4 + $0x19] sm:$0xff]
        %v4401 = vld [vmem:[#allocation4 + $0x21] sm:$0xff]
        %v4402 = vld [vmem:[#allocation4 + $0x31] sm:$0xff]
        %v4403 = vld [vmem:[#allocation4 + $0x39] sm:$0xff]
        %v4404 = vld [vmem:[#allocation4 + $0x49] sm:$0xff]
        %v4405 = vld [vmem:[#allocation4 + $0x51] sm:$0xff]
        %v4406 = vld [vmem:[#allocation4 + $0x61] sm:$0xff]
        %v4407 = vld [vmem:[#allocation4 + $0x69] sm:$0xff]
        %v4408 = vld [vmem:[#allocation4 + $0x79] sm:$0xff]
        %v4409 = vld [vmem:[#allocation4 + $0x81] sm:$0xff]
        %v4410 = vld [vmem:[#allocation4 + $0x91] sm:$0xff]
        %v4411 = vld [vmem:[#allocation4 + $0x99] sm:$0xff]
        %v4412 = vld [vmem:[#allocation4 + $0xa9] sm:$0xff]
        %v4413 = vld [vmem:[#allocation4 + $0xb1] sm:$0xff]
        %v4414 = vld [vmem:[#allocation4 + $0xc1] sm:$0xff]
        %v4415 = vld [vmem:[#allocation4 + $0xc9] sm:$0xff]
        %v4416 = vld [vmem:[#allocation4 + $0xd9] sm:$0xff]
        %v4417 = vld [vmem:[#allocation4 + $0xe1] sm:$0xff]
        %v4418 = vld [vmem:[#allocation4 + $0xf1] sm:$0xff]
        %v4419 = vld [vmem:[#allocation4 + $0xf9] sm:$0xff]
        %v4420 = vld [vmem:[#allocation4 + $0x109] sm:$0xff]
        %v4421 = vld [vmem:[#allocation4 + $0x111] sm:$0xff]
        %v4422 = vld [vmem:[#allocation4 + $0x121] sm:$0xff]
        %v4423 = vld [vmem:[#allocation4 + $0x129] sm:$0xff]
        %v4424 = vld [vmem:[#allocation4 + $0x139] sm:$0xff]
        %v4425 = vld [vmem:[#allocation4 + $0x141] sm:$0xff]
        %v4426 = vld [vmem:[#allocation4 + $0x151] sm:$0xff]
        %v4427 = vld [vmem:[#allocation4 + $0x159] sm:$0xff]
        %v4428 = vld [vmem:[#allocation4 + $0x169] sm:$0xff]
        %v4429 = vld [vmem:[#allocation4 + $0x171] sm:$0xff]
        %v4430 = vld [vmem:[#allocation4 + $0x2] sm:$0xff]
        %v4431 = vld [vmem:[#allocation4 + $0xa] sm:$0xff]
        %v4432 = vld [vmem:[#allocation4 + $0x1a] sm:$0xff]
        %v4433 = vld [vmem:[#allocation4 + $0x22] sm:$0xff]
        %v4434 = vld [vmem:[#allocation4 + $0x32] sm:$0xff]
        %v4435 = vld [vmem:[#allocation4 + $0x3a] sm:$0xff]
        %v4436 = vld [vmem:[#allocation4 + $0x4a] sm:$0xff]
        %v4437 = vld [vmem:[#allocation4 + $0x52] sm:$0xff]
        %v4438 = vld [vmem:[#allocation4 + $0x62] sm:$0xff]
        %v4439 = vld [vmem:[#allocation4 + $0x6a] sm:$0xff]
        %v4440 = vld [vmem:[#allocation4 + $0x7a] sm:$0xff]
        %v4441 = vld [vmem:[#allocation4 + $0x82] sm:$0xff]
        %v4442 = vld [vmem:[#allocation4 + $0x92] sm:$0xff]
        %v4443 = vld [vmem:[#allocation4 + $0x9a] sm:$0xff]
        %v4444 = vld [vmem:[#allocation4 + $0xaa] sm:$0xff]
        %v4445 = vld [vmem:[#allocation4 + $0xb2] sm:$0xff]
        %v4446 = vld [vmem:[#allocation4 + $0xc2] sm:$0xff]
        %v4447 = vld [vmem:[#allocation4 + $0xca] sm:$0xff]
        %v4448 = vld [vmem:[#allocation4 + $0xda] sm:$0xff]
        %v4449 = vld [vmem:[#allocation4 + $0xe2] sm:$0xff]
        %v4450 = vld [vmem:[#allocation4 + $0xf2] sm:$0xff]
        %v4451 = vld [vmem:[#allocation4 + $0xfa] sm:$0xff]
        %v4452 = vld [vmem:[#allocation4 + $0x10a] sm:$0xff]
        %v4453 = vld [vmem:[#allocation4 + $0x112] sm:$0xff]
        %v4454 = vld [vmem:[#allocation4 + $0x122] sm:$0xff]
        %v4455 = vld [vmem:[#allocation4 + $0x12a] sm:$0xff]
        %v4456 = vld [vmem:[#allocation4 + $0x13a] sm:$0xff]
        %v4457 = vld [vmem:[#allocation4 + $0x142] sm:$0xff]
        %v4458 = vld [vmem:[#allocation4 + $0x152] sm:$0xff]
        %v4459 = vld [vmem:[#allocation4 + $0x15a] sm:$0xff]
        %v4460 = vld [vmem:[#allocation4 + $0x16a] sm:$0xff]
        %v4461 = vld [vmem:[#allocation4 + $0x172] sm:$0xff]
        %v4462 = vld [vmem:[%s4260] sm:$0xff]
        %v4463 = vld [vmem:[%s4260 + $0x8] sm:$0xff]
        %v4464 = vld [vmem:[%s4260 + $0x18] sm:$0xff]
        %v4465 = vld [vmem:[%s4260 + $0x20] sm:$0xff]
        %v4466 = vld [vmem:[%s4260 + $0x30] sm:$0xff]
        %v4467 = vld [vmem:[%s4260 + $0x38] sm:$0xff]
        %v4468 = vld [vmem:[%s4260 + $0x48] sm:$0xff]
        %v4469 = vld [vmem:[%s4260 + $0x50] sm:$0xff]
        %v4470 = vld [vmem:[%s4260 + $0x60] sm:$0xff]
        %v4471 = vld [vmem:[%s4260 + $0x68] sm:$0xff]
        %v4472 = vld [vmem:[%s4260 + $0x78] sm:$0xff]
        %v4473 = vld [vmem:[%s4260 + $0x80] sm:$0xff]
        %v4474 = vld [vmem:[%s4260 + $0x90] sm:$0xff]
        %v4475 = vld [vmem:[%s4260 + $0x98] sm:$0xff]
        %v4476 = vld [vmem:[%s4260 + $0xa8] sm:$0xff]
        %v4477 = vld [vmem:[%s4260 + $0xb0] sm:$0xff]
        %v4478 = vld [vmem:[%s4260 + $0xc0] sm:$0xff]
        %v4479 = vld [vmem:[%s4260 + $0xc8] sm:$0xff]
        %v4480 = vld [vmem:[%s4260 + $0xd8] sm:$0xff]
        %v4481 = vld [vmem:[%s4260 + $0xe0] sm:$0xff]
        %v4482 = vld [vmem:[%s4260 + $0xf0] sm:$0xff]
        %v4483 = vld [vmem:[%s4260 + $0xf8] sm:$0xff]
        %v4484 = vld [vmem:[%s4260 + $0x108] sm:$0xff]
        %v4485 = vld [vmem:[%s4260 + $0x110] sm:$0xff]
        %v4486 = vld [vmem:[%s4260 + $0x120] sm:$0xff]
        %v4487 = vld [vmem:[%s4260 + $0x128] sm:$0xff]
        %v4488 = vld [vmem:[%s4260 + $0x138] sm:$0xff]
        %v4489 = vld [vmem:[%s4260 + $0x140] sm:$0xff]
        %v4490 = vld [vmem:[%s4260 + $0x150] sm:$0xff]
        %v4491 = vld [vmem:[%s4260 + $0x158] sm:$0xff]
        %v4492 = vld [vmem:[%s4260 + $0x168] sm:$0xff]
        %v4493 = vld [vmem:[%s4260 + $0x170] sm:$0xff]
        %v4494 = vld [vmem:[%s4260 + $0x1] sm:$0xff]
        %v4495 = vld [vmem:[%s4260 + $0x9] sm:$0xff]
        %v4496 = vld [vmem:[%s4260 + $0x19] sm:$0xff]
        %v4497 = vld [vmem:[%s4260 + $0x21] sm:$0xff]
        %v4498 = vld [vmem:[%s4260 + $0x31] sm:$0xff]
        %v4499 = vld [vmem:[%s4260 + $0x39] sm:$0xff]
        %v4500 = vld [vmem:[%s4260 + $0x49] sm:$0xff]
        %v4501 = vld [vmem:[%s4260 + $0x51] sm:$0xff]
        %v4502 = vld [vmem:[%s4260 + $0x61] sm:$0xff]
        %v4503 = vld [vmem:[%s4260 + $0x69] sm:$0xff]
        %v4504 = vld [vmem:[%s4260 + $0x79] sm:$0xff]
        %v4505 = vld [vmem:[%s4260 + $0x81] sm:$0xff]
        %v4506 = vld [vmem:[%s4260 + $0x91] sm:$0xff]
        %v4507 = vld [vmem:[%s4260 + $0x99] sm:$0xff]
        %v4508 = vld [vmem:[%s4260 + $0xa9] sm:$0xff]
        %v4509 = vld [vmem:[%s4260 + $0xb1] sm:$0xff]
        %v4510 = vld [vmem:[%s4260 + $0xc1] sm:$0xff]
        %v4511 = vld [vmem:[%s4260 + $0xc9] sm:$0xff]
        %v4512 = vld [vmem:[%s4260 + $0xd9] sm:$0xff]
        %v4513 = vld [vmem:[%s4260 + $0xe1] sm:$0xff]
        %v4514 = vld [vmem:[%s4260 + $0xf1] sm:$0xff]
        %v4515 = vld [vmem:[%s4260 + $0xf9] sm:$0xff]
        %v4516 = vld [vmem:[%s4260 + $0x109] sm:$0xff]
        %v4517 = vld [vmem:[%s4260 + $0x111] sm:$0xff]
        %v4518 = vld [vmem:[%s4260 + $0x121] sm:$0xff]
        %v4519 = vld [vmem:[%s4260 + $0x129] sm:$0xff]
        %v4520 = vld [vmem:[%s4260 + $0x139] sm:$0xff]
        %v4521 = vld [vmem:[%s4260 + $0x141] sm:$0xff]
        %v4522 = vld [vmem:[%s4260 + $0x151] sm:$0xff]
        %v4523 = vld [vmem:[%s4260 + $0x159] sm:$0xff]
        %v4524 = vld [vmem:[%s4260 + $0x169] sm:$0xff]
        %v4525 = vld [vmem:[%s4260 + $0x171] sm:$0xff]
        %v4526 = vld [vmem:[%s4260 + $0x2] sm:$0xff]
        %v4527 = vld [vmem:[%s4260 + $0xa] sm:$0xff]
        %v4528 = vld [vmem:[%s4260 + $0x1a] sm:$0xff]
        %v4529 = vld [vmem:[%s4260 + $0x22] sm:$0xff]
        %v4530 = vld [vmem:[%s4260 + $0x32] sm:$0xff]
        %v4531 = vld [vmem:[%s4260 + $0x3a] sm:$0xff]
        %v4532 = vld [vmem:[%s4260 + $0x4a] sm:$0xff]
        %v4533 = vld [vmem:[%s4260 + $0x52] sm:$0xff]
        %v4534 = vld [vmem:[%s4260 + $0x62] sm:$0xff]
        %v4535 = vld [vmem:[%s4260 + $0x6a] sm:$0xff]
        %v4536 = vld [vmem:[%s4260 + $0x7a] sm:$0xff]
        %v4537 = vld [vmem:[%s4260 + $0x82] sm:$0xff]
        %v4538 = vld [vmem:[%s4260 + $0x92] sm:$0xff]
        %v4539 = vld [vmem:[%s4260 + $0x9a] sm:$0xff]
        %v4540 = vld [vmem:[%s4260 + $0xaa] sm:$0xff]
        %v4541 = vld [vmem:[%s4260 + $0xb2] sm:$0xff]
        %v4542 = vld [vmem:[%s4260 + $0xc2] sm:$0xff]
        %v4543 = vld [vmem:[%s4260 + $0xca] sm:$0xff]
        %v4544 = vld [vmem:[%s4260 + $0xda] sm:$0xff]
        %v4545 = vld [vmem:[%s4260 + $0xe2] sm:$0xff]
        %v4546 = vld [vmem:[%s4260 + $0xf2] sm:$0xff]
        %v4547 = vld [vmem:[%s4260 + $0xfa] sm:$0xff]
        %v4548 = vld [vmem:[%s4260 + $0x10a] sm:$0xff]
        %v4549 = vld [vmem:[%s4260 + $0x112] sm:$0xff]
        %v4550 = vld [vmem:[%s4260 + $0x122] sm:$0xff]
        %v4551 = vld [vmem:[%s4260 + $0x12a] sm:$0xff]
        %v4552 = vld [vmem:[%s4260 + $0x13a] sm:$0xff]
        %v4553 = vld [vmem:[%s4260 + $0x142] sm:$0xff]
        %v4554 = vld [vmem:[%s4260 + $0x152] sm:$0xff]
        %v4555 = vld [vmem:[%s4260 + $0x15a] sm:$0xff]
        %v4556 = vld [vmem:[%s4260 + $0x16a] sm:$0xff]
        %v4557 = vld [vmem:[%s4260 + $0x172] sm:$0xff]
        %s4558 = scalar_lea.vmem [#allocation4], 48
        %v4559 = vld [vmem:[%s4558] sm:$0xff]
        %v4560 = vld [vmem:[%s4558 + $0x8] sm:$0xff]
        %v4561 = vld [vmem:[%s4558 + $0x18] sm:$0xff]
        %v4562 = vld [vmem:[%s4558 + $0x20] sm:$0xff]
        %v4563 = vld [vmem:[%s4558 + $0x30] sm:$0xff]
        %v4564 = vld [vmem:[%s4558 + $0x38] sm:$0xff]
        %v4565 = vld [vmem:[%s4558 + $0x48] sm:$0xff]
        %v4566 = vld [vmem:[%s4558 + $0x50] sm:$0xff]
        %v4567 = vld [vmem:[%s4558 + $0x60] sm:$0xff]
        %v4568 = vld [vmem:[%s4558 + $0x68] sm:$0xff]
        %v4569 = vld [vmem:[%s4558 + $0x78] sm:$0xff]
        %v4570 = vld [vmem:[%s4558 + $0x80] sm:$0xff]
        %v4571 = vld [vmem:[%s4558 + $0x90] sm:$0xff]
        %v4572 = vld [vmem:[%s4558 + $0x98] sm:$0xff]
        %v4573 = vld [vmem:[%s4558 + $0xa8] sm:$0xff]
        %v4574 = vld [vmem:[%s4558 + $0xb0] sm:$0xff]
        %v4575 = vld [vmem:[%s4558 + $0xc0] sm:$0xff]
        %v4576 = vld [vmem:[%s4558 + $0xc8] sm:$0xff]
        %v4577 = vld [vmem:[%s4558 + $0xd8] sm:$0xff]
        %v4578 = vld [vmem:[%s4558 + $0xe0] sm:$0xff]
        %v4579 = vld [vmem:[%s4558 + $0xf0] sm:$0xff]
        %v4580 = vld [vmem:[%s4558 + $0xf8] sm:$0xff]
        %v4581 = vld [vmem:[%s4558 + $0x108] sm:$0xff]
        %v4582 = vld [vmem:[%s4558 + $0x110] sm:$0xff]
        %v4583 = vld [vmem:[%s4558 + $0x120] sm:$0xff]
        %v4584 = vld [vmem:[%s4558 + $0x128] sm:$0xff]
        %v4585 = vld [vmem:[%s4558 + $0x138] sm:$0xff]
        %v4586 = vld [vmem:[%s4558 + $0x140] sm:$0xff]
        %v4587 = vld [vmem:[%s4558 + $0x150] sm:$0xff]
        %v4588 = vld [vmem:[%s4558 + $0x158] sm:$0xff]
        %v4589 = vld [vmem:[%s4558 + $0x168] sm:$0xff]
        %v4590 = vld [vmem:[%s4558 + $0x170] sm:$0xff]
        %v4591 = vld [vmem:[%s4558 + $0x1] sm:$0xff]
        %v4592 = vld [vmem:[%s4558 + $0x9] sm:$0xff]
        %v4593 = vld [vmem:[%s4558 + $0x19] sm:$0xff]
        %v4594 = vld [vmem:[%s4558 + $0x21] sm:$0xff]
        %v4595 = vld [vmem:[%s4558 + $0x31] sm:$0xff]
        %v4596 = vld [vmem:[%s4558 + $0x39] sm:$0xff]
        %v4597 = vld [vmem:[%s4558 + $0x49] sm:$0xff]
        %v4598 = vld [vmem:[%s4558 + $0x51] sm:$0xff]
        %v4599 = vld [vmem:[%s4558 + $0x61] sm:$0xff]
        %v4600 = vld [vmem:[%s4558 + $0x69] sm:$0xff]
        %v4601 = vld [vmem:[%s4558 + $0x79] sm:$0xff]
        %v4602 = vld [vmem:[%s4558 + $0x81] sm:$0xff]
        %v4603 = vld [vmem:[%s4558 + $0x91] sm:$0xff]
        %v4604 = vld [vmem:[%s4558 + $0x99] sm:$0xff]
        %v4605 = vld [vmem:[%s4558 + $0xa9] sm:$0xff]
        %v4606 = vld [vmem:[%s4558 + $0xb1] sm:$0xff]
        %v4607 = vld [vmem:[%s4558 + $0xc1] sm:$0xff]
        %v4608 = vld [vmem:[%s4558 + $0xc9] sm:$0xff]
        %v4609 = vld [vmem:[%s4558 + $0xd9] sm:$0xff]
        %v4610 = vld [vmem:[%s4558 + $0xe1] sm:$0xff]
        %v4611 = vld [vmem:[%s4558 + $0xf1] sm:$0xff]
        %v4612 = vld [vmem:[%s4558 + $0xf9] sm:$0xff]
        %v4613 = vld [vmem:[%s4558 + $0x109] sm:$0xff]
        %v4614 = vld [vmem:[%s4558 + $0x111] sm:$0xff]
        %v4615 = vld [vmem:[%s4558 + $0x121] sm:$0xff]
        %v4616 = vld [vmem:[%s4558 + $0x129] sm:$0xff]
        %v4617 = vld [vmem:[%s4558 + $0x139] sm:$0xff]
        %v4618 = vld [vmem:[%s4558 + $0x141] sm:$0xff]
        %v4619 = vld [vmem:[%s4558 + $0x151] sm:$0xff]
        %v4620 = vld [vmem:[%s4558 + $0x159] sm:$0xff]
        %v4621 = vld [vmem:[%s4558 + $0x169] sm:$0xff]
        %v4622 = vld [vmem:[%s4558 + $0x171] sm:$0xff]
        %v4623 = vld [vmem:[%s4558 + $0x2] sm:$0xff]
        %v4624 = vld [vmem:[%s4558 + $0xa] sm:$0xff]
        %v4625 = vld [vmem:[%s4558 + $0x1a] sm:$0xff]
        %v4626 = vld [vmem:[%s4558 + $0x22] sm:$0xff]
        %v4627 = vld [vmem:[%s4558 + $0x32] sm:$0xff]
        %v4628 = vld [vmem:[%s4558 + $0x3a] sm:$0xff]
        %v4629 = vld [vmem:[%s4558 + $0x4a] sm:$0xff]
        %v4630 = vld [vmem:[%s4558 + $0x52] sm:$0xff]
        %v4631 = vld [vmem:[%s4558 + $0x62] sm:$0xff]
        %v4632 = vld [vmem:[%s4558 + $0x6a] sm:$0xff]
        %v4633 = vld [vmem:[%s4558 + $0x7a] sm:$0xff]
        %v4634 = vld [vmem:[%s4558 + $0x82] sm:$0xff]
        %v4635 = vld [vmem:[%s4558 + $0x92] sm:$0xff]
        %v4636 = vld [vmem:[%s4558 + $0x9a] sm:$0xff]
        %v4637 = vld [vmem:[%s4558 + $0xaa] sm:$0xff]
        %v4638 = vld [vmem:[%s4558 + $0xb2] sm:$0xff]
        %v4639 = vld [vmem:[%s4558 + $0xc2] sm:$0xff]
        %v4640 = vld [vmem:[%s4558 + $0xca] sm:$0xff]
        %v4641 = vld [vmem:[%s4558 + $0xda] sm:$0xff]
        %v4642 = vld [vmem:[%s4558 + $0xe2] sm:$0xff]
        %v4643 = vld [vmem:[%s4558 + $0xf2] sm:$0xff]
        %v4644 = vld [vmem:[%s4558 + $0xfa] sm:$0xff]
        %v4645 = vld [vmem:[%s4558 + $0x10a] sm:$0xff]
        %v4646 = vld [vmem:[%s4558 + $0x112] sm:$0xff]
        %v4647 = vld [vmem:[%s4558 + $0x122] sm:$0xff]
        %v4648 = vld [vmem:[%s4558 + $0x12a] sm:$0xff]
        %v4649 = vld [vmem:[%s4558 + $0x13a] sm:$0xff]
        %v4650 = vld [vmem:[%s4558 + $0x142] sm:$0xff]
        %v4651 = vld [vmem:[%s4558 + $0x152] sm:$0xff]
        %v4652 = vld [vmem:[%s4558 + $0x15a] sm:$0xff]
        %v4653 = vld [vmem:[%s4558 + $0x16a] sm:$0xff]
        %v4654 = vld [vmem:[%s4558 + $0x172] sm:$0xff]
        %4687 = vrot.lane.b32.xlu0 %v4398, 64
        %v4688 = vpop.permute.xlu0 %4687
        %4689 = vrot.lane.b32.xlu0 %v4399, 64
        %v4690 = vpop.permute.xlu0 %4689
        %4691 = vrot.lane.b32.xlu0 %v4400, 64
        %v4692 = vpop.permute.xlu0 %4691
        %4693 = vrot.lane.b32.xlu0 %v4401, 64
        %v4694 = vpop.permute.xlu0 %4693
        %4695 = vrot.lane.b32.xlu0 %v4402, 64
        %v4696 = vpop.permute.xlu0 %4695
        %4697 = vrot.lane.b32.xlu0 %v4403, 64
        %v4698 = vpop.permute.xlu0 %4697
        %4699 = vrot.lane.b32.xlu0 %v4404, 64
        %v4700 = vpop.permute.xlu0 %4699
        %4701 = vrot.lane.b32.xlu0 %v4405, 64
        %v4702 = vpop.permute.xlu0 %4701
        %4703 = vrot.lane.b32.xlu0 %v4406, 64
        %v4704 = vpop.permute.xlu0 %4703
        %4705 = vrot.lane.b32.xlu0 %v4407, 64
        %v4706 = vpop.permute.xlu0 %4705
        %4707 = vrot.lane.b32.xlu0 %v4408, 64
        %v4708 = vpop.permute.xlu0 %4707
        %4709 = vrot.lane.b32.xlu0 %v4409, 64
        %v4710 = vpop.permute.xlu0 %4709
        %4711 = vrot.lane.b32.xlu0 %v4410, 64
        %v4712 = vpop.permute.xlu0 %4711
        %4713 = vrot.lane.b32.xlu0 %v4411, 64
        %v4714 = vpop.permute.xlu0 %4713
        %4715 = vrot.lane.b32.xlu0 %v4412, 64
        %v4716 = vpop.permute.xlu0 %4715
        %4717 = vrot.lane.b32.xlu0 %v4413, 64
        %v4718 = vpop.permute.xlu0 %4717
        %4719 = vrot.lane.b32.xlu0 %v4414, 64
        %v4720 = vpop.permute.xlu0 %4719
        %4721 = vrot.lane.b32.xlu0 %v4415, 64
        %v4722 = vpop.permute.xlu0 %4721
        %4723 = vrot.lane.b32.xlu0 %v4416, 64
        %v4724 = vpop.permute.xlu0 %4723
        %4725 = vrot.lane.b32.xlu0 %v4417, 64
        %v4726 = vpop.permute.xlu0 %4725
        %4727 = vrot.lane.b32.xlu0 %v4418, 64
        %v4728 = vpop.permute.xlu0 %4727
        %4729 = vrot.lane.b32.xlu0 %v4419, 64
        %v4730 = vpop.permute.xlu0 %4729
        %4731 = vrot.lane.b32.xlu0 %v4420, 64
        %v4732 = vpop.permute.xlu0 %4731
        %4733 = vrot.lane.b32.xlu0 %v4421, 64
        %v4734 = vpop.permute.xlu0 %4733
        %4735 = vrot.lane.b32.xlu0 %v4422, 64
        %v4736 = vpop.permute.xlu0 %4735
        %4737 = vrot.lane.b32.xlu0 %v4423, 64
        %v4738 = vpop.permute.xlu0 %4737
        %4739 = vrot.lane.b32.xlu0 %v4424, 64
        %v4740 = vpop.permute.xlu0 %4739
        %4741 = vrot.lane.b32.xlu0 %v4425, 64
        %v4742 = vpop.permute.xlu0 %4741
        %4743 = vrot.lane.b32.xlu0 %v4426, 64
        %v4744 = vpop.permute.xlu0 %4743
        %4745 = vrot.lane.b32.xlu0 %v4427, 64
        %v4746 = vpop.permute.xlu0 %4745
        %4747 = vrot.lane.b32.xlu0 %v4428, 64
        %v4748 = vpop.permute.xlu0 %4747
        %4749 = vrot.lane.b32.xlu0 %v4429, 64
        %v4750 = vpop.permute.xlu0 %4749
        %4815 = vrot.lane.b32.xlu0 %v4462, 64
        %v4816 = vpop.permute.xlu0 %4815
        %4817 = vrot.lane.b32.xlu0 %v4463, 64
        %v4818 = vpop.permute.xlu0 %4817
        %4819 = vrot.lane.b32.xlu0 %v4464, 64
        %v4820 = vpop.permute.xlu0 %4819
        %4821 = vrot.lane.b32.xlu0 %v4465, 64
        %v4822 = vpop.permute.xlu0 %4821
        %4823 = vrot.lane.b32.xlu0 %v4466, 64
        %v4824 = vpop.permute.xlu0 %4823
        %4825 = vrot.lane.b32.xlu0 %v4467, 64
        %v4826 = vpop.permute.xlu0 %4825
        %4827 = vrot.lane.b32.xlu0 %v4468, 64
        %v4828 = vpop.permute.xlu0 %4827
        %4829 = vrot.lane.b32.xlu0 %v4469, 64
        %v4830 = vpop.permute.xlu0 %4829
        %4831 = vrot.lane.b32.xlu0 %v4470, 64
        %v4832 = vpop.permute.xlu0 %4831
        %4833 = vrot.lane.b32.xlu0 %v4471, 64
        %v4834 = vpop.permute.xlu0 %4833
        %4835 = vrot.lane.b32.xlu0 %v4472, 64
        %v4836 = vpop.permute.xlu0 %4835
        %4837 = vrot.lane.b32.xlu0 %v4473, 64
        %v4838 = vpop.permute.xlu0 %4837
        %4839 = vrot.lane.b32.xlu0 %v4474, 64
        %v4840 = vpop.permute.xlu0 %4839
        %4841 = vrot.lane.b32.xlu0 %v4475, 64
        %v4842 = vpop.permute.xlu0 %4841
        %4843 = vrot.lane.b32.xlu0 %v4476, 64
        %v4844 = vpop.permute.xlu0 %4843
        %4845 = vrot.lane.b32.xlu0 %v4477, 64
        %v4846 = vpop.permute.xlu0 %4845
        %4847 = vrot.lane.b32.xlu0 %v4478, 64
        %v4848 = vpop.permute.xlu0 %4847
        %4849 = vrot.lane.b32.xlu0 %v4479, 64
        %v4850 = vpop.permute.xlu0 %4849
        %4851 = vrot.lane.b32.xlu0 %v4480, 64
        %v4852 = vpop.permute.xlu0 %4851
        %4853 = vrot.lane.b32.xlu0 %v4481, 64
        %v4854 = vpop.permute.xlu0 %4853
        %4855 = vrot.lane.b32.xlu0 %v4482, 64
        %v4856 = vpop.permute.xlu0 %4855
        %4857 = vrot.lane.b32.xlu0 %v4483, 64
        %v4858 = vpop.permute.xlu0 %4857
        %4859 = vrot.lane.b32.xlu0 %v4484, 64
        %v4860 = vpop.permute.xlu0 %4859
        %4861 = vrot.lane.b32.xlu0 %v4485, 64
        %v4862 = vpop.permute.xlu0 %4861
        %4863 = vrot.lane.b32.xlu0 %v4486, 64
        %v4864 = vpop.permute.xlu0 %4863
        %4865 = vrot.lane.b32.xlu0 %v4487, 64
        %v4866 = vpop.permute.xlu0 %4865
        %4867 = vrot.lane.b32.xlu0 %v4488, 64
        %v4868 = vpop.permute.xlu0 %4867
        %4869 = vrot.lane.b32.xlu0 %v4489, 64
        %v4870 = vpop.permute.xlu0 %4869
        %4871 = vrot.lane.b32.xlu0 %v4490, 64
        %v4872 = vpop.permute.xlu0 %4871
        %4873 = vrot.lane.b32.xlu0 %v4491, 64
        %v4874 = vpop.permute.xlu0 %4873
        %4875 = vrot.lane.b32.xlu0 %v4492, 64
        %v4876 = vpop.permute.xlu0 %4875
        %4877 = vrot.lane.b32.xlu0 %v4493, 64
        %v4878 = vpop.permute.xlu0 %4877
        %4943 = vrot.lane.b32.xlu0 %v4526, 64
        %v4944 = vpop.permute.xlu0 %4943
        %4945 = vrot.lane.b32.xlu0 %v4527, 64
        %v4946 = vpop.permute.xlu0 %4945
        %4947 = vrot.lane.b32.xlu0 %v4528, 64
        %v4948 = vpop.permute.xlu0 %4947
        %4949 = vrot.lane.b32.xlu0 %v4529, 64
        %v4950 = vpop.permute.xlu0 %4949
        %4951 = vrot.lane.b32.xlu0 %v4530, 64
        %v4952 = vpop.permute.xlu0 %4951
        %4953 = vrot.lane.b32.xlu0 %v4531, 64
        %v4954 = vpop.permute.xlu0 %4953
        %4955 = vrot.lane.b32.xlu0 %v4532, 64
        %v4956 = vpop.permute.xlu0 %4955
        %4957 = vrot.lane.b32.xlu0 %v4533, 64
        %v4958 = vpop.permute.xlu0 %4957
        %4959 = vrot.lane.b32.xlu0 %v4534, 64
        %v4960 = vpop.permute.xlu0 %4959
        %4961 = vrot.lane.b32.xlu0 %v4535, 64
        %v4962 = vpop.permute.xlu0 %4961
        %4963 = vrot.lane.b32.xlu0 %v4536, 64
        %v4964 = vpop.permute.xlu0 %4963
        %4965 = vrot.lane.b32.xlu0 %v4537, 64
        %v4966 = vpop.permute.xlu0 %4965
        %4967 = vrot.lane.b32.xlu0 %v4538, 64
        %v4968 = vpop.permute.xlu0 %4967
        %4969 = vrot.lane.b32.xlu0 %v4539, 64
        %v4970 = vpop.permute.xlu0 %4969
        %4971 = vrot.lane.b32.xlu0 %v4540, 64
        %v4972 = vpop.permute.xlu0 %4971
        %4973 = vrot.lane.b32.xlu0 %v4541, 64
        %v4974 = vpop.permute.xlu0 %4973
        %4975 = vrot.lane.b32.xlu0 %v4542, 64
        %v4976 = vpop.permute.xlu0 %4975
        %4977 = vrot.lane.b32.xlu0 %v4543, 64
        %v4978 = vpop.permute.xlu0 %4977
        %4979 = vrot.lane.b32.xlu0 %v4544, 64
        %v4980 = vpop.permute.xlu0 %4979
        %4981 = vrot.lane.b32.xlu0 %v4545, 64
        %v4982 = vpop.permute.xlu0 %4981
        %4983 = vrot.lane.b32.xlu0 %v4546, 64
        %v4984 = vpop.permute.xlu0 %4983
        %4985 = vrot.lane.b32.xlu0 %v4547, 64
        %v4986 = vpop.permute.xlu0 %4985
        %4987 = vrot.lane.b32.xlu0 %v4548, 64
        %v4988 = vpop.permute.xlu0 %4987
        %4989 = vrot.lane.b32.xlu0 %v4549, 64
        %v4990 = vpop.permute.xlu0 %4989
        %4991 = vrot.lane.b32.xlu0 %v4550, 64
        %v4992 = vpop.permute.xlu0 %4991
        %4993 = vrot.lane.b32.xlu0 %v4551, 64
        %v4994 = vpop.permute.xlu0 %4993
        %4995 = vrot.lane.b32.xlu0 %v4552, 64
        %v4996 = vpop.permute.xlu0 %4995
        %4997 = vrot.lane.b32.xlu0 %v4553, 64
        %v4998 = vpop.permute.xlu0 %4997
        %4999 = vrot.lane.b32.xlu0 %v4554, 64
        %v5000 = vpop.permute.xlu0 %4999
        %5001 = vrot.lane.b32.xlu0 %v4555, 64
        %v5002 = vpop.permute.xlu0 %5001
        %5003 = vrot.lane.b32.xlu0 %v4556, 64
        %v5004 = vpop.permute.xlu0 %5003
        %5005 = vrot.lane.b32.xlu0 %v4557, 64
        %v5006 = vpop.permute.xlu0 %5005
        %5071 = vrot.lane.b32.xlu0 %v4591, 64
        %v5072 = vpop.permute.xlu0 %5071
        %5073 = vrot.lane.b32.xlu0 %v4592, 64
        %v5074 = vpop.permute.xlu0 %5073
        %5075 = vrot.lane.b32.xlu0 %v4593, 64
        %v5076 = vpop.permute.xlu0 %5075
        %5077 = vrot.lane.b32.xlu0 %v4594, 64
        %v5078 = vpop.permute.xlu0 %5077
        %5079 = vrot.lane.b32.xlu0 %v4595, 64
        %v5080 = vpop.permute.xlu0 %5079
        %5081 = vrot.lane.b32.xlu0 %v4596, 64
        %v5082 = vpop.permute.xlu0 %5081
        %5083 = vrot.lane.b32.xlu0 %v4597, 64
        %v5084 = vpop.permute.xlu0 %5083
        %5085 = vrot.lane.b32.xlu0 %v4598, 64
        %v5086 = vpop.permute.xlu0 %5085
        %5087 = vrot.lane.b32.xlu0 %v4599, 64
        %v5088 = vpop.permute.xlu0 %5087
        %5089 = vrot.lane.b32.xlu0 %v4600, 64
        %v5090 = vpop.permute.xlu0 %5089
        %5091 = vrot.lane.b32.xlu0 %v4601, 64
        %v5092 = vpop.permute.xlu0 %5091
        %5093 = vrot.lane.b32.xlu0 %v4602, 64
        %v5094 = vpop.permute.xlu0 %5093
        %5095 = vrot.lane.b32.xlu0 %v4603, 64
        %v5096 = vpop.permute.xlu0 %5095
        %5097 = vrot.lane.b32.xlu0 %v4604, 64
        %v5098 = vpop.permute.xlu0 %5097
        %5099 = vrot.lane.b32.xlu0 %v4605, 64
        %v5100 = vpop.permute.xlu0 %5099
        %5101 = vrot.lane.b32.xlu0 %v4606, 64
        %v5102 = vpop.permute.xlu0 %5101
        %5103 = vrot.lane.b32.xlu0 %v4607, 64
        %v5104 = vpop.permute.xlu0 %5103
        %5105 = vrot.lane.b32.xlu0 %v4608, 64
        %v5106 = vpop.permute.xlu0 %5105
        %5107 = vrot.lane.b32.xlu0 %v4609, 64
        %v5108 = vpop.permute.xlu0 %5107
        %5109 = vrot.lane.b32.xlu0 %v4610, 64
        %v5110 = vpop.permute.xlu0 %5109
        %5111 = vrot.lane.b32.xlu0 %v4611, 64
        %v5112 = vpop.permute.xlu0 %5111
        %5113 = vrot.lane.b32.xlu0 %v4612, 64
        %v5114 = vpop.permute.xlu0 %5113
        %5115 = vrot.lane.b32.xlu0 %v4613, 64
        %v5116 = vpop.permute.xlu0 %5115
        %5117 = vrot.lane.b32.xlu0 %v4614, 64
        %v5118 = vpop.permute.xlu0 %5117
        %5119 = vrot.lane.b32.xlu0 %v4615, 64
        %v5120 = vpop.permute.xlu0 %5119
        %5121 = vrot.lane.b32.xlu0 %v4616, 64
        %v5122 = vpop.permute.xlu0 %5121
        %5123 = vrot.lane.b32.xlu0 %v4617, 64
        %v5124 = vpop.permute.xlu0 %5123
        %5125 = vrot.lane.b32.xlu0 %v4618, 64
        %v5126 = vpop.permute.xlu0 %5125
        %5127 = vrot.lane.b32.xlu0 %v4619, 64
        %v5128 = vpop.permute.xlu0 %5127
        %5129 = vrot.lane.b32.xlu0 %v4620, 64
        %v5130 = vpop.permute.xlu0 %5129
        %5131 = vrot.lane.b32.xlu0 %v4621, 64
        %v5132 = vpop.permute.xlu0 %5131
        %5133 = vrot.lane.b32.xlu0 %v4622, 64
        %v5134 = vpop.permute.xlu0 %5133
        %v5167 = vsel %vm389, %v4366, %v4688
        %v5168 = vsel %vm389, %v4367, %v4690
        %v5169 = vsel %vm389, %v4368, %v4692
        %v5170 = vsel %vm389, %v4369, %v4694
        %v5171 = vsel %vm389, %v4370, %v4696
        %v5172 = vsel %vm389, %v4371, %v4698
        %v5173 = vsel %vm389, %v4372, %v4700
        %v5174 = vsel %vm389, %v4373, %v4702
        %v5175 = vsel %vm389, %v4374, %v4704
        %v5176 = vsel %vm389, %v4375, %v4706
        %v5177 = vsel %vm389, %v4376, %v4708
        %v5178 = vsel %vm389, %v4377, %v4710
        %v5179 = vsel %vm389, %v4378, %v4712
        %v5180 = vsel %vm389, %v4379, %v4714
        %v5181 = vsel %vm389, %v4380, %v4716
        %v5182 = vsel %vm389, %v4381, %v4718
        %v5183 = vsel %vm389, %v4382, %v4720
        %v5184 = vsel %vm389, %v4383, %v4722
        %v5185 = vsel %vm389, %v4384, %v4724
        %v5186 = vsel %vm389, %v4385, %v4726
        %v5187 = vsel %vm389, %v4386, %v4728
        %v5188 = vsel %vm389, %v4387, %v4730
        %v5189 = vsel %vm389, %v4388, %v4732
        %v5190 = vsel %vm389, %v4389, %v4734
        %v5191 = vsel %vm389, %v4390, %v4736
        %v5192 = vsel %vm389, %v4391, %v4738
        %v5193 = vsel %vm389, %v4392, %v4740
        %v5194 = vsel %vm389, %v4393, %v4742
        %v5195 = vsel %vm389, %v4394, %v4744
        %v5196 = vsel %vm389, %v4395, %v4746
        %v5197 = vsel %vm389, %v4396, %v4748
        %v5198 = vsel %vm389, %v4397, %v4750
        %v5199 = vsel %vm389, %v4430, %v4816
        %v5200 = vsel %vm389, %v4431, %v4818
        %v5201 = vsel %vm389, %v4432, %v4820
        %v5202 = vsel %vm389, %v4433, %v4822
        %v5203 = vsel %vm389, %v4434, %v4824
        %v5204 = vsel %vm389, %v4435, %v4826
        %v5205 = vsel %vm389, %v4436, %v4828
        %v5206 = vsel %vm389, %v4437, %v4830
        %v5207 = vsel %vm389, %v4438, %v4832
        %v5208 = vsel %vm389, %v4439, %v4834
        %v5209 = vsel %vm389, %v4440, %v4836
        %v5210 = vsel %vm389, %v4441, %v4838
        %v5211 = vsel %vm389, %v4442, %v4840
        %v5212 = vsel %vm389, %v4443, %v4842
        %v5213 = vsel %vm389, %v4444, %v4844
        %v5214 = vsel %vm389, %v4445, %v4846
        %v5215 = vsel %vm389, %v4446, %v4848
        %v5216 = vsel %vm389, %v4447, %v4850
        %v5217 = vsel %vm389, %v4448, %v4852
        %v5218 = vsel %vm389, %v4449, %v4854
        %v5219 = vsel %vm389, %v4450, %v4856
        %v5220 = vsel %vm389, %v4451, %v4858
        %v5221 = vsel %vm389, %v4452, %v4860
        %v5222 = vsel %vm389, %v4453, %v4862
        %v5223 = vsel %vm389, %v4454, %v4864
        %v5224 = vsel %vm389, %v4455, %v4866
        %v5225 = vsel %vm389, %v4456, %v4868
        %v5226 = vsel %vm389, %v4457, %v4870
        %v5227 = vsel %vm389, %v4458, %v4872
        %v5228 = vsel %vm389, %v4459, %v4874
        %v5229 = vsel %vm389, %v4460, %v4876
        %v5230 = vsel %vm389, %v4461, %v4878
        %v5231 = vsel %vm389, %v4494, %v4944
        %v5232 = vsel %vm389, %v4495, %v4946
        %v5233 = vsel %vm389, %v4496, %v4948
        %v5234 = vsel %vm389, %v4497, %v4950
        %v5235 = vsel %vm389, %v4498, %v4952
        %v5236 = vsel %vm389, %v4499, %v4954
        %v5237 = vsel %vm389, %v4500, %v4956
        %v5238 = vsel %vm389, %v4501, %v4958
        %v5239 = vsel %vm389, %v4502, %v4960
        %v5240 = vsel %vm389, %v4503, %v4962
        %v5241 = vsel %vm389, %v4504, %v4964
        %v5242 = vsel %vm389, %v4505, %v4966
        %v5243 = vsel %vm389, %v4506, %v4968
        %v5244 = vsel %vm389, %v4507, %v4970
        %v5245 = vsel %vm389, %v4508, %v4972
        %v5246 = vsel %vm389, %v4509, %v4974
        %v5247 = vsel %vm389, %v4510, %v4976
        %v5248 = vsel %vm389, %v4511, %v4978
        %v5249 = vsel %vm389, %v4512, %v4980
        %v5250 = vsel %vm389, %v4513, %v4982
        %v5251 = vsel %vm389, %v4514, %v4984
        %v5252 = vsel %vm389, %v4515, %v4986
        %v5253 = vsel %vm389, %v4516, %v4988
        %v5254 = vsel %vm389, %v4517, %v4990
        %v5255 = vsel %vm389, %v4518, %v4992
        %v5256 = vsel %vm389, %v4519, %v4994
        %v5257 = vsel %vm389, %v4520, %v4996
        %v5258 = vsel %vm389, %v4521, %v4998
        %v5259 = vsel %vm389, %v4522, %v5000
        %v5260 = vsel %vm389, %v4523, %v5002
        %v5261 = vsel %vm389, %v4524, %v5004
        %v5262 = vsel %vm389, %v4525, %v5006
        %v5263 = vsel %vm389, %v4559, %v5072
        %v5264 = vsel %vm389, %v4560, %v5074
        %v5265 = vsel %vm389, %v4561, %v5076
        %v5266 = vsel %vm389, %v4562, %v5078
        %v5267 = vsel %vm389, %v4563, %v5080
        %v5268 = vsel %vm389, %v4564, %v5082
        %v5269 = vsel %vm389, %v4565, %v5084
        %v5270 = vsel %vm389, %v4566, %v5086
        %v5271 = vsel %vm389, %v4567, %v5088
        %v5272 = vsel %vm389, %v4568, %v5090
        %v5273 = vsel %vm389, %v4569, %v5092
        %v5274 = vsel %vm389, %v4570, %v5094
        %v5275 = vsel %vm389, %v4571, %v5096
        %v5276 = vsel %vm389, %v4572, %v5098
        %v5277 = vsel %vm389, %v4573, %v5100
        %v5278 = vsel %vm389, %v4574, %v5102
        %v5279 = vsel %vm389, %v4575, %v5104
        %v5280 = vsel %vm389, %v4576, %v5106
        %v5281 = vsel %vm389, %v4577, %v5108
        %v5282 = vsel %vm389, %v4578, %v5110
        %v5283 = vsel %vm389, %v4579, %v5112
        %v5284 = vsel %vm389, %v4580, %v5114
        %v5285 = vsel %vm389, %v4581, %v5116
        %v5286 = vsel %vm389, %v4582, %v5118
        %v5287 = vsel %vm389, %v4583, %v5120
        %v5288 = vsel %vm389, %v4584, %v5122
        %v5289 = vsel %vm389, %v4585, %v5124
        %v5290 = vsel %vm389, %v4586, %v5126
        %v5291 = vsel %vm389, %v4587, %v5128
        %v5292 = vsel %vm389, %v4588, %v5130
        %v5293 = vsel %vm389, %v4589, %v5132
        %v5294 = vsel %vm389, %v4590, %v5134
        %v5296 = vperm.slane %v4365, 0
        %v5299 = vsel %vm389, %v4623, 0
        %v5302 = vsel %vm389, %v4624, 0
        %v5305 = vsel %vm389, %v4625, 0
        %v5308 = vsel %vm389, %v4626, 0
        %v5311 = vsel %vm389, %v4627, 0
        %v5314 = vsel %vm389, %v4628, 0
        %v5317 = vsel %vm389, %v4629, 0
        %v5320 = vsel %vm389, %v4630, 0
        %v5323 = vsel %vm389, %v4631, 0
        %v5326 = vsel %vm389, %v4632, 0
        %v5329 = vsel %vm389, %v4633, 0
        %v5332 = vsel %vm389, %v4634, 0
        %v5335 = vsel %vm389, %v4635, 0
        %v5338 = vsel %vm389, %v4636, 0
        %v5341 = vsel %vm389, %v4637, 0
        %v5344 = vsel %vm389, %v4638, 0
        %v5347 = vsel %vm389, %v4639, 0
        %v5350 = vsel %vm389, %v4640, 0
        %v5353 = vsel %vm389, %v4641, 0
        %v5356 = vsel %vm389, %v4642, 0
        %v5359 = vsel %vm389, %v4643, 0
        %v5362 = vsel %vm389, %v4644, 0
        %v5365 = vsel %vm389, %v4645, 0
        %v5368 = vsel %vm389, %v4646, 0
        %v5371 = vsel %vm389, %v4647, 0
        %v5374 = vsel %vm389, %v4648, 0
        %v5377 = vsel %vm389, %v4649, 0
        %v5380 = vsel %vm389, %v4650, 0
        %v5383 = vsel %vm389, %v4651, 0
        %v5386 = vsel %vm389, %v4652, 0
        %v5389 = vsel %vm389, %v4653, 0
        %v5392 = vsel %vm389, %v4654, 0
        %5394 = vmatpush.msra.mxu0 %v4308
        %5395 = vmatpush.msra.mxu0 %v4307
        %5396 = vmatpush.msra.mxu0 %v4306
        %5397 = vmatpush.msra.mxu0 %v4305
        %5398 = vmatpush.msra.mxu0 %v4304
        %5399 = vmatpush.msra.mxu0 %v4303
        %5400 = vmatpush.msra.mxu0 %v4302
        %5401 = vmatpush.msra.mxu0 %v4301
        %5402 = vmatpush.msra.mxu0 %v4300
        %5403 = vmatpush.msra.mxu0 %v4299
        %5404 = vmatpush.msra.mxu0 %v4298
        %5405 = vmatpush.msra.mxu0 %v4297
        %5406 = vmatpush.msra.mxu0 %v4296
        %5407 = vmatpush.msra.mxu0 %v4295
        %5408 = vmatpush.msra.mxu0 %v4294
        %5409 = vmatpush.msra.mxu0 %v4293
        %5410 = vmatmul.f32.gmra.mxu0 %v5167
        %v5411 = vpop.f32.mrf.mxu0
        %v5412 = vadd.f32 %v5296, %v5411
        %5413 = vmatmul.f32.gmra.mxu0 %v5168
        %v5414 = vpop.f32.mrf.mxu0
        %v5415 = vadd.f32 %v5296, %v5414
        %5416 = vmatmul.f32.gmra.mxu0 %v5169
        %v5417 = vpop.f32.mrf.mxu0
        %v5418 = vadd.f32 %v5296, %v5417
        %5419 = vmatmul.f32.gmra.mxu0 %v5170
        %v5420 = vpop.f32.mrf.mxu0
        %v5421 = vadd.f32 %v5296, %v5420
        %5422 = vmatmul.f32.gmra.mxu0 %v5171
        %v5423 = vpop.f32.mrf.mxu0
        %v5424 = vadd.f32 %v5296, %v5423
        %5425 = vmatmul.f32.gmra.mxu0 %v5172
        %v5426 = vpop.f32.mrf.mxu0
        %v5427 = vadd.f32 %v5296, %v5426
        %5428 = vmatmul.f32.gmra.mxu0 %v5173
        %v5429 = vpop.f32.mrf.mxu0
        %v5430 = vadd.f32 %v5296, %v5429
        %5431 = vmatmul.f32.gmra.mxu0 %v5174
        %v5432 = vpop.f32.mrf.mxu0
        %v5433 = vadd.f32 %v5296, %v5432
        %5434 = vmatmul.f32.gmra.mxu0 %v5175
        %v5435 = vpop.f32.mrf.mxu0
        %v5436 = vadd.f32 %v5296, %v5435
        %5437 = vmatmul.f32.gmra.mxu0 %v5176
        %v5438 = vpop.f32.mrf.mxu0
        %v5439 = vadd.f32 %v5296, %v5438
        %5440 = vmatmul.f32.gmra.mxu0 %v5177
        %v5441 = vpop.f32.mrf.mxu0
        %v5442 = vadd.f32 %v5296, %v5441
        %5443 = vmatmul.f32.gmra.mxu0 %v5178
        %v5444 = vpop.f32.mrf.mxu0
        %v5445 = vadd.f32 %v5296, %v5444
        %5446 = vmatmul.f32.gmra.mxu0 %v5179
        %v5447 = vpop.f32.mrf.mxu0
        %v5448 = vadd.f32 %v5296, %v5447
        %5449 = vmatmul.f32.gmra.mxu0 %v5180
        %v5450 = vpop.f32.mrf.mxu0
        %v5451 = vadd.f32 %v5296, %v5450
        %5452 = vmatmul.f32.gmra.mxu0 %v5181
        %v5453 = vpop.f32.mrf.mxu0
        %v5454 = vadd.f32 %v5296, %v5453
        %5455 = vmatmul.f32.gmra.mxu0 %v5182
        %v5456 = vpop.f32.mrf.mxu0
        %v5457 = vadd.f32 %v5296, %v5456
        %5458 = vmatmul.f32.gmra.mxu0 %v5183
        %v5459 = vpop.f32.mrf.mxu0
        %v5460 = vadd.f32 %v5296, %v5459
        %5461 = vmatmul.f32.gmra.mxu0 %v5184
        %v5462 = vpop.f32.mrf.mxu0
        %v5463 = vadd.f32 %v5296, %v5462
        %5464 = vmatmul.f32.gmra.mxu0 %v5185
        %v5465 = vpop.f32.mrf.mxu0
        %v5466 = vadd.f32 %v5296, %v5465
        %5467 = vmatmul.f32.gmra.mxu0 %v5186
        %v5468 = vpop.f32.mrf.mxu0
        %v5469 = vadd.f32 %v5296, %v5468
        %5470 = vmatmul.f32.gmra.mxu0 %v5187
        %v5471 = vpop.f32.mrf.mxu0
        %v5472 = vadd.f32 %v5296, %v5471
        %5473 = vmatmul.f32.gmra.mxu0 %v5188
        %v5474 = vpop.f32.mrf.mxu0
        %v5475 = vadd.f32 %v5296, %v5474
        %5476 = vmatmul.f32.gmra.mxu0 %v5189
        %v5477 = vpop.f32.mrf.mxu0
        %v5478 = vadd.f32 %v5296, %v5477
        %5479 = vmatmul.f32.gmra.mxu0 %v5190
        %v5480 = vpop.f32.mrf.mxu0
        %v5481 = vadd.f32 %v5296, %v5480
        %5482 = vmatmul.f32.gmra.mxu0 %v5191
        %v5483 = vpop.f32.mrf.mxu0
        %v5484 = vadd.f32 %v5296, %v5483
        %5485 = vmatmul.f32.gmra.mxu0 %v5192
        %v5486 = vpop.f32.mrf.mxu0
        %v5487 = vadd.f32 %v5296, %v5486
        %5488 = vmatmul.f32.gmra.mxu0 %v5193
        %v5489 = vpop.f32.mrf.mxu0
        %v5490 = vadd.f32 %v5296, %v5489
        %5491 = vmatmul.f32.gmra.mxu0 %v5194
        %v5492 = vpop.f32.mrf.mxu0
        %v5493 = vadd.f32 %v5296, %v5492
        %5494 = vmatmul.f32.gmra.mxu0 %v5195
        %v5495 = vpop.f32.mrf.mxu0
        %v5496 = vadd.f32 %v5296, %v5495
        %5497 = vmatmul.f32.gmra.mxu0 %v5196
        %v5498 = vpop.f32.mrf.mxu0
        %v5499 = vadd.f32 %v5296, %v5498
        %5500 = vmatmul.f32.gmra.mxu0 %v5197
        %v5501 = vpop.f32.mrf.mxu0
        %v5502 = vadd.f32 %v5296, %v5501
        %5503 = vmatmul.f32.gmra.mxu0 %v5198
        %v5504 = vpop.f32.mrf.mxu0
        %v5505 = vadd.f32 %v5296, %v5504
        %5506 = vdwg.mxu0
        %5507 = vmatpush.msra.mxu0 %v4324
        %5508 = vmatpush.msra.mxu0 %v4323
        %5509 = vmatpush.msra.mxu0 %v4322
        %5510 = vmatpush.msra.mxu0 %v4321
        %5511 = vmatpush.msra.mxu0 %v4320
        %5512 = vmatpush.msra.mxu0 %v4319
        %5513 = vmatpush.msra.mxu0 %v4318
        %5514 = vmatpush.msra.mxu0 %v4317
        %5515 = vmatpush.msra.mxu0 %v4316
        %5516 = vmatpush.msra.mxu0 %v4315
        %5517 = vmatpush.msra.mxu0 %v4314
        %5518 = vmatpush.msra.mxu0 %v4313
        %5519 = vmatpush.msra.mxu0 %v4312
        %5520 = vmatpush.msra.mxu0 %v4311
        %5521 = vmatpush.msra.mxu0 %v4310
        %5522 = vmatpush.msra.mxu0 %v4309
        %5523 = vmatmul.f32.gmra.mxu0 %v5199
        %v5524 = vpop.f32.mrf.mxu0
        %v5525 = vadd.f32 %v5412, %v5524
        %5526 = vmatmul.f32.gmra.mxu0 %v5200
        %v5527 = vpop.f32.mrf.mxu0
        %v5528 = vadd.f32 %v5415, %v5527
        %5529 = vmatmul.f32.gmra.mxu0 %v5201
        %v5530 = vpop.f32.mrf.mxu0
        %v5531 = vadd.f32 %v5418, %v5530
        %5532 = vmatmul.f32.gmra.mxu0 %v5202
        %v5533 = vpop.f32.mrf.mxu0
        %v5534 = vadd.f32 %v5421, %v5533
        %5535 = vmatmul.f32.gmra.mxu0 %v5203
        %v5536 = vpop.f32.mrf.mxu0
        %v5537 = vadd.f32 %v5424, %v5536
        %5538 = vmatmul.f32.gmra.mxu0 %v5204
        %v5539 = vpop.f32.mrf.mxu0
        %v5540 = vadd.f32 %v5427, %v5539
        %5541 = vmatmul.f32.gmra.mxu0 %v5205
        %v5542 = vpop.f32.mrf.mxu0
        %v5543 = vadd.f32 %v5430, %v5542
        %5544 = vmatmul.f32.gmra.mxu0 %v5206
        %v5545 = vpop.f32.mrf.mxu0
        %v5546 = vadd.f32 %v5433, %v5545
        %5547 = vmatmul.f32.gmra.mxu0 %v5207
        %v5548 = vpop.f32.mrf.mxu0
        %v5549 = vadd.f32 %v5436, %v5548
        %5550 = vmatmul.f32.gmra.mxu0 %v5208
        %v5551 = vpop.f32.mrf.mxu0
        %v5552 = vadd.f32 %v5439, %v5551
        %5553 = vmatmul.f32.gmra.mxu0 %v5209
        %v5554 = vpop.f32.mrf.mxu0
        %v5555 = vadd.f32 %v5442, %v5554
        %5556 = vmatmul.f32.gmra.mxu0 %v5210
        %v5557 = vpop.f32.mrf.mxu0
        %v5558 = vadd.f32 %v5445, %v5557
        %5559 = vmatmul.f32.gmra.mxu0 %v5211
        %v5560 = vpop.f32.mrf.mxu0
        %v5561 = vadd.f32 %v5448, %v5560
        %5562 = vmatmul.f32.gmra.mxu0 %v5212
        %v5563 = vpop.f32.mrf.mxu0
        %v5564 = vadd.f32 %v5451, %v5563
        %5565 = vmatmul.f32.gmra.mxu0 %v5213
        %v5566 = vpop.f32.mrf.mxu0
        %v5567 = vadd.f32 %v5454, %v5566
        %5568 = vmatmul.f32.gmra.mxu0 %v5214
        %v5569 = vpop.f32.mrf.mxu0
        %v5570 = vadd.f32 %v5457, %v5569
        %5571 = vmatmul.f32.gmra.mxu0 %v5215
        %v5572 = vpop.f32.mrf.mxu0
        %v5573 = vadd.f32 %v5460, %v5572
        %5574 = vmatmul.f32.gmra.mxu0 %v5216
        %v5575 = vpop.f32.mrf.mxu0
        %v5576 = vadd.f32 %v5463, %v5575
        %5577 = vmatmul.f32.gmra.mxu0 %v5217
        %v5578 = vpop.f32.mrf.mxu0
        %v5579 = vadd.f32 %v5466, %v5578
        %5580 = vmatmul.f32.gmra.mxu0 %v5218
        %v5581 = vpop.f32.mrf.mxu0
        %v5582 = vadd.f32 %v5469, %v5581
        %5583 = vmatmul.f32.gmra.mxu0 %v5219
        %v5584 = vpop.f32.mrf.mxu0
        %v5585 = vadd.f32 %v5472, %v5584
        %5586 = vmatmul.f32.gmra.mxu0 %v5220
        %v5587 = vpop.f32.mrf.mxu0
        %v5588 = vadd.f32 %v5475, %v5587
        %5589 = vmatmul.f32.gmra.mxu0 %v5221
        %v5590 = vpop.f32.mrf.mxu0
        %v5591 = vadd.f32 %v5478, %v5590
        %5592 = vmatmul.f32.gmra.mxu0 %v5222
        %v5593 = vpop.f32.mrf.mxu0
        %v5594 = vadd.f32 %v5481, %v5593
        %5595 = vmatmul.f32.gmra.mxu0 %v5223
        %v5596 = vpop.f32.mrf.mxu0
        %v5597 = vadd.f32 %v5484, %v5596
        %5598 = vmatmul.f32.gmra.mxu0 %v5224
        %v5599 = vpop.f32.mrf.mxu0
        %v5600 = vadd.f32 %v5487, %v5599
        %5601 = vmatmul.f32.gmra.mxu0 %v5225
        %v5602 = vpop.f32.mrf.mxu0
        %v5603 = vadd.f32 %v5490, %v5602
        %5604 = vmatmul.f32.gmra.mxu0 %v5226
        %v5605 = vpop.f32.mrf.mxu0
        %v5606 = vadd.f32 %v5493, %v5605
        %5607 = vmatmul.f32.gmra.mxu0 %v5227
        %v5608 = vpop.f32.mrf.mxu0
        %v5609 = vadd.f32 %v5496, %v5608
        %5610 = vmatmul.f32.gmra.mxu0 %v5228
        %v5611 = vpop.f32.mrf.mxu0
        %v5612 = vadd.f32 %v5499, %v5611
        %5613 = vmatmul.f32.gmra.mxu0 %v5229
        %v5614 = vpop.f32.mrf.mxu0
        %v5615 = vadd.f32 %v5502, %v5614
        %5616 = vmatmul.f32.gmra.mxu0 %v5230
        %v5617 = vpop.f32.mrf.mxu0
        %v5618 = vadd.f32 %v5505, %v5617
        %5619 = vdwg.mxu0
        %5620 = vmatpush.msra.mxu0 %v4340
        %5621 = vmatpush.msra.mxu0 %v4339
        %5622 = vmatpush.msra.mxu0 %v4338
        %5623 = vmatpush.msra.mxu0 %v4337
        %5624 = vmatpush.msra.mxu0 %v4336
        %5625 = vmatpush.msra.mxu0 %v4335
        %5626 = vmatpush.msra.mxu0 %v4334
        %5627 = vmatpush.msra.mxu0 %v4333
        %5628 = vmatpush.msra.mxu0 %v4332
        %5629 = vmatpush.msra.mxu0 %v4331
        %5630 = vmatpush.msra.mxu0 %v4330
        %5631 = vmatpush.msra.mxu0 %v4329
        %5632 = vmatpush.msra.mxu0 %v4328
        %5633 = vmatpush.msra.mxu0 %v4327
        %5634 = vmatpush.msra.mxu0 %v4326
        %5635 = vmatpush.msra.mxu0 %v4325
        %5636 = vmatmul.f32.gmra.mxu0 %v5231
        %v5637 = vpop.f32.mrf.mxu0
        %v5638 = vadd.f32 %v5525, %v5637
        %5639 = vmatmul.f32.gmra.mxu0 %v5232
        %v5640 = vpop.f32.mrf.mxu0
        %v5641 = vadd.f32 %v5528, %v5640
        %5642 = vmatmul.f32.gmra.mxu0 %v5233
        %v5643 = vpop.f32.mrf.mxu0
        %v5644 = vadd.f32 %v5531, %v5643
        %5645 = vmatmul.f32.gmra.mxu0 %v5234
        %v5646 = vpop.f32.mrf.mxu0
        %v5647 = vadd.f32 %v5534, %v5646
        %5648 = vmatmul.f32.gmra.mxu0 %v5235
        %v5649 = vpop.f32.mrf.mxu0
        %v5650 = vadd.f32 %v5537, %v5649
        %5651 = vmatmul.f32.gmra.mxu0 %v5236
        %v5652 = vpop.f32.mrf.mxu0
        %v5653 = vadd.f32 %v5540, %v5652
        %5654 = vmatmul.f32.gmra.mxu0 %v5237
        %v5655 = vpop.f32.mrf.mxu0
        %v5656 = vadd.f32 %v5543, %v5655
        %5657 = vmatmul.f32.gmra.mxu0 %v5238
        %v5658 = vpop.f32.mrf.mxu0
        %v5659 = vadd.f32 %v5546, %v5658
        %5660 = vmatmul.f32.gmra.mxu0 %v5239
        %v5661 = vpop.f32.mrf.mxu0
        %v5662 = vadd.f32 %v5549, %v5661
        %5663 = vmatmul.f32.gmra.mxu0 %v5240
        %v5664 = vpop.f32.mrf.mxu0
        %v5665 = vadd.f32 %v5552, %v5664
        %5666 = vmatmul.f32.gmra.mxu0 %v5241
        %v5667 = vpop.f32.mrf.mxu0
        %v5668 = vadd.f32 %v5555, %v5667
        %5669 = vmatmul.f32.gmra.mxu0 %v5242
        %v5670 = vpop.f32.mrf.mxu0
        %v5671 = vadd.f32 %v5558, %v5670
        %5672 = vmatmul.f32.gmra.mxu0 %v5243
        %v5673 = vpop.f32.mrf.mxu0
        %v5674 = vadd.f32 %v5561, %v5673
        %5675 = vmatmul.f32.gmra.mxu0 %v5244
        %v5676 = vpop.f32.mrf.mxu0
        %v5677 = vadd.f32 %v5564, %v5676
        %5678 = vmatmul.f32.gmra.mxu0 %v5245
        %v5679 = vpop.f32.mrf.mxu0
        %v5680 = vadd.f32 %v5567, %v5679
        %5681 = vmatmul.f32.gmra.mxu0 %v5246
        %v5682 = vpop.f32.mrf.mxu0
        %v5683 = vadd.f32 %v5570, %v5682
        %5684 = vmatmul.f32.gmra.mxu0 %v5247
        %v5685 = vpop.f32.mrf.mxu0
        %v5686 = vadd.f32 %v5573, %v5685
        %5687 = vmatmul.f32.gmra.mxu0 %v5248
        %v5688 = vpop.f32.mrf.mxu0
        %v5689 = vadd.f32 %v5576, %v5688
        %5690 = vmatmul.f32.gmra.mxu0 %v5249
        %v5691 = vpop.f32.mrf.mxu0
        %v5692 = vadd.f32 %v5579, %v5691
        %5693 = vmatmul.f32.gmra.mxu0 %v5250
        %v5694 = vpop.f32.mrf.mxu0
        %v5695 = vadd.f32 %v5582, %v5694
        %5696 = vmatmul.f32.gmra.mxu0 %v5251
        %v5697 = vpop.f32.mrf.mxu0
        %v5698 = vadd.f32 %v5585, %v5697
        %5699 = vmatmul.f32.gmra.mxu0 %v5252
        %v5700 = vpop.f32.mrf.mxu0
        %v5701 = vadd.f32 %v5588, %v5700
        %5702 = vmatmul.f32.gmra.mxu0 %v5253
        %v5703 = vpop.f32.mrf.mxu0
        %v5704 = vadd.f32 %v5591, %v5703
        %5705 = vmatmul.f32.gmra.mxu0 %v5254
        %v5706 = vpop.f32.mrf.mxu0
        %v5707 = vadd.f32 %v5594, %v5706
        %5708 = vmatmul.f32.gmra.mxu0 %v5255
        %v5709 = vpop.f32.mrf.mxu0
        %v5710 = vadd.f32 %v5597, %v5709
        %5711 = vmatmul.f32.gmra.mxu0 %v5256
        %v5712 = vpop.f32.mrf.mxu0
        %v5713 = vadd.f32 %v5600, %v5712
        %5714 = vmatmul.f32.gmra.mxu0 %v5257
        %v5715 = vpop.f32.mrf.mxu0
        %v5716 = vadd.f32 %v5603, %v5715
        %5717 = vmatmul.f32.gmra.mxu0 %v5258
        %v5718 = vpop.f32.mrf.mxu0
        %v5719 = vadd.f32 %v5606, %v5718
        %5720 = vmatmul.f32.gmra.mxu0 %v5259
        %v5721 = vpop.f32.mrf.mxu0
        %v5722 = vadd.f32 %v5609, %v5721
        %5723 = vmatmul.f32.gmra.mxu0 %v5260
        %v5724 = vpop.f32.mrf.mxu0
        %v5725 = vadd.f32 %v5612, %v5724
        %5726 = vmatmul.f32.gmra.mxu0 %v5261
        %v5727 = vpop.f32.mrf.mxu0
        %v5728 = vadd.f32 %v5615, %v5727
        %5729 = vmatmul.f32.gmra.mxu0 %v5262
        %v5730 = vpop.f32.mrf.mxu0
        %v5731 = vadd.f32 %v5618, %v5730
        %5732 = vdwg.mxu0
        %5733 = vmatpush.msra.mxu0 %v4356
        %5734 = vmatpush.msra.mxu0 %v4355
        %5735 = vmatpush.msra.mxu0 %v4354
        %5736 = vmatpush.msra.mxu0 %v4353
        %5737 = vmatpush.msra.mxu0 %v4352
        %5738 = vmatpush.msra.mxu0 %v4351
        %5739 = vmatpush.msra.mxu0 %v4350
        %5740 = vmatpush.msra.mxu0 %v4349
        %5741 = vmatpush.msra.mxu0 %v4348
        %5742 = vmatpush.msra.mxu0 %v4347
        %5743 = vmatpush.msra.mxu0 %v4346
        %5744 = vmatpush.msra.mxu0 %v4345
        %5745 = vmatpush.msra.mxu0 %v4344
        %5746 = vmatpush.msra.mxu0 %v4343
        %5747 = vmatpush.msra.mxu0 %v4342
        %5748 = vmatpush.msra.mxu0 %v4341
        %5749 = vmatmul.f32.gmra.mxu0 %v5263
        %v5750 = vpop.f32.mrf.mxu0
        %v5751 = vadd.f32 %v5638, %v5750
        %5752 = vmatmul.f32.gmra.mxu0 %v5264
        %v5753 = vpop.f32.mrf.mxu0
        %v5754 = vadd.f32 %v5641, %v5753
        %5755 = vmatmul.f32.gmra.mxu0 %v5265
        %v5756 = vpop.f32.mrf.mxu0
        %v5757 = vadd.f32 %v5644, %v5756
        %5758 = vmatmul.f32.gmra.mxu0 %v5266
        %v5759 = vpop.f32.mrf.mxu0
        %v5760 = vadd.f32 %v5647, %v5759
        %5761 = vmatmul.f32.gmra.mxu0 %v5267
        %v5762 = vpop.f32.mrf.mxu0
        %v5763 = vadd.f32 %v5650, %v5762
        %5764 = vmatmul.f32.gmra.mxu0 %v5268
        %v5765 = vpop.f32.mrf.mxu0
        %v5766 = vadd.f32 %v5653, %v5765
        %5767 = vmatmul.f32.gmra.mxu0 %v5269
        %v5768 = vpop.f32.mrf.mxu0
        %v5769 = vadd.f32 %v5656, %v5768
        %5770 = vmatmul.f32.gmra.mxu0 %v5270
        %v5771 = vpop.f32.mrf.mxu0
        %v5772 = vadd.f32 %v5659, %v5771
        %5773 = vmatmul.f32.gmra.mxu0 %v5271
        %v5774 = vpop.f32.mrf.mxu0
        %v5775 = vadd.f32 %v5662, %v5774
        %5776 = vmatmul.f32.gmra.mxu0 %v5272
        %v5777 = vpop.f32.mrf.mxu0
        %v5778 = vadd.f32 %v5665, %v5777
        %5779 = vmatmul.f32.gmra.mxu0 %v5273
        %v5780 = vpop.f32.mrf.mxu0
        %v5781 = vadd.f32 %v5668, %v5780
        %5782 = vmatmul.f32.gmra.mxu0 %v5274
        %v5783 = vpop.f32.mrf.mxu0
        %v5784 = vadd.f32 %v5671, %v5783
        %5785 = vmatmul.f32.gmra.mxu0 %v5275
        %v5786 = vpop.f32.mrf.mxu0
        %v5787 = vadd.f32 %v5674, %v5786
        %5788 = vmatmul.f32.gmra.mxu0 %v5276
        %v5789 = vpop.f32.mrf.mxu0
        %v5790 = vadd.f32 %v5677, %v5789
        %5791 = vmatmul.f32.gmra.mxu0 %v5277
        %v5792 = vpop.f32.mrf.mxu0
        %v5793 = vadd.f32 %v5680, %v5792
        %5794 = vmatmul.f32.gmra.mxu0 %v5278
        %v5795 = vpop.f32.mrf.mxu0
        %v5796 = vadd.f32 %v5683, %v5795
        %5797 = vmatmul.f32.gmra.mxu0 %v5279
        %v5798 = vpop.f32.mrf.mxu0
        %v5799 = vadd.f32 %v5686, %v5798
        %5800 = vmatmul.f32.gmra.mxu0 %v5280
        %v5801 = vpop.f32.mrf.mxu0
        %v5802 = vadd.f32 %v5689, %v5801
        %5803 = vmatmul.f32.gmra.mxu0 %v5281
        %v5804 = vpop.f32.mrf.mxu0
        %v5805 = vadd.f32 %v5692, %v5804
        %5806 = vmatmul.f32.gmra.mxu0 %v5282
        %v5807 = vpop.f32.mrf.mxu0
        %v5808 = vadd.f32 %v5695, %v5807
        %5809 = vmatmul.f32.gmra.mxu0 %v5283
        %v5810 = vpop.f32.mrf.mxu0
        %v5811 = vadd.f32 %v5698, %v5810
        %5812 = vmatmul.f32.gmra.mxu0 %v5284
        %v5813 = vpop.f32.mrf.mxu0
        %v5814 = vadd.f32 %v5701, %v5813
        %5815 = vmatmul.f32.gmra.mxu0 %v5285
        %v5816 = vpop.f32.mrf.mxu0
        %v5817 = vadd.f32 %v5704, %v5816
        %5818 = vmatmul.f32.gmra.mxu0 %v5286
        %v5819 = vpop.f32.mrf.mxu0
        %v5820 = vadd.f32 %v5707, %v5819
        %5821 = vmatmul.f32.gmra.mxu0 %v5287
        %v5822 = vpop.f32.mrf.mxu0
        %v5823 = vadd.f32 %v5710, %v5822
        %5824 = vmatmul.f32.gmra.mxu0 %v5288
        %v5825 = vpop.f32.mrf.mxu0
        %v5826 = vadd.f32 %v5713, %v5825
        %5827 = vmatmul.f32.gmra.mxu0 %v5289
        %v5828 = vpop.f32.mrf.mxu0
        %v5829 = vadd.f32 %v5716, %v5828
        %5830 = vmatmul.f32.gmra.mxu0 %v5290
        %v5831 = vpop.f32.mrf.mxu0
        %v5832 = vadd.f32 %v5719, %v5831
        %5833 = vmatmul.f32.gmra.mxu0 %v5291
        %v5834 = vpop.f32.mrf.mxu0
        %v5835 = vadd.f32 %v5722, %v5834
        %5836 = vmatmul.f32.gmra.mxu0 %v5292
        %v5837 = vpop.f32.mrf.mxu0
        %v5838 = vadd.f32 %v5725, %v5837
        %5839 = vmatmul.f32.gmra.mxu0 %v5293
        %v5840 = vpop.f32.mrf.mxu0
        %v5841 = vadd.f32 %v5728, %v5840
        %5842 = vmatmul.f32.gmra.mxu0 %v5294
        %v5843 = vpop.f32.mrf.mxu0
        %v5844 = vadd.f32 %v5731, %v5843
        %5845 = vdwg.mxu0
        %5846 = vmatpush.msra.mxu0 0.0
        %5847 = vmatpush.msra.mxu0 0.0
        %5848 = vmatpush.msra.mxu0 0.0
        %5849 = vmatpush.msra.mxu0 0.0
        %5850 = vmatpush.msra.mxu0 0.0
        %5851 = vmatpush.msra.mxu0 0.0
        %5852 = vmatpush.msra.mxu0 0.0
        %5853 = vmatpush.msra.mxu0 0.0
        %5854 = vmatpush.msra.mxu0 %v4364
        %5855 = vmatpush.msra.mxu0 %v4363
        %5856 = vmatpush.msra.mxu0 %v4362
        %5857 = vmatpush.msra.mxu0 %v4361
        %5858 = vmatpush.msra.mxu0 %v4360
        %5859 = vmatpush.msra.mxu0 %v4359
        %5860 = vmatpush.msra.mxu0 %v4358
        %5861 = vmatpush.msra.mxu0 %v4357
        %5862 = vmatmul.f32.gmra.mxu0 %v5299
        %v5863 = vpop.f32.mrf.mxu0
        %v5864 = vadd.f32 %v5751, %v5863
        %5865 = vmatmul.f32.gmra.mxu0 %v5302
        %v5866 = vpop.f32.mrf.mxu0
        %v5867 = vadd.f32 %v5754, %v5866
        %5868 = vmatmul.f32.gmra.mxu0 %v5305
        %v5869 = vpop.f32.mrf.mxu0
        %v5870 = vadd.f32 %v5757, %v5869
        %5871 = vmatmul.f32.gmra.mxu0 %v5308
        %v5872 = vpop.f32.mrf.mxu0
        %v5873 = vadd.f32 %v5760, %v5872
        %5874 = vmatmul.f32.gmra.mxu0 %v5311
        %v5875 = vpop.f32.mrf.mxu0
        %v5876 = vadd.f32 %v5763, %v5875
        %5877 = vmatmul.f32.gmra.mxu0 %v5314
        %v5878 = vpop.f32.mrf.mxu0
        %v5879 = vadd.f32 %v5766, %v5878
        %5880 = vmatmul.f32.gmra.mxu0 %v5317
        %v5881 = vpop.f32.mrf.mxu0
        %v5882 = vadd.f32 %v5769, %v5881
        %5883 = vmatmul.f32.gmra.mxu0 %v5320
        %v5884 = vpop.f32.mrf.mxu0
        %v5885 = vadd.f32 %v5772, %v5884
        %5886 = vmatmul.f32.gmra.mxu0 %v5323
        %v5887 = vpop.f32.mrf.mxu0
        %v5888 = vadd.f32 %v5775, %v5887
        %5889 = vmatmul.f32.gmra.mxu0 %v5326
        %v5890 = vpop.f32.mrf.mxu0
        %v5891 = vadd.f32 %v5778, %v5890
        %5892 = vmatmul.f32.gmra.mxu0 %v5329
        %v5893 = vpop.f32.mrf.mxu0
        %v5894 = vadd.f32 %v5781, %v5893
        %5895 = vmatmul.f32.gmra.mxu0 %v5332
        %v5896 = vpop.f32.mrf.mxu0
        %v5897 = vadd.f32 %v5784, %v5896
        %5898 = vmatmul.f32.gmra.mxu0 %v5335
        %v5899 = vpop.f32.mrf.mxu0
        %v5900 = vadd.f32 %v5787, %v5899
        %5901 = vmatmul.f32.gmra.mxu0 %v5338
        %v5902 = vpop.f32.mrf.mxu0
        %v5903 = vadd.f32 %v5790, %v5902
        %5904 = vmatmul.f32.gmra.mxu0 %v5341
        %v5905 = vpop.f32.mrf.mxu0
        %v5906 = vadd.f32 %v5793, %v5905
        %5907 = vmatmul.f32.gmra.mxu0 %v5344
        %v5908 = vpop.f32.mrf.mxu0
        %v5909 = vadd.f32 %v5796, %v5908
        %5910 = vmatmul.f32.gmra.mxu0 %v5347
        %v5911 = vpop.f32.mrf.mxu0
        %v5912 = vadd.f32 %v5799, %v5911
        %5913 = vmatmul.f32.gmra.mxu0 %v5350
        %v5914 = vpop.f32.mrf.mxu0
        %v5915 = vadd.f32 %v5802, %v5914
        %5916 = vmatmul.f32.gmra.mxu0 %v5353
        %v5917 = vpop.f32.mrf.mxu0
        %v5918 = vadd.f32 %v5805, %v5917
        %5919 = vmatmul.f32.gmra.mxu0 %v5356
        %v5920 = vpop.f32.mrf.mxu0
        %v5921 = vadd.f32 %v5808, %v5920
        %5922 = vmatmul.f32.gmra.mxu0 %v5359
        %v5923 = vpop.f32.mrf.mxu0
        %v5924 = vadd.f32 %v5811, %v5923
        %5925 = vmatmul.f32.gmra.mxu0 %v5362
        %v5926 = vpop.f32.mrf.mxu0
        %v5927 = vadd.f32 %v5814, %v5926
        %5928 = vmatmul.f32.gmra.mxu0 %v5365
        %v5929 = vpop.f32.mrf.mxu0
        %v5930 = vadd.f32 %v5817, %v5929
        %5931 = vmatmul.f32.gmra.mxu0 %v5368
        %v5932 = vpop.f32.mrf.mxu0
        %v5933 = vadd.f32 %v5820, %v5932
        %5934 = vmatmul.f32.gmra.mxu0 %v5371
        %v5935 = vpop.f32.mrf.mxu0
        %v5936 = vadd.f32 %v5823, %v5935
        %5937 = vmatmul.f32.gmra.mxu0 %v5374
        %v5938 = vpop.f32.mrf.mxu0
        %v5939 = vadd.f32 %v5826, %v5938
        %5940 = vmatmul.f32.gmra.mxu0 %v5377
        %v5941 = vpop.f32.mrf.mxu0
        %v5942 = vadd.f32 %v5829, %v5941
        %5943 = vmatmul.f32.gmra.mxu0 %v5380
        %v5944 = vpop.f32.mrf.mxu0
        %v5945 = vadd.f32 %v5832, %v5944
        %5946 = vmatmul.f32.gmra.mxu0 %v5383
        %v5947 = vpop.f32.mrf.mxu0
        %v5948 = vadd.f32 %v5835, %v5947
        %5949 = vmatmul.f32.gmra.mxu0 %v5386
        %v5950 = vpop.f32.mrf.mxu0
        %v5951 = vadd.f32 %v5838, %v5950
        %5952 = vmatmul.f32.gmra.mxu0 %v5389
        %v5953 = vpop.f32.mrf.mxu0
        %v5954 = vadd.f32 %v5841, %v5953
        %5955 = vmatmul.f32.gmra.mxu0 %v5392
        %v5956 = vpop.f32.mrf.mxu0
        %v5957 = vadd.f32 %v5844, %v5956
        %5958 = vdwg.mxu0
        %v5959 = vld [vmem:[%s2465 + $0x1] sm:$0xff]
        %v5960 = vld [vmem:[%s2465 + $0x9] sm:$0xff]
        %v5961 = vld [vmem:[%s2465 + $0x19] sm:$0xff]
        %v5962 = vld [vmem:[%s2465 + $0x21] sm:$0xff]
        %v5963 = vld [vmem:[%s2465 + $0x31] sm:$0xff]
        %v5964 = vld [vmem:[%s2465 + $0x39] sm:$0xff]
        %v5965 = vld [vmem:[%s2465 + $0x49] sm:$0xff]
        %v5966 = vld [vmem:[%s2465 + $0x51] sm:$0xff]
        %v5967 = vld [vmem:[%s2465 + $0x61] sm:$0xff]
        %v5968 = vld [vmem:[%s2465 + $0x69] sm:$0xff]
        %v5969 = vld [vmem:[%s2465 + $0x79] sm:$0xff]
        %v5970 = vld [vmem:[%s2465 + $0x81] sm:$0xff]
        %v5971 = vld [vmem:[%s2465 + $0x91] sm:$0xff]
        %v5972 = vld [vmem:[%s2465 + $0x99] sm:$0xff]
        %v5973 = vld [vmem:[%s2465 + $0xa9] sm:$0xff]
        %v5974 = vld [vmem:[%s2465 + $0xb1] sm:$0xff]
        %v5975 = vld [vmem:[%s2465 + $0xc1] sm:$0xff]
        %v5976 = vld [vmem:[%s2465 + $0xc9] sm:$0xff]
        %v5977 = vld [vmem:[%s2465 + $0xd9] sm:$0xff]
        %v5978 = vld [vmem:[%s2465 + $0xe1] sm:$0xff]
        %v5979 = vld [vmem:[%s2465 + $0xf1] sm:$0xff]
        %v5980 = vld [vmem:[%s2465 + $0xf9] sm:$0xff]
        %v5981 = vld [vmem:[%s2465 + $0x109] sm:$0xff]
        %v5982 = vld [vmem:[%s2465 + $0x111] sm:$0xff]
        %v5983 = vld [vmem:[%s2465 + $0x121] sm:$0xff]
        %v5984 = vld [vmem:[%s2465 + $0x129] sm:$0xff]
        %v5985 = vld [vmem:[%s2465 + $0x139] sm:$0xff]
        %v5986 = vld [vmem:[%s2465 + $0x141] sm:$0xff]
        %v5987 = vld [vmem:[%s2465 + $0x151] sm:$0xff]
        %v5988 = vld [vmem:[%s2465 + $0x159] sm:$0xff]
        %v5989 = vld [vmem:[%s2465 + $0x169] sm:$0xff]
        %v5990 = vld [vmem:[%s2465 + $0x171] sm:$0xff]
        %v5991 = vadd.f32 %v5864, %v5959
        %v5992 = vadd.f32 %v5867, %v5960
        %v5993 = vadd.f32 %v5870, %v5961
        %v5994 = vadd.f32 %v5873, %v5962
        %v5995 = vadd.f32 %v5876, %v5963
        %v5996 = vadd.f32 %v5879, %v5964
        %v5997 = vadd.f32 %v5882, %v5965
        %v5998 = vadd.f32 %v5885, %v5966
        %v5999 = vadd.f32 %v5888, %v5967
        %v6000 = vadd.f32 %v5891, %v5968
        %v6001 = vadd.f32 %v5894, %v5969
        %v6002 = vadd.f32 %v5897, %v5970
        %v6003 = vadd.f32 %v5900, %v5971
        %v6004 = vadd.f32 %v5903, %v5972
        %v6005 = vadd.f32 %v5906, %v5973
        %v6006 = vadd.f32 %v5909, %v5974
        %v6007 = vadd.f32 %v5912, %v5975
        %v6008 = vadd.f32 %v5915, %v5976
        %v6009 = vadd.f32 %v5918, %v5977
        %v6010 = vadd.f32 %v5921, %v5978
        %v6011 = vadd.f32 %v5924, %v5979
        %v6012 = vadd.f32 %v5927, %v5980
        %v6013 = vadd.f32 %v5930, %v5981
        %v6014 = vadd.f32 %v5933, %v5982
        %v6015 = vadd.f32 %v5936, %v5983
        %v6016 = vadd.f32 %v5939, %v5984
        %v6017 = vadd.f32 %v5942, %v5985
        %v6018 = vadd.f32 %v5945, %v5986
        %v6019 = vadd.f32 %v5948, %v5987
        %v6020 = vadd.f32 %v5951, %v5988
        %v6021 = vadd.f32 %v5954, %v5989
        %v6022 = vadd.f32 %v5957, %v5990
        %6023 = vst.msk [vmem:[%s2465 + $0x1] sm:$0xff] %vm389, %v5991
        %6024 = vst.msk [vmem:[%s2465 + $0x9] sm:$0xff] %vm389, %v5992
        %6025 = vst.msk [vmem:[%s2465 + $0x19] sm:$0xff] %vm389, %v5993
        %6026 = vst.msk [vmem:[%s2465 + $0x21] sm:$0xff] %vm389, %v5994
        %6027 = vst.msk [vmem:[%s2465 + $0x31] sm:$0xff] %vm389, %v5995
        %6028 = vst.msk [vmem:[%s2465 + $0x39] sm:$0xff] %vm389, %v5996
        %6029 = vst.msk [vmem:[%s2465 + $0x49] sm:$0xff] %vm389, %v5997
        %6030 = vst.msk [vmem:[%s2465 + $0x51] sm:$0xff] %vm389, %v5998
        %6031 = vst.msk [vmem:[%s2465 + $0x61] sm:$0xff] %vm389, %v5999
        %6032 = vst.msk [vmem:[%s2465 + $0x69] sm:$0xff] %vm389, %v6000
        %6033 = vst.msk [vmem:[%s2465 + $0x79] sm:$0xff] %vm389, %v6001
        %6034 = vst.msk [vmem:[%s2465 + $0x81] sm:$0xff] %vm389, %v6002
        %6035 = vst.msk [vmem:[%s2465 + $0x91] sm:$0xff] %vm389, %v6003
        %6036 = vst.msk [vmem:[%s2465 + $0x99] sm:$0xff] %vm389, %v6004
        %6037 = vst.msk [vmem:[%s2465 + $0xa9] sm:$0xff] %vm389, %v6005
        %6038 = vst.msk [vmem:[%s2465 + $0xb1] sm:$0xff] %vm389, %v6006
        %6039 = vst.msk [vmem:[%s2465 + $0xc1] sm:$0xff] %vm389, %v6007
        %6040 = vst.msk [vmem:[%s2465 + $0xc9] sm:$0xff] %vm389, %v6008
        %6041 = vst.msk [vmem:[%s2465 + $0xd9] sm:$0xff] %vm389, %v6009
        %6042 = vst.msk [vmem:[%s2465 + $0xe1] sm:$0xff] %vm389, %v6010
        %6043 = vst.msk [vmem:[%s2465 + $0xf1] sm:$0xff] %vm389, %v6011
        %6044 = vst.msk [vmem:[%s2465 + $0xf9] sm:$0xff] %vm389, %v6012
        %6045 = vst.msk [vmem:[%s2465 + $0x109] sm:$0xff] %vm389, %v6013
        %6046 = vst.msk [vmem:[%s2465 + $0x111] sm:$0xff] %vm389, %v6014
        %6047 = vst.msk [vmem:[%s2465 + $0x121] sm:$0xff] %vm389, %v6015
        %6048 = vst.msk [vmem:[%s2465 + $0x129] sm:$0xff] %vm389, %v6016
        %6049 = vst.msk [vmem:[%s2465 + $0x139] sm:$0xff] %vm389, %v6017
        %6050 = vst.msk [vmem:[%s2465 + $0x141] sm:$0xff] %vm389, %v6018
        %6051 = vst.msk [vmem:[%s2465 + $0x151] sm:$0xff] %vm389, %v6019
        %6052 = vst.msk [vmem:[%s2465 + $0x159] sm:$0xff] %vm389, %v6020
        %6053 = vst.msk [vmem:[%s2465 + $0x169] sm:$0xff] %vm389, %v6021
        %6054 = vst.msk [vmem:[%s2465 + $0x171] sm:$0xff] %vm389, %v6022
        %s6055 = scalar_lea.vmem %s3, 576
        %v6056 = vld [vmem:[%s6055] sm:$0xff]
        %v6057 = vld [vmem:[%s6055 + $0x8] sm:$0xff]
        %v6058 = vld [vmem:[%s6055 + $0x10] sm:$0xff]
        %v6059 = vld [vmem:[%s6055 + $0x18] sm:$0xff]
        %v6060 = vld [vmem:[%s6055 + $0x20] sm:$0xff]
        %v6061 = vld [vmem:[%s6055 + $0x28] sm:$0xff]
        %v6062 = vld [vmem:[%s6055 + $0x30] sm:$0xff]
        %v6063 = vld [vmem:[%s6055 + $0x38] sm:$0xff]
        %v6064 = vld [vmem:[%s6055 + $0x40] sm:$0xff]
        %v6065 = vld [vmem:[%s6055 + $0x48] sm:$0xff]
        %v6066 = vld [vmem:[%s6055 + $0x50] sm:$0xff]
        %v6067 = vld [vmem:[%s6055 + $0x58] sm:$0xff]
        %v6068 = vld [vmem:[%s6055 + $0x60] sm:$0xff]
        %v6069 = vld [vmem:[%s6055 + $0x68] sm:$0xff]
        %v6070 = vld [vmem:[%s6055 + $0x70] sm:$0xff]
        %v6071 = vld [vmem:[%s6055 + $0x78] sm:$0xff]
        %v6072 = vld [vmem:[%s6055 + $0x80] sm:$0xff]
        %v6073 = vld [vmem:[%s6055 + $0x88] sm:$0xff]
        %v6074 = vld [vmem:[%s6055 + $0x90] sm:$0xff]
        %v6075 = vld [vmem:[%s6055 + $0x98] sm:$0xff]
        %v6076 = vld [vmem:[%s6055 + $0xa0] sm:$0xff]
        %v6077 = vld [vmem:[%s6055 + $0xa8] sm:$0xff]
        %v6078 = vld [vmem:[%s6055 + $0xb0] sm:$0xff]
        %v6079 = vld [vmem:[%s6055 + $0xb8] sm:$0xff]
        %v6080 = vld [vmem:[%s6055 + $0xc0] sm:$0xff]
        %v6081 = vld [vmem:[%s6055 + $0xc8] sm:$0xff]
        %v6082 = vld [vmem:[%s6055 + $0xd0] sm:$0xff]
        %v6083 = vld [vmem:[%s6055 + $0xd8] sm:$0xff]
        %v6084 = vld [vmem:[%s6055 + $0xe0] sm:$0xff]
        %v6085 = vld [vmem:[%s6055 + $0xe8] sm:$0xff]
        %v6086 = vld [vmem:[%s6055 + $0xf0] sm:$0xff]
        %v6087 = vld [vmem:[%s6055 + $0xf8] sm:$0xff]
        %v6088 = vld [vmem:[%s6055 + $0x100] sm:$0xff]
        %v6089 = vld [vmem:[%s6055 + $0x108] sm:$0xff]
        %v6090 = vld [vmem:[%s6055 + $0x110] sm:$0xff]
        %v6091 = vld [vmem:[%s6055 + $0x118] sm:$0xff]
        %v6092 = vld [vmem:[%s6055 + $0x120] sm:$0xff]
        %v6093 = vld [vmem:[%s6055 + $0x128] sm:$0xff]
        %v6094 = vld [vmem:[%s6055 + $0x130] sm:$0xff]
        %v6095 = vld [vmem:[%s6055 + $0x138] sm:$0xff]
        %v6096 = vld [vmem:[%s6055 + $0x140] sm:$0xff]
        %v6097 = vld [vmem:[%s6055 + $0x148] sm:$0xff]
        %v6098 = vld [vmem:[%s6055 + $0x150] sm:$0xff]
        %v6099 = vld [vmem:[%s6055 + $0x158] sm:$0xff]
        %v6100 = vld [vmem:[%s6055 + $0x160] sm:$0xff]
        %v6101 = vld [vmem:[%s6055 + $0x168] sm:$0xff]
        %v6102 = vld [vmem:[%s6055 + $0x170] sm:$0xff]
        %v6103 = vld [vmem:[%s6055 + $0x178] sm:$0xff]
        %v6104 = vld [vmem:[%s6055 + $0x180] sm:$0xff]
        %v6105 = vld [vmem:[%s6055 + $0x188] sm:$0xff]
        %v6106 = vld [vmem:[%s6055 + $0x190] sm:$0xff]
        %v6107 = vld [vmem:[%s6055 + $0x198] sm:$0xff]
        %v6108 = vld [vmem:[%s6055 + $0x1a0] sm:$0xff]
        %v6109 = vld [vmem:[%s6055 + $0x1a8] sm:$0xff]
        %v6110 = vld [vmem:[%s6055 + $0x1b0] sm:$0xff]
        %v6111 = vld [vmem:[%s6055 + $0x1b8] sm:$0xff]
        %v6112 = vld [vmem:[%s6055 + $0x1c0] sm:$0xff]
        %v6113 = vld [vmem:[%s6055 + $0x1c8] sm:$0xff]
        %v6114 = vld [vmem:[%s6055 + $0x1d0] sm:$0xff]
        %v6115 = vld [vmem:[%s6055 + $0x1d8] sm:$0xff]
        %v6116 = vld [vmem:[%s6055 + $0x1e0] sm:$0xff]
        %v6117 = vld [vmem:[%s6055 + $0x1e8] sm:$0xff]
        %v6118 = vld [vmem:[%s6055 + $0x1f0] sm:$0xff]
        %v6119 = vld [vmem:[%s6055 + $0x1f8] sm:$0xff]
        %v6120 = vld [vmem:[%s6055 + $0x200] sm:$0xff]
        %v6121 = vld [vmem:[%s6055 + $0x208] sm:$0xff]
        %v6122 = vld [vmem:[%s6055 + $0x210] sm:$0xff]
        %v6123 = vld [vmem:[%s6055 + $0x218] sm:$0xff]
        %v6124 = vld [vmem:[%s6055 + $0x220] sm:$0xff]
        %v6125 = vld [vmem:[%s6055 + $0x228] sm:$0xff]
        %v6126 = vld [vmem:[%s6055 + $0x230] sm:$0xff]
        %v6127 = vld [vmem:[%s6055 + $0x238] sm:$0xff]
        %s6128 = scalar_lea.vmem %s4, 1
        %v6129 = vld [vmem:[%s6128] sm:$0x1]
        %v6130 = vld [vmem:[#allocation3] sm:$0xff]
        %v6131 = vld [vmem:[#allocation3 + $0x8] sm:$0xff]
        %v6132 = vld [vmem:[#allocation3 + $0x18] sm:$0xff]
        %v6133 = vld [vmem:[#allocation3 + $0x20] sm:$0xff]
        %v6134 = vld [vmem:[#allocation3 + $0x30] sm:$0xff]
        %v6135 = vld [vmem:[#allocation3 + $0x38] sm:$0xff]
        %v6136 = vld [vmem:[#allocation3 + $0x48] sm:$0xff]
        %v6137 = vld [vmem:[#allocation3 + $0x50] sm:$0xff]
        %v6138 = vld [vmem:[#allocation3 + $0x60] sm:$0xff]
        %v6139 = vld [vmem:[#allocation3 + $0x68] sm:$0xff]
        %v6140 = vld [vmem:[#allocation3 + $0x78] sm:$0xff]
        %v6141 = vld [vmem:[#allocation3 + $0x80] sm:$0xff]
        %v6142 = vld [vmem:[#allocation3 + $0x90] sm:$0xff]
        %v6143 = vld [vmem:[#allocation3 + $0x98] sm:$0xff]
        %v6144 = vld [vmem:[#allocation3 + $0xa8] sm:$0xff]
        %v6145 = vld [vmem:[#allocation3 + $0xb0] sm:$0xff]
        %v6146 = vld [vmem:[#allocation3 + $0xc0] sm:$0xff]
        %v6147 = vld [vmem:[#allocation3 + $0xc8] sm:$0xff]
        %v6148 = vld [vmem:[#allocation3 + $0xd8] sm:$0xff]
        %v6149 = vld [vmem:[#allocation3 + $0xe0] sm:$0xff]
        %v6150 = vld [vmem:[#allocation3 + $0xf0] sm:$0xff]
        %v6151 = vld [vmem:[#allocation3 + $0xf8] sm:$0xff]
        %v6152 = vld [vmem:[#allocation3 + $0x108] sm:$0xff]
        %v6153 = vld [vmem:[#allocation3 + $0x110] sm:$0xff]
        %v6154 = vld [vmem:[#allocation3 + $0x120] sm:$0xff]
        %v6155 = vld [vmem:[#allocation3 + $0x128] sm:$0xff]
        %v6156 = vld [vmem:[#allocation3 + $0x138] sm:$0xff]
        %v6157 = vld [vmem:[#allocation3 + $0x140] sm:$0xff]
        %v6158 = vld [vmem:[#allocation3 + $0x150] sm:$0xff]
        %v6159 = vld [vmem:[#allocation3 + $0x158] sm:$0xff]
        %v6160 = vld [vmem:[#allocation3 + $0x168] sm:$0xff]
        %v6161 = vld [vmem:[#allocation3 + $0x170] sm:$0xff]
        %v6162 = vld [vmem:[#allocation3 + $0x1] sm:$0xff]
        %v6163 = vld [vmem:[#allocation3 + $0x9] sm:$0xff]
        %v6164 = vld [vmem:[#allocation3 + $0x19] sm:$0xff]
        %v6165 = vld [vmem:[#allocation3 + $0x21] sm:$0xff]
        %v6166 = vld [vmem:[#allocation3 + $0x31] sm:$0xff]
        %v6167 = vld [vmem:[#allocation3 + $0x39] sm:$0xff]
        %v6168 = vld [vmem:[#allocation3 + $0x49] sm:$0xff]
        %v6169 = vld [vmem:[#allocation3 + $0x51] sm:$0xff]
        %v6170 = vld [vmem:[#allocation3 + $0x61] sm:$0xff]
        %v6171 = vld [vmem:[#allocation3 + $0x69] sm:$0xff]
        %v6172 = vld [vmem:[#allocation3 + $0x79] sm:$0xff]
        %v6173 = vld [vmem:[#allocation3 + $0x81] sm:$0xff]
        %v6174 = vld [vmem:[#allocation3 + $0x91] sm:$0xff]
        %v6175 = vld [vmem:[#allocation3 + $0x99] sm:$0xff]
        %v6176 = vld [vmem:[#allocation3 + $0xa9] sm:$0xff]
        %v6177 = vld [vmem:[#allocation3 + $0xb1] sm:$0xff]
        %v6178 = vld [vmem:[#allocation3 + $0xc1] sm:$0xff]
        %v6179 = vld [vmem:[#allocation3 + $0xc9] sm:$0xff]
        %v6180 = vld [vmem:[#allocation3 + $0xd9] sm:$0xff]
        %v6181 = vld [vmem:[#allocation3 + $0xe1] sm:$0xff]
        %v6182 = vld [vmem:[#allocation3 + $0xf1] sm:$0xff]
        %v6183 = vld [vmem:[#allocation3 + $0xf9] sm:$0xff]
        %v6184 = vld [vmem:[#allocation3 + $0x109] sm:$0xff]
        %v6185 = vld [vmem:[#allocation3 + $0x111] sm:$0xff]
        %v6186 = vld [vmem:[#allocation3 + $0x121] sm:$0xff]
        %v6187 = vld [vmem:[#allocation3 + $0x129] sm:$0xff]
        %v6188 = vld [vmem:[#allocation3 + $0x139] sm:$0xff]
        %v6189 = vld [vmem:[#allocation3 + $0x141] sm:$0xff]
        %v6190 = vld [vmem:[#allocation3 + $0x151] sm:$0xff]
        %v6191 = vld [vmem:[#allocation3 + $0x159] sm:$0xff]
        %v6192 = vld [vmem:[#allocation3 + $0x169] sm:$0xff]
        %v6193 = vld [vmem:[#allocation3 + $0x171] sm:$0xff]
        %v6194 = vld [vmem:[#allocation3 + $0x2] sm:$0xff]
        %v6195 = vld [vmem:[#allocation3 + $0xa] sm:$0xff]
        %v6196 = vld [vmem:[#allocation3 + $0x1a] sm:$0xff]
        %v6197 = vld [vmem:[#allocation3 + $0x22] sm:$0xff]
        %v6198 = vld [vmem:[#allocation3 + $0x32] sm:$0xff]
        %v6199 = vld [vmem:[#allocation3 + $0x3a] sm:$0xff]
        %v6200 = vld [vmem:[#allocation3 + $0x4a] sm:$0xff]
        %v6201 = vld [vmem:[#allocation3 + $0x52] sm:$0xff]
        %v6202 = vld [vmem:[#allocation3 + $0x62] sm:$0xff]
        %v6203 = vld [vmem:[#allocation3 + $0x6a] sm:$0xff]
        %v6204 = vld [vmem:[#allocation3 + $0x7a] sm:$0xff]
        %v6205 = vld [vmem:[#allocation3 + $0x82] sm:$0xff]
        %v6206 = vld [vmem:[#allocation3 + $0x92] sm:$0xff]
        %v6207 = vld [vmem:[#allocation3 + $0x9a] sm:$0xff]
        %v6208 = vld [vmem:[#allocation3 + $0xaa] sm:$0xff]
        %v6209 = vld [vmem:[#allocation3 + $0xb2] sm:$0xff]
        %v6210 = vld [vmem:[#allocation3 + $0xc2] sm:$0xff]
        %v6211 = vld [vmem:[#allocation3 + $0xca] sm:$0xff]
        %v6212 = vld [vmem:[#allocation3 + $0xda] sm:$0xff]
        %v6213 = vld [vmem:[#allocation3 + $0xe2] sm:$0xff]
        %v6214 = vld [vmem:[#allocation3 + $0xf2] sm:$0xff]
        %v6215 = vld [vmem:[#allocation3 + $0xfa] sm:$0xff]
        %v6216 = vld [vmem:[#allocation3 + $0x10a] sm:$0xff]
        %v6217 = vld [vmem:[#allocation3 + $0x112] sm:$0xff]
        %v6218 = vld [vmem:[#allocation3 + $0x122] sm:$0xff]
        %v6219 = vld [vmem:[#allocation3 + $0x12a] sm:$0xff]
        %v6220 = vld [vmem:[#allocation3 + $0x13a] sm:$0xff]
        %v6221 = vld [vmem:[#allocation3 + $0x142] sm:$0xff]
        %v6222 = vld [vmem:[#allocation3 + $0x152] sm:$0xff]
        %v6223 = vld [vmem:[#allocation3 + $0x15a] sm:$0xff]
        %v6224 = vld [vmem:[#allocation3 + $0x16a] sm:$0xff]
        %v6225 = vld [vmem:[#allocation3 + $0x172] sm:$0xff]
        %v6226 = vld [vmem:[%s2465] sm:$0xff]
        %v6227 = vld [vmem:[%s2465 + $0x8] sm:$0xff]
        %v6228 = vld [vmem:[%s2465 + $0x18] sm:$0xff]
        %v6229 = vld [vmem:[%s2465 + $0x20] sm:$0xff]
        %v6230 = vld [vmem:[%s2465 + $0x30] sm:$0xff]
        %v6231 = vld [vmem:[%s2465 + $0x38] sm:$0xff]
        %v6232 = vld [vmem:[%s2465 + $0x48] sm:$0xff]
        %v6233 = vld [vmem:[%s2465 + $0x50] sm:$0xff]
        %v6234 = vld [vmem:[%s2465 + $0x60] sm:$0xff]
        %v6235 = vld [vmem:[%s2465 + $0x68] sm:$0xff]
        %v6236 = vld [vmem:[%s2465 + $0x78] sm:$0xff]
        %v6237 = vld [vmem:[%s2465 + $0x80] sm:$0xff]
        %v6238 = vld [vmem:[%s2465 + $0x90] sm:$0xff]
        %v6239 = vld [vmem:[%s2465 + $0x98] sm:$0xff]
        %v6240 = vld [vmem:[%s2465 + $0xa8] sm:$0xff]
        %v6241 = vld [vmem:[%s2465 + $0xb0] sm:$0xff]
        %v6242 = vld [vmem:[%s2465 + $0xc0] sm:$0xff]
        %v6243 = vld [vmem:[%s2465 + $0xc8] sm:$0xff]
        %v6244 = vld [vmem:[%s2465 + $0xd8] sm:$0xff]
        %v6245 = vld [vmem:[%s2465 + $0xe0] sm:$0xff]
        %v6246 = vld [vmem:[%s2465 + $0xf0] sm:$0xff]
        %v6247 = vld [vmem:[%s2465 + $0xf8] sm:$0xff]
        %v6248 = vld [vmem:[%s2465 + $0x108] sm:$0xff]
        %v6249 = vld [vmem:[%s2465 + $0x110] sm:$0xff]
        %v6250 = vld [vmem:[%s2465 + $0x120] sm:$0xff]
        %v6251 = vld [vmem:[%s2465 + $0x128] sm:$0xff]
        %v6252 = vld [vmem:[%s2465 + $0x138] sm:$0xff]
        %v6253 = vld [vmem:[%s2465 + $0x140] sm:$0xff]
        %v6254 = vld [vmem:[%s2465 + $0x150] sm:$0xff]
        %v6255 = vld [vmem:[%s2465 + $0x158] sm:$0xff]
        %v6256 = vld [vmem:[%s2465 + $0x168] sm:$0xff]
        %v6257 = vld [vmem:[%s2465 + $0x170] sm:$0xff]
        %v6258 = vld [vmem:[%s2465 + $0x1] sm:$0xff]
        %v6259 = vld [vmem:[%s2465 + $0x9] sm:$0xff]
        %v6260 = vld [vmem:[%s2465 + $0x19] sm:$0xff]
        %v6261 = vld [vmem:[%s2465 + $0x21] sm:$0xff]
        %v6262 = vld [vmem:[%s2465 + $0x31] sm:$0xff]
        %v6263 = vld [vmem:[%s2465 + $0x39] sm:$0xff]
        %v6264 = vld [vmem:[%s2465 + $0x49] sm:$0xff]
        %v6265 = vld [vmem:[%s2465 + $0x51] sm:$0xff]
        %v6266 = vld [vmem:[%s2465 + $0x61] sm:$0xff]
        %v6267 = vld [vmem:[%s2465 + $0x69] sm:$0xff]
        %v6268 = vld [vmem:[%s2465 + $0x79] sm:$0xff]
        %v6269 = vld [vmem:[%s2465 + $0x81] sm:$0xff]
        %v6270 = vld [vmem:[%s2465 + $0x91] sm:$0xff]
        %v6271 = vld [vmem:[%s2465 + $0x99] sm:$0xff]
        %v6272 = vld [vmem:[%s2465 + $0xa9] sm:$0xff]
        %v6273 = vld [vmem:[%s2465 + $0xb1] sm:$0xff]
        %v6274 = vld [vmem:[%s2465 + $0xc1] sm:$0xff]
        %v6275 = vld [vmem:[%s2465 + $0xc9] sm:$0xff]
        %v6276 = vld [vmem:[%s2465 + $0xd9] sm:$0xff]
        %v6277 = vld [vmem:[%s2465 + $0xe1] sm:$0xff]
        %v6278 = vld [vmem:[%s2465 + $0xf1] sm:$0xff]
        %v6279 = vld [vmem:[%s2465 + $0xf9] sm:$0xff]
        %v6280 = vld [vmem:[%s2465 + $0x109] sm:$0xff]
        %v6281 = vld [vmem:[%s2465 + $0x111] sm:$0xff]
        %v6282 = vld [vmem:[%s2465 + $0x121] sm:$0xff]
        %v6283 = vld [vmem:[%s2465 + $0x129] sm:$0xff]
        %v6284 = vld [vmem:[%s2465 + $0x139] sm:$0xff]
        %v6285 = vld [vmem:[%s2465 + $0x141] sm:$0xff]
        %v6286 = vld [vmem:[%s2465 + $0x151] sm:$0xff]
        %v6287 = vld [vmem:[%s2465 + $0x159] sm:$0xff]
        %v6288 = vld [vmem:[%s2465 + $0x169] sm:$0xff]
        %v6289 = vld [vmem:[%s2465 + $0x171] sm:$0xff]
        %v6290 = vld [vmem:[%s2465 + $0x2] sm:$0xff]
        %v6291 = vld [vmem:[%s2465 + $0xa] sm:$0xff]
        %v6292 = vld [vmem:[%s2465 + $0x1a] sm:$0xff]
        %v6293 = vld [vmem:[%s2465 + $0x22] sm:$0xff]
        %v6294 = vld [vmem:[%s2465 + $0x32] sm:$0xff]
        %v6295 = vld [vmem:[%s2465 + $0x3a] sm:$0xff]
        %v6296 = vld [vmem:[%s2465 + $0x4a] sm:$0xff]
        %v6297 = vld [vmem:[%s2465 + $0x52] sm:$0xff]
        %v6298 = vld [vmem:[%s2465 + $0x62] sm:$0xff]
        %v6299 = vld [vmem:[%s2465 + $0x6a] sm:$0xff]
        %v6300 = vld [vmem:[%s2465 + $0x7a] sm:$0xff]
        %v6301 = vld [vmem:[%s2465 + $0x82] sm:$0xff]
        %v6302 = vld [vmem:[%s2465 + $0x92] sm:$0xff]
        %v6303 = vld [vmem:[%s2465 + $0x9a] sm:$0xff]
        %v6304 = vld [vmem:[%s2465 + $0xaa] sm:$0xff]
        %v6305 = vld [vmem:[%s2465 + $0xb2] sm:$0xff]
        %v6306 = vld [vmem:[%s2465 + $0xc2] sm:$0xff]
        %v6307 = vld [vmem:[%s2465 + $0xca] sm:$0xff]
        %v6308 = vld [vmem:[%s2465 + $0xda] sm:$0xff]
        %v6309 = vld [vmem:[%s2465 + $0xe2] sm:$0xff]
        %v6310 = vld [vmem:[%s2465 + $0xf2] sm:$0xff]
        %v6311 = vld [vmem:[%s2465 + $0xfa] sm:$0xff]
        %v6312 = vld [vmem:[%s2465 + $0x10a] sm:$0xff]
        %v6313 = vld [vmem:[%s2465 + $0x112] sm:$0xff]
        %v6314 = vld [vmem:[%s2465 + $0x122] sm:$0xff]
        %v6315 = vld [vmem:[%s2465 + $0x12a] sm:$0xff]
        %v6316 = vld [vmem:[%s2465 + $0x13a] sm:$0xff]
        %v6317 = vld [vmem:[%s2465 + $0x142] sm:$0xff]
        %v6318 = vld [vmem:[%s2465 + $0x152] sm:$0xff]
        %v6319 = vld [vmem:[%s2465 + $0x15a] sm:$0xff]
        %v6320 = vld [vmem:[%s2465 + $0x16a] sm:$0xff]
        %v6321 = vld [vmem:[%s2465 + $0x172] sm:$0xff]
        %v6322 = vld [vmem:[%s2763] sm:$0xff]
        %v6323 = vld [vmem:[%s2763 + $0x8] sm:$0xff]
        %v6324 = vld [vmem:[%s2763 + $0x18] sm:$0xff]
        %v6325 = vld [vmem:[%s2763 + $0x20] sm:$0xff]
        %v6326 = vld [vmem:[%s2763 + $0x30] sm:$0xff]
        %v6327 = vld [vmem:[%s2763 + $0x38] sm:$0xff]
        %v6328 = vld [vmem:[%s2763 + $0x48] sm:$0xff]
        %v6329 = vld [vmem:[%s2763 + $0x50] sm:$0xff]
        %v6330 = vld [vmem:[%s2763 + $0x60] sm:$0xff]
        %v6331 = vld [vmem:[%s2763 + $0x68] sm:$0xff]
        %v6332 = vld [vmem:[%s2763 + $0x78] sm:$0xff]
        %v6333 = vld [vmem:[%s2763 + $0x80] sm:$0xff]
        %v6334 = vld [vmem:[%s2763 + $0x90] sm:$0xff]
        %v6335 = vld [vmem:[%s2763 + $0x98] sm:$0xff]
        %v6336 = vld [vmem:[%s2763 + $0xa8] sm:$0xff]
        %v6337 = vld [vmem:[%s2763 + $0xb0] sm:$0xff]
        %v6338 = vld [vmem:[%s2763 + $0xc0] sm:$0xff]
        %v6339 = vld [vmem:[%s2763 + $0xc8] sm:$0xff]
        %v6340 = vld [vmem:[%s2763 + $0xd8] sm:$0xff]
        %v6341 = vld [vmem:[%s2763 + $0xe0] sm:$0xff]
        %v6342 = vld [vmem:[%s2763 + $0xf0] sm:$0xff]
        %v6343 = vld [vmem:[%s2763 + $0xf8] sm:$0xff]
        %v6344 = vld [vmem:[%s2763 + $0x108] sm:$0xff]
        %v6345 = vld [vmem:[%s2763 + $0x110] sm:$0xff]
        %v6346 = vld [vmem:[%s2763 + $0x120] sm:$0xff]
        %v6347 = vld [vmem:[%s2763 + $0x128] sm:$0xff]
        %v6348 = vld [vmem:[%s2763 + $0x138] sm:$0xff]
        %v6349 = vld [vmem:[%s2763 + $0x140] sm:$0xff]
        %v6350 = vld [vmem:[%s2763 + $0x150] sm:$0xff]
        %v6351 = vld [vmem:[%s2763 + $0x158] sm:$0xff]
        %v6352 = vld [vmem:[%s2763 + $0x168] sm:$0xff]
        %v6353 = vld [vmem:[%s2763 + $0x170] sm:$0xff]
        %v6354 = vld [vmem:[%s2763 + $0x1] sm:$0xff]
        %v6355 = vld [vmem:[%s2763 + $0x9] sm:$0xff]
        %v6356 = vld [vmem:[%s2763 + $0x19] sm:$0xff]
        %v6357 = vld [vmem:[%s2763 + $0x21] sm:$0xff]
        %v6358 = vld [vmem:[%s2763 + $0x31] sm:$0xff]
        %v6359 = vld [vmem:[%s2763 + $0x39] sm:$0xff]
        %v6360 = vld [vmem:[%s2763 + $0x49] sm:$0xff]
        %v6361 = vld [vmem:[%s2763 + $0x51] sm:$0xff]
        %v6362 = vld [vmem:[%s2763 + $0x61] sm:$0xff]
        %v6363 = vld [vmem:[%s2763 + $0x69] sm:$0xff]
        %v6364 = vld [vmem:[%s2763 + $0x79] sm:$0xff]
        %v6365 = vld [vmem:[%s2763 + $0x81] sm:$0xff]
        %v6366 = vld [vmem:[%s2763 + $0x91] sm:$0xff]
        %v6367 = vld [vmem:[%s2763 + $0x99] sm:$0xff]
        %v6368 = vld [vmem:[%s2763 + $0xa9] sm:$0xff]
        %v6369 = vld [vmem:[%s2763 + $0xb1] sm:$0xff]
        %v6370 = vld [vmem:[%s2763 + $0xc1] sm:$0xff]
        %v6371 = vld [vmem:[%s2763 + $0xc9] sm:$0xff]
        %v6372 = vld [vmem:[%s2763 + $0xd9] sm:$0xff]
        %v6373 = vld [vmem:[%s2763 + $0xe1] sm:$0xff]
        %v6374 = vld [vmem:[%s2763 + $0xf1] sm:$0xff]
        %v6375 = vld [vmem:[%s2763 + $0xf9] sm:$0xff]
        %v6376 = vld [vmem:[%s2763 + $0x109] sm:$0xff]
        %v6377 = vld [vmem:[%s2763 + $0x111] sm:$0xff]
        %v6378 = vld [vmem:[%s2763 + $0x121] sm:$0xff]
        %v6379 = vld [vmem:[%s2763 + $0x129] sm:$0xff]
        %v6380 = vld [vmem:[%s2763 + $0x139] sm:$0xff]
        %v6381 = vld [vmem:[%s2763 + $0x141] sm:$0xff]
        %v6382 = vld [vmem:[%s2763 + $0x151] sm:$0xff]
        %v6383 = vld [vmem:[%s2763 + $0x159] sm:$0xff]
        %v6384 = vld [vmem:[%s2763 + $0x169] sm:$0xff]
        %v6385 = vld [vmem:[%s2763 + $0x171] sm:$0xff]
        %v6386 = vld [vmem:[%s2763 + $0x2] sm:$0xff]
        %v6387 = vld [vmem:[%s2763 + $0xa] sm:$0xff]
        %v6388 = vld [vmem:[%s2763 + $0x1a] sm:$0xff]
        %v6389 = vld [vmem:[%s2763 + $0x22] sm:$0xff]
        %v6390 = vld [vmem:[%s2763 + $0x32] sm:$0xff]
        %v6391 = vld [vmem:[%s2763 + $0x3a] sm:$0xff]
        %v6392 = vld [vmem:[%s2763 + $0x4a] sm:$0xff]
        %v6393 = vld [vmem:[%s2763 + $0x52] sm:$0xff]
        %v6394 = vld [vmem:[%s2763 + $0x62] sm:$0xff]
        %v6395 = vld [vmem:[%s2763 + $0x6a] sm:$0xff]
        %v6396 = vld [vmem:[%s2763 + $0x7a] sm:$0xff]
        %v6397 = vld [vmem:[%s2763 + $0x82] sm:$0xff]
        %v6398 = vld [vmem:[%s2763 + $0x92] sm:$0xff]
        %v6399 = vld [vmem:[%s2763 + $0x9a] sm:$0xff]
        %v6400 = vld [vmem:[%s2763 + $0xaa] sm:$0xff]
        %v6401 = vld [vmem:[%s2763 + $0xb2] sm:$0xff]
        %v6402 = vld [vmem:[%s2763 + $0xc2] sm:$0xff]
        %v6403 = vld [vmem:[%s2763 + $0xca] sm:$0xff]
        %v6404 = vld [vmem:[%s2763 + $0xda] sm:$0xff]
        %v6405 = vld [vmem:[%s2763 + $0xe2] sm:$0xff]
        %v6406 = vld [vmem:[%s2763 + $0xf2] sm:$0xff]
        %v6407 = vld [vmem:[%s2763 + $0xfa] sm:$0xff]
        %v6408 = vld [vmem:[%s2763 + $0x10a] sm:$0xff]
        %v6409 = vld [vmem:[%s2763 + $0x112] sm:$0xff]
        %v6410 = vld [vmem:[%s2763 + $0x122] sm:$0xff]
        %v6411 = vld [vmem:[%s2763 + $0x12a] sm:$0xff]
        %v6412 = vld [vmem:[%s2763 + $0x13a] sm:$0xff]
        %v6413 = vld [vmem:[%s2763 + $0x142] sm:$0xff]
        %v6414 = vld [vmem:[%s2763 + $0x152] sm:$0xff]
        %v6415 = vld [vmem:[%s2763 + $0x15a] sm:$0xff]
        %v6416 = vld [vmem:[%s2763 + $0x16a] sm:$0xff]
        %v6417 = vld [vmem:[%s2763 + $0x172] sm:$0xff]
        %6450 = vrot.lane.b32.xlu0 %v6162, 64
        %v6451 = vpop.permute.xlu0 %6450
        %6452 = vrot.lane.b32.xlu0 %v6163, 64
        %v6453 = vpop.permute.xlu0 %6452
        %6454 = vrot.lane.b32.xlu0 %v6164, 64
        %v6455 = vpop.permute.xlu0 %6454
        %6456 = vrot.lane.b32.xlu0 %v6165, 64
        %v6457 = vpop.permute.xlu0 %6456
        %6458 = vrot.lane.b32.xlu0 %v6166, 64
        %v6459 = vpop.permute.xlu0 %6458
        %6460 = vrot.lane.b32.xlu0 %v6167, 64
        %v6461 = vpop.permute.xlu0 %6460
        %6462 = vrot.lane.b32.xlu0 %v6168, 64
        %v6463 = vpop.permute.xlu0 %6462
        %6464 = vrot.lane.b32.xlu0 %v6169, 64
        %v6465 = vpop.permute.xlu0 %6464
        %6466 = vrot.lane.b32.xlu0 %v6170, 64
        %v6467 = vpop.permute.xlu0 %6466
        %6468 = vrot.lane.b32.xlu0 %v6171, 64
        %v6469 = vpop.permute.xlu0 %6468
        %6470 = vrot.lane.b32.xlu0 %v6172, 64
        %v6471 = vpop.permute.xlu0 %6470
        %6472 = vrot.lane.b32.xlu0 %v6173, 64
        %v6473 = vpop.permute.xlu0 %6472
        %6474 = vrot.lane.b32.xlu0 %v6174, 64
        %v6475 = vpop.permute.xlu0 %6474
        %6476 = vrot.lane.b32.xlu0 %v6175, 64
        %v6477 = vpop.permute.xlu0 %6476
        %6478 = vrot.lane.b32.xlu0 %v6176, 64
        %v6479 = vpop.permute.xlu0 %6478
        %6480 = vrot.lane.b32.xlu0 %v6177, 64
        %v6481 = vpop.permute.xlu0 %6480
        %6482 = vrot.lane.b32.xlu0 %v6178, 64
        %v6483 = vpop.permute.xlu0 %6482
        %6484 = vrot.lane.b32.xlu0 %v6179, 64
        %v6485 = vpop.permute.xlu0 %6484
        %6486 = vrot.lane.b32.xlu0 %v6180, 64
        %v6487 = vpop.permute.xlu0 %6486
        %6488 = vrot.lane.b32.xlu0 %v6181, 64
        %v6489 = vpop.permute.xlu0 %6488
        %6490 = vrot.lane.b32.xlu0 %v6182, 64
        %v6491 = vpop.permute.xlu0 %6490
        %6492 = vrot.lane.b32.xlu0 %v6183, 64
        %v6493 = vpop.permute.xlu0 %6492
        %6494 = vrot.lane.b32.xlu0 %v6184, 64
        %v6495 = vpop.permute.xlu0 %6494
        %6496 = vrot.lane.b32.xlu0 %v6185, 64
        %v6497 = vpop.permute.xlu0 %6496
        %6498 = vrot.lane.b32.xlu0 %v6186, 64
        %v6499 = vpop.permute.xlu0 %6498
        %6500 = vrot.lane.b32.xlu0 %v6187, 64
        %v6501 = vpop.permute.xlu0 %6500
        %6502 = vrot.lane.b32.xlu0 %v6188, 64
        %v6503 = vpop.permute.xlu0 %6502
        %6504 = vrot.lane.b32.xlu0 %v6189, 64
        %v6505 = vpop.permute.xlu0 %6504
        %6506 = vrot.lane.b32.xlu0 %v6190, 64
        %v6507 = vpop.permute.xlu0 %6506
        %6508 = vrot.lane.b32.xlu0 %v6191, 64
        %v6509 = vpop.permute.xlu0 %6508
        %6510 = vrot.lane.b32.xlu0 %v6192, 64
        %v6511 = vpop.permute.xlu0 %6510
        %6512 = vrot.lane.b32.xlu0 %v6193, 64
        %v6513 = vpop.permute.xlu0 %6512
        %6578 = vrot.lane.b32.xlu0 %v6226, 64
        %v6579 = vpop.permute.xlu0 %6578
        %6580 = vrot.lane.b32.xlu0 %v6227, 64
        %v6581 = vpop.permute.xlu0 %6580
        %6582 = vrot.lane.b32.xlu0 %v6228, 64
        %v6583 = vpop.permute.xlu0 %6582
        %6584 = vrot.lane.b32.xlu0 %v6229, 64
        %v6585 = vpop.permute.xlu0 %6584
        %6586 = vrot.lane.b32.xlu0 %v6230, 64
        %v6587 = vpop.permute.xlu0 %6586
        %6588 = vrot.lane.b32.xlu0 %v6231, 64
        %v6589 = vpop.permute.xlu0 %6588
        %6590 = vrot.lane.b32.xlu0 %v6232, 64
        %v6591 = vpop.permute.xlu0 %6590
        %6592 = vrot.lane.b32.xlu0 %v6233, 64
        %v6593 = vpop.permute.xlu0 %6592
        %6594 = vrot.lane.b32.xlu0 %v6234, 64
        %v6595 = vpop.permute.xlu0 %6594
        %6596 = vrot.lane.b32.xlu0 %v6235, 64
        %v6597 = vpop.permute.xlu0 %6596
        %6598 = vrot.lane.b32.xlu0 %v6236, 64
        %v6599 = vpop.permute.xlu0 %6598
        %6600 = vrot.lane.b32.xlu0 %v6237, 64
        %v6601 = vpop.permute.xlu0 %6600
        %6602 = vrot.lane.b32.xlu0 %v6238, 64
        %v6603 = vpop.permute.xlu0 %6602
        %6604 = vrot.lane.b32.xlu0 %v6239, 64
        %v6605 = vpop.permute.xlu0 %6604
        %6606 = vrot.lane.b32.xlu0 %v6240, 64
        %v6607 = vpop.permute.xlu0 %6606
        %6608 = vrot.lane.b32.xlu0 %v6241, 64
        %v6609 = vpop.permute.xlu0 %6608
        %6610 = vrot.lane.b32.xlu0 %v6242, 64
        %v6611 = vpop.permute.xlu0 %6610
        %6612 = vrot.lane.b32.xlu0 %v6243, 64
        %v6613 = vpop.permute.xlu0 %6612
        %6614 = vrot.lane.b32.xlu0 %v6244, 64
        %v6615 = vpop.permute.xlu0 %6614
        %6616 = vrot.lane.b32.xlu0 %v6245, 64
        %v6617 = vpop.permute.xlu0 %6616
        %6618 = vrot.lane.b32.xlu0 %v6246, 64
        %v6619 = vpop.permute.xlu0 %6618
        %6620 = vrot.lane.b32.xlu0 %v6247, 64
        %v6621 = vpop.permute.xlu0 %6620
        %6622 = vrot.lane.b32.xlu0 %v6248, 64
        %v6623 = vpop.permute.xlu0 %6622
        %6624 = vrot.lane.b32.xlu0 %v6249, 64
        %v6625 = vpop.permute.xlu0 %6624
        %6626 = vrot.lane.b32.xlu0 %v6250, 64
        %v6627 = vpop.permute.xlu0 %6626
        %6628 = vrot.lane.b32.xlu0 %v6251, 64
        %v6629 = vpop.permute.xlu0 %6628
        %6630 = vrot.lane.b32.xlu0 %v6252, 64
        %v6631 = vpop.permute.xlu0 %6630
        %6632 = vrot.lane.b32.xlu0 %v6253, 64
        %v6633 = vpop.permute.xlu0 %6632
        %6634 = vrot.lane.b32.xlu0 %v6254, 64
        %v6635 = vpop.permute.xlu0 %6634
        %6636 = vrot.lane.b32.xlu0 %v6255, 64
        %v6637 = vpop.permute.xlu0 %6636
        %6638 = vrot.lane.b32.xlu0 %v6256, 64
        %v6639 = vpop.permute.xlu0 %6638
        %6640 = vrot.lane.b32.xlu0 %v6257, 64
        %v6641 = vpop.permute.xlu0 %6640
        %6706 = vrot.lane.b32.xlu0 %v6290, 64
        %v6707 = vpop.permute.xlu0 %6706
        %6708 = vrot.lane.b32.xlu0 %v6291, 64
        %v6709 = vpop.permute.xlu0 %6708
        %6710 = vrot.lane.b32.xlu0 %v6292, 64
        %v6711 = vpop.permute.xlu0 %6710
        %6712 = vrot.lane.b32.xlu0 %v6293, 64
        %v6713 = vpop.permute.xlu0 %6712
        %6714 = vrot.lane.b32.xlu0 %v6294, 64
        %v6715 = vpop.permute.xlu0 %6714
        %6716 = vrot.lane.b32.xlu0 %v6295, 64
        %v6717 = vpop.permute.xlu0 %6716
        %6718 = vrot.lane.b32.xlu0 %v6296, 64
        %v6719 = vpop.permute.xlu0 %6718
        %6720 = vrot.lane.b32.xlu0 %v6297, 64
        %v6721 = vpop.permute.xlu0 %6720
        %6722 = vrot.lane.b32.xlu0 %v6298, 64
        %v6723 = vpop.permute.xlu0 %6722
        %6724 = vrot.lane.b32.xlu0 %v6299, 64
        %v6725 = vpop.permute.xlu0 %6724
        %6726 = vrot.lane.b32.xlu0 %v6300, 64
        %v6727 = vpop.permute.xlu0 %6726
        %6728 = vrot.lane.b32.xlu0 %v6301, 64
        %v6729 = vpop.permute.xlu0 %6728
        %6730 = vrot.lane.b32.xlu0 %v6302, 64
        %v6731 = vpop.permute.xlu0 %6730
        %6732 = vrot.lane.b32.xlu0 %v6303, 64
        %v6733 = vpop.permute.xlu0 %6732
        %6734 = vrot.lane.b32.xlu0 %v6304, 64
        %v6735 = vpop.permute.xlu0 %6734
        %6736 = vrot.lane.b32.xlu0 %v6305, 64
        %v6737 = vpop.permute.xlu0 %6736
        %6738 = vrot.lane.b32.xlu0 %v6306, 64
        %v6739 = vpop.permute.xlu0 %6738
        %6740 = vrot.lane.b32.xlu0 %v6307, 64
        %v6741 = vpop.permute.xlu0 %6740
        %6742 = vrot.lane.b32.xlu0 %v6308, 64
        %v6743 = vpop.permute.xlu0 %6742
        %6744 = vrot.lane.b32.xlu0 %v6309, 64
        %v6745 = vpop.permute.xlu0 %6744
        %6746 = vrot.lane.b32.xlu0 %v6310, 64
        %v6747 = vpop.permute.xlu0 %6746
        %6748 = vrot.lane.b32.xlu0 %v6311, 64
        %v6749 = vpop.permute.xlu0 %6748
        %6750 = vrot.lane.b32.xlu0 %v6312, 64
        %v6751 = vpop.permute.xlu0 %6750
        %6752 = vrot.lane.b32.xlu0 %v6313, 64
        %v6753 = vpop.permute.xlu0 %6752
        %6754 = vrot.lane.b32.xlu0 %v6314, 64
        %v6755 = vpop.permute.xlu0 %6754
        %6756 = vrot.lane.b32.xlu0 %v6315, 64
        %v6757 = vpop.permute.xlu0 %6756
        %6758 = vrot.lane.b32.xlu0 %v6316, 64
        %v6759 = vpop.permute.xlu0 %6758
        %6760 = vrot.lane.b32.xlu0 %v6317, 64
        %v6761 = vpop.permute.xlu0 %6760
        %6762 = vrot.lane.b32.xlu0 %v6318, 64
        %v6763 = vpop.permute.xlu0 %6762
        %6764 = vrot.lane.b32.xlu0 %v6319, 64
        %v6765 = vpop.permute.xlu0 %6764
        %6766 = vrot.lane.b32.xlu0 %v6320, 64
        %v6767 = vpop.permute.xlu0 %6766
        %6768 = vrot.lane.b32.xlu0 %v6321, 64
        %v6769 = vpop.permute.xlu0 %6768
        %6834 = vrot.lane.b32.xlu0 %v6354, 64
        %v6835 = vpop.permute.xlu0 %6834
        %6836 = vrot.lane.b32.xlu0 %v6355, 64
        %v6837 = vpop.permute.xlu0 %6836
        %6838 = vrot.lane.b32.xlu0 %v6356, 64
        %v6839 = vpop.permute.xlu0 %6838
        %6840 = vrot.lane.b32.xlu0 %v6357, 64
        %v6841 = vpop.permute.xlu0 %6840
        %6842 = vrot.lane.b32.xlu0 %v6358, 64
        %v6843 = vpop.permute.xlu0 %6842
        %6844 = vrot.lane.b32.xlu0 %v6359, 64
        %v6845 = vpop.permute.xlu0 %6844
        %6846 = vrot.lane.b32.xlu0 %v6360, 64
        %v6847 = vpop.permute.xlu0 %6846
        %6848 = vrot.lane.b32.xlu0 %v6361, 64
        %v6849 = vpop.permute.xlu0 %6848
        %6850 = vrot.lane.b32.xlu0 %v6362, 64
        %v6851 = vpop.permute.xlu0 %6850
        %6852 = vrot.lane.b32.xlu0 %v6363, 64
        %v6853 = vpop.permute.xlu0 %6852
        %6854 = vrot.lane.b32.xlu0 %v6364, 64
        %v6855 = vpop.permute.xlu0 %6854
        %6856 = vrot.lane.b32.xlu0 %v6365, 64
        %v6857 = vpop.permute.xlu0 %6856
        %6858 = vrot.lane.b32.xlu0 %v6366, 64
        %v6859 = vpop.permute.xlu0 %6858
        %6860 = vrot.lane.b32.xlu0 %v6367, 64
        %v6861 = vpop.permute.xlu0 %6860
        %6862 = vrot.lane.b32.xlu0 %v6368, 64
        %v6863 = vpop.permute.xlu0 %6862
        %6864 = vrot.lane.b32.xlu0 %v6369, 64
        %v6865 = vpop.permute.xlu0 %6864
        %6866 = vrot.lane.b32.xlu0 %v6370, 64
        %v6867 = vpop.permute.xlu0 %6866
        %6868 = vrot.lane.b32.xlu0 %v6371, 64
        %v6869 = vpop.permute.xlu0 %6868
        %6870 = vrot.lane.b32.xlu0 %v6372, 64
        %v6871 = vpop.permute.xlu0 %6870
        %6872 = vrot.lane.b32.xlu0 %v6373, 64
        %v6873 = vpop.permute.xlu0 %6872
        %6874 = vrot.lane.b32.xlu0 %v6374, 64
        %v6875 = vpop.permute.xlu0 %6874
        %6876 = vrot.lane.b32.xlu0 %v6375, 64
        %v6877 = vpop.permute.xlu0 %6876
        %6878 = vrot.lane.b32.xlu0 %v6376, 64
        %v6879 = vpop.permute.xlu0 %6878
        %6880 = vrot.lane.b32.xlu0 %v6377, 64
        %v6881 = vpop.permute.xlu0 %6880
        %6882 = vrot.lane.b32.xlu0 %v6378, 64
        %v6883 = vpop.permute.xlu0 %6882
        %6884 = vrot.lane.b32.xlu0 %v6379, 64
        %v6885 = vpop.permute.xlu0 %6884
        %6886 = vrot.lane.b32.xlu0 %v6380, 64
        %v6887 = vpop.permute.xlu0 %6886
        %6888 = vrot.lane.b32.xlu0 %v6381, 64
        %v6889 = vpop.permute.xlu0 %6888
        %6890 = vrot.lane.b32.xlu0 %v6382, 64
        %v6891 = vpop.permute.xlu0 %6890
        %6892 = vrot.lane.b32.xlu0 %v6383, 64
        %v6893 = vpop.permute.xlu0 %6892
        %6894 = vrot.lane.b32.xlu0 %v6384, 64
        %v6895 = vpop.permute.xlu0 %6894
        %6896 = vrot.lane.b32.xlu0 %v6385, 64
        %v6897 = vpop.permute.xlu0 %6896
        %v6930 = vsel %vm389, %v6130, %v6451
        %v6931 = vsel %vm389, %v6131, %v6453
        %v6932 = vsel %vm389, %v6132, %v6455
        %v6933 = vsel %vm389, %v6133, %v6457
        %v6934 = vsel %vm389, %v6134, %v6459
        %v6935 = vsel %vm389, %v6135, %v6461
        %v6936 = vsel %vm389, %v6136, %v6463
        %v6937 = vsel %vm389, %v6137, %v6465
        %v6938 = vsel %vm389, %v6138, %v6467
        %v6939 = vsel %vm389, %v6139, %v6469
        %v6940 = vsel %vm389, %v6140, %v6471
        %v6941 = vsel %vm389, %v6141, %v6473
        %v6942 = vsel %vm389, %v6142, %v6475
        %v6943 = vsel %vm389, %v6143, %v6477
        %v6944 = vsel %vm389, %v6144, %v6479
        %v6945 = vsel %vm389, %v6145, %v6481
        %v6946 = vsel %vm389, %v6146, %v6483
        %v6947 = vsel %vm389, %v6147, %v6485
        %v6948 = vsel %vm389, %v6148, %v6487
        %v6949 = vsel %vm389, %v6149, %v6489
        %v6950 = vsel %vm389, %v6150, %v6491
        %v6951 = vsel %vm389, %v6151, %v6493
        %v6952 = vsel %vm389, %v6152, %v6495
        %v6953 = vsel %vm389, %v6153, %v6497
        %v6954 = vsel %vm389, %v6154, %v6499
        %v6955 = vsel %vm389, %v6155, %v6501
        %v6956 = vsel %vm389, %v6156, %v6503
        %v6957 = vsel %vm389, %v6157, %v6505
        %v6958 = vsel %vm389, %v6158, %v6507
        %v6959 = vsel %vm389, %v6159, %v6509
        %v6960 = vsel %vm389, %v6160, %v6511
        %v6961 = vsel %vm389, %v6161, %v6513
        %v6962 = vsel %vm389, %v6194, %v6579
        %v6963 = vsel %vm389, %v6195, %v6581
        %v6964 = vsel %vm389, %v6196, %v6583
        %v6965 = vsel %vm389, %v6197, %v6585
        %v6966 = vsel %vm389, %v6198, %v6587
        %v6967 = vsel %vm389, %v6199, %v6589
        %v6968 = vsel %vm389, %v6200, %v6591
        %v6969 = vsel %vm389, %v6201, %v6593
        %v6970 = vsel %vm389, %v6202, %v6595
        %v6971 = vsel %vm389, %v6203, %v6597
        %v6972 = vsel %vm389, %v6204, %v6599
        %v6973 = vsel %vm389, %v6205, %v6601
        %v6974 = vsel %vm389, %v6206, %v6603
        %v6975 = vsel %vm389, %v6207, %v6605
        %v6976 = vsel %vm389, %v6208, %v6607
        %v6977 = vsel %vm389, %v6209, %v6609
        %v6978 = vsel %vm389, %v6210, %v6611
        %v6979 = vsel %vm389, %v6211, %v6613
        %v6980 = vsel %vm389, %v6212, %v6615
        %v6981 = vsel %vm389, %v6213, %v6617
        %v6982 = vsel %vm389, %v6214, %v6619
        %v6983 = vsel %vm389, %v6215, %v6621
        %v6984 = vsel %vm389, %v6216, %v6623
        %v6985 = vsel %vm389, %v6217, %v6625
        %v6986 = vsel %vm389, %v6218, %v6627
        %v6987 = vsel %vm389, %v6219, %v6629
        %v6988 = vsel %vm389, %v6220, %v6631
        %v6989 = vsel %vm389, %v6221, %v6633
        %v6990 = vsel %vm389, %v6222, %v6635
        %v6991 = vsel %vm389, %v6223, %v6637
        %v6992 = vsel %vm389, %v6224, %v6639
        %v6993 = vsel %vm389, %v6225, %v6641
        %v6994 = vsel %vm389, %v6258, %v6707
        %v6995 = vsel %vm389, %v6259, %v6709
        %v6996 = vsel %vm389, %v6260, %v6711
        %v6997 = vsel %vm389, %v6261, %v6713
        %v6998 = vsel %vm389, %v6262, %v6715
        %v6999 = vsel %vm389, %v6263, %v6717
        %v7000 = vsel %vm389, %v6264, %v6719
        %v7001 = vsel %vm389, %v6265, %v6721
        %v7002 = vsel %vm389, %v6266, %v6723
        %v7003 = vsel %vm389, %v6267, %v6725
        %v7004 = vsel %vm389, %v6268, %v6727
        %v7005 = vsel %vm389, %v6269, %v6729
        %v7006 = vsel %vm389, %v6270, %v6731
        %v7007 = vsel %vm389, %v6271, %v6733
        %v7008 = vsel %vm389, %v6272, %v6735
        %v7009 = vsel %vm389, %v6273, %v6737
        %v7010 = vsel %vm389, %v6274, %v6739
        %v7011 = vsel %vm389, %v6275, %v6741
        %v7012 = vsel %vm389, %v6276, %v6743
        %v7013 = vsel %vm389, %v6277, %v6745
        %v7014 = vsel %vm389, %v6278, %v6747
        %v7015 = vsel %vm389, %v6279, %v6749
        %v7016 = vsel %vm389, %v6280, %v6751
        %v7017 = vsel %vm389, %v6281, %v6753
        %v7018 = vsel %vm389, %v6282, %v6755
        %v7019 = vsel %vm389, %v6283, %v6757
        %v7020 = vsel %vm389, %v6284, %v6759
        %v7021 = vsel %vm389, %v6285, %v6761
        %v7022 = vsel %vm389, %v6286, %v6763
        %v7023 = vsel %vm389, %v6287, %v6765
        %v7024 = vsel %vm389, %v6288, %v6767
        %v7025 = vsel %vm389, %v6289, %v6769
        %v7026 = vsel %vm389, %v6322, %v6835
        %v7027 = vsel %vm389, %v6323, %v6837
        %v7028 = vsel %vm389, %v6324, %v6839
        %v7029 = vsel %vm389, %v6325, %v6841
        %v7030 = vsel %vm389, %v6326, %v6843
        %v7031 = vsel %vm389, %v6327, %v6845
        %v7032 = vsel %vm389, %v6328, %v6847
        %v7033 = vsel %vm389, %v6329, %v6849
        %v7034 = vsel %vm389, %v6330, %v6851
        %v7035 = vsel %vm389, %v6331, %v6853
        %v7036 = vsel %vm389, %v6332, %v6855
        %v7037 = vsel %vm389, %v6333, %v6857
        %v7038 = vsel %vm389, %v6334, %v6859
        %v7039 = vsel %vm389, %v6335, %v6861
        %v7040 = vsel %vm389, %v6336, %v6863
        %v7041 = vsel %vm389, %v6337, %v6865
        %v7042 = vsel %vm389, %v6338, %v6867
        %v7043 = vsel %vm389, %v6339, %v6869
        %v7044 = vsel %vm389, %v6340, %v6871
        %v7045 = vsel %vm389, %v6341, %v6873
        %v7046 = vsel %vm389, %v6342, %v6875
        %v7047 = vsel %vm389, %v6343, %v6877
        %v7048 = vsel %vm389, %v6344, %v6879
        %v7049 = vsel %vm389, %v6345, %v6881
        %v7050 = vsel %vm389, %v6346, %v6883
        %v7051 = vsel %vm389, %v6347, %v6885
        %v7052 = vsel %vm389, %v6348, %v6887
        %v7053 = vsel %vm389, %v6349, %v6889
        %v7054 = vsel %vm389, %v6350, %v6891
        %v7055 = vsel %vm389, %v6351, %v6893
        %v7056 = vsel %vm389, %v6352, %v6895
        %v7057 = vsel %vm389, %v6353, %v6897
        %v7059 = vperm.slane %v6129, 0
        %v7062 = vsel %vm389, %v6386, 0
        %v7065 = vsel %vm389, %v6387, 0
        %v7068 = vsel %vm389, %v6388, 0
        %v7071 = vsel %vm389, %v6389, 0
        %v7074 = vsel %vm389, %v6390, 0
        %v7077 = vsel %vm389, %v6391, 0
        %v7080 = vsel %vm389, %v6392, 0
        %v7083 = vsel %vm389, %v6393, 0
        %v7086 = vsel %vm389, %v6394, 0
        %v7089 = vsel %vm389, %v6395, 0
        %v7092 = vsel %vm389, %v6396, 0
        %v7095 = vsel %vm389, %v6397, 0
        %v7098 = vsel %vm389, %v6398, 0
        %v7101 = vsel %vm389, %v6399, 0
        %v7104 = vsel %vm389, %v6400, 0
        %v7107 = vsel %vm389, %v6401, 0
        %v7110 = vsel %vm389, %v6402, 0
        %v7113 = vsel %vm389, %v6403, 0
        %v7116 = vsel %vm389, %v6404, 0
        %v7119 = vsel %vm389, %v6405, 0
        %v7122 = vsel %vm389, %v6406, 0
        %v7125 = vsel %vm389, %v6407, 0
        %v7128 = vsel %vm389, %v6408, 0
        %v7131 = vsel %vm389, %v6409, 0
        %v7134 = vsel %vm389, %v6410, 0
        %v7137 = vsel %vm389, %v6411, 0
        %v7140 = vsel %vm389, %v6412, 0
        %v7143 = vsel %vm389, %v6413, 0
        %v7146 = vsel %vm389, %v6414, 0
        %v7149 = vsel %vm389, %v6415, 0
        %v7152 = vsel %vm389, %v6416, 0
        %v7155 = vsel %vm389, %v6417, 0
        %7157 = vmatpush.msra.mxu0 %v6071
        %7158 = vmatpush.msra.mxu0 %v6070
        %7159 = vmatpush.msra.mxu0 %v6069
        %7160 = vmatpush.msra.mxu0 %v6068
        %7161 = vmatpush.msra.mxu0 %v6067
        %7162 = vmatpush.msra.mxu0 %v6066
        %7163 = vmatpush.msra.mxu0 %v6065
        %7164 = vmatpush.msra.mxu0 %v6064
        %7165 = vmatpush.msra.mxu0 %v6063
        %7166 = vmatpush.msra.mxu0 %v6062
        %7167 = vmatpush.msra.mxu0 %v6061
        %7168 = vmatpush.msra.mxu0 %v6060
        %7169 = vmatpush.msra.mxu0 %v6059
        %7170 = vmatpush.msra.mxu0 %v6058
        %7171 = vmatpush.msra.mxu0 %v6057
        %7172 = vmatpush.msra.mxu0 %v6056
        %7173 = vmatmul.f32.gmra.mxu0 %v6930
        %v7174 = vpop.f32.mrf.mxu0
        %v7175 = vadd.f32 %v7059, %v7174
        %7176 = vmatmul.f32.gmra.mxu0 %v6931
        %v7177 = vpop.f32.mrf.mxu0
        %v7178 = vadd.f32 %v7059, %v7177
        %7179 = vmatmul.f32.gmra.mxu0 %v6932
        %v7180 = vpop.f32.mrf.mxu0
        %v7181 = vadd.f32 %v7059, %v7180
        %7182 = vmatmul.f32.gmra.mxu0 %v6933
        %v7183 = vpop.f32.mrf.mxu0
        %v7184 = vadd.f32 %v7059, %v7183
        %7185 = vmatmul.f32.gmra.mxu0 %v6934
        %v7186 = vpop.f32.mrf.mxu0
        %v7187 = vadd.f32 %v7059, %v7186
        %7188 = vmatmul.f32.gmra.mxu0 %v6935
        %v7189 = vpop.f32.mrf.mxu0
        %v7190 = vadd.f32 %v7059, %v7189
        %7191 = vmatmul.f32.gmra.mxu0 %v6936
        %v7192 = vpop.f32.mrf.mxu0
        %v7193 = vadd.f32 %v7059, %v7192
        %7194 = vmatmul.f32.gmra.mxu0 %v6937
        %v7195 = vpop.f32.mrf.mxu0
        %v7196 = vadd.f32 %v7059, %v7195
        %7197 = vmatmul.f32.gmra.mxu0 %v6938
        %v7198 = vpop.f32.mrf.mxu0
        %v7199 = vadd.f32 %v7059, %v7198
        %7200 = vmatmul.f32.gmra.mxu0 %v6939
        %v7201 = vpop.f32.mrf.mxu0
        %v7202 = vadd.f32 %v7059, %v7201
        %7203 = vmatmul.f32.gmra.mxu0 %v6940
        %v7204 = vpop.f32.mrf.mxu0
        %v7205 = vadd.f32 %v7059, %v7204
        %7206 = vmatmul.f32.gmra.mxu0 %v6941
        %v7207 = vpop.f32.mrf.mxu0
        %v7208 = vadd.f32 %v7059, %v7207
        %7209 = vmatmul.f32.gmra.mxu0 %v6942
        %v7210 = vpop.f32.mrf.mxu0
        %v7211 = vadd.f32 %v7059, %v7210
        %7212 = vmatmul.f32.gmra.mxu0 %v6943
        %v7213 = vpop.f32.mrf.mxu0
        %v7214 = vadd.f32 %v7059, %v7213
        %7215 = vmatmul.f32.gmra.mxu0 %v6944
        %v7216 = vpop.f32.mrf.mxu0
        %v7217 = vadd.f32 %v7059, %v7216
        %7218 = vmatmul.f32.gmra.mxu0 %v6945
        %v7219 = vpop.f32.mrf.mxu0
        %v7220 = vadd.f32 %v7059, %v7219
        %7221 = vmatmul.f32.gmra.mxu0 %v6946
        %v7222 = vpop.f32.mrf.mxu0
        %v7223 = vadd.f32 %v7059, %v7222
        %7224 = vmatmul.f32.gmra.mxu0 %v6947
        %v7225 = vpop.f32.mrf.mxu0
        %v7226 = vadd.f32 %v7059, %v7225
        %7227 = vmatmul.f32.gmra.mxu0 %v6948
        %v7228 = vpop.f32.mrf.mxu0
        %v7229 = vadd.f32 %v7059, %v7228
        %7230 = vmatmul.f32.gmra.mxu0 %v6949
        %v7231 = vpop.f32.mrf.mxu0
        %v7232 = vadd.f32 %v7059, %v7231
        %7233 = vmatmul.f32.gmra.mxu0 %v6950
        %v7234 = vpop.f32.mrf.mxu0
        %v7235 = vadd.f32 %v7059, %v7234
        %7236 = vmatmul.f32.gmra.mxu0 %v6951
        %v7237 = vpop.f32.mrf.mxu0
        %v7238 = vadd.f32 %v7059, %v7237
        %7239 = vmatmul.f32.gmra.mxu0 %v6952
        %v7240 = vpop.f32.mrf.mxu0
        %v7241 = vadd.f32 %v7059, %v7240
        %7242 = vmatmul.f32.gmra.mxu0 %v6953
        %v7243 = vpop.f32.mrf.mxu0
        %v7244 = vadd.f32 %v7059, %v7243
        %7245 = vmatmul.f32.gmra.mxu0 %v6954
        %v7246 = vpop.f32.mrf.mxu0
        %v7247 = vadd.f32 %v7059, %v7246
        %7248 = vmatmul.f32.gmra.mxu0 %v6955
        %v7249 = vpop.f32.mrf.mxu0
        %v7250 = vadd.f32 %v7059, %v7249
        %7251 = vmatmul.f32.gmra.mxu0 %v6956
        %v7252 = vpop.f32.mrf.mxu0
        %v7253 = vadd.f32 %v7059, %v7252
        %7254 = vmatmul.f32.gmra.mxu0 %v6957
        %v7255 = vpop.f32.mrf.mxu0
        %v7256 = vadd.f32 %v7059, %v7255
        %7257 = vmatmul.f32.gmra.mxu0 %v6958
        %v7258 = vpop.f32.mrf.mxu0
        %v7259 = vadd.f32 %v7059, %v7258
        %7260 = vmatmul.f32.gmra.mxu0 %v6959
        %v7261 = vpop.f32.mrf.mxu0
        %v7262 = vadd.f32 %v7059, %v7261
        %7263 = vmatmul.f32.gmra.mxu0 %v6960
        %v7264 = vpop.f32.mrf.mxu0
        %v7265 = vadd.f32 %v7059, %v7264
        %7266 = vmatmul.f32.gmra.mxu0 %v6961
        %v7267 = vpop.f32.mrf.mxu0
        %v7268 = vadd.f32 %v7059, %v7267
        %7269 = vdwg.mxu0
        %7270 = vmatpush.msra.mxu0 %v6087
        %7271 = vmatpush.msra.mxu0 %v6086
        %7272 = vmatpush.msra.mxu0 %v6085
        %7273 = vmatpush.msra.mxu0 %v6084
        %7274 = vmatpush.msra.mxu0 %v6083
        %7275 = vmatpush.msra.mxu0 %v6082
        %7276 = vmatpush.msra.mxu0 %v6081
        %7277 = vmatpush.msra.mxu0 %v6080
        %7278 = vmatpush.msra.mxu0 %v6079
        %7279 = vmatpush.msra.mxu0 %v6078
        %7280 = vmatpush.msra.mxu0 %v6077
        %7281 = vmatpush.msra.mxu0 %v6076
        %7282 = vmatpush.msra.mxu0 %v6075
        %7283 = vmatpush.msra.mxu0 %v6074
        %7284 = vmatpush.msra.mxu0 %v6073
        %7285 = vmatpush.msra.mxu0 %v6072
        %7286 = vmatmul.f32.gmra.mxu0 %v6962
        %v7287 = vpop.f32.mrf.mxu0
        %v7288 = vadd.f32 %v7175, %v7287
        %7289 = vmatmul.f32.gmra.mxu0 %v6963
        %v7290 = vpop.f32.mrf.mxu0
        %v7291 = vadd.f32 %v7178, %v7290
        %7292 = vmatmul.f32.gmra.mxu0 %v6964
        %v7293 = vpop.f32.mrf.mxu0
        %v7294 = vadd.f32 %v7181, %v7293
        %7295 = vmatmul.f32.gmra.mxu0 %v6965
        %v7296 = vpop.f32.mrf.mxu0
        %v7297 = vadd.f32 %v7184, %v7296
        %7298 = vmatmul.f32.gmra.mxu0 %v6966
        %v7299 = vpop.f32.mrf.mxu0
        %v7300 = vadd.f32 %v7187, %v7299
        %7301 = vmatmul.f32.gmra.mxu0 %v6967
        %v7302 = vpop.f32.mrf.mxu0
        %v7303 = vadd.f32 %v7190, %v7302
        %7304 = vmatmul.f32.gmra.mxu0 %v6968
        %v7305 = vpop.f32.mrf.mxu0
        %v7306 = vadd.f32 %v7193, %v7305
        %7307 = vmatmul.f32.gmra.mxu0 %v6969
        %v7308 = vpop.f32.mrf.mxu0
        %v7309 = vadd.f32 %v7196, %v7308
        %7310 = vmatmul.f32.gmra.mxu0 %v6970
        %v7311 = vpop.f32.mrf.mxu0
        %v7312 = vadd.f32 %v7199, %v7311
        %7313 = vmatmul.f32.gmra.mxu0 %v6971
        %v7314 = vpop.f32.mrf.mxu0
        %v7315 = vadd.f32 %v7202, %v7314
        %7316 = vmatmul.f32.gmra.mxu0 %v6972
        %v7317 = vpop.f32.mrf.mxu0
        %v7318 = vadd.f32 %v7205, %v7317
        %7319 = vmatmul.f32.gmra.mxu0 %v6973
        %v7320 = vpop.f32.mrf.mxu0
        %v7321 = vadd.f32 %v7208, %v7320
        %7322 = vmatmul.f32.gmra.mxu0 %v6974
        %v7323 = vpop.f32.mrf.mxu0
        %v7324 = vadd.f32 %v7211, %v7323
        %7325 = vmatmul.f32.gmra.mxu0 %v6975
        %v7326 = vpop.f32.mrf.mxu0
        %v7327 = vadd.f32 %v7214, %v7326
        %7328 = vmatmul.f32.gmra.mxu0 %v6976
        %v7329 = vpop.f32.mrf.mxu0
        %v7330 = vadd.f32 %v7217, %v7329
        %7331 = vmatmul.f32.gmra.mxu0 %v6977
        %v7332 = vpop.f32.mrf.mxu0
        %v7333 = vadd.f32 %v7220, %v7332
        %7334 = vmatmul.f32.gmra.mxu0 %v6978
        %v7335 = vpop.f32.mrf.mxu0
        %v7336 = vadd.f32 %v7223, %v7335
        %7337 = vmatmul.f32.gmra.mxu0 %v6979
        %v7338 = vpop.f32.mrf.mxu0
        %v7339 = vadd.f32 %v7226, %v7338
        %7340 = vmatmul.f32.gmra.mxu0 %v6980
        %v7341 = vpop.f32.mrf.mxu0
        %v7342 = vadd.f32 %v7229, %v7341
        %7343 = vmatmul.f32.gmra.mxu0 %v6981
        %v7344 = vpop.f32.mrf.mxu0
        %v7345 = vadd.f32 %v7232, %v7344
        %7346 = vmatmul.f32.gmra.mxu0 %v6982
        %v7347 = vpop.f32.mrf.mxu0
        %v7348 = vadd.f32 %v7235, %v7347
        %7349 = vmatmul.f32.gmra.mxu0 %v6983
        %v7350 = vpop.f32.mrf.mxu0
        %v7351 = vadd.f32 %v7238, %v7350
        %7352 = vmatmul.f32.gmra.mxu0 %v6984
        %v7353 = vpop.f32.mrf.mxu0
        %v7354 = vadd.f32 %v7241, %v7353
        %7355 = vmatmul.f32.gmra.mxu0 %v6985
        %v7356 = vpop.f32.mrf.mxu0
        %v7357 = vadd.f32 %v7244, %v7356
        %7358 = vmatmul.f32.gmra.mxu0 %v6986
        %v7359 = vpop.f32.mrf.mxu0
        %v7360 = vadd.f32 %v7247, %v7359
        %7361 = vmatmul.f32.gmra.mxu0 %v6987
        %v7362 = vpop.f32.mrf.mxu0
        %v7363 = vadd.f32 %v7250, %v7362
        %7364 = vmatmul.f32.gmra.mxu0 %v6988
        %v7365 = vpop.f32.mrf.mxu0
        %v7366 = vadd.f32 %v7253, %v7365
        %7367 = vmatmul.f32.gmra.mxu0 %v6989
        %v7368 = vpop.f32.mrf.mxu0
        %v7369 = vadd.f32 %v7256, %v7368
        %7370 = vmatmul.f32.gmra.mxu0 %v6990
        %v7371 = vpop.f32.mrf.mxu0
        %v7372 = vadd.f32 %v7259, %v7371
        %7373 = vmatmul.f32.gmra.mxu0 %v6991
        %v7374 = vpop.f32.mrf.mxu0
        %v7375 = vadd.f32 %v7262, %v7374
        %7376 = vmatmul.f32.gmra.mxu0 %v6992
        %v7377 = vpop.f32.mrf.mxu0
        %v7378 = vadd.f32 %v7265, %v7377
        %7379 = vmatmul.f32.gmra.mxu0 %v6993
        %v7380 = vpop.f32.mrf.mxu0
        %v7381 = vadd.f32 %v7268, %v7380
        %7382 = vdwg.mxu0
        %7383 = vmatpush.msra.mxu0 %v6103
        %7384 = vmatpush.msra.mxu0 %v6102
        %7385 = vmatpush.msra.mxu0 %v6101
        %7386 = vmatpush.msra.mxu0 %v6100
        %7387 = vmatpush.msra.mxu0 %v6099
        %7388 = vmatpush.msra.mxu0 %v6098
        %7389 = vmatpush.msra.mxu0 %v6097
        %7390 = vmatpush.msra.mxu0 %v6096
        %7391 = vmatpush.msra.mxu0 %v6095
        %7392 = vmatpush.msra.mxu0 %v6094
        %7393 = vmatpush.msra.mxu0 %v6093
        %7394 = vmatpush.msra.mxu0 %v6092
        %7395 = vmatpush.msra.mxu0 %v6091
        %7396 = vmatpush.msra.mxu0 %v6090
        %7397 = vmatpush.msra.mxu0 %v6089
        %7398 = vmatpush.msra.mxu0 %v6088
        %7399 = vmatmul.f32.gmra.mxu0 %v6994
        %v7400 = vpop.f32.mrf.mxu0
        %v7401 = vadd.f32 %v7288, %v7400
        %7402 = vmatmul.f32.gmra.mxu0 %v6995
        %v7403 = vpop.f32.mrf.mxu0
        %v7404 = vadd.f32 %v7291, %v7403
        %7405 = vmatmul.f32.gmra.mxu0 %v6996
        %v7406 = vpop.f32.mrf.mxu0
        %v7407 = vadd.f32 %v7294, %v7406
        %7408 = vmatmul.f32.gmra.mxu0 %v6997
        %v7409 = vpop.f32.mrf.mxu0
        %v7410 = vadd.f32 %v7297, %v7409
        %7411 = vmatmul.f32.gmra.mxu0 %v6998
        %v7412 = vpop.f32.mrf.mxu0
        %v7413 = vadd.f32 %v7300, %v7412
        %7414 = vmatmul.f32.gmra.mxu0 %v6999
        %v7415 = vpop.f32.mrf.mxu0
        %v7416 = vadd.f32 %v7303, %v7415
        %7417 = vmatmul.f32.gmra.mxu0 %v7000
        %v7418 = vpop.f32.mrf.mxu0
        %v7419 = vadd.f32 %v7306, %v7418
        %7420 = vmatmul.f32.gmra.mxu0 %v7001
        %v7421 = vpop.f32.mrf.mxu0
        %v7422 = vadd.f32 %v7309, %v7421
        %7423 = vmatmul.f32.gmra.mxu0 %v7002
        %v7424 = vpop.f32.mrf.mxu0
        %v7425 = vadd.f32 %v7312, %v7424
        %7426 = vmatmul.f32.gmra.mxu0 %v7003
        %v7427 = vpop.f32.mrf.mxu0
        %v7428 = vadd.f32 %v7315, %v7427
        %7429 = vmatmul.f32.gmra.mxu0 %v7004
        %v7430 = vpop.f32.mrf.mxu0
        %v7431 = vadd.f32 %v7318, %v7430
        %7432 = vmatmul.f32.gmra.mxu0 %v7005
        %v7433 = vpop.f32.mrf.mxu0
        %v7434 = vadd.f32 %v7321, %v7433
        %7435 = vmatmul.f32.gmra.mxu0 %v7006
        %v7436 = vpop.f32.mrf.mxu0
        %v7437 = vadd.f32 %v7324, %v7436
        %7438 = vmatmul.f32.gmra.mxu0 %v7007
        %v7439 = vpop.f32.mrf.mxu0
        %v7440 = vadd.f32 %v7327, %v7439
        %7441 = vmatmul.f32.gmra.mxu0 %v7008
        %v7442 = vpop.f32.mrf.mxu0
        %v7443 = vadd.f32 %v7330, %v7442
        %7444 = vmatmul.f32.gmra.mxu0 %v7009
        %v7445 = vpop.f32.mrf.mxu0
        %v7446 = vadd.f32 %v7333, %v7445
        %7447 = vmatmul.f32.gmra.mxu0 %v7010
        %v7448 = vpop.f32.mrf.mxu0
        %v7449 = vadd.f32 %v7336, %v7448
        %7450 = vmatmul.f32.gmra.mxu0 %v7011
        %v7451 = vpop.f32.mrf.mxu0
        %v7452 = vadd.f32 %v7339, %v7451
        %7453 = vmatmul.f32.gmra.mxu0 %v7012
        %v7454 = vpop.f32.mrf.mxu0
        %v7455 = vadd.f32 %v7342, %v7454
        %7456 = vmatmul.f32.gmra.mxu0 %v7013
        %v7457 = vpop.f32.mrf.mxu0
        %v7458 = vadd.f32 %v7345, %v7457
        %7459 = vmatmul.f32.gmra.mxu0 %v7014
        %v7460 = vpop.f32.mrf.mxu0
        %v7461 = vadd.f32 %v7348, %v7460
        %7462 = vmatmul.f32.gmra.mxu0 %v7015
        %v7463 = vpop.f32.mrf.mxu0
        %v7464 = vadd.f32 %v7351, %v7463
        %7465 = vmatmul.f32.gmra.mxu0 %v7016
        %v7466 = vpop.f32.mrf.mxu0
        %v7467 = vadd.f32 %v7354, %v7466
        %7468 = vmatmul.f32.gmra.mxu0 %v7017
        %v7469 = vpop.f32.mrf.mxu0
        %v7470 = vadd.f32 %v7357, %v7469
        %7471 = vmatmul.f32.gmra.mxu0 %v7018
        %v7472 = vpop.f32.mrf.mxu0
        %v7473 = vadd.f32 %v7360, %v7472
        %7474 = vmatmul.f32.gmra.mxu0 %v7019
        %v7475 = vpop.f32.mrf.mxu0
        %v7476 = vadd.f32 %v7363, %v7475
        %7477 = vmatmul.f32.gmra.mxu0 %v7020
        %v7478 = vpop.f32.mrf.mxu0
        %v7479 = vadd.f32 %v7366, %v7478
        %7480 = vmatmul.f32.gmra.mxu0 %v7021
        %v7481 = vpop.f32.mrf.mxu0
        %v7482 = vadd.f32 %v7369, %v7481
        %7483 = vmatmul.f32.gmra.mxu0 %v7022
        %v7484 = vpop.f32.mrf.mxu0
        %v7485 = vadd.f32 %v7372, %v7484
        %7486 = vmatmul.f32.gmra.mxu0 %v7023
        %v7487 = vpop.f32.mrf.mxu0
        %v7488 = vadd.f32 %v7375, %v7487
        %7489 = vmatmul.f32.gmra.mxu0 %v7024
        %v7490 = vpop.f32.mrf.mxu0
        %v7491 = vadd.f32 %v7378, %v7490
        %7492 = vmatmul.f32.gmra.mxu0 %v7025
        %v7493 = vpop.f32.mrf.mxu0
        %v7494 = vadd.f32 %v7381, %v7493
        %7495 = vdwg.mxu0
        %7496 = vmatpush.msra.mxu0 %v6119
        %7497 = vmatpush.msra.mxu0 %v6118
        %7498 = vmatpush.msra.mxu0 %v6117
        %7499 = vmatpush.msra.mxu0 %v6116
        %7500 = vmatpush.msra.mxu0 %v6115
        %7501 = vmatpush.msra.mxu0 %v6114
        %7502 = vmatpush.msra.mxu0 %v6113
        %7503 = vmatpush.msra.mxu0 %v6112
        %7504 = vmatpush.msra.mxu0 %v6111
        %7505 = vmatpush.msra.mxu0 %v6110
        %7506 = vmatpush.msra.mxu0 %v6109
        %7507 = vmatpush.msra.mxu0 %v6108
        %7508 = vmatpush.msra.mxu0 %v6107
        %7509 = vmatpush.msra.mxu0 %v6106
        %7510 = vmatpush.msra.mxu0 %v6105
        %7511 = vmatpush.msra.mxu0 %v6104
        %7512 = vmatmul.f32.gmra.mxu0 %v7026
        %v7513 = vpop.f32.mrf.mxu0
        %v7514 = vadd.f32 %v7401, %v7513
        %7515 = vmatmul.f32.gmra.mxu0 %v7027
        %v7516 = vpop.f32.mrf.mxu0
        %v7517 = vadd.f32 %v7404, %v7516
        %7518 = vmatmul.f32.gmra.mxu0 %v7028
        %v7519 = vpop.f32.mrf.mxu0
        %v7520 = vadd.f32 %v7407, %v7519
        %7521 = vmatmul.f32.gmra.mxu0 %v7029
        %v7522 = vpop.f32.mrf.mxu0
        %v7523 = vadd.f32 %v7410, %v7522
        %7524 = vmatmul.f32.gmra.mxu0 %v7030
        %v7525 = vpop.f32.mrf.mxu0
        %v7526 = vadd.f32 %v7413, %v7525
        %7527 = vmatmul.f32.gmra.mxu0 %v7031
        %v7528 = vpop.f32.mrf.mxu0
        %v7529 = vadd.f32 %v7416, %v7528
        %7530 = vmatmul.f32.gmra.mxu0 %v7032
        %v7531 = vpop.f32.mrf.mxu0
        %v7532 = vadd.f32 %v7419, %v7531
        %7533 = vmatmul.f32.gmra.mxu0 %v7033
        %v7534 = vpop.f32.mrf.mxu0
        %v7535 = vadd.f32 %v7422, %v7534
        %7536 = vmatmul.f32.gmra.mxu0 %v7034
        %v7537 = vpop.f32.mrf.mxu0
        %v7538 = vadd.f32 %v7425, %v7537
        %7539 = vmatmul.f32.gmra.mxu0 %v7035
        %v7540 = vpop.f32.mrf.mxu0
        %v7541 = vadd.f32 %v7428, %v7540
        %7542 = vmatmul.f32.gmra.mxu0 %v7036
        %v7543 = vpop.f32.mrf.mxu0
        %v7544 = vadd.f32 %v7431, %v7543
        %7545 = vmatmul.f32.gmra.mxu0 %v7037
        %v7546 = vpop.f32.mrf.mxu0
        %v7547 = vadd.f32 %v7434, %v7546
        %7548 = vmatmul.f32.gmra.mxu0 %v7038
        %v7549 = vpop.f32.mrf.mxu0
        %v7550 = vadd.f32 %v7437, %v7549
        %7551 = vmatmul.f32.gmra.mxu0 %v7039
        %v7552 = vpop.f32.mrf.mxu0
        %v7553 = vadd.f32 %v7440, %v7552
        %7554 = vmatmul.f32.gmra.mxu0 %v7040
        %v7555 = vpop.f32.mrf.mxu0
        %v7556 = vadd.f32 %v7443, %v7555
        %7557 = vmatmul.f32.gmra.mxu0 %v7041
        %v7558 = vpop.f32.mrf.mxu0
        %v7559 = vadd.f32 %v7446, %v7558
        %7560 = vmatmul.f32.gmra.mxu0 %v7042
        %v7561 = vpop.f32.mrf.mxu0
        %v7562 = vadd.f32 %v7449, %v7561
        %7563 = vmatmul.f32.gmra.mxu0 %v7043
        %v7564 = vpop.f32.mrf.mxu0
        %v7565 = vadd.f32 %v7452, %v7564
        %7566 = vmatmul.f32.gmra.mxu0 %v7044
        %v7567 = vpop.f32.mrf.mxu0
        %v7568 = vadd.f32 %v7455, %v7567
        %7569 = vmatmul.f32.gmra.mxu0 %v7045
        %v7570 = vpop.f32.mrf.mxu0
        %v7571 = vadd.f32 %v7458, %v7570
        %7572 = vmatmul.f32.gmra.mxu0 %v7046
        %v7573 = vpop.f32.mrf.mxu0
        %v7574 = vadd.f32 %v7461, %v7573
        %7575 = vmatmul.f32.gmra.mxu0 %v7047
        %v7576 = vpop.f32.mrf.mxu0
        %v7577 = vadd.f32 %v7464, %v7576
        %7578 = vmatmul.f32.gmra.mxu0 %v7048
        %v7579 = vpop.f32.mrf.mxu0
        %v7580 = vadd.f32 %v7467, %v7579
        %7581 = vmatmul.f32.gmra.mxu0 %v7049
        %v7582 = vpop.f32.mrf.mxu0
        %v7583 = vadd.f32 %v7470, %v7582
        %7584 = vmatmul.f32.gmra.mxu0 %v7050
        %v7585 = vpop.f32.mrf.mxu0
        %v7586 = vadd.f32 %v7473, %v7585
        %7587 = vmatmul.f32.gmra.mxu0 %v7051
        %v7588 = vpop.f32.mrf.mxu0
        %v7589 = vadd.f32 %v7476, %v7588
        %7590 = vmatmul.f32.gmra.mxu0 %v7052
        %v7591 = vpop.f32.mrf.mxu0
        %v7592 = vadd.f32 %v7479, %v7591
        %7593 = vmatmul.f32.gmra.mxu0 %v7053
        %v7594 = vpop.f32.mrf.mxu0
        %v7595 = vadd.f32 %v7482, %v7594
        %7596 = vmatmul.f32.gmra.mxu0 %v7054
        %v7597 = vpop.f32.mrf.mxu0
        %v7598 = vadd.f32 %v7485, %v7597
        %7599 = vmatmul.f32.gmra.mxu0 %v7055
        %v7600 = vpop.f32.mrf.mxu0
        %v7601 = vadd.f32 %v7488, %v7600
        %7602 = vmatmul.f32.gmra.mxu0 %v7056
        %v7603 = vpop.f32.mrf.mxu0
        %v7604 = vadd.f32 %v7491, %v7603
        %7605 = vmatmul.f32.gmra.mxu0 %v7057
        %v7606 = vpop.f32.mrf.mxu0
        %v7607 = vadd.f32 %v7494, %v7606
        %7608 = vdwg.mxu0
        %7609 = vmatpush.msra.mxu0 0.0
        %7610 = vmatpush.msra.mxu0 0.0
        %7611 = vmatpush.msra.mxu0 0.0
        %7612 = vmatpush.msra.mxu0 0.0
        %7613 = vmatpush.msra.mxu0 0.0
        %7614 = vmatpush.msra.mxu0 0.0
        %7615 = vmatpush.msra.mxu0 0.0
        %7616 = vmatpush.msra.mxu0 0.0
        %7617 = vmatpush.msra.mxu0 %v6127
        %7618 = vmatpush.msra.mxu0 %v6126
        %7619 = vmatpush.msra.mxu0 %v6125
        %7620 = vmatpush.msra.mxu0 %v6124
        %7621 = vmatpush.msra.mxu0 %v6123
        %7622 = vmatpush.msra.mxu0 %v6122
        %7623 = vmatpush.msra.mxu0 %v6121
        %7624 = vmatpush.msra.mxu0 %v6120
        %7625 = vmatmul.f32.gmra.mxu0 %v7062
        %v7626 = vpop.f32.mrf.mxu0
        %v7627 = vadd.f32 %v7514, %v7626
        %7628 = vmatmul.f32.gmra.mxu0 %v7065
        %v7629 = vpop.f32.mrf.mxu0
        %v7630 = vadd.f32 %v7517, %v7629
        %7631 = vmatmul.f32.gmra.mxu0 %v7068
        %v7632 = vpop.f32.mrf.mxu0
        %v7633 = vadd.f32 %v7520, %v7632
        %7634 = vmatmul.f32.gmra.mxu0 %v7071
        %v7635 = vpop.f32.mrf.mxu0
        %v7636 = vadd.f32 %v7523, %v7635
        %7637 = vmatmul.f32.gmra.mxu0 %v7074
        %v7638 = vpop.f32.mrf.mxu0
        %v7639 = vadd.f32 %v7526, %v7638
        %7640 = vmatmul.f32.gmra.mxu0 %v7077
        %v7641 = vpop.f32.mrf.mxu0
        %v7642 = vadd.f32 %v7529, %v7641
        %7643 = vmatmul.f32.gmra.mxu0 %v7080
        %v7644 = vpop.f32.mrf.mxu0
        %v7645 = vadd.f32 %v7532, %v7644
        %7646 = vmatmul.f32.gmra.mxu0 %v7083
        %v7647 = vpop.f32.mrf.mxu0
        %v7648 = vadd.f32 %v7535, %v7647
        %7649 = vmatmul.f32.gmra.mxu0 %v7086
        %v7650 = vpop.f32.mrf.mxu0
        %v7651 = vadd.f32 %v7538, %v7650
        %7652 = vmatmul.f32.gmra.mxu0 %v7089
        %v7653 = vpop.f32.mrf.mxu0
        %v7654 = vadd.f32 %v7541, %v7653
        %7655 = vmatmul.f32.gmra.mxu0 %v7092
        %v7656 = vpop.f32.mrf.mxu0
        %v7657 = vadd.f32 %v7544, %v7656
        %7658 = vmatmul.f32.gmra.mxu0 %v7095
        %v7659 = vpop.f32.mrf.mxu0
        %v7660 = vadd.f32 %v7547, %v7659
        %7661 = vmatmul.f32.gmra.mxu0 %v7098
        %v7662 = vpop.f32.mrf.mxu0
        %v7663 = vadd.f32 %v7550, %v7662
        %7664 = vmatmul.f32.gmra.mxu0 %v7101
        %v7665 = vpop.f32.mrf.mxu0
        %v7666 = vadd.f32 %v7553, %v7665
        %7667 = vmatmul.f32.gmra.mxu0 %v7104
        %v7668 = vpop.f32.mrf.mxu0
        %v7669 = vadd.f32 %v7556, %v7668
        %7670 = vmatmul.f32.gmra.mxu0 %v7107
        %v7671 = vpop.f32.mrf.mxu0
        %v7672 = vadd.f32 %v7559, %v7671
        %7673 = vmatmul.f32.gmra.mxu0 %v7110
        %v7674 = vpop.f32.mrf.mxu0
        %v7675 = vadd.f32 %v7562, %v7674
        %7676 = vmatmul.f32.gmra.mxu0 %v7113
        %v7677 = vpop.f32.mrf.mxu0
        %v7678 = vadd.f32 %v7565, %v7677
        %7679 = vmatmul.f32.gmra.mxu0 %v7116
        %v7680 = vpop.f32.mrf.mxu0
        %v7681 = vadd.f32 %v7568, %v7680
        %7682 = vmatmul.f32.gmra.mxu0 %v7119
        %v7683 = vpop.f32.mrf.mxu0
        %v7684 = vadd.f32 %v7571, %v7683
        %7685 = vmatmul.f32.gmra.mxu0 %v7122
        %v7686 = vpop.f32.mrf.mxu0
        %v7687 = vadd.f32 %v7574, %v7686
        %7688 = vmatmul.f32.gmra.mxu0 %v7125
        %v7689 = vpop.f32.mrf.mxu0
        %v7690 = vadd.f32 %v7577, %v7689
        %7691 = vmatmul.f32.gmra.mxu0 %v7128
        %v7692 = vpop.f32.mrf.mxu0
        %v7693 = vadd.f32 %v7580, %v7692
        %7694 = vmatmul.f32.gmra.mxu0 %v7131
        %v7695 = vpop.f32.mrf.mxu0
        %v7696 = vadd.f32 %v7583, %v7695
        %7697 = vmatmul.f32.gmra.mxu0 %v7134
        %v7698 = vpop.f32.mrf.mxu0
        %v7699 = vadd.f32 %v7586, %v7698
        %7700 = vmatmul.f32.gmra.mxu0 %v7137
        %v7701 = vpop.f32.mrf.mxu0
        %v7702 = vadd.f32 %v7589, %v7701
        %7703 = vmatmul.f32.gmra.mxu0 %v7140
        %v7704 = vpop.f32.mrf.mxu0
        %v7705 = vadd.f32 %v7592, %v7704
        %7706 = vmatmul.f32.gmra.mxu0 %v7143
        %v7707 = vpop.f32.mrf.mxu0
        %v7708 = vadd.f32 %v7595, %v7707
        %7709 = vmatmul.f32.gmra.mxu0 %v7146
        %v7710 = vpop.f32.mrf.mxu0
        %v7711 = vadd.f32 %v7598, %v7710
        %7712 = vmatmul.f32.gmra.mxu0 %v7149
        %v7713 = vpop.f32.mrf.mxu0
        %v7714 = vadd.f32 %v7601, %v7713
        %7715 = vmatmul.f32.gmra.mxu0 %v7152
        %v7716 = vpop.f32.mrf.mxu0
        %v7717 = vadd.f32 %v7604, %v7716
        %7718 = vmatmul.f32.gmra.mxu0 %v7155
        %v7719 = vpop.f32.mrf.mxu0
        %v7720 = vadd.f32 %v7607, %v7719
        %7721 = vdwg.mxu0
        %vm7722 = vcmp.ge.f32.partialorder %v7627, 0.0
        %vm7723 = vcmp.ge.f32.partialorder %v7630, 0.0
        %vm7724 = vcmp.ge.f32.partialorder %v7633, 0.0
        %vm7725 = vcmp.ge.f32.partialorder %v7636, 0.0
        %vm7726 = vcmp.ge.f32.partialorder %v7639, 0.0
        %vm7727 = vcmp.ge.f32.partialorder %v7642, 0.0
        %vm7728 = vcmp.ge.f32.partialorder %v7645, 0.0
        %vm7729 = vcmp.ge.f32.partialorder %v7648, 0.0
        %vm7730 = vcmp.ge.f32.partialorder %v7651, 0.0
        %vm7731 = vcmp.ge.f32.partialorder %v7654, 0.0
        %vm7732 = vcmp.ge.f32.partialorder %v7657, 0.0
        %vm7733 = vcmp.ge.f32.partialorder %v7660, 0.0
        %vm7734 = vcmp.ge.f32.partialorder %v7663, 0.0
        %vm7735 = vcmp.ge.f32.partialorder %v7666, 0.0
        %vm7736 = vcmp.ge.f32.partialorder %v7669, 0.0
        %vm7737 = vcmp.ge.f32.partialorder %v7672, 0.0
        %vm7738 = vcmp.ge.f32.partialorder %v7675, 0.0
        %vm7739 = vcmp.ge.f32.partialorder %v7678, 0.0
        %vm7740 = vcmp.ge.f32.partialorder %v7681, 0.0
        %vm7741 = vcmp.ge.f32.partialorder %v7684, 0.0
        %vm7742 = vcmp.ge.f32.partialorder %v7687, 0.0
        %vm7743 = vcmp.ge.f32.partialorder %v7690, 0.0
        %vm7744 = vcmp.ge.f32.partialorder %v7693, 0.0
        %vm7745 = vcmp.ge.f32.partialorder %v7696, 0.0
        %vm7746 = vcmp.ge.f32.partialorder %v7699, 0.0
        %vm7747 = vcmp.ge.f32.partialorder %v7702, 0.0
        %vm7748 = vcmp.ge.f32.partialorder %v7705, 0.0
        %vm7749 = vcmp.ge.f32.partialorder %v7708, 0.0
        %vm7750 = vcmp.ge.f32.partialorder %v7711, 0.0
        %vm7751 = vcmp.ge.f32.partialorder %v7714, 0.0
        %vm7752 = vcmp.ge.f32.partialorder %v7717, 0.0
        %vm7753 = vcmp.ge.f32.partialorder %v7720, 0.0
        %v7754 = vmul.f32 %v7627, 0.01
        %v7755 = vmul.f32 %v7630, 0.01
        %v7756 = vmul.f32 %v7633, 0.01
        %v7757 = vmul.f32 %v7636, 0.01
        %v7758 = vmul.f32 %v7639, 0.01
        %v7759 = vmul.f32 %v7642, 0.01
        %v7760 = vmul.f32 %v7645, 0.01
        %v7761 = vmul.f32 %v7648, 0.01
        %v7762 = vmul.f32 %v7651, 0.01
        %v7763 = vmul.f32 %v7654, 0.01
        %v7764 = vmul.f32 %v7657, 0.01
        %v7765 = vmul.f32 %v7660, 0.01
        %v7766 = vmul.f32 %v7663, 0.01
        %v7767 = vmul.f32 %v7666, 0.01
        %v7768 = vmul.f32 %v7669, 0.01
        %v7769 = vmul.f32 %v7672, 0.01
        %v7770 = vmul.f32 %v7675, 0.01
        %v7771 = vmul.f32 %v7678, 0.01
        %v7772 = vmul.f32 %v7681, 0.01
        %v7773 = vmul.f32 %v7684, 0.01
        %v7774 = vmul.f32 %v7687, 0.01
        %v7775 = vmul.f32 %v7690, 0.01
        %v7776 = vmul.f32 %v7693, 0.01
        %v7777 = vmul.f32 %v7696, 0.01
        %v7778 = vmul.f32 %v7699, 0.01
        %v7779 = vmul.f32 %v7702, 0.01
        %v7780 = vmul.f32 %v7705, 0.01
        %v7781 = vmul.f32 %v7708, 0.01
        %v7782 = vmul.f32 %v7711, 0.01
        %v7783 = vmul.f32 %v7714, 0.01
        %v7784 = vmul.f32 %v7717, 0.01
        %v7785 = vmul.f32 %v7720, 0.01
        %v7786 = vsel %vm7722, %v7627, %v7754
        %v7787 = vsel %vm7723, %v7630, %v7755
        %v7788 = vsel %vm7724, %v7633, %v7756
        %v7789 = vsel %vm7725, %v7636, %v7757
        %v7790 = vsel %vm7726, %v7639, %v7758
        %v7791 = vsel %vm7727, %v7642, %v7759
        %v7792 = vsel %vm7728, %v7645, %v7760
        %v7793 = vsel %vm7729, %v7648, %v7761
        %v7794 = vsel %vm7730, %v7651, %v7762
        %v7795 = vsel %vm7731, %v7654, %v7763
        %v7796 = vsel %vm7732, %v7657, %v7764
        %v7797 = vsel %vm7733, %v7660, %v7765
        %v7798 = vsel %vm7734, %v7663, %v7766
        %v7799 = vsel %vm7735, %v7666, %v7767
        %v7800 = vsel %vm7736, %v7669, %v7768
        %v7801 = vsel %vm7737, %v7672, %v7769
        %v7802 = vsel %vm7738, %v7675, %v7770
        %v7803 = vsel %vm7739, %v7678, %v7771
        %v7804 = vsel %vm7740, %v7681, %v7772
        %v7805 = vsel %vm7741, %v7684, %v7773
        %v7806 = vsel %vm7742, %v7687, %v7774
        %v7807 = vsel %vm7743, %v7690, %v7775
        %v7808 = vsel %vm7744, %v7693, %v7776
        %v7809 = vsel %vm7745, %v7696, %v7777
        %v7810 = vsel %vm7746, %v7699, %v7778
        %v7811 = vsel %vm7747, %v7702, %v7779
        %v7812 = vsel %vm7748, %v7705, %v7780
        %v7813 = vsel %vm7749, %v7708, %v7781
        %v7814 = vsel %vm7750, %v7711, %v7782
        %v7815 = vsel %vm7751, %v7714, %v7783
        %v7816 = vsel %vm7752, %v7717, %v7784
        %v7817 = vsel %vm7753, %v7720, %v7785
        %7818 = vst.msk [vmem:[%s4260 + $0x1] sm:$0xff] %vm389, %v7786
        %7819 = vst.msk [vmem:[%s4260 + $0x9] sm:$0xff] %vm389, %v7787
        %7820 = vst.msk [vmem:[%s4260 + $0x19] sm:$0xff] %vm389, %v7788
        %7821 = vst.msk [vmem:[%s4260 + $0x21] sm:$0xff] %vm389, %v7789
        %7822 = vst.msk [vmem:[%s4260 + $0x31] sm:$0xff] %vm389, %v7790
        %7823 = vst.msk [vmem:[%s4260 + $0x39] sm:$0xff] %vm389, %v7791
        %7824 = vst.msk [vmem:[%s4260 + $0x49] sm:$0xff] %vm389, %v7792
        %7825 = vst.msk [vmem:[%s4260 + $0x51] sm:$0xff] %vm389, %v7793
        %7826 = vst.msk [vmem:[%s4260 + $0x61] sm:$0xff] %vm389, %v7794
        %7827 = vst.msk [vmem:[%s4260 + $0x69] sm:$0xff] %vm389, %v7795
        %7828 = vst.msk [vmem:[%s4260 + $0x79] sm:$0xff] %vm389, %v7796
        %7829 = vst.msk [vmem:[%s4260 + $0x81] sm:$0xff] %vm389, %v7797
        %7830 = vst.msk [vmem:[%s4260 + $0x91] sm:$0xff] %vm389, %v7798
        %7831 = vst.msk [vmem:[%s4260 + $0x99] sm:$0xff] %vm389, %v7799
        %7832 = vst.msk [vmem:[%s4260 + $0xa9] sm:$0xff] %vm389, %v7800
        %7833 = vst.msk [vmem:[%s4260 + $0xb1] sm:$0xff] %vm389, %v7801
        %7834 = vst.msk [vmem:[%s4260 + $0xc1] sm:$0xff] %vm389, %v7802
        %7835 = vst.msk [vmem:[%s4260 + $0xc9] sm:$0xff] %vm389, %v7803
        %7836 = vst.msk [vmem:[%s4260 + $0xd9] sm:$0xff] %vm389, %v7804
        %7837 = vst.msk [vmem:[%s4260 + $0xe1] sm:$0xff] %vm389, %v7805
        %7838 = vst.msk [vmem:[%s4260 + $0xf1] sm:$0xff] %vm389, %v7806
        %7839 = vst.msk [vmem:[%s4260 + $0xf9] sm:$0xff] %vm389, %v7807
        %7840 = vst.msk [vmem:[%s4260 + $0x109] sm:$0xff] %vm389, %v7808
        %7841 = vst.msk [vmem:[%s4260 + $0x111] sm:$0xff] %vm389, %v7809
        %7842 = vst.msk [vmem:[%s4260 + $0x121] sm:$0xff] %vm389, %v7810
        %7843 = vst.msk [vmem:[%s4260 + $0x129] sm:$0xff] %vm389, %v7811
        %7844 = vst.msk [vmem:[%s4260 + $0x139] sm:$0xff] %vm389, %v7812
        %7845 = vst.msk [vmem:[%s4260 + $0x141] sm:$0xff] %vm389, %v7813
        %7846 = vst.msk [vmem:[%s4260 + $0x151] sm:$0xff] %vm389, %v7814
        %7847 = vst.msk [vmem:[%s4260 + $0x159] sm:$0xff] %vm389, %v7815
        %7848 = vst.msk [vmem:[%s4260 + $0x169] sm:$0xff] %vm389, %v7816
        %7849 = vst.msk [vmem:[%s4260 + $0x171] sm:$0xff] %vm389, %v7817
        %s7850 = scalar_lea.vmem %s5, 576
        %v7851 = vld [vmem:[%s7850] sm:$0xff]
        %v7852 = vld [vmem:[%s7850 + $0x8] sm:$0xff]
        %v7853 = vld [vmem:[%s7850 + $0x10] sm:$0xff]
        %v7854 = vld [vmem:[%s7850 + $0x18] sm:$0xff]
        %v7855 = vld [vmem:[%s7850 + $0x20] sm:$0xff]
        %v7856 = vld [vmem:[%s7850 + $0x28] sm:$0xff]
        %v7857 = vld [vmem:[%s7850 + $0x30] sm:$0xff]
        %v7858 = vld [vmem:[%s7850 + $0x38] sm:$0xff]
        %v7859 = vld [vmem:[%s7850 + $0x40] sm:$0xff]
        %v7860 = vld [vmem:[%s7850 + $0x48] sm:$0xff]
        %v7861 = vld [vmem:[%s7850 + $0x50] sm:$0xff]
        %v7862 = vld [vmem:[%s7850 + $0x58] sm:$0xff]
        %v7863 = vld [vmem:[%s7850 + $0x60] sm:$0xff]
        %v7864 = vld [vmem:[%s7850 + $0x68] sm:$0xff]
        %v7865 = vld [vmem:[%s7850 + $0x70] sm:$0xff]
        %v7866 = vld [vmem:[%s7850 + $0x78] sm:$0xff]
        %v7867 = vld [vmem:[%s7850 + $0x80] sm:$0xff]
        %v7868 = vld [vmem:[%s7850 + $0x88] sm:$0xff]
        %v7869 = vld [vmem:[%s7850 + $0x90] sm:$0xff]
        %v7870 = vld [vmem:[%s7850 + $0x98] sm:$0xff]
        %v7871 = vld [vmem:[%s7850 + $0xa0] sm:$0xff]
        %v7872 = vld [vmem:[%s7850 + $0xa8] sm:$0xff]
        %v7873 = vld [vmem:[%s7850 + $0xb0] sm:$0xff]
        %v7874 = vld [vmem:[%s7850 + $0xb8] sm:$0xff]
        %v7875 = vld [vmem:[%s7850 + $0xc0] sm:$0xff]
        %v7876 = vld [vmem:[%s7850 + $0xc8] sm:$0xff]
        %v7877 = vld [vmem:[%s7850 + $0xd0] sm:$0xff]
        %v7878 = vld [vmem:[%s7850 + $0xd8] sm:$0xff]
        %v7879 = vld [vmem:[%s7850 + $0xe0] sm:$0xff]
        %v7880 = vld [vmem:[%s7850 + $0xe8] sm:$0xff]
        %v7881 = vld [vmem:[%s7850 + $0xf0] sm:$0xff]
        %v7882 = vld [vmem:[%s7850 + $0xf8] sm:$0xff]
        %v7883 = vld [vmem:[%s7850 + $0x100] sm:$0xff]
        %v7884 = vld [vmem:[%s7850 + $0x108] sm:$0xff]
        %v7885 = vld [vmem:[%s7850 + $0x110] sm:$0xff]
        %v7886 = vld [vmem:[%s7850 + $0x118] sm:$0xff]
        %v7887 = vld [vmem:[%s7850 + $0x120] sm:$0xff]
        %v7888 = vld [vmem:[%s7850 + $0x128] sm:$0xff]
        %v7889 = vld [vmem:[%s7850 + $0x130] sm:$0xff]
        %v7890 = vld [vmem:[%s7850 + $0x138] sm:$0xff]
        %v7891 = vld [vmem:[%s7850 + $0x140] sm:$0xff]
        %v7892 = vld [vmem:[%s7850 + $0x148] sm:$0xff]
        %v7893 = vld [vmem:[%s7850 + $0x150] sm:$0xff]
        %v7894 = vld [vmem:[%s7850 + $0x158] sm:$0xff]
        %v7895 = vld [vmem:[%s7850 + $0x160] sm:$0xff]
        %v7896 = vld [vmem:[%s7850 + $0x168] sm:$0xff]
        %v7897 = vld [vmem:[%s7850 + $0x170] sm:$0xff]
        %v7898 = vld [vmem:[%s7850 + $0x178] sm:$0xff]
        %v7899 = vld [vmem:[%s7850 + $0x180] sm:$0xff]
        %v7900 = vld [vmem:[%s7850 + $0x188] sm:$0xff]
        %v7901 = vld [vmem:[%s7850 + $0x190] sm:$0xff]
        %v7902 = vld [vmem:[%s7850 + $0x198] sm:$0xff]
        %v7903 = vld [vmem:[%s7850 + $0x1a0] sm:$0xff]
        %v7904 = vld [vmem:[%s7850 + $0x1a8] sm:$0xff]
        %v7905 = vld [vmem:[%s7850 + $0x1b0] sm:$0xff]
        %v7906 = vld [vmem:[%s7850 + $0x1b8] sm:$0xff]
        %v7907 = vld [vmem:[%s7850 + $0x1c0] sm:$0xff]
        %v7908 = vld [vmem:[%s7850 + $0x1c8] sm:$0xff]
        %v7909 = vld [vmem:[%s7850 + $0x1d0] sm:$0xff]
        %v7910 = vld [vmem:[%s7850 + $0x1d8] sm:$0xff]
        %v7911 = vld [vmem:[%s7850 + $0x1e0] sm:$0xff]
        %v7912 = vld [vmem:[%s7850 + $0x1e8] sm:$0xff]
        %v7913 = vld [vmem:[%s7850 + $0x1f0] sm:$0xff]
        %v7914 = vld [vmem:[%s7850 + $0x1f8] sm:$0xff]
        %v7915 = vld [vmem:[%s7850 + $0x200] sm:$0xff]
        %v7916 = vld [vmem:[%s7850 + $0x208] sm:$0xff]
        %v7917 = vld [vmem:[%s7850 + $0x210] sm:$0xff]
        %v7918 = vld [vmem:[%s7850 + $0x218] sm:$0xff]
        %v7919 = vld [vmem:[%s7850 + $0x220] sm:$0xff]
        %v7920 = vld [vmem:[%s7850 + $0x228] sm:$0xff]
        %v7921 = vld [vmem:[%s7850 + $0x230] sm:$0xff]
        %v7922 = vld [vmem:[%s7850 + $0x238] sm:$0xff]
        %s7923 = scalar_lea.vmem %s6, 1
        %v7924 = vld [vmem:[%s7923] sm:$0x1]
        %v7925 = vld [vmem:[#allocation4] sm:$0xff]
        %v7926 = vld [vmem:[#allocation4 + $0x8] sm:$0xff]
        %v7927 = vld [vmem:[#allocation4 + $0x18] sm:$0xff]
        %v7928 = vld [vmem:[#allocation4 + $0x20] sm:$0xff]
        %v7929 = vld [vmem:[#allocation4 + $0x30] sm:$0xff]
        %v7930 = vld [vmem:[#allocation4 + $0x38] sm:$0xff]
        %v7931 = vld [vmem:[#allocation4 + $0x48] sm:$0xff]
        %v7932 = vld [vmem:[#allocation4 + $0x50] sm:$0xff]
        %v7933 = vld [vmem:[#allocation4 + $0x60] sm:$0xff]
        %v7934 = vld [vmem:[#allocation4 + $0x68] sm:$0xff]
        %v7935 = vld [vmem:[#allocation4 + $0x78] sm:$0xff]
        %v7936 = vld [vmem:[#allocation4 + $0x80] sm:$0xff]
        %v7937 = vld [vmem:[#allocation4 + $0x90] sm:$0xff]
        %v7938 = vld [vmem:[#allocation4 + $0x98] sm:$0xff]
        %v7939 = vld [vmem:[#allocation4 + $0xa8] sm:$0xff]
        %v7940 = vld [vmem:[#allocation4 + $0xb0] sm:$0xff]
        %v7941 = vld [vmem:[#allocation4 + $0xc0] sm:$0xff]
        %v7942 = vld [vmem:[#allocation4 + $0xc8] sm:$0xff]
        %v7943 = vld [vmem:[#allocation4 + $0xd8] sm:$0xff]
        %v7944 = vld [vmem:[#allocation4 + $0xe0] sm:$0xff]
        %v7945 = vld [vmem:[#allocation4 + $0xf0] sm:$0xff]
        %v7946 = vld [vmem:[#allocation4 + $0xf8] sm:$0xff]
        %v7947 = vld [vmem:[#allocation4 + $0x108] sm:$0xff]
        %v7948 = vld [vmem:[#allocation4 + $0x110] sm:$0xff]
        %v7949 = vld [vmem:[#allocation4 + $0x120] sm:$0xff]
        %v7950 = vld [vmem:[#allocation4 + $0x128] sm:$0xff]
        %v7951 = vld [vmem:[#allocation4 + $0x138] sm:$0xff]
        %v7952 = vld [vmem:[#allocation4 + $0x140] sm:$0xff]
        %v7953 = vld [vmem:[#allocation4 + $0x150] sm:$0xff]
        %v7954 = vld [vmem:[#allocation4 + $0x158] sm:$0xff]
        %v7955 = vld [vmem:[#allocation4 + $0x168] sm:$0xff]
        %v7956 = vld [vmem:[#allocation4 + $0x170] sm:$0xff]
        %v7957 = vld [vmem:[#allocation4 + $0x1] sm:$0xff]
        %v7958 = vld [vmem:[#allocation4 + $0x9] sm:$0xff]
        %v7959 = vld [vmem:[#allocation4 + $0x19] sm:$0xff]
        %v7960 = vld [vmem:[#allocation4 + $0x21] sm:$0xff]
        %v7961 = vld [vmem:[#allocation4 + $0x31] sm:$0xff]
        %v7962 = vld [vmem:[#allocation4 + $0x39] sm:$0xff]
        %v7963 = vld [vmem:[#allocation4 + $0x49] sm:$0xff]
        %v7964 = vld [vmem:[#allocation4 + $0x51] sm:$0xff]
        %v7965 = vld [vmem:[#allocation4 + $0x61] sm:$0xff]
        %v7966 = vld [vmem:[#allocation4 + $0x69] sm:$0xff]
        %v7967 = vld [vmem:[#allocation4 + $0x79] sm:$0xff]
        %v7968 = vld [vmem:[#allocation4 + $0x81] sm:$0xff]
        %v7969 = vld [vmem:[#allocation4 + $0x91] sm:$0xff]
        %v7970 = vld [vmem:[#allocation4 + $0x99] sm:$0xff]
        %v7971 = vld [vmem:[#allocation4 + $0xa9] sm:$0xff]
        %v7972 = vld [vmem:[#allocation4 + $0xb1] sm:$0xff]
        %v7973 = vld [vmem:[#allocation4 + $0xc1] sm:$0xff]
        %v7974 = vld [vmem:[#allocation4 + $0xc9] sm:$0xff]
        %v7975 = vld [vmem:[#allocation4 + $0xd9] sm:$0xff]
        %v7976 = vld [vmem:[#allocation4 + $0xe1] sm:$0xff]
        %v7977 = vld [vmem:[#allocation4 + $0xf1] sm:$0xff]
        %v7978 = vld [vmem:[#allocation4 + $0xf9] sm:$0xff]
        %v7979 = vld [vmem:[#allocation4 + $0x109] sm:$0xff]
        %v7980 = vld [vmem:[#allocation4 + $0x111] sm:$0xff]
        %v7981 = vld [vmem:[#allocation4 + $0x121] sm:$0xff]
        %v7982 = vld [vmem:[#allocation4 + $0x129] sm:$0xff]
        %v7983 = vld [vmem:[#allocation4 + $0x139] sm:$0xff]
        %v7984 = vld [vmem:[#allocation4 + $0x141] sm:$0xff]
        %v7985 = vld [vmem:[#allocation4 + $0x151] sm:$0xff]
        %v7986 = vld [vmem:[#allocation4 + $0x159] sm:$0xff]
        %v7987 = vld [vmem:[#allocation4 + $0x169] sm:$0xff]
        %v7988 = vld [vmem:[#allocation4 + $0x171] sm:$0xff]
        %v7989 = vld [vmem:[#allocation4 + $0x2] sm:$0xff]
        %v7990 = vld [vmem:[#allocation4 + $0xa] sm:$0xff]
        %v7991 = vld [vmem:[#allocation4 + $0x1a] sm:$0xff]
        %v7992 = vld [vmem:[#allocation4 + $0x22] sm:$0xff]
        %v7993 = vld [vmem:[#allocation4 + $0x32] sm:$0xff]
        %v7994 = vld [vmem:[#allocation4 + $0x3a] sm:$0xff]
        %v7995 = vld [vmem:[#allocation4 + $0x4a] sm:$0xff]
        %v7996 = vld [vmem:[#allocation4 + $0x52] sm:$0xff]
        %v7997 = vld [vmem:[#allocation4 + $0x62] sm:$0xff]
        %v7998 = vld [vmem:[#allocation4 + $0x6a] sm:$0xff]
        %v7999 = vld [vmem:[#allocation4 + $0x7a] sm:$0xff]
        %v8000 = vld [vmem:[#allocation4 + $0x82] sm:$0xff]
        %v8001 = vld [vmem:[#allocation4 + $0x92] sm:$0xff]
        %v8002 = vld [vmem:[#allocation4 + $0x9a] sm:$0xff]
        %v8003 = vld [vmem:[#allocation4 + $0xaa] sm:$0xff]
        %v8004 = vld [vmem:[#allocation4 + $0xb2] sm:$0xff]
        %v8005 = vld [vmem:[#allocation4 + $0xc2] sm:$0xff]
        %v8006 = vld [vmem:[#allocation4 + $0xca] sm:$0xff]
        %v8007 = vld [vmem:[#allocation4 + $0xda] sm:$0xff]
        %v8008 = vld [vmem:[#allocation4 + $0xe2] sm:$0xff]
        %v8009 = vld [vmem:[#allocation4 + $0xf2] sm:$0xff]
        %v8010 = vld [vmem:[#allocation4 + $0xfa] sm:$0xff]
        %v8011 = vld [vmem:[#allocation4 + $0x10a] sm:$0xff]
        %v8012 = vld [vmem:[#allocation4 + $0x112] sm:$0xff]
        %v8013 = vld [vmem:[#allocation4 + $0x122] sm:$0xff]
        %v8014 = vld [vmem:[#allocation4 + $0x12a] sm:$0xff]
        %v8015 = vld [vmem:[#allocation4 + $0x13a] sm:$0xff]
        %v8016 = vld [vmem:[#allocation4 + $0x142] sm:$0xff]
        %v8017 = vld [vmem:[#allocation4 + $0x152] sm:$0xff]
        %v8018 = vld [vmem:[#allocation4 + $0x15a] sm:$0xff]
        %v8019 = vld [vmem:[#allocation4 + $0x16a] sm:$0xff]
        %v8020 = vld [vmem:[#allocation4 + $0x172] sm:$0xff]
        %v8021 = vld [vmem:[%s4260] sm:$0xff]
        %v8022 = vld [vmem:[%s4260 + $0x8] sm:$0xff]
        %v8023 = vld [vmem:[%s4260 + $0x18] sm:$0xff]
        %v8024 = vld [vmem:[%s4260 + $0x20] sm:$0xff]
        %v8025 = vld [vmem:[%s4260 + $0x30] sm:$0xff]
        %v8026 = vld [vmem:[%s4260 + $0x38] sm:$0xff]
        %v8027 = vld [vmem:[%s4260 + $0x48] sm:$0xff]
        %v8028 = vld [vmem:[%s4260 + $0x50] sm:$0xff]
        %v8029 = vld [vmem:[%s4260 + $0x60] sm:$0xff]
        %v8030 = vld [vmem:[%s4260 + $0x68] sm:$0xff]
        %v8031 = vld [vmem:[%s4260 + $0x78] sm:$0xff]
        %v8032 = vld [vmem:[%s4260 + $0x80] sm:$0xff]
        %v8033 = vld [vmem:[%s4260 + $0x90] sm:$0xff]
        %v8034 = vld [vmem:[%s4260 + $0x98] sm:$0xff]
        %v8035 = vld [vmem:[%s4260 + $0xa8] sm:$0xff]
        %v8036 = vld [vmem:[%s4260 + $0xb0] sm:$0xff]
        %v8037 = vld [vmem:[%s4260 + $0xc0] sm:$0xff]
        %v8038 = vld [vmem:[%s4260 + $0xc8] sm:$0xff]
        %v8039 = vld [vmem:[%s4260 + $0xd8] sm:$0xff]
        %v8040 = vld [vmem:[%s4260 + $0xe0] sm:$0xff]
        %v8041 = vld [vmem:[%s4260 + $0xf0] sm:$0xff]
        %v8042 = vld [vmem:[%s4260 + $0xf8] sm:$0xff]
        %v8043 = vld [vmem:[%s4260 + $0x108] sm:$0xff]
        %v8044 = vld [vmem:[%s4260 + $0x110] sm:$0xff]
        %v8045 = vld [vmem:[%s4260 + $0x120] sm:$0xff]
        %v8046 = vld [vmem:[%s4260 + $0x128] sm:$0xff]
        %v8047 = vld [vmem:[%s4260 + $0x138] sm:$0xff]
        %v8048 = vld [vmem:[%s4260 + $0x140] sm:$0xff]
        %v8049 = vld [vmem:[%s4260 + $0x150] sm:$0xff]
        %v8050 = vld [vmem:[%s4260 + $0x158] sm:$0xff]
        %v8051 = vld [vmem:[%s4260 + $0x168] sm:$0xff]
        %v8052 = vld [vmem:[%s4260 + $0x170] sm:$0xff]
        %v8053 = vld [vmem:[%s4260 + $0x1] sm:$0xff]
        %v8054 = vld [vmem:[%s4260 + $0x9] sm:$0xff]
        %v8055 = vld [vmem:[%s4260 + $0x19] sm:$0xff]
        %v8056 = vld [vmem:[%s4260 + $0x21] sm:$0xff]
        %v8057 = vld [vmem:[%s4260 + $0x31] sm:$0xff]
        %v8058 = vld [vmem:[%s4260 + $0x39] sm:$0xff]
        %v8059 = vld [vmem:[%s4260 + $0x49] sm:$0xff]
        %v8060 = vld [vmem:[%s4260 + $0x51] sm:$0xff]
        %v8061 = vld [vmem:[%s4260 + $0x61] sm:$0xff]
        %v8062 = vld [vmem:[%s4260 + $0x69] sm:$0xff]
        %v8063 = vld [vmem:[%s4260 + $0x79] sm:$0xff]
        %v8064 = vld [vmem:[%s4260 + $0x81] sm:$0xff]
        %v8065 = vld [vmem:[%s4260 + $0x91] sm:$0xff]
        %v8066 = vld [vmem:[%s4260 + $0x99] sm:$0xff]
        %v8067 = vld [vmem:[%s4260 + $0xa9] sm:$0xff]
        %v8068 = vld [vmem:[%s4260 + $0xb1] sm:$0xff]
        %v8069 = vld [vmem:[%s4260 + $0xc1] sm:$0xff]
        %v8070 = vld [vmem:[%s4260 + $0xc9] sm:$0xff]
        %v8071 = vld [vmem:[%s4260 + $0xd9] sm:$0xff]
        %v8072 = vld [vmem:[%s4260 + $0xe1] sm:$0xff]
        %v8073 = vld [vmem:[%s4260 + $0xf1] sm:$0xff]
        %v8074 = vld [vmem:[%s4260 + $0xf9] sm:$0xff]
        %v8075 = vld [vmem:[%s4260 + $0x109] sm:$0xff]
        %v8076 = vld [vmem:[%s4260 + $0x111] sm:$0xff]
        %v8077 = vld [vmem:[%s4260 + $0x121] sm:$0xff]
        %v8078 = vld [vmem:[%s4260 + $0x129] sm:$0xff]
        %v8079 = vld [vmem:[%s4260 + $0x139] sm:$0xff]
        %v8080 = vld [vmem:[%s4260 + $0x141] sm:$0xff]
        %v8081 = vld [vmem:[%s4260 + $0x151] sm:$0xff]
        %v8082 = vld [vmem:[%s4260 + $0x159] sm:$0xff]
        %v8083 = vld [vmem:[%s4260 + $0x169] sm:$0xff]
        %v8084 = vld [vmem:[%s4260 + $0x171] sm:$0xff]
        %v8085 = vld [vmem:[%s4260 + $0x2] sm:$0xff]
        %v8086 = vld [vmem:[%s4260 + $0xa] sm:$0xff]
        %v8087 = vld [vmem:[%s4260 + $0x1a] sm:$0xff]
        %v8088 = vld [vmem:[%s4260 + $0x22] sm:$0xff]
        %v8089 = vld [vmem:[%s4260 + $0x32] sm:$0xff]
        %v8090 = vld [vmem:[%s4260 + $0x3a] sm:$0xff]
        %v8091 = vld [vmem:[%s4260 + $0x4a] sm:$0xff]
        %v8092 = vld [vmem:[%s4260 + $0x52] sm:$0xff]
        %v8093 = vld [vmem:[%s4260 + $0x62] sm:$0xff]
        %v8094 = vld [vmem:[%s4260 + $0x6a] sm:$0xff]
        %v8095 = vld [vmem:[%s4260 + $0x7a] sm:$0xff]
        %v8096 = vld [vmem:[%s4260 + $0x82] sm:$0xff]
        %v8097 = vld [vmem:[%s4260 + $0x92] sm:$0xff]
        %v8098 = vld [vmem:[%s4260 + $0x9a] sm:$0xff]
        %v8099 = vld [vmem:[%s4260 + $0xaa] sm:$0xff]
        %v8100 = vld [vmem:[%s4260 + $0xb2] sm:$0xff]
        %v8101 = vld [vmem:[%s4260 + $0xc2] sm:$0xff]
        %v8102 = vld [vmem:[%s4260 + $0xca] sm:$0xff]
        %v8103 = vld [vmem:[%s4260 + $0xda] sm:$0xff]
        %v8104 = vld [vmem:[%s4260 + $0xe2] sm:$0xff]
        %v8105 = vld [vmem:[%s4260 + $0xf2] sm:$0xff]
        %v8106 = vld [vmem:[%s4260 + $0xfa] sm:$0xff]
        %v8107 = vld [vmem:[%s4260 + $0x10a] sm:$0xff]
        %v8108 = vld [vmem:[%s4260 + $0x112] sm:$0xff]
        %v8109 = vld [vmem:[%s4260 + $0x122] sm:$0xff]
        %v8110 = vld [vmem:[%s4260 + $0x12a] sm:$0xff]
        %v8111 = vld [vmem:[%s4260 + $0x13a] sm:$0xff]
        %v8112 = vld [vmem:[%s4260 + $0x142] sm:$0xff]
        %v8113 = vld [vmem:[%s4260 + $0x152] sm:$0xff]
        %v8114 = vld [vmem:[%s4260 + $0x15a] sm:$0xff]
        %v8115 = vld [vmem:[%s4260 + $0x16a] sm:$0xff]
        %v8116 = vld [vmem:[%s4260 + $0x172] sm:$0xff]
        %v8117 = vld [vmem:[%s4558] sm:$0xff]
        %v8118 = vld [vmem:[%s4558 + $0x8] sm:$0xff]
        %v8119 = vld [vmem:[%s4558 + $0x18] sm:$0xff]
        %v8120 = vld [vmem:[%s4558 + $0x20] sm:$0xff]
        %v8121 = vld [vmem:[%s4558 + $0x30] sm:$0xff]
        %v8122 = vld [vmem:[%s4558 + $0x38] sm:$0xff]
        %v8123 = vld [vmem:[%s4558 + $0x48] sm:$0xff]
        %v8124 = vld [vmem:[%s4558 + $0x50] sm:$0xff]
        %v8125 = vld [vmem:[%s4558 + $0x60] sm:$0xff]
        %v8126 = vld [vmem:[%s4558 + $0x68] sm:$0xff]
        %v8127 = vld [vmem:[%s4558 + $0x78] sm:$0xff]
        %v8128 = vld [vmem:[%s4558 + $0x80] sm:$0xff]
        %v8129 = vld [vmem:[%s4558 + $0x90] sm:$0xff]
        %v8130 = vld [vmem:[%s4558 + $0x98] sm:$0xff]
        %v8131 = vld [vmem:[%s4558 + $0xa8] sm:$0xff]
        %v8132 = vld [vmem:[%s4558 + $0xb0] sm:$0xff]
        %v8133 = vld [vmem:[%s4558 + $0xc0] sm:$0xff]
        %v8134 = vld [vmem:[%s4558 + $0xc8] sm:$0xff]
        %v8135 = vld [vmem:[%s4558 + $0xd8] sm:$0xff]
        %v8136 = vld [vmem:[%s4558 + $0xe0] sm:$0xff]
        %v8137 = vld [vmem:[%s4558 + $0xf0] sm:$0xff]
        %v8138 = vld [vmem:[%s4558 + $0xf8] sm:$0xff]
        %v8139 = vld [vmem:[%s4558 + $0x108] sm:$0xff]
        %v8140 = vld [vmem:[%s4558 + $0x110] sm:$0xff]
        %v8141 = vld [vmem:[%s4558 + $0x120] sm:$0xff]
        %v8142 = vld [vmem:[%s4558 + $0x128] sm:$0xff]
        %v8143 = vld [vmem:[%s4558 + $0x138] sm:$0xff]
        %v8144 = vld [vmem:[%s4558 + $0x140] sm:$0xff]
        %v8145 = vld [vmem:[%s4558 + $0x150] sm:$0xff]
        %v8146 = vld [vmem:[%s4558 + $0x158] sm:$0xff]
        %v8147 = vld [vmem:[%s4558 + $0x168] sm:$0xff]
        %v8148 = vld [vmem:[%s4558 + $0x170] sm:$0xff]
        %v8149 = vld [vmem:[%s4558 + $0x1] sm:$0xff]
        %v8150 = vld [vmem:[%s4558 + $0x9] sm:$0xff]
        %v8151 = vld [vmem:[%s4558 + $0x19] sm:$0xff]
        %v8152 = vld [vmem:[%s4558 + $0x21] sm:$0xff]
        %v8153 = vld [vmem:[%s4558 + $0x31] sm:$0xff]
        %v8154 = vld [vmem:[%s4558 + $0x39] sm:$0xff]
        %v8155 = vld [vmem:[%s4558 + $0x49] sm:$0xff]
        %v8156 = vld [vmem:[%s4558 + $0x51] sm:$0xff]
        %v8157 = vld [vmem:[%s4558 + $0x61] sm:$0xff]
        %v8158 = vld [vmem:[%s4558 + $0x69] sm:$0xff]
        %v8159 = vld [vmem:[%s4558 + $0x79] sm:$0xff]
        %v8160 = vld [vmem:[%s4558 + $0x81] sm:$0xff]
        %v8161 = vld [vmem:[%s4558 + $0x91] sm:$0xff]
        %v8162 = vld [vmem:[%s4558 + $0x99] sm:$0xff]
        %v8163 = vld [vmem:[%s4558 + $0xa9] sm:$0xff]
        %v8164 = vld [vmem:[%s4558 + $0xb1] sm:$0xff]
        %v8165 = vld [vmem:[%s4558 + $0xc1] sm:$0xff]
        %v8166 = vld [vmem:[%s4558 + $0xc9] sm:$0xff]
        %v8167 = vld [vmem:[%s4558 + $0xd9] sm:$0xff]
        %v8168 = vld [vmem:[%s4558 + $0xe1] sm:$0xff]
        %v8169 = vld [vmem:[%s4558 + $0xf1] sm:$0xff]
        %v8170 = vld [vmem:[%s4558 + $0xf9] sm:$0xff]
        %v8171 = vld [vmem:[%s4558 + $0x109] sm:$0xff]
        %v8172 = vld [vmem:[%s4558 + $0x111] sm:$0xff]
        %v8173 = vld [vmem:[%s4558 + $0x121] sm:$0xff]
        %v8174 = vld [vmem:[%s4558 + $0x129] sm:$0xff]
        %v8175 = vld [vmem:[%s4558 + $0x139] sm:$0xff]
        %v8176 = vld [vmem:[%s4558 + $0x141] sm:$0xff]
        %v8177 = vld [vmem:[%s4558 + $0x151] sm:$0xff]
        %v8178 = vld [vmem:[%s4558 + $0x159] sm:$0xff]
        %v8179 = vld [vmem:[%s4558 + $0x169] sm:$0xff]
        %v8180 = vld [vmem:[%s4558 + $0x171] sm:$0xff]
        %v8181 = vld [vmem:[%s4558 + $0x2] sm:$0xff]
        %v8182 = vld [vmem:[%s4558 + $0xa] sm:$0xff]
        %v8183 = vld [vmem:[%s4558 + $0x1a] sm:$0xff]
        %v8184 = vld [vmem:[%s4558 + $0x22] sm:$0xff]
        %v8185 = vld [vmem:[%s4558 + $0x32] sm:$0xff]
        %v8186 = vld [vmem:[%s4558 + $0x3a] sm:$0xff]
        %v8187 = vld [vmem:[%s4558 + $0x4a] sm:$0xff]
        %v8188 = vld [vmem:[%s4558 + $0x52] sm:$0xff]
        %v8189 = vld [vmem:[%s4558 + $0x62] sm:$0xff]
        %v8190 = vld [vmem:[%s4558 + $0x6a] sm:$0xff]
        %v8191 = vld [vmem:[%s4558 + $0x7a] sm:$0xff]
        %v8192 = vld [vmem:[%s4558 + $0x82] sm:$0xff]
        %v8193 = vld [vmem:[%s4558 + $0x92] sm:$0xff]
        %v8194 = vld [vmem:[%s4558 + $0x9a] sm:$0xff]
        %v8195 = vld [vmem:[%s4558 + $0xaa] sm:$0xff]
        %v8196 = vld [vmem:[%s4558 + $0xb2] sm:$0xff]
        %v8197 = vld [vmem:[%s4558 + $0xc2] sm:$0xff]
        %v8198 = vld [vmem:[%s4558 + $0xca] sm:$0xff]
        %v8199 = vld [vmem:[%s4558 + $0xda] sm:$0xff]
        %v8200 = vld [vmem:[%s4558 + $0xe2] sm:$0xff]
        %v8201 = vld [vmem:[%s4558 + $0xf2] sm:$0xff]
        %v8202 = vld [vmem:[%s4558 + $0xfa] sm:$0xff]
        %v8203 = vld [vmem:[%s4558 + $0x10a] sm:$0xff]
        %v8204 = vld [vmem:[%s4558 + $0x112] sm:$0xff]
        %v8205 = vld [vmem:[%s4558 + $0x122] sm:$0xff]
        %v8206 = vld [vmem:[%s4558 + $0x12a] sm:$0xff]
        %v8207 = vld [vmem:[%s4558 + $0x13a] sm:$0xff]
        %v8208 = vld [vmem:[%s4558 + $0x142] sm:$0xff]
        %v8209 = vld [vmem:[%s4558 + $0x152] sm:$0xff]
        %v8210 = vld [vmem:[%s4558 + $0x15a] sm:$0xff]
        %v8211 = vld [vmem:[%s4558 + $0x16a] sm:$0xff]
        %v8212 = vld [vmem:[%s4558 + $0x172] sm:$0xff]
        %8245 = vrot.lane.b32.xlu0 %v7957, 64
        %v8246 = vpop.permute.xlu0 %8245
        %8247 = vrot.lane.b32.xlu0 %v7958, 64
        %v8248 = vpop.permute.xlu0 %8247
        %8249 = vrot.lane.b32.xlu0 %v7959, 64
        %v8250 = vpop.permute.xlu0 %8249
        %8251 = vrot.lane.b32.xlu0 %v7960, 64
        %v8252 = vpop.permute.xlu0 %8251
        %8253 = vrot.lane.b32.xlu0 %v7961, 64
        %v8254 = vpop.permute.xlu0 %8253
        %8255 = vrot.lane.b32.xlu0 %v7962, 64
        %v8256 = vpop.permute.xlu0 %8255
        %8257 = vrot.lane.b32.xlu0 %v7963, 64
        %v8258 = vpop.permute.xlu0 %8257
        %8259 = vrot.lane.b32.xlu0 %v7964, 64
        %v8260 = vpop.permute.xlu0 %8259
        %8261 = vrot.lane.b32.xlu0 %v7965, 64
        %v8262 = vpop.permute.xlu0 %8261
        %8263 = vrot.lane.b32.xlu0 %v7966, 64
        %v8264 = vpop.permute.xlu0 %8263
        %8265 = vrot.lane.b32.xlu0 %v7967, 64
        %v8266 = vpop.permute.xlu0 %8265
        %8267 = vrot.lane.b32.xlu0 %v7968, 64
        %v8268 = vpop.permute.xlu0 %8267
        %8269 = vrot.lane.b32.xlu0 %v7969, 64
        %v8270 = vpop.permute.xlu0 %8269
        %8271 = vrot.lane.b32.xlu0 %v7970, 64
        %v8272 = vpop.permute.xlu0 %8271
        %8273 = vrot.lane.b32.xlu0 %v7971, 64
        %v8274 = vpop.permute.xlu0 %8273
        %8275 = vrot.lane.b32.xlu0 %v7972, 64
        %v8276 = vpop.permute.xlu0 %8275
        %8277 = vrot.lane.b32.xlu0 %v7973, 64
        %v8278 = vpop.permute.xlu0 %8277
        %8279 = vrot.lane.b32.xlu0 %v7974, 64
        %v8280 = vpop.permute.xlu0 %8279
        %8281 = vrot.lane.b32.xlu0 %v7975, 64
        %v8282 = vpop.permute.xlu0 %8281
        %8283 = vrot.lane.b32.xlu0 %v7976, 64
        %v8284 = vpop.permute.xlu0 %8283
        %8285 = vrot.lane.b32.xlu0 %v7977, 64
        %v8286 = vpop.permute.xlu0 %8285
        %8287 = vrot.lane.b32.xlu0 %v7978, 64
        %v8288 = vpop.permute.xlu0 %8287
        %8289 = vrot.lane.b32.xlu0 %v7979, 64
        %v8290 = vpop.permute.xlu0 %8289
        %8291 = vrot.lane.b32.xlu0 %v7980, 64
        %v8292 = vpop.permute.xlu0 %8291
        %8293 = vrot.lane.b32.xlu0 %v7981, 64
        %v8294 = vpop.permute.xlu0 %8293
        %8295 = vrot.lane.b32.xlu0 %v7982, 64
        %v8296 = vpop.permute.xlu0 %8295
        %8297 = vrot.lane.b32.xlu0 %v7983, 64
        %v8298 = vpop.permute.xlu0 %8297
        %8299 = vrot.lane.b32.xlu0 %v7984, 64
        %v8300 = vpop.permute.xlu0 %8299
        %8301 = vrot.lane.b32.xlu0 %v7985, 64
        %v8302 = vpop.permute.xlu0 %8301
        %8303 = vrot.lane.b32.xlu0 %v7986, 64
        %v8304 = vpop.permute.xlu0 %8303
        %8305 = vrot.lane.b32.xlu0 %v7987, 64
        %v8306 = vpop.permute.xlu0 %8305
        %8307 = vrot.lane.b32.xlu0 %v7988, 64
        %v8308 = vpop.permute.xlu0 %8307
        %8373 = vrot.lane.b32.xlu0 %v8021, 64
        %v8374 = vpop.permute.xlu0 %8373
        %8375 = vrot.lane.b32.xlu0 %v8022, 64
        %v8376 = vpop.permute.xlu0 %8375
        %8377 = vrot.lane.b32.xlu0 %v8023, 64
        %v8378 = vpop.permute.xlu0 %8377
        %8379 = vrot.lane.b32.xlu0 %v8024, 64
        %v8380 = vpop.permute.xlu0 %8379
        %8381 = vrot.lane.b32.xlu0 %v8025, 64
        %v8382 = vpop.permute.xlu0 %8381
        %8383 = vrot.lane.b32.xlu0 %v8026, 64
        %v8384 = vpop.permute.xlu0 %8383
        %8385 = vrot.lane.b32.xlu0 %v8027, 64
        %v8386 = vpop.permute.xlu0 %8385
        %8387 = vrot.lane.b32.xlu0 %v8028, 64
        %v8388 = vpop.permute.xlu0 %8387
        %8389 = vrot.lane.b32.xlu0 %v8029, 64
        %v8390 = vpop.permute.xlu0 %8389
        %8391 = vrot.lane.b32.xlu0 %v8030, 64
        %v8392 = vpop.permute.xlu0 %8391
        %8393 = vrot.lane.b32.xlu0 %v8031, 64
        %v8394 = vpop.permute.xlu0 %8393
        %8395 = vrot.lane.b32.xlu0 %v8032, 64
        %v8396 = vpop.permute.xlu0 %8395
        %8397 = vrot.lane.b32.xlu0 %v8033, 64
        %v8398 = vpop.permute.xlu0 %8397
        %8399 = vrot.lane.b32.xlu0 %v8034, 64
        %v8400 = vpop.permute.xlu0 %8399
        %8401 = vrot.lane.b32.xlu0 %v8035, 64
        %v8402 = vpop.permute.xlu0 %8401
        %8403 = vrot.lane.b32.xlu0 %v8036, 64
        %v8404 = vpop.permute.xlu0 %8403
        %8405 = vrot.lane.b32.xlu0 %v8037, 64
        %v8406 = vpop.permute.xlu0 %8405
        %8407 = vrot.lane.b32.xlu0 %v8038, 64
        %v8408 = vpop.permute.xlu0 %8407
        %8409 = vrot.lane.b32.xlu0 %v8039, 64
        %v8410 = vpop.permute.xlu0 %8409
        %8411 = vrot.lane.b32.xlu0 %v8040, 64
        %v8412 = vpop.permute.xlu0 %8411
        %8413 = vrot.lane.b32.xlu0 %v8041, 64
        %v8414 = vpop.permute.xlu0 %8413
        %8415 = vrot.lane.b32.xlu0 %v8042, 64
        %v8416 = vpop.permute.xlu0 %8415
        %8417 = vrot.lane.b32.xlu0 %v8043, 64
        %v8418 = vpop.permute.xlu0 %8417
        %8419 = vrot.lane.b32.xlu0 %v8044, 64
        %v8420 = vpop.permute.xlu0 %8419
        %8421 = vrot.lane.b32.xlu0 %v8045, 64
        %v8422 = vpop.permute.xlu0 %8421
        %8423 = vrot.lane.b32.xlu0 %v8046, 64
        %v8424 = vpop.permute.xlu0 %8423
        %8425 = vrot.lane.b32.xlu0 %v8047, 64
        %v8426 = vpop.permute.xlu0 %8425
        %8427 = vrot.lane.b32.xlu0 %v8048, 64
        %v8428 = vpop.permute.xlu0 %8427
        %8429 = vrot.lane.b32.xlu0 %v8049, 64
        %v8430 = vpop.permute.xlu0 %8429
        %8431 = vrot.lane.b32.xlu0 %v8050, 64
        %v8432 = vpop.permute.xlu0 %8431
        %8433 = vrot.lane.b32.xlu0 %v8051, 64
        %v8434 = vpop.permute.xlu0 %8433
        %8435 = vrot.lane.b32.xlu0 %v8052, 64
        %v8436 = vpop.permute.xlu0 %8435
        %8501 = vrot.lane.b32.xlu0 %v8085, 64
        %v8502 = vpop.permute.xlu0 %8501
        %8503 = vrot.lane.b32.xlu0 %v8086, 64
        %v8504 = vpop.permute.xlu0 %8503
        %8505 = vrot.lane.b32.xlu0 %v8087, 64
        %v8506 = vpop.permute.xlu0 %8505
        %8507 = vrot.lane.b32.xlu0 %v8088, 64
        %v8508 = vpop.permute.xlu0 %8507
        %8509 = vrot.lane.b32.xlu0 %v8089, 64
        %v8510 = vpop.permute.xlu0 %8509
        %8511 = vrot.lane.b32.xlu0 %v8090, 64
        %v8512 = vpop.permute.xlu0 %8511
        %8513 = vrot.lane.b32.xlu0 %v8091, 64
        %v8514 = vpop.permute.xlu0 %8513
        %8515 = vrot.lane.b32.xlu0 %v8092, 64
        %v8516 = vpop.permute.xlu0 %8515
        %8517 = vrot.lane.b32.xlu0 %v8093, 64
        %v8518 = vpop.permute.xlu0 %8517
        %8519 = vrot.lane.b32.xlu0 %v8094, 64
        %v8520 = vpop.permute.xlu0 %8519
        %8521 = vrot.lane.b32.xlu0 %v8095, 64
        %v8522 = vpop.permute.xlu0 %8521
        %8523 = vrot.lane.b32.xlu0 %v8096, 64
        %v8524 = vpop.permute.xlu0 %8523
        %8525 = vrot.lane.b32.xlu0 %v8097, 64
        %v8526 = vpop.permute.xlu0 %8525
        %8527 = vrot.lane.b32.xlu0 %v8098, 64
        %v8528 = vpop.permute.xlu0 %8527
        %8529 = vrot.lane.b32.xlu0 %v8099, 64
        %v8530 = vpop.permute.xlu0 %8529
        %8531 = vrot.lane.b32.xlu0 %v8100, 64
        %v8532 = vpop.permute.xlu0 %8531
        %8533 = vrot.lane.b32.xlu0 %v8101, 64
        %v8534 = vpop.permute.xlu0 %8533
        %8535 = vrot.lane.b32.xlu0 %v8102, 64
        %v8536 = vpop.permute.xlu0 %8535
        %8537 = vrot.lane.b32.xlu0 %v8103, 64
        %v8538 = vpop.permute.xlu0 %8537
        %8539 = vrot.lane.b32.xlu0 %v8104, 64
        %v8540 = vpop.permute.xlu0 %8539
        %8541 = vrot.lane.b32.xlu0 %v8105, 64
        %v8542 = vpop.permute.xlu0 %8541
        %8543 = vrot.lane.b32.xlu0 %v8106, 64
        %v8544 = vpop.permute.xlu0 %8543
        %8545 = vrot.lane.b32.xlu0 %v8107, 64
        %v8546 = vpop.permute.xlu0 %8545
        %8547 = vrot.lane.b32.xlu0 %v8108, 64
        %v8548 = vpop.permute.xlu0 %8547
        %8549 = vrot.lane.b32.xlu0 %v8109, 64
        %v8550 = vpop.permute.xlu0 %8549
        %8551 = vrot.lane.b32.xlu0 %v8110, 64
        %v8552 = vpop.permute.xlu0 %8551
        %8553 = vrot.lane.b32.xlu0 %v8111, 64
        %v8554 = vpop.permute.xlu0 %8553
        %8555 = vrot.lane.b32.xlu0 %v8112, 64
        %v8556 = vpop.permute.xlu0 %8555
        %8557 = vrot.lane.b32.xlu0 %v8113, 64
        %v8558 = vpop.permute.xlu0 %8557
        %8559 = vrot.lane.b32.xlu0 %v8114, 64
        %v8560 = vpop.permute.xlu0 %8559
        %8561 = vrot.lane.b32.xlu0 %v8115, 64
        %v8562 = vpop.permute.xlu0 %8561
        %8563 = vrot.lane.b32.xlu0 %v8116, 64
        %v8564 = vpop.permute.xlu0 %8563
        %8629 = vrot.lane.b32.xlu0 %v8149, 64
        %v8630 = vpop.permute.xlu0 %8629
        %8631 = vrot.lane.b32.xlu0 %v8150, 64
        %v8632 = vpop.permute.xlu0 %8631
        %8633 = vrot.lane.b32.xlu0 %v8151, 64
        %v8634 = vpop.permute.xlu0 %8633
        %8635 = vrot.lane.b32.xlu0 %v8152, 64
        %v8636 = vpop.permute.xlu0 %8635
        %8637 = vrot.lane.b32.xlu0 %v8153, 64
        %v8638 = vpop.permute.xlu0 %8637
        %8639 = vrot.lane.b32.xlu0 %v8154, 64
        %v8640 = vpop.permute.xlu0 %8639
        %8641 = vrot.lane.b32.xlu0 %v8155, 64
        %v8642 = vpop.permute.xlu0 %8641
        %8643 = vrot.lane.b32.xlu0 %v8156, 64
        %v8644 = vpop.permute.xlu0 %8643
        %8645 = vrot.lane.b32.xlu0 %v8157, 64
        %v8646 = vpop.permute.xlu0 %8645
        %8647 = vrot.lane.b32.xlu0 %v8158, 64
        %v8648 = vpop.permute.xlu0 %8647
        %8649 = vrot.lane.b32.xlu0 %v8159, 64
        %v8650 = vpop.permute.xlu0 %8649
        %8651 = vrot.lane.b32.xlu0 %v8160, 64
        %v8652 = vpop.permute.xlu0 %8651
        %8653 = vrot.lane.b32.xlu0 %v8161, 64
        %v8654 = vpop.permute.xlu0 %8653
        %8655 = vrot.lane.b32.xlu0 %v8162, 64
        %v8656 = vpop.permute.xlu0 %8655
        %8657 = vrot.lane.b32.xlu0 %v8163, 64
        %v8658 = vpop.permute.xlu0 %8657
        %8659 = vrot.lane.b32.xlu0 %v8164, 64
        %v8660 = vpop.permute.xlu0 %8659
        %8661 = vrot.lane.b32.xlu0 %v8165, 64
        %v8662 = vpop.permute.xlu0 %8661
        %8663 = vrot.lane.b32.xlu0 %v8166, 64
        %v8664 = vpop.permute.xlu0 %8663
        %8665 = vrot.lane.b32.xlu0 %v8167, 64
        %v8666 = vpop.permute.xlu0 %8665
        %8667 = vrot.lane.b32.xlu0 %v8168, 64
        %v8668 = vpop.permute.xlu0 %8667
        %8669 = vrot.lane.b32.xlu0 %v8169, 64
        %v8670 = vpop.permute.xlu0 %8669
        %8671 = vrot.lane.b32.xlu0 %v8170, 64
        %v8672 = vpop.permute.xlu0 %8671
        %8673 = vrot.lane.b32.xlu0 %v8171, 64
        %v8674 = vpop.permute.xlu0 %8673
        %8675 = vrot.lane.b32.xlu0 %v8172, 64
        %v8676 = vpop.permute.xlu0 %8675
        %8677 = vrot.lane.b32.xlu0 %v8173, 64
        %v8678 = vpop.permute.xlu0 %8677
        %8679 = vrot.lane.b32.xlu0 %v8174, 64
        %v8680 = vpop.permute.xlu0 %8679
        %8681 = vrot.lane.b32.xlu0 %v8175, 64
        %v8682 = vpop.permute.xlu0 %8681
        %8683 = vrot.lane.b32.xlu0 %v8176, 64
        %v8684 = vpop.permute.xlu0 %8683
        %8685 = vrot.lane.b32.xlu0 %v8177, 64
        %v8686 = vpop.permute.xlu0 %8685
        %8687 = vrot.lane.b32.xlu0 %v8178, 64
        %v8688 = vpop.permute.xlu0 %8687
        %8689 = vrot.lane.b32.xlu0 %v8179, 64
        %v8690 = vpop.permute.xlu0 %8689
        %8691 = vrot.lane.b32.xlu0 %v8180, 64
        %v8692 = vpop.permute.xlu0 %8691
        %v8725 = vsel %vm389, %v7925, %v8246
        %v8726 = vsel %vm389, %v7926, %v8248
        %v8727 = vsel %vm389, %v7927, %v8250
        %v8728 = vsel %vm389, %v7928, %v8252
        %v8729 = vsel %vm389, %v7929, %v8254
        %v8730 = vsel %vm389, %v7930, %v8256
        %v8731 = vsel %vm389, %v7931, %v8258
        %v8732 = vsel %vm389, %v7932, %v8260
        %v8733 = vsel %vm389, %v7933, %v8262
        %v8734 = vsel %vm389, %v7934, %v8264
        %v8735 = vsel %vm389, %v7935, %v8266
        %v8736 = vsel %vm389, %v7936, %v8268
        %v8737 = vsel %vm389, %v7937, %v8270
        %v8738 = vsel %vm389, %v7938, %v8272
        %v8739 = vsel %vm389, %v7939, %v8274
        %v8740 = vsel %vm389, %v7940, %v8276
        %v8741 = vsel %vm389, %v7941, %v8278
        %v8742 = vsel %vm389, %v7942, %v8280
        %v8743 = vsel %vm389, %v7943, %v8282
        %v8744 = vsel %vm389, %v7944, %v8284
        %v8745 = vsel %vm389, %v7945, %v8286
        %v8746 = vsel %vm389, %v7946, %v8288
        %v8747 = vsel %vm389, %v7947, %v8290
        %v8748 = vsel %vm389, %v7948, %v8292
        %v8749 = vsel %vm389, %v7949, %v8294
        %v8750 = vsel %vm389, %v7950, %v8296
        %v8751 = vsel %vm389, %v7951, %v8298
        %v8752 = vsel %vm389, %v7952, %v8300
        %v8753 = vsel %vm389, %v7953, %v8302
        %v8754 = vsel %vm389, %v7954, %v8304
        %v8755 = vsel %vm389, %v7955, %v8306
        %v8756 = vsel %vm389, %v7956, %v8308
        %v8757 = vsel %vm389, %v7989, %v8374
        %v8758 = vsel %vm389, %v7990, %v8376
        %v8759 = vsel %vm389, %v7991, %v8378
        %v8760 = vsel %vm389, %v7992, %v8380
        %v8761 = vsel %vm389, %v7993, %v8382
        %v8762 = vsel %vm389, %v7994, %v8384
        %v8763 = vsel %vm389, %v7995, %v8386
        %v8764 = vsel %vm389, %v7996, %v8388
        %v8765 = vsel %vm389, %v7997, %v8390
        %v8766 = vsel %vm389, %v7998, %v8392
        %v8767 = vsel %vm389, %v7999, %v8394
        %v8768 = vsel %vm389, %v8000, %v8396
        %v8769 = vsel %vm389, %v8001, %v8398
        %v8770 = vsel %vm389, %v8002, %v8400
        %v8771 = vsel %vm389, %v8003, %v8402
        %v8772 = vsel %vm389, %v8004, %v8404
        %v8773 = vsel %vm389, %v8005, %v8406
        %v8774 = vsel %vm389, %v8006, %v8408
        %v8775 = vsel %vm389, %v8007, %v8410
        %v8776 = vsel %vm389, %v8008, %v8412
        %v8777 = vsel %vm389, %v8009, %v8414
        %v8778 = vsel %vm389, %v8010, %v8416
        %v8779 = vsel %vm389, %v8011, %v8418
        %v8780 = vsel %vm389, %v8012, %v8420
        %v8781 = vsel %vm389, %v8013, %v8422
        %v8782 = vsel %vm389, %v8014, %v8424
        %v8783 = vsel %vm389, %v8015, %v8426
        %v8784 = vsel %vm389, %v8016, %v8428
        %v8785 = vsel %vm389, %v8017, %v8430
        %v8786 = vsel %vm389, %v8018, %v8432
        %v8787 = vsel %vm389, %v8019, %v8434
        %v8788 = vsel %vm389, %v8020, %v8436
        %v8789 = vsel %vm389, %v8053, %v8502
        %v8790 = vsel %vm389, %v8054, %v8504
        %v8791 = vsel %vm389, %v8055, %v8506
        %v8792 = vsel %vm389, %v8056, %v8508
        %v8793 = vsel %vm389, %v8057, %v8510
        %v8794 = vsel %vm389, %v8058, %v8512
        %v8795 = vsel %vm389, %v8059, %v8514
        %v8796 = vsel %vm389, %v8060, %v8516
        %v8797 = vsel %vm389, %v8061, %v8518
        %v8798 = vsel %vm389, %v8062, %v8520
        %v8799 = vsel %vm389, %v8063, %v8522
        %v8800 = vsel %vm389, %v8064, %v8524
        %v8801 = vsel %vm389, %v8065, %v8526
        %v8802 = vsel %vm389, %v8066, %v8528
        %v8803 = vsel %vm389, %v8067, %v8530
        %v8804 = vsel %vm389, %v8068, %v8532
        %v8805 = vsel %vm389, %v8069, %v8534
        %v8806 = vsel %vm389, %v8070, %v8536
        %v8807 = vsel %vm389, %v8071, %v8538
        %v8808 = vsel %vm389, %v8072, %v8540
        %v8809 = vsel %vm389, %v8073, %v8542
        %v8810 = vsel %vm389, %v8074, %v8544
        %v8811 = vsel %vm389, %v8075, %v8546
        %v8812 = vsel %vm389, %v8076, %v8548
        %v8813 = vsel %vm389, %v8077, %v8550
        %v8814 = vsel %vm389, %v8078, %v8552
        %v8815 = vsel %vm389, %v8079, %v8554
        %v8816 = vsel %vm389, %v8080, %v8556
        %v8817 = vsel %vm389, %v8081, %v8558
        %v8818 = vsel %vm389, %v8082, %v8560
        %v8819 = vsel %vm389, %v8083, %v8562
        %v8820 = vsel %vm389, %v8084, %v8564
        %v8821 = vsel %vm389, %v8117, %v8630
        %v8822 = vsel %vm389, %v8118, %v8632
        %v8823 = vsel %vm389, %v8119, %v8634
        %v8824 = vsel %vm389, %v8120, %v8636
        %v8825 = vsel %vm389, %v8121, %v8638
        %v8826 = vsel %vm389, %v8122, %v8640
        %v8827 = vsel %vm389, %v8123, %v8642
        %v8828 = vsel %vm389, %v8124, %v8644
        %v8829 = vsel %vm389, %v8125, %v8646
        %v8830 = vsel %vm389, %v8126, %v8648
        %v8831 = vsel %vm389, %v8127, %v8650
        %v8832 = vsel %vm389, %v8128, %v8652
        %v8833 = vsel %vm389, %v8129, %v8654
        %v8834 = vsel %vm389, %v8130, %v8656
        %v8835 = vsel %vm389, %v8131, %v8658
        %v8836 = vsel %vm389, %v8132, %v8660
        %v8837 = vsel %vm389, %v8133, %v8662
        %v8838 = vsel %vm389, %v8134, %v8664
        %v8839 = vsel %vm389, %v8135, %v8666
        %v8840 = vsel %vm389, %v8136, %v8668
        %v8841 = vsel %vm389, %v8137, %v8670
        %v8842 = vsel %vm389, %v8138, %v8672
        %v8843 = vsel %vm389, %v8139, %v8674
        %v8844 = vsel %vm389, %v8140, %v8676
        %v8845 = vsel %vm389, %v8141, %v8678
        %v8846 = vsel %vm389, %v8142, %v8680
        %v8847 = vsel %vm389, %v8143, %v8682
        %v8848 = vsel %vm389, %v8144, %v8684
        %v8849 = vsel %vm389, %v8145, %v8686
        %v8850 = vsel %vm389, %v8146, %v8688
        %v8851 = vsel %vm389, %v8147, %v8690
        %v8852 = vsel %vm389, %v8148, %v8692
        %v8854 = vperm.slane %v7924, 0
        %v8857 = vsel %vm389, %v8181, 0
        %v8860 = vsel %vm389, %v8182, 0
        %v8863 = vsel %vm389, %v8183, 0
        %v8866 = vsel %vm389, %v8184, 0
        %v8869 = vsel %vm389, %v8185, 0
        %v8872 = vsel %vm389, %v8186, 0
        %v8875 = vsel %vm389, %v8187, 0
        %v8878 = vsel %vm389, %v8188, 0
        %v8881 = vsel %vm389, %v8189, 0
        %v8884 = vsel %vm389, %v8190, 0
        %v8887 = vsel %vm389, %v8191, 0
        %v8890 = vsel %vm389, %v8192, 0
        %v8893 = vsel %vm389, %v8193, 0
        %v8896 = vsel %vm389, %v8194, 0
        %v8899 = vsel %vm389, %v8195, 0
        %v8902 = vsel %vm389, %v8196, 0
        %v8905 = vsel %vm389, %v8197, 0
        %v8908 = vsel %vm389, %v8198, 0
        %v8911 = vsel %vm389, %v8199, 0
        %v8914 = vsel %vm389, %v8200, 0
        %v8917 = vsel %vm389, %v8201, 0
        %v8920 = vsel %vm389, %v8202, 0
        %v8923 = vsel %vm389, %v8203, 0
        %v8926 = vsel %vm389, %v8204, 0
        %v8929 = vsel %vm389, %v8205, 0
        %v8932 = vsel %vm389, %v8206, 0
        %v8935 = vsel %vm389, %v8207, 0
        %v8938 = vsel %vm389, %v8208, 0
        %v8941 = vsel %vm389, %v8209, 0
        %v8944 = vsel %vm389, %v8210, 0
        %v8947 = vsel %vm389, %v8211, 0
        %v8950 = vsel %vm389, %v8212, 0
        %8952 = vmatpush.msra.mxu0 %v7866
        %8953 = vmatpush.msra.mxu0 %v7865
        %8954 = vmatpush.msra.mxu0 %v7864
        %8955 = vmatpush.msra.mxu0 %v7863
        %8956 = vmatpush.msra.mxu0 %v7862
        %8957 = vmatpush.msra.mxu0 %v7861
        %8958 = vmatpush.msra.mxu0 %v7860
        %8959 = vmatpush.msra.mxu0 %v7859
        %8960 = vmatpush.msra.mxu0 %v7858
        %8961 = vmatpush.msra.mxu0 %v7857
        %8962 = vmatpush.msra.mxu0 %v7856
        %8963 = vmatpush.msra.mxu0 %v7855
        %8964 = vmatpush.msra.mxu0 %v7854
        %8965 = vmatpush.msra.mxu0 %v7853
        %8966 = vmatpush.msra.mxu0 %v7852
        %8967 = vmatpush.msra.mxu0 %v7851
        %8968 = vmatmul.f32.gmra.mxu0 %v8725
        %v8969 = vpop.f32.mrf.mxu0
        %v8970 = vadd.f32 %v8854, %v8969
        %8971 = vmatmul.f32.gmra.mxu0 %v8726
        %v8972 = vpop.f32.mrf.mxu0
        %v8973 = vadd.f32 %v8854, %v8972
        %8974 = vmatmul.f32.gmra.mxu0 %v8727
        %v8975 = vpop.f32.mrf.mxu0
        %v8976 = vadd.f32 %v8854, %v8975
        %8977 = vmatmul.f32.gmra.mxu0 %v8728
        %v8978 = vpop.f32.mrf.mxu0
        %v8979 = vadd.f32 %v8854, %v8978
        %8980 = vmatmul.f32.gmra.mxu0 %v8729
        %v8981 = vpop.f32.mrf.mxu0
        %v8982 = vadd.f32 %v8854, %v8981
        %8983 = vmatmul.f32.gmra.mxu0 %v8730
        %v8984 = vpop.f32.mrf.mxu0
        %v8985 = vadd.f32 %v8854, %v8984
        %8986 = vmatmul.f32.gmra.mxu0 %v8731
        %v8987 = vpop.f32.mrf.mxu0
        %v8988 = vadd.f32 %v8854, %v8987
        %8989 = vmatmul.f32.gmra.mxu0 %v8732
        %v8990 = vpop.f32.mrf.mxu0
        %v8991 = vadd.f32 %v8854, %v8990
        %8992 = vmatmul.f32.gmra.mxu0 %v8733
        %v8993 = vpop.f32.mrf.mxu0
        %v8994 = vadd.f32 %v8854, %v8993
        %8995 = vmatmul.f32.gmra.mxu0 %v8734
        %v8996 = vpop.f32.mrf.mxu0
        %v8997 = vadd.f32 %v8854, %v8996
        %8998 = vmatmul.f32.gmra.mxu0 %v8735
        %v8999 = vpop.f32.mrf.mxu0
        %v9000 = vadd.f32 %v8854, %v8999
        %9001 = vmatmul.f32.gmra.mxu0 %v8736
        %v9002 = vpop.f32.mrf.mxu0
        %v9003 = vadd.f32 %v8854, %v9002
        %9004 = vmatmul.f32.gmra.mxu0 %v8737
        %v9005 = vpop.f32.mrf.mxu0
        %v9006 = vadd.f32 %v8854, %v9005
        %9007 = vmatmul.f32.gmra.mxu0 %v8738
        %v9008 = vpop.f32.mrf.mxu0
        %v9009 = vadd.f32 %v8854, %v9008
        %9010 = vmatmul.f32.gmra.mxu0 %v8739
        %v9011 = vpop.f32.mrf.mxu0
        %v9012 = vadd.f32 %v8854, %v9011
        %9013 = vmatmul.f32.gmra.mxu0 %v8740
        %v9014 = vpop.f32.mrf.mxu0
        %v9015 = vadd.f32 %v8854, %v9014
        %9016 = vmatmul.f32.gmra.mxu0 %v8741
        %v9017 = vpop.f32.mrf.mxu0
        %v9018 = vadd.f32 %v8854, %v9017
        %9019 = vmatmul.f32.gmra.mxu0 %v8742
        %v9020 = vpop.f32.mrf.mxu0
        %v9021 = vadd.f32 %v8854, %v9020
        %9022 = vmatmul.f32.gmra.mxu0 %v8743
        %v9023 = vpop.f32.mrf.mxu0
        %v9024 = vadd.f32 %v8854, %v9023
        %9025 = vmatmul.f32.gmra.mxu0 %v8744
        %v9026 = vpop.f32.mrf.mxu0
        %v9027 = vadd.f32 %v8854, %v9026
        %9028 = vmatmul.f32.gmra.mxu0 %v8745
        %v9029 = vpop.f32.mrf.mxu0
        %v9030 = vadd.f32 %v8854, %v9029
        %9031 = vmatmul.f32.gmra.mxu0 %v8746
        %v9032 = vpop.f32.mrf.mxu0
        %v9033 = vadd.f32 %v8854, %v9032
        %9034 = vmatmul.f32.gmra.mxu0 %v8747
        %v9035 = vpop.f32.mrf.mxu0
        %v9036 = vadd.f32 %v8854, %v9035
        %9037 = vmatmul.f32.gmra.mxu0 %v8748
        %v9038 = vpop.f32.mrf.mxu0
        %v9039 = vadd.f32 %v8854, %v9038
        %9040 = vmatmul.f32.gmra.mxu0 %v8749
        %v9041 = vpop.f32.mrf.mxu0
        %v9042 = vadd.f32 %v8854, %v9041
        %9043 = vmatmul.f32.gmra.mxu0 %v8750
        %v9044 = vpop.f32.mrf.mxu0
        %v9045 = vadd.f32 %v8854, %v9044
        %9046 = vmatmul.f32.gmra.mxu0 %v8751
        %v9047 = vpop.f32.mrf.mxu0
        %v9048 = vadd.f32 %v8854, %v9047
        %9049 = vmatmul.f32.gmra.mxu0 %v8752
        %v9050 = vpop.f32.mrf.mxu0
        %v9051 = vadd.f32 %v8854, %v9050
        %9052 = vmatmul.f32.gmra.mxu0 %v8753
        %v9053 = vpop.f32.mrf.mxu0
        %v9054 = vadd.f32 %v8854, %v9053
        %9055 = vmatmul.f32.gmra.mxu0 %v8754
        %v9056 = vpop.f32.mrf.mxu0
        %v9057 = vadd.f32 %v8854, %v9056
        %9058 = vmatmul.f32.gmra.mxu0 %v8755
        %v9059 = vpop.f32.mrf.mxu0
        %v9060 = vadd.f32 %v8854, %v9059
        %9061 = vmatmul.f32.gmra.mxu0 %v8756
        %v9062 = vpop.f32.mrf.mxu0
        %v9063 = vadd.f32 %v8854, %v9062
        %9064 = vdwg.mxu0
        %9065 = vmatpush.msra.mxu0 %v7882
        %9066 = vmatpush.msra.mxu0 %v7881
        %9067 = vmatpush.msra.mxu0 %v7880
        %9068 = vmatpush.msra.mxu0 %v7879
        %9069 = vmatpush.msra.mxu0 %v7878
        %9070 = vmatpush.msra.mxu0 %v7877
        %9071 = vmatpush.msra.mxu0 %v7876
        %9072 = vmatpush.msra.mxu0 %v7875
        %9073 = vmatpush.msra.mxu0 %v7874
        %9074 = vmatpush.msra.mxu0 %v7873
        %9075 = vmatpush.msra.mxu0 %v7872
        %9076 = vmatpush.msra.mxu0 %v7871
        %9077 = vmatpush.msra.mxu0 %v7870
        %9078 = vmatpush.msra.mxu0 %v7869
        %9079 = vmatpush.msra.mxu0 %v7868
        %9080 = vmatpush.msra.mxu0 %v7867
        %9081 = vmatmul.f32.gmra.mxu0 %v8757
        %v9082 = vpop.f32.mrf.mxu0
        %v9083 = vadd.f32 %v8970, %v9082
        %9084 = vmatmul.f32.gmra.mxu0 %v8758
        %v9085 = vpop.f32.mrf.mxu0
        %v9086 = vadd.f32 %v8973, %v9085
        %9087 = vmatmul.f32.gmra.mxu0 %v8759
        %v9088 = vpop.f32.mrf.mxu0
        %v9089 = vadd.f32 %v8976, %v9088
        %9090 = vmatmul.f32.gmra.mxu0 %v8760
        %v9091 = vpop.f32.mrf.mxu0
        %v9092 = vadd.f32 %v8979, %v9091
        %9093 = vmatmul.f32.gmra.mxu0 %v8761
        %v9094 = vpop.f32.mrf.mxu0
        %v9095 = vadd.f32 %v8982, %v9094
        %9096 = vmatmul.f32.gmra.mxu0 %v8762
        %v9097 = vpop.f32.mrf.mxu0
        %v9098 = vadd.f32 %v8985, %v9097
        %9099 = vmatmul.f32.gmra.mxu0 %v8763
        %v9100 = vpop.f32.mrf.mxu0
        %v9101 = vadd.f32 %v8988, %v9100
        %9102 = vmatmul.f32.gmra.mxu0 %v8764
        %v9103 = vpop.f32.mrf.mxu0
        %v9104 = vadd.f32 %v8991, %v9103
        %9105 = vmatmul.f32.gmra.mxu0 %v8765
        %v9106 = vpop.f32.mrf.mxu0
        %v9107 = vadd.f32 %v8994, %v9106
        %9108 = vmatmul.f32.gmra.mxu0 %v8766
        %v9109 = vpop.f32.mrf.mxu0
        %v9110 = vadd.f32 %v8997, %v9109
        %9111 = vmatmul.f32.gmra.mxu0 %v8767
        %v9112 = vpop.f32.mrf.mxu0
        %v9113 = vadd.f32 %v9000, %v9112
        %9114 = vmatmul.f32.gmra.mxu0 %v8768
        %v9115 = vpop.f32.mrf.mxu0
        %v9116 = vadd.f32 %v9003, %v9115
        %9117 = vmatmul.f32.gmra.mxu0 %v8769
        %v9118 = vpop.f32.mrf.mxu0
        %v9119 = vadd.f32 %v9006, %v9118
        %9120 = vmatmul.f32.gmra.mxu0 %v8770
        %v9121 = vpop.f32.mrf.mxu0
        %v9122 = vadd.f32 %v9009, %v9121
        %9123 = vmatmul.f32.gmra.mxu0 %v8771
        %v9124 = vpop.f32.mrf.mxu0
        %v9125 = vadd.f32 %v9012, %v9124
        %9126 = vmatmul.f32.gmra.mxu0 %v8772
        %v9127 = vpop.f32.mrf.mxu0
        %v9128 = vadd.f32 %v9015, %v9127
        %9129 = vmatmul.f32.gmra.mxu0 %v8773
        %v9130 = vpop.f32.mrf.mxu0
        %v9131 = vadd.f32 %v9018, %v9130
        %9132 = vmatmul.f32.gmra.mxu0 %v8774
        %v9133 = vpop.f32.mrf.mxu0
        %v9134 = vadd.f32 %v9021, %v9133
        %9135 = vmatmul.f32.gmra.mxu0 %v8775
        %v9136 = vpop.f32.mrf.mxu0
        %v9137 = vadd.f32 %v9024, %v9136
        %9138 = vmatmul.f32.gmra.mxu0 %v8776
        %v9139 = vpop.f32.mrf.mxu0
        %v9140 = vadd.f32 %v9027, %v9139
        %9141 = vmatmul.f32.gmra.mxu0 %v8777
        %v9142 = vpop.f32.mrf.mxu0
        %v9143 = vadd.f32 %v9030, %v9142
        %9144 = vmatmul.f32.gmra.mxu0 %v8778
        %v9145 = vpop.f32.mrf.mxu0
        %v9146 = vadd.f32 %v9033, %v9145
        %9147 = vmatmul.f32.gmra.mxu0 %v8779
        %v9148 = vpop.f32.mrf.mxu0
        %v9149 = vadd.f32 %v9036, %v9148
        %9150 = vmatmul.f32.gmra.mxu0 %v8780
        %v9151 = vpop.f32.mrf.mxu0
        %v9152 = vadd.f32 %v9039, %v9151
        %9153 = vmatmul.f32.gmra.mxu0 %v8781
        %v9154 = vpop.f32.mrf.mxu0
        %v9155 = vadd.f32 %v9042, %v9154
        %9156 = vmatmul.f32.gmra.mxu0 %v8782
        %v9157 = vpop.f32.mrf.mxu0
        %v9158 = vadd.f32 %v9045, %v9157
        %9159 = vmatmul.f32.gmra.mxu0 %v8783
        %v9160 = vpop.f32.mrf.mxu0
        %v9161 = vadd.f32 %v9048, %v9160
        %9162 = vmatmul.f32.gmra.mxu0 %v8784
        %v9163 = vpop.f32.mrf.mxu0
        %v9164 = vadd.f32 %v9051, %v9163
        %9165 = vmatmul.f32.gmra.mxu0 %v8785
        %v9166 = vpop.f32.mrf.mxu0
        %v9167 = vadd.f32 %v9054, %v9166
        %9168 = vmatmul.f32.gmra.mxu0 %v8786
        %v9169 = vpop.f32.mrf.mxu0
        %v9170 = vadd.f32 %v9057, %v9169
        %9171 = vmatmul.f32.gmra.mxu0 %v8787
        %v9172 = vpop.f32.mrf.mxu0
        %v9173 = vadd.f32 %v9060, %v9172
        %9174 = vmatmul.f32.gmra.mxu0 %v8788
        %v9175 = vpop.f32.mrf.mxu0
        %v9176 = vadd.f32 %v9063, %v9175
        %9177 = vdwg.mxu0
        %9178 = vmatpush.msra.mxu0 %v7898
        %9179 = vmatpush.msra.mxu0 %v7897
        %9180 = vmatpush.msra.mxu0 %v7896
        %9181 = vmatpush.msra.mxu0 %v7895
        %9182 = vmatpush.msra.mxu0 %v7894
        %9183 = vmatpush.msra.mxu0 %v7893
        %9184 = vmatpush.msra.mxu0 %v7892
        %9185 = vmatpush.msra.mxu0 %v7891
        %9186 = vmatpush.msra.mxu0 %v7890
        %9187 = vmatpush.msra.mxu0 %v7889
        %9188 = vmatpush.msra.mxu0 %v7888
        %9189 = vmatpush.msra.mxu0 %v7887
        %9190 = vmatpush.msra.mxu0 %v7886
        %9191 = vmatpush.msra.mxu0 %v7885
        %9192 = vmatpush.msra.mxu0 %v7884
        %9193 = vmatpush.msra.mxu0 %v7883
        %9194 = vmatmul.f32.gmra.mxu0 %v8789
        %v9195 = vpop.f32.mrf.mxu0
        %v9196 = vadd.f32 %v9083, %v9195
        %9197 = vmatmul.f32.gmra.mxu0 %v8790
        %v9198 = vpop.f32.mrf.mxu0
        %v9199 = vadd.f32 %v9086, %v9198
        %9200 = vmatmul.f32.gmra.mxu0 %v8791
        %v9201 = vpop.f32.mrf.mxu0
        %v9202 = vadd.f32 %v9089, %v9201
        %9203 = vmatmul.f32.gmra.mxu0 %v8792
        %v9204 = vpop.f32.mrf.mxu0
        %v9205 = vadd.f32 %v9092, %v9204
        %9206 = vmatmul.f32.gmra.mxu0 %v8793
        %v9207 = vpop.f32.mrf.mxu0
        %v9208 = vadd.f32 %v9095, %v9207
        %9209 = vmatmul.f32.gmra.mxu0 %v8794
        %v9210 = vpop.f32.mrf.mxu0
        %v9211 = vadd.f32 %v9098, %v9210
        %9212 = vmatmul.f32.gmra.mxu0 %v8795
        %v9213 = vpop.f32.mrf.mxu0
        %v9214 = vadd.f32 %v9101, %v9213
        %9215 = vmatmul.f32.gmra.mxu0 %v8796
        %v9216 = vpop.f32.mrf.mxu0
        %v9217 = vadd.f32 %v9104, %v9216
        %9218 = vmatmul.f32.gmra.mxu0 %v8797
        %v9219 = vpop.f32.mrf.mxu0
        %v9220 = vadd.f32 %v9107, %v9219
        %9221 = vmatmul.f32.gmra.mxu0 %v8798
        %v9222 = vpop.f32.mrf.mxu0
        %v9223 = vadd.f32 %v9110, %v9222
        %9224 = vmatmul.f32.gmra.mxu0 %v8799
        %v9225 = vpop.f32.mrf.mxu0
        %v9226 = vadd.f32 %v9113, %v9225
        %9227 = vmatmul.f32.gmra.mxu0 %v8800
        %v9228 = vpop.f32.mrf.mxu0
        %v9229 = vadd.f32 %v9116, %v9228
        %9230 = vmatmul.f32.gmra.mxu0 %v8801
        %v9231 = vpop.f32.mrf.mxu0
        %v9232 = vadd.f32 %v9119, %v9231
        %9233 = vmatmul.f32.gmra.mxu0 %v8802
        %v9234 = vpop.f32.mrf.mxu0
        %v9235 = vadd.f32 %v9122, %v9234
        %9236 = vmatmul.f32.gmra.mxu0 %v8803
        %v9237 = vpop.f32.mrf.mxu0
        %v9238 = vadd.f32 %v9125, %v9237
        %9239 = vmatmul.f32.gmra.mxu0 %v8804
        %v9240 = vpop.f32.mrf.mxu0
        %v9241 = vadd.f32 %v9128, %v9240
        %9242 = vmatmul.f32.gmra.mxu0 %v8805
        %v9243 = vpop.f32.mrf.mxu0
        %v9244 = vadd.f32 %v9131, %v9243
        %9245 = vmatmul.f32.gmra.mxu0 %v8806
        %v9246 = vpop.f32.mrf.mxu0
        %v9247 = vadd.f32 %v9134, %v9246
        %9248 = vmatmul.f32.gmra.mxu0 %v8807
        %v9249 = vpop.f32.mrf.mxu0
        %v9250 = vadd.f32 %v9137, %v9249
        %9251 = vmatmul.f32.gmra.mxu0 %v8808
        %v9252 = vpop.f32.mrf.mxu0
        %v9253 = vadd.f32 %v9140, %v9252
        %9254 = vmatmul.f32.gmra.mxu0 %v8809
        %v9255 = vpop.f32.mrf.mxu0
        %v9256 = vadd.f32 %v9143, %v9255
        %9257 = vmatmul.f32.gmra.mxu0 %v8810
        %v9258 = vpop.f32.mrf.mxu0
        %v9259 = vadd.f32 %v9146, %v9258
        %9260 = vmatmul.f32.gmra.mxu0 %v8811
        %v9261 = vpop.f32.mrf.mxu0
        %v9262 = vadd.f32 %v9149, %v9261
        %9263 = vmatmul.f32.gmra.mxu0 %v8812
        %v9264 = vpop.f32.mrf.mxu0
        %v9265 = vadd.f32 %v9152, %v9264
        %9266 = vmatmul.f32.gmra.mxu0 %v8813
        %v9267 = vpop.f32.mrf.mxu0
        %v9268 = vadd.f32 %v9155, %v9267
        %9269 = vmatmul.f32.gmra.mxu0 %v8814
        %v9270 = vpop.f32.mrf.mxu0
        %v9271 = vadd.f32 %v9158, %v9270
        %9272 = vmatmul.f32.gmra.mxu0 %v8815
        %v9273 = vpop.f32.mrf.mxu0
        %v9274 = vadd.f32 %v9161, %v9273
        %9275 = vmatmul.f32.gmra.mxu0 %v8816
        %v9276 = vpop.f32.mrf.mxu0
        %v9277 = vadd.f32 %v9164, %v9276
        %9278 = vmatmul.f32.gmra.mxu0 %v8817
        %v9279 = vpop.f32.mrf.mxu0
        %v9280 = vadd.f32 %v9167, %v9279
        %9281 = vmatmul.f32.gmra.mxu0 %v8818
        %v9282 = vpop.f32.mrf.mxu0
        %v9283 = vadd.f32 %v9170, %v9282
        %9284 = vmatmul.f32.gmra.mxu0 %v8819
        %v9285 = vpop.f32.mrf.mxu0
        %v9286 = vadd.f32 %v9173, %v9285
        %9287 = vmatmul.f32.gmra.mxu0 %v8820
        %v9288 = vpop.f32.mrf.mxu0
        %v9289 = vadd.f32 %v9176, %v9288
        %9290 = vdwg.mxu0
        %9291 = vmatpush.msra.mxu0 %v7914
        %9292 = vmatpush.msra.mxu0 %v7913
        %9293 = vmatpush.msra.mxu0 %v7912
        %9294 = vmatpush.msra.mxu0 %v7911
        %9295 = vmatpush.msra.mxu0 %v7910
        %9296 = vmatpush.msra.mxu0 %v7909
        %9297 = vmatpush.msra.mxu0 %v7908
        %9298 = vmatpush.msra.mxu0 %v7907
        %9299 = vmatpush.msra.mxu0 %v7906
        %9300 = vmatpush.msra.mxu0 %v7905
        %9301 = vmatpush.msra.mxu0 %v7904
        %9302 = vmatpush.msra.mxu0 %v7903
        %9303 = vmatpush.msra.mxu0 %v7902
        %9304 = vmatpush.msra.mxu0 %v7901
        %9305 = vmatpush.msra.mxu0 %v7900
        %9306 = vmatpush.msra.mxu0 %v7899
        %9307 = vmatmul.f32.gmra.mxu0 %v8821
        %v9308 = vpop.f32.mrf.mxu0
        %v9309 = vadd.f32 %v9196, %v9308
        %9310 = vmatmul.f32.gmra.mxu0 %v8822
        %v9311 = vpop.f32.mrf.mxu0
        %v9312 = vadd.f32 %v9199, %v9311
        %9313 = vmatmul.f32.gmra.mxu0 %v8823
        %v9314 = vpop.f32.mrf.mxu0
        %v9315 = vadd.f32 %v9202, %v9314
        %9316 = vmatmul.f32.gmra.mxu0 %v8824
        %v9317 = vpop.f32.mrf.mxu0
        %v9318 = vadd.f32 %v9205, %v9317
        %9319 = vmatmul.f32.gmra.mxu0 %v8825
        %v9320 = vpop.f32.mrf.mxu0
        %v9321 = vadd.f32 %v9208, %v9320
        %9322 = vmatmul.f32.gmra.mxu0 %v8826
        %v9323 = vpop.f32.mrf.mxu0
        %v9324 = vadd.f32 %v9211, %v9323
        %9325 = vmatmul.f32.gmra.mxu0 %v8827
        %v9326 = vpop.f32.mrf.mxu0
        %v9327 = vadd.f32 %v9214, %v9326
        %9328 = vmatmul.f32.gmra.mxu0 %v8828
        %v9329 = vpop.f32.mrf.mxu0
        %v9330 = vadd.f32 %v9217, %v9329
        %9331 = vmatmul.f32.gmra.mxu0 %v8829
        %v9332 = vpop.f32.mrf.mxu0
        %v9333 = vadd.f32 %v9220, %v9332
        %9334 = vmatmul.f32.gmra.mxu0 %v8830
        %v9335 = vpop.f32.mrf.mxu0
        %v9336 = vadd.f32 %v9223, %v9335
        %9337 = vmatmul.f32.gmra.mxu0 %v8831
        %v9338 = vpop.f32.mrf.mxu0
        %v9339 = vadd.f32 %v9226, %v9338
        %9340 = vmatmul.f32.gmra.mxu0 %v8832
        %v9341 = vpop.f32.mrf.mxu0
        %v9342 = vadd.f32 %v9229, %v9341
        %9343 = vmatmul.f32.gmra.mxu0 %v8833
        %v9344 = vpop.f32.mrf.mxu0
        %v9345 = vadd.f32 %v9232, %v9344
        %9346 = vmatmul.f32.gmra.mxu0 %v8834
        %v9347 = vpop.f32.mrf.mxu0
        %v9348 = vadd.f32 %v9235, %v9347
        %9349 = vmatmul.f32.gmra.mxu0 %v8835
        %v9350 = vpop.f32.mrf.mxu0
        %v9351 = vadd.f32 %v9238, %v9350
        %9352 = vmatmul.f32.gmra.mxu0 %v8836
        %v9353 = vpop.f32.mrf.mxu0
        %v9354 = vadd.f32 %v9241, %v9353
        %9355 = vmatmul.f32.gmra.mxu0 %v8837
        %v9356 = vpop.f32.mrf.mxu0
        %v9357 = vadd.f32 %v9244, %v9356
        %9358 = vmatmul.f32.gmra.mxu0 %v8838
        %v9359 = vpop.f32.mrf.mxu0
        %v9360 = vadd.f32 %v9247, %v9359
        %9361 = vmatmul.f32.gmra.mxu0 %v8839
        %v9362 = vpop.f32.mrf.mxu0
        %v9363 = vadd.f32 %v9250, %v9362
        %9364 = vmatmul.f32.gmra.mxu0 %v8840
        %v9365 = vpop.f32.mrf.mxu0
        %v9366 = vadd.f32 %v9253, %v9365
        %9367 = vmatmul.f32.gmra.mxu0 %v8841
        %v9368 = vpop.f32.mrf.mxu0
        %v9369 = vadd.f32 %v9256, %v9368
        %9370 = vmatmul.f32.gmra.mxu0 %v8842
        %v9371 = vpop.f32.mrf.mxu0
        %v9372 = vadd.f32 %v9259, %v9371
        %9373 = vmatmul.f32.gmra.mxu0 %v8843
        %v9374 = vpop.f32.mrf.mxu0
        %v9375 = vadd.f32 %v9262, %v9374
        %9376 = vmatmul.f32.gmra.mxu0 %v8844
        %v9377 = vpop.f32.mrf.mxu0
        %v9378 = vadd.f32 %v9265, %v9377
        %9379 = vmatmul.f32.gmra.mxu0 %v8845
        %v9380 = vpop.f32.mrf.mxu0
        %v9381 = vadd.f32 %v9268, %v9380
        %9382 = vmatmul.f32.gmra.mxu0 %v8846
        %v9383 = vpop.f32.mrf.mxu0
        %v9384 = vadd.f32 %v9271, %v9383
        %9385 = vmatmul.f32.gmra.mxu0 %v8847
        %v9386 = vpop.f32.mrf.mxu0
        %v9387 = vadd.f32 %v9274, %v9386
        %9388 = vmatmul.f32.gmra.mxu0 %v8848
        %v9389 = vpop.f32.mrf.mxu0
        %v9390 = vadd.f32 %v9277, %v9389
        %9391 = vmatmul.f32.gmra.mxu0 %v8849
        %v9392 = vpop.f32.mrf.mxu0
        %v9393 = vadd.f32 %v9280, %v9392
        %9394 = vmatmul.f32.gmra.mxu0 %v8850
        %v9395 = vpop.f32.mrf.mxu0
        %v9396 = vadd.f32 %v9283, %v9395
        %9397 = vmatmul.f32.gmra.mxu0 %v8851
        %v9398 = vpop.f32.mrf.mxu0
        %v9399 = vadd.f32 %v9286, %v9398
        %9400 = vmatmul.f32.gmra.mxu0 %v8852
        %v9401 = vpop.f32.mrf.mxu0
        %v9402 = vadd.f32 %v9289, %v9401
        %9403 = vdwg.mxu0
        %9404 = vmatpush.msra.mxu0 0.0
        %9405 = vmatpush.msra.mxu0 0.0
        %9406 = vmatpush.msra.mxu0 0.0
        %9407 = vmatpush.msra.mxu0 0.0
        %9408 = vmatpush.msra.mxu0 0.0
        %9409 = vmatpush.msra.mxu0 0.0
        %9410 = vmatpush.msra.mxu0 0.0
        %9411 = vmatpush.msra.mxu0 0.0
        %9412 = vmatpush.msra.mxu0 %v7922
        %9413 = vmatpush.msra.mxu0 %v7921
        %9414 = vmatpush.msra.mxu0 %v7920
        %9415 = vmatpush.msra.mxu0 %v7919
        %9416 = vmatpush.msra.mxu0 %v7918
        %9417 = vmatpush.msra.mxu0 %v7917
        %9418 = vmatpush.msra.mxu0 %v7916
        %9419 = vmatpush.msra.mxu0 %v7915
        %9420 = vmatmul.f32.gmra.mxu0 %v8857
        %v9421 = vpop.f32.mrf.mxu0
        %v9422 = vadd.f32 %v9309, %v9421
        %9423 = vmatmul.f32.gmra.mxu0 %v8860
        %v9424 = vpop.f32.mrf.mxu0
        %v9425 = vadd.f32 %v9312, %v9424
        %9426 = vmatmul.f32.gmra.mxu0 %v8863
        %v9427 = vpop.f32.mrf.mxu0
        %v9428 = vadd.f32 %v9315, %v9427
        %9429 = vmatmul.f32.gmra.mxu0 %v8866
        %v9430 = vpop.f32.mrf.mxu0
        %v9431 = vadd.f32 %v9318, %v9430
        %9432 = vmatmul.f32.gmra.mxu0 %v8869
        %v9433 = vpop.f32.mrf.mxu0
        %v9434 = vadd.f32 %v9321, %v9433
        %9435 = vmatmul.f32.gmra.mxu0 %v8872
        %v9436 = vpop.f32.mrf.mxu0
        %v9437 = vadd.f32 %v9324, %v9436
        %9438 = vmatmul.f32.gmra.mxu0 %v8875
        %v9439 = vpop.f32.mrf.mxu0
        %v9440 = vadd.f32 %v9327, %v9439
        %9441 = vmatmul.f32.gmra.mxu0 %v8878
        %v9442 = vpop.f32.mrf.mxu0
        %v9443 = vadd.f32 %v9330, %v9442
        %9444 = vmatmul.f32.gmra.mxu0 %v8881
        %v9445 = vpop.f32.mrf.mxu0
        %v9446 = vadd.f32 %v9333, %v9445
        %9447 = vmatmul.f32.gmra.mxu0 %v8884
        %v9448 = vpop.f32.mrf.mxu0
        %v9449 = vadd.f32 %v9336, %v9448
        %9450 = vmatmul.f32.gmra.mxu0 %v8887
        %v9451 = vpop.f32.mrf.mxu0
        %v9452 = vadd.f32 %v9339, %v9451
        %9453 = vmatmul.f32.gmra.mxu0 %v8890
        %v9454 = vpop.f32.mrf.mxu0
        %v9455 = vadd.f32 %v9342, %v9454
        %9456 = vmatmul.f32.gmra.mxu0 %v8893
        %v9457 = vpop.f32.mrf.mxu0
        %v9458 = vadd.f32 %v9345, %v9457
        %9459 = vmatmul.f32.gmra.mxu0 %v8896
        %v9460 = vpop.f32.mrf.mxu0
        %v9461 = vadd.f32 %v9348, %v9460
        %9462 = vmatmul.f32.gmra.mxu0 %v8899
        %v9463 = vpop.f32.mrf.mxu0
        %v9464 = vadd.f32 %v9351, %v9463
        %9465 = vmatmul.f32.gmra.mxu0 %v8902
        %v9466 = vpop.f32.mrf.mxu0
        %v9467 = vadd.f32 %v9354, %v9466
        %9468 = vmatmul.f32.gmra.mxu0 %v8905
        %v9469 = vpop.f32.mrf.mxu0
        %v9470 = vadd.f32 %v9357, %v9469
        %9471 = vmatmul.f32.gmra.mxu0 %v8908
        %v9472 = vpop.f32.mrf.mxu0
        %v9473 = vadd.f32 %v9360, %v9472
        %9474 = vmatmul.f32.gmra.mxu0 %v8911
        %v9475 = vpop.f32.mrf.mxu0
        %v9476 = vadd.f32 %v9363, %v9475
        %9477 = vmatmul.f32.gmra.mxu0 %v8914
        %v9478 = vpop.f32.mrf.mxu0
        %v9479 = vadd.f32 %v9366, %v9478
        %9480 = vmatmul.f32.gmra.mxu0 %v8917
        %v9481 = vpop.f32.mrf.mxu0
        %v9482 = vadd.f32 %v9369, %v9481
        %9483 = vmatmul.f32.gmra.mxu0 %v8920
        %v9484 = vpop.f32.mrf.mxu0
        %v9485 = vadd.f32 %v9372, %v9484
        %9486 = vmatmul.f32.gmra.mxu0 %v8923
        %v9487 = vpop.f32.mrf.mxu0
        %v9488 = vadd.f32 %v9375, %v9487
        %9489 = vmatmul.f32.gmra.mxu0 %v8926
        %v9490 = vpop.f32.mrf.mxu0
        %v9491 = vadd.f32 %v9378, %v9490
        %9492 = vmatmul.f32.gmra.mxu0 %v8929
        %v9493 = vpop.f32.mrf.mxu0
        %v9494 = vadd.f32 %v9381, %v9493
        %9495 = vmatmul.f32.gmra.mxu0 %v8932
        %v9496 = vpop.f32.mrf.mxu0
        %v9497 = vadd.f32 %v9384, %v9496
        %9498 = vmatmul.f32.gmra.mxu0 %v8935
        %v9499 = vpop.f32.mrf.mxu0
        %v9500 = vadd.f32 %v9387, %v9499
        %9501 = vmatmul.f32.gmra.mxu0 %v8938
        %v9502 = vpop.f32.mrf.mxu0
        %v9503 = vadd.f32 %v9390, %v9502
        %9504 = vmatmul.f32.gmra.mxu0 %v8941
        %v9505 = vpop.f32.mrf.mxu0
        %v9506 = vadd.f32 %v9393, %v9505
        %9507 = vmatmul.f32.gmra.mxu0 %v8944
        %v9508 = vpop.f32.mrf.mxu0
        %v9509 = vadd.f32 %v9396, %v9508
        %9510 = vmatmul.f32.gmra.mxu0 %v8947
        %v9511 = vpop.f32.mrf.mxu0
        %v9512 = vadd.f32 %v9399, %v9511
        %9513 = vmatmul.f32.gmra.mxu0 %v8950
        %v9514 = vpop.f32.mrf.mxu0
        %v9515 = vadd.f32 %v9402, %v9514
        %9516 = vdwg.mxu0
        %v9517 = vld [vmem:[%s2465 + $0x1] sm:$0xff]
        %v9518 = vld [vmem:[%s2465 + $0x9] sm:$0xff]
        %v9519 = vld [vmem:[%s2465 + $0x19] sm:$0xff]
        %v9520 = vld [vmem:[%s2465 + $0x21] sm:$0xff]
        %v9521 = vld [vmem:[%s2465 + $0x31] sm:$0xff]
        %v9522 = vld [vmem:[%s2465 + $0x39] sm:$0xff]
        %v9523 = vld [vmem:[%s2465 + $0x49] sm:$0xff]
        %v9524 = vld [vmem:[%s2465 + $0x51] sm:$0xff]
        %v9525 = vld [vmem:[%s2465 + $0x61] sm:$0xff]
        %v9526 = vld [vmem:[%s2465 + $0x69] sm:$0xff]
        %v9527 = vld [vmem:[%s2465 + $0x79] sm:$0xff]
        %v9528 = vld [vmem:[%s2465 + $0x81] sm:$0xff]
        %v9529 = vld [vmem:[%s2465 + $0x91] sm:$0xff]
        %v9530 = vld [vmem:[%s2465 + $0x99] sm:$0xff]
        %v9531 = vld [vmem:[%s2465 + $0xa9] sm:$0xff]
        %v9532 = vld [vmem:[%s2465 + $0xb1] sm:$0xff]
        %v9533 = vld [vmem:[%s2465 + $0xc1] sm:$0xff]
        %v9534 = vld [vmem:[%s2465 + $0xc9] sm:$0xff]
        %v9535 = vld [vmem:[%s2465 + $0xd9] sm:$0xff]
        %v9536 = vld [vmem:[%s2465 + $0xe1] sm:$0xff]
        %v9537 = vld [vmem:[%s2465 + $0xf1] sm:$0xff]
        %v9538 = vld [vmem:[%s2465 + $0xf9] sm:$0xff]
        %v9539 = vld [vmem:[%s2465 + $0x109] sm:$0xff]
        %v9540 = vld [vmem:[%s2465 + $0x111] sm:$0xff]
        %v9541 = vld [vmem:[%s2465 + $0x121] sm:$0xff]
        %v9542 = vld [vmem:[%s2465 + $0x129] sm:$0xff]
        %v9543 = vld [vmem:[%s2465 + $0x139] sm:$0xff]
        %v9544 = vld [vmem:[%s2465 + $0x141] sm:$0xff]
        %v9545 = vld [vmem:[%s2465 + $0x151] sm:$0xff]
        %v9546 = vld [vmem:[%s2465 + $0x159] sm:$0xff]
        %v9547 = vld [vmem:[%s2465 + $0x169] sm:$0xff]
        %v9548 = vld [vmem:[%s2465 + $0x171] sm:$0xff]
        %v9549 = vadd.f32 %v9422, %v9517
        %v9550 = vadd.f32 %v9425, %v9518
        %v9551 = vadd.f32 %v9428, %v9519
        %v9552 = vadd.f32 %v9431, %v9520
        %v9553 = vadd.f32 %v9434, %v9521
        %v9554 = vadd.f32 %v9437, %v9522
        %v9555 = vadd.f32 %v9440, %v9523
        %v9556 = vadd.f32 %v9443, %v9524
        %v9557 = vadd.f32 %v9446, %v9525
        %v9558 = vadd.f32 %v9449, %v9526
        %v9559 = vadd.f32 %v9452, %v9527
        %v9560 = vadd.f32 %v9455, %v9528
        %v9561 = vadd.f32 %v9458, %v9529
        %v9562 = vadd.f32 %v9461, %v9530
        %v9563 = vadd.f32 %v9464, %v9531
        %v9564 = vadd.f32 %v9467, %v9532
        %v9565 = vadd.f32 %v9470, %v9533
        %v9566 = vadd.f32 %v9473, %v9534
        %v9567 = vadd.f32 %v9476, %v9535
        %v9568 = vadd.f32 %v9479, %v9536
        %v9569 = vadd.f32 %v9482, %v9537
        %v9570 = vadd.f32 %v9485, %v9538
        %v9571 = vadd.f32 %v9488, %v9539
        %v9572 = vadd.f32 %v9491, %v9540
        %v9573 = vadd.f32 %v9494, %v9541
        %v9574 = vadd.f32 %v9497, %v9542
        %v9575 = vadd.f32 %v9500, %v9543
        %v9576 = vadd.f32 %v9503, %v9544
        %v9577 = vadd.f32 %v9506, %v9545
        %v9578 = vadd.f32 %v9509, %v9546
        %v9579 = vadd.f32 %v9512, %v9547
        %v9580 = vadd.f32 %v9515, %v9548
        %9581 = vst.msk [vmem:[%s2465 + $0x1] sm:$0xff] %vm389, %v9549
        %9582 = vst.msk [vmem:[%s2465 + $0x9] sm:$0xff] %vm389, %v9550
        %9583 = vst.msk [vmem:[%s2465 + $0x19] sm:$0xff] %vm389, %v9551
        %9584 = vst.msk [vmem:[%s2465 + $0x21] sm:$0xff] %vm389, %v9552
        %9585 = vst.msk [vmem:[%s2465 + $0x31] sm:$0xff] %vm389, %v9553
        %9586 = vst.msk [vmem:[%s2465 + $0x39] sm:$0xff] %vm389, %v9554
        %9587 = vst.msk [vmem:[%s2465 + $0x49] sm:$0xff] %vm389, %v9555
        %9588 = vst.msk [vmem:[%s2465 + $0x51] sm:$0xff] %vm389, %v9556
        %9589 = vst.msk [vmem:[%s2465 + $0x61] sm:$0xff] %vm389, %v9557
        %9590 = vst.msk [vmem:[%s2465 + $0x69] sm:$0xff] %vm389, %v9558
        %9591 = vst.msk [vmem:[%s2465 + $0x79] sm:$0xff] %vm389, %v9559
        %9592 = vst.msk [vmem:[%s2465 + $0x81] sm:$0xff] %vm389, %v9560
        %9593 = vst.msk [vmem:[%s2465 + $0x91] sm:$0xff] %vm389, %v9561
        %9594 = vst.msk [vmem:[%s2465 + $0x99] sm:$0xff] %vm389, %v9562
        %9595 = vst.msk [vmem:[%s2465 + $0xa9] sm:$0xff] %vm389, %v9563
        %9596 = vst.msk [vmem:[%s2465 + $0xb1] sm:$0xff] %vm389, %v9564
        %9597 = vst.msk [vmem:[%s2465 + $0xc1] sm:$0xff] %vm389, %v9565
        %9598 = vst.msk [vmem:[%s2465 + $0xc9] sm:$0xff] %vm389, %v9566
        %9599 = vst.msk [vmem:[%s2465 + $0xd9] sm:$0xff] %vm389, %v9567
        %9600 = vst.msk [vmem:[%s2465 + $0xe1] sm:$0xff] %vm389, %v9568
        %9601 = vst.msk [vmem:[%s2465 + $0xf1] sm:$0xff] %vm389, %v9569
        %9602 = vst.msk [vmem:[%s2465 + $0xf9] sm:$0xff] %vm389, %v9570
        %9603 = vst.msk [vmem:[%s2465 + $0x109] sm:$0xff] %vm389, %v9571
        %9604 = vst.msk [vmem:[%s2465 + $0x111] sm:$0xff] %vm389, %v9572
        %9605 = vst.msk [vmem:[%s2465 + $0x121] sm:$0xff] %vm389, %v9573
        %9606 = vst.msk [vmem:[%s2465 + $0x129] sm:$0xff] %vm389, %v9574
        %9607 = vst.msk [vmem:[%s2465 + $0x139] sm:$0xff] %vm389, %v9575
        %9608 = vst.msk [vmem:[%s2465 + $0x141] sm:$0xff] %vm389, %v9576
        %9609 = vst.msk [vmem:[%s2465 + $0x151] sm:$0xff] %vm389, %v9577
        %9610 = vst.msk [vmem:[%s2465 + $0x159] sm:$0xff] %vm389, %v9578
        %9611 = vst.msk [vmem:[%s2465 + $0x169] sm:$0xff] %vm389, %v9579
        %9612 = vst.msk [vmem:[%s2465 + $0x171] sm:$0xff] %vm389, %v9580
        %v9613 = vld [vmem:[#allocation3] sm:$0xff]
        %v9614 = vld [vmem:[#allocation3 + $0x8] sm:$0xff]
        %v9615 = vld [vmem:[#allocation3 + $0x18] sm:$0xff]
        %v9616 = vld [vmem:[#allocation3 + $0x20] sm:$0xff]
        %v9617 = vld [vmem:[#allocation3 + $0x30] sm:$0xff]
        %v9618 = vld [vmem:[#allocation3 + $0x38] sm:$0xff]
        %v9619 = vld [vmem:[#allocation3 + $0x48] sm:$0xff]
        %v9620 = vld [vmem:[#allocation3 + $0x50] sm:$0xff]
        %v9621 = vld [vmem:[#allocation3 + $0x60] sm:$0xff]
        %v9622 = vld [vmem:[#allocation3 + $0x68] sm:$0xff]
        %v9623 = vld [vmem:[#allocation3 + $0x78] sm:$0xff]
        %v9624 = vld [vmem:[#allocation3 + $0x80] sm:$0xff]
        %v9625 = vld [vmem:[#allocation3 + $0x90] sm:$0xff]
        %v9626 = vld [vmem:[#allocation3 + $0x98] sm:$0xff]
        %v9627 = vld [vmem:[#allocation3 + $0xa8] sm:$0xff]
        %v9628 = vld [vmem:[#allocation3 + $0xb0] sm:$0xff]
        %v9629 = vld [vmem:[#allocation3 + $0xc0] sm:$0xff]
        %v9630 = vld [vmem:[#allocation3 + $0xc8] sm:$0xff]
        %v9631 = vld [vmem:[#allocation3 + $0xd8] sm:$0xff]
        %v9632 = vld [vmem:[#allocation3 + $0xe0] sm:$0xff]
        %v9633 = vld [vmem:[#allocation3 + $0xf0] sm:$0xff]
        %v9634 = vld [vmem:[#allocation3 + $0xf8] sm:$0xff]
        %v9635 = vld [vmem:[#allocation3 + $0x108] sm:$0xff]
        %v9636 = vld [vmem:[#allocation3 + $0x110] sm:$0xff]
        %v9637 = vld [vmem:[#allocation3 + $0x120] sm:$0xff]
        %v9638 = vld [vmem:[#allocation3 + $0x128] sm:$0xff]
        %v9639 = vld [vmem:[#allocation3 + $0x138] sm:$0xff]
        %v9640 = vld [vmem:[#allocation3 + $0x140] sm:$0xff]
        %v9641 = vld [vmem:[#allocation3 + $0x150] sm:$0xff]
        %v9642 = vld [vmem:[#allocation3 + $0x158] sm:$0xff]
        %v9643 = vld [vmem:[#allocation3 + $0x168] sm:$0xff]
        %v9644 = vld [vmem:[#allocation3 + $0x170] sm:$0xff]
        %v9645 = vld [vmem:[#allocation3 + $0x1] sm:$0xff]
        %v9646 = vld [vmem:[#allocation3 + $0x9] sm:$0xff]
        %v9647 = vld [vmem:[#allocation3 + $0x19] sm:$0xff]
        %v9648 = vld [vmem:[#allocation3 + $0x21] sm:$0xff]
        %v9649 = vld [vmem:[#allocation3 + $0x31] sm:$0xff]
        %v9650 = vld [vmem:[#allocation3 + $0x39] sm:$0xff]
        %v9651 = vld [vmem:[#allocation3 + $0x49] sm:$0xff]
        %v9652 = vld [vmem:[#allocation3 + $0x51] sm:$0xff]
        %v9653 = vld [vmem:[#allocation3 + $0x61] sm:$0xff]
        %v9654 = vld [vmem:[#allocation3 + $0x69] sm:$0xff]
        %v9655 = vld [vmem:[#allocation3 + $0x79] sm:$0xff]
        %v9656 = vld [vmem:[#allocation3 + $0x81] sm:$0xff]
        %v9657 = vld [vmem:[#allocation3 + $0x91] sm:$0xff]
        %v9658 = vld [vmem:[#allocation3 + $0x99] sm:$0xff]
        %v9659 = vld [vmem:[#allocation3 + $0xa9] sm:$0xff]
        %v9660 = vld [vmem:[#allocation3 + $0xb1] sm:$0xff]
        %v9661 = vld [vmem:[#allocation3 + $0xc1] sm:$0xff]
        %v9662 = vld [vmem:[#allocation3 + $0xc9] sm:$0xff]
        %v9663 = vld [vmem:[#allocation3 + $0xd9] sm:$0xff]
        %v9664 = vld [vmem:[#allocation3 + $0xe1] sm:$0xff]
        %v9665 = vld [vmem:[#allocation3 + $0xf1] sm:$0xff]
        %v9666 = vld [vmem:[#allocation3 + $0xf9] sm:$0xff]
        %v9667 = vld [vmem:[#allocation3 + $0x109] sm:$0xff]
        %v9668 = vld [vmem:[#allocation3 + $0x111] sm:$0xff]
        %v9669 = vld [vmem:[#allocation3 + $0x121] sm:$0xff]
        %v9670 = vld [vmem:[#allocation3 + $0x129] sm:$0xff]
        %v9671 = vld [vmem:[#allocation3 + $0x139] sm:$0xff]
        %v9672 = vld [vmem:[#allocation3 + $0x141] sm:$0xff]
        %v9673 = vld [vmem:[#allocation3 + $0x151] sm:$0xff]
        %v9674 = vld [vmem:[#allocation3 + $0x159] sm:$0xff]
        %v9675 = vld [vmem:[#allocation3 + $0x169] sm:$0xff]
        %v9676 = vld [vmem:[#allocation3 + $0x171] sm:$0xff]
        %v9677 = vld [vmem:[#allocation3 + $0x2] sm:$0xff]
        %v9678 = vld [vmem:[#allocation3 + $0xa] sm:$0xff]
        %v9679 = vld [vmem:[#allocation3 + $0x1a] sm:$0xff]
        %v9680 = vld [vmem:[#allocation3 + $0x22] sm:$0xff]
        %v9681 = vld [vmem:[#allocation3 + $0x32] sm:$0xff]
        %v9682 = vld [vmem:[#allocation3 + $0x3a] sm:$0xff]
        %v9683 = vld [vmem:[#allocation3 + $0x4a] sm:$0xff]
        %v9684 = vld [vmem:[#allocation3 + $0x52] sm:$0xff]
        %v9685 = vld [vmem:[#allocation3 + $0x62] sm:$0xff]
        %v9686 = vld [vmem:[#allocation3 + $0x6a] sm:$0xff]
        %v9687 = vld [vmem:[#allocation3 + $0x7a] sm:$0xff]
        %v9688 = vld [vmem:[#allocation3 + $0x82] sm:$0xff]
        %v9689 = vld [vmem:[#allocation3 + $0x92] sm:$0xff]
        %v9690 = vld [vmem:[#allocation3 + $0x9a] sm:$0xff]
        %v9691 = vld [vmem:[#allocation3 + $0xaa] sm:$0xff]
        %v9692 = vld [vmem:[#allocation3 + $0xb2] sm:$0xff]
        %v9693 = vld [vmem:[#allocation3 + $0xc2] sm:$0xff]
        %v9694 = vld [vmem:[#allocation3 + $0xca] sm:$0xff]
        %v9695 = vld [vmem:[#allocation3 + $0xda] sm:$0xff]
        %v9696 = vld [vmem:[#allocation3 + $0xe2] sm:$0xff]
        %v9697 = vld [vmem:[#allocation3 + $0xf2] sm:$0xff]
        %v9698 = vld [vmem:[#allocation3 + $0xfa] sm:$0xff]
        %v9699 = vld [vmem:[#allocation3 + $0x10a] sm:$0xff]
        %v9700 = vld [vmem:[#allocation3 + $0x112] sm:$0xff]
        %v9701 = vld [vmem:[#allocation3 + $0x122] sm:$0xff]
        %v9702 = vld [vmem:[#allocation3 + $0x12a] sm:$0xff]
        %v9703 = vld [vmem:[#allocation3 + $0x13a] sm:$0xff]
        %v9704 = vld [vmem:[#allocation3 + $0x142] sm:$0xff]
        %v9705 = vld [vmem:[#allocation3 + $0x152] sm:$0xff]
        %v9706 = vld [vmem:[#allocation3 + $0x15a] sm:$0xff]
        %v9707 = vld [vmem:[#allocation3 + $0x16a] sm:$0xff]
        %v9708 = vld [vmem:[#allocation3 + $0x172] sm:$0xff]
        %v9709 = vld [vmem:[%s2465] sm:$0xff]
        %v9710 = vld [vmem:[%s2465 + $0x8] sm:$0xff]
        %v9711 = vld [vmem:[%s2465 + $0x18] sm:$0xff]
        %v9712 = vld [vmem:[%s2465 + $0x20] sm:$0xff]
        %v9713 = vld [vmem:[%s2465 + $0x30] sm:$0xff]
        %v9714 = vld [vmem:[%s2465 + $0x38] sm:$0xff]
        %v9715 = vld [vmem:[%s2465 + $0x48] sm:$0xff]
        %v9716 = vld [vmem:[%s2465 + $0x50] sm:$0xff]
        %v9717 = vld [vmem:[%s2465 + $0x60] sm:$0xff]
        %v9718 = vld [vmem:[%s2465 + $0x68] sm:$0xff]
        %v9719 = vld [vmem:[%s2465 + $0x78] sm:$0xff]
        %v9720 = vld [vmem:[%s2465 + $0x80] sm:$0xff]
        %v9721 = vld [vmem:[%s2465 + $0x90] sm:$0xff]
        %v9722 = vld [vmem:[%s2465 + $0x98] sm:$0xff]
        %v9723 = vld [vmem:[%s2465 + $0xa8] sm:$0xff]
        %v9724 = vld [vmem:[%s2465 + $0xb0] sm:$0xff]
        %v9725 = vld [vmem:[%s2465 + $0xc0] sm:$0xff]
        %v9726 = vld [vmem:[%s2465 + $0xc8] sm:$0xff]
        %v9727 = vld [vmem:[%s2465 + $0xd8] sm:$0xff]
        %v9728 = vld [vmem:[%s2465 + $0xe0] sm:$0xff]
        %v9729 = vld [vmem:[%s2465 + $0xf0] sm:$0xff]
        %v9730 = vld [vmem:[%s2465 + $0xf8] sm:$0xff]
        %v9731 = vld [vmem:[%s2465 + $0x108] sm:$0xff]
        %v9732 = vld [vmem:[%s2465 + $0x110] sm:$0xff]
        %v9733 = vld [vmem:[%s2465 + $0x120] sm:$0xff]
        %v9734 = vld [vmem:[%s2465 + $0x128] sm:$0xff]
        %v9735 = vld [vmem:[%s2465 + $0x138] sm:$0xff]
        %v9736 = vld [vmem:[%s2465 + $0x140] sm:$0xff]
        %v9737 = vld [vmem:[%s2465 + $0x150] sm:$0xff]
        %v9738 = vld [vmem:[%s2465 + $0x158] sm:$0xff]
        %v9739 = vld [vmem:[%s2465 + $0x168] sm:$0xff]
        %v9740 = vld [vmem:[%s2465 + $0x170] sm:$0xff]
        %v9741 = vld [vmem:[%s2465 + $0x1] sm:$0xff]
        %v9742 = vld [vmem:[%s2465 + $0x9] sm:$0xff]
        %v9743 = vld [vmem:[%s2465 + $0x19] sm:$0xff]
        %v9744 = vld [vmem:[%s2465 + $0x21] sm:$0xff]
        %v9745 = vld [vmem:[%s2465 + $0x31] sm:$0xff]
        %v9746 = vld [vmem:[%s2465 + $0x39] sm:$0xff]
        %v9747 = vld [vmem:[%s2465 + $0x49] sm:$0xff]
        %v9748 = vld [vmem:[%s2465 + $0x51] sm:$0xff]
        %v9749 = vld [vmem:[%s2465 + $0x61] sm:$0xff]
        %v9750 = vld [vmem:[%s2465 + $0x69] sm:$0xff]
        %v9751 = vld [vmem:[%s2465 + $0x79] sm:$0xff]
        %v9752 = vld [vmem:[%s2465 + $0x81] sm:$0xff]
        %v9753 = vld [vmem:[%s2465 + $0x91] sm:$0xff]
        %v9754 = vld [vmem:[%s2465 + $0x99] sm:$0xff]
        %v9755 = vld [vmem:[%s2465 + $0xa9] sm:$0xff]
        %v9756 = vld [vmem:[%s2465 + $0xb1] sm:$0xff]
        %v9757 = vld [vmem:[%s2465 + $0xc1] sm:$0xff]
        %v9758 = vld [vmem:[%s2465 + $0xc9] sm:$0xff]
        %v9759 = vld [vmem:[%s2465 + $0xd9] sm:$0xff]
        %v9760 = vld [vmem:[%s2465 + $0xe1] sm:$0xff]
        %v9761 = vld [vmem:[%s2465 + $0xf1] sm:$0xff]
        %v9762 = vld [vmem:[%s2465 + $0xf9] sm:$0xff]
        %v9763 = vld [vmem:[%s2465 + $0x109] sm:$0xff]
        %v9764 = vld [vmem:[%s2465 + $0x111] sm:$0xff]
        %v9765 = vld [vmem:[%s2465 + $0x121] sm:$0xff]
        %v9766 = vld [vmem:[%s2465 + $0x129] sm:$0xff]
        %v9767 = vld [vmem:[%s2465 + $0x139] sm:$0xff]
        %v9768 = vld [vmem:[%s2465 + $0x141] sm:$0xff]
        %v9769 = vld [vmem:[%s2465 + $0x151] sm:$0xff]
        %v9770 = vld [vmem:[%s2465 + $0x159] sm:$0xff]
        %v9771 = vld [vmem:[%s2465 + $0x169] sm:$0xff]
        %v9772 = vld [vmem:[%s2465 + $0x171] sm:$0xff]
        %v9773 = vld [vmem:[%s2465 + $0x2] sm:$0xff]
        %v9774 = vld [vmem:[%s2465 + $0xa] sm:$0xff]
        %v9775 = vld [vmem:[%s2465 + $0x1a] sm:$0xff]
        %v9776 = vld [vmem:[%s2465 + $0x22] sm:$0xff]
        %v9777 = vld [vmem:[%s2465 + $0x32] sm:$0xff]
        %v9778 = vld [vmem:[%s2465 + $0x3a] sm:$0xff]
        %v9779 = vld [vmem:[%s2465 + $0x4a] sm:$0xff]
        %v9780 = vld [vmem:[%s2465 + $0x52] sm:$0xff]
        %v9781 = vld [vmem:[%s2465 + $0x62] sm:$0xff]
        %v9782 = vld [vmem:[%s2465 + $0x6a] sm:$0xff]
        %v9783 = vld [vmem:[%s2465 + $0x7a] sm:$0xff]
        %v9784 = vld [vmem:[%s2465 + $0x82] sm:$0xff]
        %v9785 = vld [vmem:[%s2465 + $0x92] sm:$0xff]
        %v9786 = vld [vmem:[%s2465 + $0x9a] sm:$0xff]
        %v9787 = vld [vmem:[%s2465 + $0xaa] sm:$0xff]
        %v9788 = vld [vmem:[%s2465 + $0xb2] sm:$0xff]
        %v9789 = vld [vmem:[%s2465 + $0xc2] sm:$0xff]
        %v9790 = vld [vmem:[%s2465 + $0xca] sm:$0xff]
        %v9791 = vld [vmem:[%s2465 + $0xda] sm:$0xff]
        %v9792 = vld [vmem:[%s2465 + $0xe2] sm:$0xff]
        %v9793 = vld [vmem:[%s2465 + $0xf2] sm:$0xff]
        %v9794 = vld [vmem:[%s2465 + $0xfa] sm:$0xff]
        %v9795 = vld [vmem:[%s2465 + $0x10a] sm:$0xff]
        %v9796 = vld [vmem:[%s2465 + $0x112] sm:$0xff]
        %v9797 = vld [vmem:[%s2465 + $0x122] sm:$0xff]
        %v9798 = vld [vmem:[%s2465 + $0x12a] sm:$0xff]
        %v9799 = vld [vmem:[%s2465 + $0x13a] sm:$0xff]
        %v9800 = vld [vmem:[%s2465 + $0x142] sm:$0xff]
        %v9801 = vld [vmem:[%s2465 + $0x152] sm:$0xff]
        %v9802 = vld [vmem:[%s2465 + $0x15a] sm:$0xff]
        %v9803 = vld [vmem:[%s2465 + $0x16a] sm:$0xff]
        %v9804 = vld [vmem:[%s2465 + $0x172] sm:$0xff]
        %v9805 = vld [vmem:[%s2763] sm:$0xff]
        %v9806 = vld [vmem:[%s2763 + $0x8] sm:$0xff]
        %v9807 = vld [vmem:[%s2763 + $0x18] sm:$0xff]
        %v9808 = vld [vmem:[%s2763 + $0x20] sm:$0xff]
        %v9809 = vld [vmem:[%s2763 + $0x30] sm:$0xff]
        %v9810 = vld [vmem:[%s2763 + $0x38] sm:$0xff]
        %v9811 = vld [vmem:[%s2763 + $0x48] sm:$0xff]
        %v9812 = vld [vmem:[%s2763 + $0x50] sm:$0xff]
        %v9813 = vld [vmem:[%s2763 + $0x60] sm:$0xff]
        %v9814 = vld [vmem:[%s2763 + $0x68] sm:$0xff]
        %v9815 = vld [vmem:[%s2763 + $0x78] sm:$0xff]
        %v9816 = vld [vmem:[%s2763 + $0x80] sm:$0xff]
        %v9817 = vld [vmem:[%s2763 + $0x90] sm:$0xff]
        %v9818 = vld [vmem:[%s2763 + $0x98] sm:$0xff]
        %v9819 = vld [vmem:[%s2763 + $0xa8] sm:$0xff]
        %v9820 = vld [vmem:[%s2763 + $0xb0] sm:$0xff]
        %v9821 = vld [vmem:[%s2763 + $0xc0] sm:$0xff]
        %v9822 = vld [vmem:[%s2763 + $0xc8] sm:$0xff]
        %v9823 = vld [vmem:[%s2763 + $0xd8] sm:$0xff]
        %v9824 = vld [vmem:[%s2763 + $0xe0] sm:$0xff]
        %v9825 = vld [vmem:[%s2763 + $0xf0] sm:$0xff]
        %v9826 = vld [vmem:[%s2763 + $0xf8] sm:$0xff]
        %v9827 = vld [vmem:[%s2763 + $0x108] sm:$0xff]
        %v9828 = vld [vmem:[%s2763 + $0x110] sm:$0xff]
        %v9829 = vld [vmem:[%s2763 + $0x120] sm:$0xff]
        %v9830 = vld [vmem:[%s2763 + $0x128] sm:$0xff]
        %v9831 = vld [vmem:[%s2763 + $0x138] sm:$0xff]
        %v9832 = vld [vmem:[%s2763 + $0x140] sm:$0xff]
        %v9833 = vld [vmem:[%s2763 + $0x150] sm:$0xff]
        %v9834 = vld [vmem:[%s2763 + $0x158] sm:$0xff]
        %v9835 = vld [vmem:[%s2763 + $0x168] sm:$0xff]
        %v9836 = vld [vmem:[%s2763 + $0x170] sm:$0xff]
        %v9837 = vld [vmem:[%s2763 + $0x1] sm:$0xff]
        %v9838 = vld [vmem:[%s2763 + $0x9] sm:$0xff]
        %v9839 = vld [vmem:[%s2763 + $0x19] sm:$0xff]
        %v9840 = vld [vmem:[%s2763 + $0x21] sm:$0xff]
        %v9841 = vld [vmem:[%s2763 + $0x31] sm:$0xff]
        %v9842 = vld [vmem:[%s2763 + $0x39] sm:$0xff]
        %v9843 = vld [vmem:[%s2763 + $0x49] sm:$0xff]
        %v9844 = vld [vmem:[%s2763 + $0x51] sm:$0xff]
        %v9845 = vld [vmem:[%s2763 + $0x61] sm:$0xff]
        %v9846 = vld [vmem:[%s2763 + $0x69] sm:$0xff]
        %v9847 = vld [vmem:[%s2763 + $0x79] sm:$0xff]
        %v9848 = vld [vmem:[%s2763 + $0x81] sm:$0xff]
        %v9849 = vld [vmem:[%s2763 + $0x91] sm:$0xff]
        %v9850 = vld [vmem:[%s2763 + $0x99] sm:$0xff]
        %v9851 = vld [vmem:[%s2763 + $0xa9] sm:$0xff]
        %v9852 = vld [vmem:[%s2763 + $0xb1] sm:$0xff]
        %v9853 = vld [vmem:[%s2763 + $0xc1] sm:$0xff]
        %v9854 = vld [vmem:[%s2763 + $0xc9] sm:$0xff]
        %v9855 = vld [vmem:[%s2763 + $0xd9] sm:$0xff]
        %v9856 = vld [vmem:[%s2763 + $0xe1] sm:$0xff]
        %v9857 = vld [vmem:[%s2763 + $0xf1] sm:$0xff]
        %v9858 = vld [vmem:[%s2763 + $0xf9] sm:$0xff]
        %v9859 = vld [vmem:[%s2763 + $0x109] sm:$0xff]
        %v9860 = vld [vmem:[%s2763 + $0x111] sm:$0xff]
        %v9861 = vld [vmem:[%s2763 + $0x121] sm:$0xff]
        %v9862 = vld [vmem:[%s2763 + $0x129] sm:$0xff]
        %v9863 = vld [vmem:[%s2763 + $0x139] sm:$0xff]
        %v9864 = vld [vmem:[%s2763 + $0x141] sm:$0xff]
        %v9865 = vld [vmem:[%s2763 + $0x151] sm:$0xff]
        %v9866 = vld [vmem:[%s2763 + $0x159] sm:$0xff]
        %v9867 = vld [vmem:[%s2763 + $0x169] sm:$0xff]
        %v9868 = vld [vmem:[%s2763 + $0x171] sm:$0xff]
        %v9869 = vld [vmem:[%s2763 + $0x2] sm:$0xff]
        %v9870 = vld [vmem:[%s2763 + $0xa] sm:$0xff]
        %v9871 = vld [vmem:[%s2763 + $0x1a] sm:$0xff]
        %v9872 = vld [vmem:[%s2763 + $0x22] sm:$0xff]
        %v9873 = vld [vmem:[%s2763 + $0x32] sm:$0xff]
        %v9874 = vld [vmem:[%s2763 + $0x3a] sm:$0xff]
        %v9875 = vld [vmem:[%s2763 + $0x4a] sm:$0xff]
        %v9876 = vld [vmem:[%s2763 + $0x52] sm:$0xff]
        %v9877 = vld [vmem:[%s2763 + $0x62] sm:$0xff]
        %v9878 = vld [vmem:[%s2763 + $0x6a] sm:$0xff]
        %v9879 = vld [vmem:[%s2763 + $0x7a] sm:$0xff]
        %v9880 = vld [vmem:[%s2763 + $0x82] sm:$0xff]
        %v9881 = vld [vmem:[%s2763 + $0x92] sm:$0xff]
        %v9882 = vld [vmem:[%s2763 + $0x9a] sm:$0xff]
        %v9883 = vld [vmem:[%s2763 + $0xaa] sm:$0xff]
        %v9884 = vld [vmem:[%s2763 + $0xb2] sm:$0xff]
        %v9885 = vld [vmem:[%s2763 + $0xc2] sm:$0xff]
        %v9886 = vld [vmem:[%s2763 + $0xca] sm:$0xff]
        %v9887 = vld [vmem:[%s2763 + $0xda] sm:$0xff]
        %v9888 = vld [vmem:[%s2763 + $0xe2] sm:$0xff]
        %v9889 = vld [vmem:[%s2763 + $0xf2] sm:$0xff]
        %v9890 = vld [vmem:[%s2763 + $0xfa] sm:$0xff]
        %v9891 = vld [vmem:[%s2763 + $0x10a] sm:$0xff]
        %v9892 = vld [vmem:[%s2763 + $0x112] sm:$0xff]
        %v9893 = vld [vmem:[%s2763 + $0x122] sm:$0xff]
        %v9894 = vld [vmem:[%s2763 + $0x12a] sm:$0xff]
        %v9895 = vld [vmem:[%s2763 + $0x13a] sm:$0xff]
        %v9896 = vld [vmem:[%s2763 + $0x142] sm:$0xff]
        %v9897 = vld [vmem:[%s2763 + $0x152] sm:$0xff]
        %v9898 = vld [vmem:[%s2763 + $0x15a] sm:$0xff]
        %v9899 = vld [vmem:[%s2763 + $0x16a] sm:$0xff]
        %v9900 = vld [vmem:[%s2763 + $0x172] sm:$0xff]
        %9933 = vrot.lane.b32.xlu0 %v9645, 64
        %v9934 = vpop.permute.xlu0 %9933
        %9935 = vrot.lane.b32.xlu0 %v9646, 64
        %v9936 = vpop.permute.xlu0 %9935
        %9937 = vrot.lane.b32.xlu0 %v9647, 64
        %v9938 = vpop.permute.xlu0 %9937
        %9939 = vrot.lane.b32.xlu0 %v9648, 64
        %v9940 = vpop.permute.xlu0 %9939
        %9941 = vrot.lane.b32.xlu0 %v9649, 64
        %v9942 = vpop.permute.xlu0 %9941
        %9943 = vrot.lane.b32.xlu0 %v9650, 64
        %v9944 = vpop.permute.xlu0 %9943
        %9945 = vrot.lane.b32.xlu0 %v9651, 64
        %v9946 = vpop.permute.xlu0 %9945
        %9947 = vrot.lane.b32.xlu0 %v9652, 64
        %v9948 = vpop.permute.xlu0 %9947
        %9949 = vrot.lane.b32.xlu0 %v9653, 64
        %v9950 = vpop.permute.xlu0 %9949
        %9951 = vrot.lane.b32.xlu0 %v9654, 64
        %v9952 = vpop.permute.xlu0 %9951
        %9953 = vrot.lane.b32.xlu0 %v9655, 64
        %v9954 = vpop.permute.xlu0 %9953
        %9955 = vrot.lane.b32.xlu0 %v9656, 64
        %v9956 = vpop.permute.xlu0 %9955
        %9957 = vrot.lane.b32.xlu0 %v9657, 64
        %v9958 = vpop.permute.xlu0 %9957
        %9959 = vrot.lane.b32.xlu0 %v9658, 64
        %v9960 = vpop.permute.xlu0 %9959
        %9961 = vrot.lane.b32.xlu0 %v9659, 64
        %v9962 = vpop.permute.xlu0 %9961
        %9963 = vrot.lane.b32.xlu0 %v9660, 64
        %v9964 = vpop.permute.xlu0 %9963
        %9965 = vrot.lane.b32.xlu0 %v9661, 64
        %v9966 = vpop.permute.xlu0 %9965
        %9967 = vrot.lane.b32.xlu0 %v9662, 64
        %v9968 = vpop.permute.xlu0 %9967
        %9969 = vrot.lane.b32.xlu0 %v9663, 64
        %v9970 = vpop.permute.xlu0 %9969
        %9971 = vrot.lane.b32.xlu0 %v9664, 64
        %v9972 = vpop.permute.xlu0 %9971
        %9973 = vrot.lane.b32.xlu0 %v9665, 64
        %v9974 = vpop.permute.xlu0 %9973
        %9975 = vrot.lane.b32.xlu0 %v9666, 64
        %v9976 = vpop.permute.xlu0 %9975
        %9977 = vrot.lane.b32.xlu0 %v9667, 64
        %v9978 = vpop.permute.xlu0 %9977
        %9979 = vrot.lane.b32.xlu0 %v9668, 64
        %v9980 = vpop.permute.xlu0 %9979
        %9981 = vrot.lane.b32.xlu0 %v9669, 64
        %v9982 = vpop.permute.xlu0 %9981
        %9983 = vrot.lane.b32.xlu0 %v9670, 64
        %v9984 = vpop.permute.xlu0 %9983
        %9985 = vrot.lane.b32.xlu0 %v9671, 64
        %v9986 = vpop.permute.xlu0 %9985
        %9987 = vrot.lane.b32.xlu0 %v9672, 64
        %v9988 = vpop.permute.xlu0 %9987
        %9989 = vrot.lane.b32.xlu0 %v9673, 64
        %v9990 = vpop.permute.xlu0 %9989
        %9991 = vrot.lane.b32.xlu0 %v9674, 64
        %v9992 = vpop.permute.xlu0 %9991
        %9993 = vrot.lane.b32.xlu0 %v9675, 64
        %v9994 = vpop.permute.xlu0 %9993
        %9995 = vrot.lane.b32.xlu0 %v9676, 64
        %v9996 = vpop.permute.xlu0 %9995
        %10061 = vrot.lane.b32.xlu0 %v9709, 64
        %v10062 = vpop.permute.xlu0 %10061
        %10063 = vrot.lane.b32.xlu0 %v9710, 64
        %v10064 = vpop.permute.xlu0 %10063
        %10065 = vrot.lane.b32.xlu0 %v9711, 64
        %v10066 = vpop.permute.xlu0 %10065
        %10067 = vrot.lane.b32.xlu0 %v9712, 64
        %v10068 = vpop.permute.xlu0 %10067
        %10069 = vrot.lane.b32.xlu0 %v9713, 64
        %v10070 = vpop.permute.xlu0 %10069
        %10071 = vrot.lane.b32.xlu0 %v9714, 64
        %v10072 = vpop.permute.xlu0 %10071
        %10073 = vrot.lane.b32.xlu0 %v9715, 64
        %v10074 = vpop.permute.xlu0 %10073
        %10075 = vrot.lane.b32.xlu0 %v9716, 64
        %v10076 = vpop.permute.xlu0 %10075
        %10077 = vrot.lane.b32.xlu0 %v9717, 64
        %v10078 = vpop.permute.xlu0 %10077
        %10079 = vrot.lane.b32.xlu0 %v9718, 64
        %v10080 = vpop.permute.xlu0 %10079
        %10081 = vrot.lane.b32.xlu0 %v9719, 64
        %v10082 = vpop.permute.xlu0 %10081
        %10083 = vrot.lane.b32.xlu0 %v9720, 64
        %v10084 = vpop.permute.xlu0 %10083
        %10085 = vrot.lane.b32.xlu0 %v9721, 64
        %v10086 = vpop.permute.xlu0 %10085
        %10087 = vrot.lane.b32.xlu0 %v9722, 64
        %v10088 = vpop.permute.xlu0 %10087
        %10089 = vrot.lane.b32.xlu0 %v9723, 64
        %v10090 = vpop.permute.xlu0 %10089
        %10091 = vrot.lane.b32.xlu0 %v9724, 64
        %v10092 = vpop.permute.xlu0 %10091
        %10093 = vrot.lane.b32.xlu0 %v9725, 64
        %v10094 = vpop.permute.xlu0 %10093
        %10095 = vrot.lane.b32.xlu0 %v9726, 64
        %v10096 = vpop.permute.xlu0 %10095
        %10097 = vrot.lane.b32.xlu0 %v9727, 64
        %v10098 = vpop.permute.xlu0 %10097
        %10099 = vrot.lane.b32.xlu0 %v9728, 64
        %v10100 = vpop.permute.xlu0 %10099
        %10101 = vrot.lane.b32.xlu0 %v9729, 64
        %v10102 = vpop.permute.xlu0 %10101
        %10103 = vrot.lane.b32.xlu0 %v9730, 64
        %v10104 = vpop.permute.xlu0 %10103
        %10105 = vrot.lane.b32.xlu0 %v9731, 64
        %v10106 = vpop.permute.xlu0 %10105
        %10107 = vrot.lane.b32.xlu0 %v9732, 64
        %v10108 = vpop.permute.xlu0 %10107
        %10109 = vrot.lane.b32.xlu0 %v9733, 64
        %v10110 = vpop.permute.xlu0 %10109
        %10111 = vrot.lane.b32.xlu0 %v9734, 64
        %v10112 = vpop.permute.xlu0 %10111
        %10113 = vrot.lane.b32.xlu0 %v9735, 64
        %v10114 = vpop.permute.xlu0 %10113
        %10115 = vrot.lane.b32.xlu0 %v9736, 64
        %v10116 = vpop.permute.xlu0 %10115
        %10117 = vrot.lane.b32.xlu0 %v9737, 64
        %v10118 = vpop.permute.xlu0 %10117
        %10119 = vrot.lane.b32.xlu0 %v9738, 64
        %v10120 = vpop.permute.xlu0 %10119
        %10121 = vrot.lane.b32.xlu0 %v9739, 64
        %v10122 = vpop.permute.xlu0 %10121
        %10123 = vrot.lane.b32.xlu0 %v9740, 64
        %v10124 = vpop.permute.xlu0 %10123
        %10189 = vrot.lane.b32.xlu0 %v9773, 64
        %v10190 = vpop.permute.xlu0 %10189
        %10191 = vrot.lane.b32.xlu0 %v9774, 64
        %v10192 = vpop.permute.xlu0 %10191
        %10193 = vrot.lane.b32.xlu0 %v9775, 64
        %v10194 = vpop.permute.xlu0 %10193
        %10195 = vrot.lane.b32.xlu0 %v9776, 64
        %v10196 = vpop.permute.xlu0 %10195
        %10197 = vrot.lane.b32.xlu0 %v9777, 64
        %v10198 = vpop.permute.xlu0 %10197
        %10199 = vrot.lane.b32.xlu0 %v9778, 64
        %v10200 = vpop.permute.xlu0 %10199
        %10201 = vrot.lane.b32.xlu0 %v9779, 64
        %v10202 = vpop.permute.xlu0 %10201
        %10203 = vrot.lane.b32.xlu0 %v9780, 64
        %v10204 = vpop.permute.xlu0 %10203
        %10205 = vrot.lane.b32.xlu0 %v9781, 64
        %v10206 = vpop.permute.xlu0 %10205
        %10207 = vrot.lane.b32.xlu0 %v9782, 64
        %v10208 = vpop.permute.xlu0 %10207
        %10209 = vrot.lane.b32.xlu0 %v9783, 64
        %v10210 = vpop.permute.xlu0 %10209
        %10211 = vrot.lane.b32.xlu0 %v9784, 64
        %v10212 = vpop.permute.xlu0 %10211
        %10213 = vrot.lane.b32.xlu0 %v9785, 64
        %v10214 = vpop.permute.xlu0 %10213
        %10215 = vrot.lane.b32.xlu0 %v9786, 64
        %v10216 = vpop.permute.xlu0 %10215
        %10217 = vrot.lane.b32.xlu0 %v9787, 64
        %v10218 = vpop.permute.xlu0 %10217
        %10219 = vrot.lane.b32.xlu0 %v9788, 64
        %v10220 = vpop.permute.xlu0 %10219
        %10221 = vrot.lane.b32.xlu0 %v9789, 64
        %v10222 = vpop.permute.xlu0 %10221
        %10223 = vrot.lane.b32.xlu0 %v9790, 64
        %v10224 = vpop.permute.xlu0 %10223
        %10225 = vrot.lane.b32.xlu0 %v9791, 64
        %v10226 = vpop.permute.xlu0 %10225
        %10227 = vrot.lane.b32.xlu0 %v9792, 64
        %v10228 = vpop.permute.xlu0 %10227
        %10229 = vrot.lane.b32.xlu0 %v9793, 64
        %v10230 = vpop.permute.xlu0 %10229
        %10231 = vrot.lane.b32.xlu0 %v9794, 64
        %v10232 = vpop.permute.xlu0 %10231
        %10233 = vrot.lane.b32.xlu0 %v9795, 64
        %v10234 = vpop.permute.xlu0 %10233
        %10235 = vrot.lane.b32.xlu0 %v9796, 64
        %v10236 = vpop.permute.xlu0 %10235
        %10237 = vrot.lane.b32.xlu0 %v9797, 64
        %v10238 = vpop.permute.xlu0 %10237
        %10239 = vrot.lane.b32.xlu0 %v9798, 64
        %v10240 = vpop.permute.xlu0 %10239
        %10241 = vrot.lane.b32.xlu0 %v9799, 64
        %v10242 = vpop.permute.xlu0 %10241
        %10243 = vrot.lane.b32.xlu0 %v9800, 64
        %v10244 = vpop.permute.xlu0 %10243
        %10245 = vrot.lane.b32.xlu0 %v9801, 64
        %v10246 = vpop.permute.xlu0 %10245
        %10247 = vrot.lane.b32.xlu0 %v9802, 64
        %v10248 = vpop.permute.xlu0 %10247
        %10249 = vrot.lane.b32.xlu0 %v9803, 64
        %v10250 = vpop.permute.xlu0 %10249
        %10251 = vrot.lane.b32.xlu0 %v9804, 64
        %v10252 = vpop.permute.xlu0 %10251
        %10317 = vrot.lane.b32.xlu0 %v9837, 64
        %v10318 = vpop.permute.xlu0 %10317
        %10319 = vrot.lane.b32.xlu0 %v9838, 64
        %v10320 = vpop.permute.xlu0 %10319
        %10321 = vrot.lane.b32.xlu0 %v9839, 64
        %v10322 = vpop.permute.xlu0 %10321
        %10323 = vrot.lane.b32.xlu0 %v9840, 64
        %v10324 = vpop.permute.xlu0 %10323
        %10325 = vrot.lane.b32.xlu0 %v9841, 64
        %v10326 = vpop.permute.xlu0 %10325
        %10327 = vrot.lane.b32.xlu0 %v9842, 64
        %v10328 = vpop.permute.xlu0 %10327
        %10329 = vrot.lane.b32.xlu0 %v9843, 64
        %v10330 = vpop.permute.xlu0 %10329
        %10331 = vrot.lane.b32.xlu0 %v9844, 64
        %v10332 = vpop.permute.xlu0 %10331
        %10333 = vrot.lane.b32.xlu0 %v9845, 64
        %v10334 = vpop.permute.xlu0 %10333
        %10335 = vrot.lane.b32.xlu0 %v9846, 64
        %v10336 = vpop.permute.xlu0 %10335
        %10337 = vrot.lane.b32.xlu0 %v9847, 64
        %v10338 = vpop.permute.xlu0 %10337
        %10339 = vrot.lane.b32.xlu0 %v9848, 64
        %v10340 = vpop.permute.xlu0 %10339
        %10341 = vrot.lane.b32.xlu0 %v9849, 64
        %v10342 = vpop.permute.xlu0 %10341
        %10343 = vrot.lane.b32.xlu0 %v9850, 64
        %v10344 = vpop.permute.xlu0 %10343
        %10345 = vrot.lane.b32.xlu0 %v9851, 64
        %v10346 = vpop.permute.xlu0 %10345
        %10347 = vrot.lane.b32.xlu0 %v9852, 64
        %v10348 = vpop.permute.xlu0 %10347
        %10349 = vrot.lane.b32.xlu0 %v9853, 64
        %v10350 = vpop.permute.xlu0 %10349
        %10351 = vrot.lane.b32.xlu0 %v9854, 64
        %v10352 = vpop.permute.xlu0 %10351
        %10353 = vrot.lane.b32.xlu0 %v9855, 64
        %v10354 = vpop.permute.xlu0 %10353
        %10355 = vrot.lane.b32.xlu0 %v9856, 64
        %v10356 = vpop.permute.xlu0 %10355
        %10357 = vrot.lane.b32.xlu0 %v9857, 64
        %v10358 = vpop.permute.xlu0 %10357
        %10359 = vrot.lane.b32.xlu0 %v9858, 64
        %v10360 = vpop.permute.xlu0 %10359
        %10361 = vrot.lane.b32.xlu0 %v9859, 64
        %v10362 = vpop.permute.xlu0 %10361
        %10363 = vrot.lane.b32.xlu0 %v9860, 64
        %v10364 = vpop.permute.xlu0 %10363
        %10365 = vrot.lane.b32.xlu0 %v9861, 64
        %v10366 = vpop.permute.xlu0 %10365
        %10367 = vrot.lane.b32.xlu0 %v9862, 64
        %v10368 = vpop.permute.xlu0 %10367
        %10369 = vrot.lane.b32.xlu0 %v9863, 64
        %v10370 = vpop.permute.xlu0 %10369
        %10371 = vrot.lane.b32.xlu0 %v9864, 64
        %v10372 = vpop.permute.xlu0 %10371
        %10373 = vrot.lane.b32.xlu0 %v9865, 64
        %v10374 = vpop.permute.xlu0 %10373
        %10375 = vrot.lane.b32.xlu0 %v9866, 64
        %v10376 = vpop.permute.xlu0 %10375
        %10377 = vrot.lane.b32.xlu0 %v9867, 64
        %v10378 = vpop.permute.xlu0 %10377
        %10379 = vrot.lane.b32.xlu0 %v9868, 64
        %v10380 = vpop.permute.xlu0 %10379
        %v10413 = vsel %vm389, %v9613, %v9934
        %v10414 = vsel %vm389, %v9614, %v9936
        %v10415 = vsel %vm389, %v9615, %v9938
        %v10416 = vsel %vm389, %v9616, %v9940
        %v10417 = vsel %vm389, %v9617, %v9942
        %v10418 = vsel %vm389, %v9618, %v9944
        %v10419 = vsel %vm389, %v9619, %v9946
        %v10420 = vsel %vm389, %v9620, %v9948
        %v10421 = vsel %vm389, %v9621, %v9950
        %v10422 = vsel %vm389, %v9622, %v9952
        %v10423 = vsel %vm389, %v9623, %v9954
        %v10424 = vsel %vm389, %v9624, %v9956
        %v10425 = vsel %vm389, %v9625, %v9958
        %v10426 = vsel %vm389, %v9626, %v9960
        %v10427 = vsel %vm389, %v9627, %v9962
        %v10428 = vsel %vm389, %v9628, %v9964
        %v10429 = vsel %vm389, %v9629, %v9966
        %v10430 = vsel %vm389, %v9630, %v9968
        %v10431 = vsel %vm389, %v9631, %v9970
        %v10432 = vsel %vm389, %v9632, %v9972
        %v10433 = vsel %vm389, %v9633, %v9974
        %v10434 = vsel %vm389, %v9634, %v9976
        %v10435 = vsel %vm389, %v9635, %v9978
        %v10436 = vsel %vm389, %v9636, %v9980
        %v10437 = vsel %vm389, %v9637, %v9982
        %v10438 = vsel %vm389, %v9638, %v9984
        %v10439 = vsel %vm389, %v9639, %v9986
        %v10440 = vsel %vm389, %v9640, %v9988
        %v10441 = vsel %vm389, %v9641, %v9990
        %v10442 = vsel %vm389, %v9642, %v9992
        %v10443 = vsel %vm389, %v9643, %v9994
        %v10444 = vsel %vm389, %v9644, %v9996
        %v10445 = vsel %vm389, %v9677, %v10062
        %v10446 = vsel %vm389, %v9678, %v10064
        %v10447 = vsel %vm389, %v9679, %v10066
        %v10448 = vsel %vm389, %v9680, %v10068
        %v10449 = vsel %vm389, %v9681, %v10070
        %v10450 = vsel %vm389, %v9682, %v10072
        %v10451 = vsel %vm389, %v9683, %v10074
        %v10452 = vsel %vm389, %v9684, %v10076
        %v10453 = vsel %vm389, %v9685, %v10078
        %v10454 = vsel %vm389, %v9686, %v10080
        %v10455 = vsel %vm389, %v9687, %v10082
        %v10456 = vsel %vm389, %v9688, %v10084
        %v10457 = vsel %vm389, %v9689, %v10086
        %v10458 = vsel %vm389, %v9690, %v10088
        %v10459 = vsel %vm389, %v9691, %v10090
        %v10460 = vsel %vm389, %v9692, %v10092
        %v10461 = vsel %vm389, %v9693, %v10094
        %v10462 = vsel %vm389, %v9694, %v10096
        %v10463 = vsel %vm389, %v9695, %v10098
        %v10464 = vsel %vm389, %v9696, %v10100
        %v10465 = vsel %vm389, %v9697, %v10102
        %v10466 = vsel %vm389, %v9698, %v10104
        %v10467 = vsel %vm389, %v9699, %v10106
        %v10468 = vsel %vm389, %v9700, %v10108
        %v10469 = vsel %vm389, %v9701, %v10110
        %v10470 = vsel %vm389, %v9702, %v10112
        %v10471 = vsel %vm389, %v9703, %v10114
        %v10472 = vsel %vm389, %v9704, %v10116
        %v10473 = vsel %vm389, %v9705, %v10118
        %v10474 = vsel %vm389, %v9706, %v10120
        %v10475 = vsel %vm389, %v9707, %v10122
        %v10476 = vsel %vm389, %v9708, %v10124
        %v10477 = vsel %vm389, %v9741, %v10190
        %v10478 = vsel %vm389, %v9742, %v10192
        %v10479 = vsel %vm389, %v9743, %v10194
        %v10480 = vsel %vm389, %v9744, %v10196
        %v10481 = vsel %vm389, %v9745, %v10198
        %v10482 = vsel %vm389, %v9746, %v10200
        %v10483 = vsel %vm389, %v9747, %v10202
        %v10484 = vsel %vm389, %v9748, %v10204
        %v10485 = vsel %vm389, %v9749, %v10206
        %v10486 = vsel %vm389, %v9750, %v10208
        %v10487 = vsel %vm389, %v9751, %v10210
        %v10488 = vsel %vm389, %v9752, %v10212
        %v10489 = vsel %vm389, %v9753, %v10214
        %v10490 = vsel %vm389, %v9754, %v10216
        %v10491 = vsel %vm389, %v9755, %v10218
        %v10492 = vsel %vm389, %v9756, %v10220
        %v10493 = vsel %vm389, %v9757, %v10222
        %v10494 = vsel %vm389, %v9758, %v10224
        %v10495 = vsel %vm389, %v9759, %v10226
        %v10496 = vsel %vm389, %v9760, %v10228
        %v10497 = vsel %vm389, %v9761, %v10230
        %v10498 = vsel %vm389, %v9762, %v10232
        %v10499 = vsel %vm389, %v9763, %v10234
        %v10500 = vsel %vm389, %v9764, %v10236
        %v10501 = vsel %vm389, %v9765, %v10238
        %v10502 = vsel %vm389, %v9766, %v10240
        %v10503 = vsel %vm389, %v9767, %v10242
        %v10504 = vsel %vm389, %v9768, %v10244
        %v10505 = vsel %vm389, %v9769, %v10246
        %v10506 = vsel %vm389, %v9770, %v10248
        %v10507 = vsel %vm389, %v9771, %v10250
        %v10508 = vsel %vm389, %v9772, %v10252
        %v10509 = vsel %vm389, %v9805, %v10318
        %v10510 = vsel %vm389, %v9806, %v10320
        %v10511 = vsel %vm389, %v9807, %v10322
        %v10512 = vsel %vm389, %v9808, %v10324
        %v10513 = vsel %vm389, %v9809, %v10326
        %v10514 = vsel %vm389, %v9810, %v10328
        %v10515 = vsel %vm389, %v9811, %v10330
        %v10516 = vsel %vm389, %v9812, %v10332
        %v10517 = vsel %vm389, %v9813, %v10334
        %v10518 = vsel %vm389, %v9814, %v10336
        %v10519 = vsel %vm389, %v9815, %v10338
        %v10520 = vsel %vm389, %v9816, %v10340
        %v10521 = vsel %vm389, %v9817, %v10342
        %v10522 = vsel %vm389, %v9818, %v10344
        %v10523 = vsel %vm389, %v9819, %v10346
        %v10524 = vsel %vm389, %v9820, %v10348
        %v10525 = vsel %vm389, %v9821, %v10350
        %v10526 = vsel %vm389, %v9822, %v10352
        %v10527 = vsel %vm389, %v9823, %v10354
        %v10528 = vsel %vm389, %v9824, %v10356
        %v10529 = vsel %vm389, %v9825, %v10358
        %v10530 = vsel %vm389, %v9826, %v10360
        %v10531 = vsel %vm389, %v9827, %v10362
        %v10532 = vsel %vm389, %v9828, %v10364
        %v10533 = vsel %vm389, %v9829, %v10366
        %v10534 = vsel %vm389, %v9830, %v10368
        %v10535 = vsel %vm389, %v9831, %v10370
        %v10536 = vsel %vm389, %v9832, %v10372
        %v10537 = vsel %vm389, %v9833, %v10374
        %v10538 = vsel %vm389, %v9834, %v10376
        %v10539 = vsel %vm389, %v9835, %v10378
        %v10540 = vsel %vm389, %v9836, %v10380
        %v10541 = vld [vmem:[%s7] sm:$0x1f]
        %v10543 = vperm.slane %v10541, 0
        %v10544 = vperm.slane %v10541, 1
        %v10545 = vperm.slane %v10541, 2
        %v10546 = vperm.slane %v10541, 3
        %v10547 = vperm.slane %v10541, 4
        %v10553 = vmul.f32 %v10413, %v10543
        %v10554 = vmul.f32 %v10445, %v10544
        %v10555 = vmul.f32 %v10477, %v10545
        %v10556 = vmul.f32 %v10509, %v10546
        %v10557 = vmul.f32 %v9869, %v10547
        %v10558 = vmul.f32 %v10414, %v10543
        %v10559 = vmul.f32 %v10446, %v10544
        %v10560 = vmul.f32 %v10478, %v10545
        %v10561 = vmul.f32 %v10510, %v10546
        %v10562 = vmul.f32 %v9870, %v10547
        %v10563 = vmul.f32 %v10415, %v10543
        %v10564 = vmul.f32 %v10447, %v10544
        %v10565 = vmul.f32 %v10479, %v10545
        %v10566 = vmul.f32 %v10511, %v10546
        %v10567 = vmul.f32 %v9871, %v10547
        %v10568 = vmul.f32 %v10416, %v10543
        %v10569 = vmul.f32 %v10448, %v10544
        %v10570 = vmul.f32 %v10480, %v10545
        %v10571 = vmul.f32 %v10512, %v10546
        %v10572 = vmul.f32 %v9872, %v10547
        %v10573 = vmul.f32 %v10417, %v10543
        %v10574 = vmul.f32 %v10449, %v10544
        %v10575 = vmul.f32 %v10481, %v10545
        %v10576 = vmul.f32 %v10513, %v10546
        %v10577 = vmul.f32 %v9873, %v10547
        %v10578 = vmul.f32 %v10418, %v10543
        %v10579 = vmul.f32 %v10450, %v10544
        %v10580 = vmul.f32 %v10482, %v10545
        %v10581 = vmul.f32 %v10514, %v10546
        %v10582 = vmul.f32 %v9874, %v10547
        %v10583 = vmul.f32 %v10419, %v10543
        %v10584 = vmul.f32 %v10451, %v10544
        %v10585 = vmul.f32 %v10483, %v10545
        %v10586 = vmul.f32 %v10515, %v10546
        %v10587 = vmul.f32 %v9875, %v10547
        %v10588 = vmul.f32 %v10420, %v10543
        %v10589 = vmul.f32 %v10452, %v10544
        %v10590 = vmul.f32 %v10484, %v10545
        %v10591 = vmul.f32 %v10516, %v10546
        %v10592 = vmul.f32 %v9876, %v10547
        %v10593 = vmul.f32 %v10421, %v10543
        %v10594 = vmul.f32 %v10453, %v10544
        %v10595 = vmul.f32 %v10485, %v10545
        %v10596 = vmul.f32 %v10517, %v10546
        %v10597 = vmul.f32 %v9877, %v10547
        %v10598 = vmul.f32 %v10422, %v10543
        %v10599 = vmul.f32 %v10454, %v10544
        %v10600 = vmul.f32 %v10486, %v10545
        %v10601 = vmul.f32 %v10518, %v10546
        %v10602 = vmul.f32 %v9878, %v10547
        %v10603 = vmul.f32 %v10423, %v10543
        %v10604 = vmul.f32 %v10455, %v10544
        %v10605 = vmul.f32 %v10487, %v10545
        %v10606 = vmul.f32 %v10519, %v10546
        %v10607 = vmul.f32 %v9879, %v10547
        %v10608 = vmul.f32 %v10424, %v10543
        %v10609 = vmul.f32 %v10456, %v10544
        %v10610 = vmul.f32 %v10488, %v10545
        %v10611 = vmul.f32 %v10520, %v10546
        %v10612 = vmul.f32 %v9880, %v10547
        %v10613 = vmul.f32 %v10425, %v10543
        %v10614 = vmul.f32 %v10457, %v10544
        %v10615 = vmul.f32 %v10489, %v10545
        %v10616 = vmul.f32 %v10521, %v10546
        %v10617 = vmul.f32 %v9881, %v10547
        %v10618 = vmul.f32 %v10426, %v10543
        %v10619 = vmul.f32 %v10458, %v10544
        %v10620 = vmul.f32 %v10490, %v10545
        %v10621 = vmul.f32 %v10522, %v10546
        %v10622 = vmul.f32 %v9882, %v10547
        %v10623 = vmul.f32 %v10427, %v10543
        %v10624 = vmul.f32 %v10459, %v10544
        %v10625 = vmul.f32 %v10491, %v10545
        %v10626 = vmul.f32 %v10523, %v10546
        %v10627 = vmul.f32 %v9883, %v10547
        %v10628 = vmul.f32 %v10428, %v10543
        %v10629 = vmul.f32 %v10460, %v10544
        %v10630 = vmul.f32 %v10492, %v10545
        %v10631 = vmul.f32 %v10524, %v10546
        %v10632 = vmul.f32 %v9884, %v10547
        %v10633 = vmul.f32 %v10429, %v10543
        %v10634 = vmul.f32 %v10461, %v10544
        %v10635 = vmul.f32 %v10493, %v10545
        %v10636 = vmul.f32 %v10525, %v10546
        %v10637 = vmul.f32 %v9885, %v10547
        %v10638 = vmul.f32 %v10430, %v10543
        %v10639 = vmul.f32 %v10462, %v10544
        %v10640 = vmul.f32 %v10494, %v10545
        %v10641 = vmul.f32 %v10526, %v10546
        %v10642 = vmul.f32 %v9886, %v10547
        %v10643 = vmul.f32 %v10431, %v10543
        %v10644 = vmul.f32 %v10463, %v10544
        %v10645 = vmul.f32 %v10495, %v10545
        %v10646 = vmul.f32 %v10527, %v10546
        %v10647 = vmul.f32 %v9887, %v10547
        %v10648 = vmul.f32 %v10432, %v10543
        %v10649 = vmul.f32 %v10464, %v10544
        %v10650 = vmul.f32 %v10496, %v10545
        %v10651 = vmul.f32 %v10528, %v10546
        %v10652 = vmul.f32 %v9888, %v10547
        %v10653 = vmul.f32 %v10433, %v10543
        %v10654 = vmul.f32 %v10465, %v10544
        %v10655 = vmul.f32 %v10497, %v10545
        %v10656 = vmul.f32 %v10529, %v10546
        %v10657 = vmul.f32 %v9889, %v10547
        %v10658 = vmul.f32 %v10434, %v10543
        %v10659 = vmul.f32 %v10466, %v10544
        %v10660 = vmul.f32 %v10498, %v10545
        %v10661 = vmul.f32 %v10530, %v10546
        %v10662 = vmul.f32 %v9890, %v10547
        %v10663 = vmul.f32 %v10435, %v10543
        %v10664 = vmul.f32 %v10467, %v10544
        %v10665 = vmul.f32 %v10499, %v10545
        %v10666 = vmul.f32 %v10531, %v10546
        %v10667 = vmul.f32 %v9891, %v10547
        %v10668 = vmul.f32 %v10436, %v10543
        %v10669 = vmul.f32 %v10468, %v10544
        %v10670 = vmul.f32 %v10500, %v10545
        %v10671 = vmul.f32 %v10532, %v10546
        %v10672 = vmul.f32 %v9892, %v10547
        %v10673 = vmul.f32 %v10437, %v10543
        %v10674 = vmul.f32 %v10469, %v10544
        %v10675 = vmul.f32 %v10501, %v10545
        %v10676 = vmul.f32 %v10533, %v10546
        %v10677 = vmul.f32 %v9893, %v10547
        %v10678 = vmul.f32 %v10438, %v10543
        %v10679 = vmul.f32 %v10470, %v10544
        %v10680 = vmul.f32 %v10502, %v10545
        %v10681 = vmul.f32 %v10534, %v10546
        %v10682 = vmul.f32 %v9894, %v10547
        %v10683 = vmul.f32 %v10439, %v10543
        %v10684 = vmul.f32 %v10471, %v10544
        %v10685 = vmul.f32 %v10503, %v10545
        %v10686 = vmul.f32 %v10535, %v10546
        %v10687 = vmul.f32 %v9895, %v10547
        %v10688 = vmul.f32 %v10440, %v10543
        %v10689 = vmul.f32 %v10472, %v10544
        %v10690 = vmul.f32 %v10504, %v10545
        %v10691 = vmul.f32 %v10536, %v10546
        %v10692 = vmul.f32 %v9896, %v10547
        %v10693 = vmul.f32 %v10441, %v10543
        %v10694 = vmul.f32 %v10473, %v10544
        %v10695 = vmul.f32 %v10505, %v10545
        %v10696 = vmul.f32 %v10537, %v10546
        %v10697 = vmul.f32 %v9897, %v10547
        %v10698 = vmul.f32 %v10442, %v10543
        %v10699 = vmul.f32 %v10474, %v10544
        %v10700 = vmul.f32 %v10506, %v10545
        %v10701 = vmul.f32 %v10538, %v10546
        %v10702 = vmul.f32 %v9898, %v10547
        %v10703 = vmul.f32 %v10443, %v10543
        %v10704 = vmul.f32 %v10475, %v10544
        %v10705 = vmul.f32 %v10507, %v10545
        %v10706 = vmul.f32 %v10539, %v10546
        %v10707 = vmul.f32 %v9899, %v10547
        %v10708 = vmul.f32 %v10444, %v10543
        %v10709 = vmul.f32 %v10476, %v10544
        %v10710 = vmul.f32 %v10508, %v10545
        %v10711 = vmul.f32 %v10540, %v10546
        %v10712 = vmul.f32 %v9900, %v10547
        %v10713 = vadd.f32 %v10553, %v10554
        %v10714 = vadd.f32 %v10713, %v10555
        %v10715 = vadd.f32 %v10714, %v10556
        %v10716 = vsel %vm389, %v10557, 0.0
        %v10717 = vadd.f32 %v10715, %v10716
        %10718 = vadd.xlane.f32.xlu0 %v10717
        %v10719 = vpop.xlane.xlu0 %10718
        %v10720 = vadd.f32 %v10558, %v10559
        %v10721 = vadd.f32 %v10720, %v10560
        %v10722 = vadd.f32 %v10721, %v10561
        %v10723 = vsel %vm389, %v10562, 0.0
        %v10724 = vadd.f32 %v10722, %v10723
        %10725 = vadd.xlane.f32.xlu0 %v10724
        %v10726 = vpop.xlane.xlu0 %10725
        %v10727 = vadd.f32 %v10563, %v10564
        %v10728 = vadd.f32 %v10727, %v10565
        %v10729 = vadd.f32 %v10728, %v10566
        %v10730 = vsel %vm389, %v10567, 0.0
        %v10731 = vadd.f32 %v10729, %v10730
        %10732 = vadd.xlane.f32.xlu0 %v10731
        %v10733 = vpop.xlane.xlu0 %10732
        %v10734 = vadd.f32 %v10568, %v10569
        %v10735 = vadd.f32 %v10734, %v10570
        %v10736 = vadd.f32 %v10735, %v10571
        %v10737 = vsel %vm389, %v10572, 0.0
        %v10738 = vadd.f32 %v10736, %v10737
        %10739 = vadd.xlane.f32.xlu0 %v10738
        %v10740 = vpop.xlane.xlu0 %10739
        %v10741 = vadd.f32 %v10573, %v10574
        %v10742 = vadd.f32 %v10741, %v10575
        %v10743 = vadd.f32 %v10742, %v10576
        %v10744 = vsel %vm389, %v10577, 0.0
        %v10745 = vadd.f32 %v10743, %v10744
        %10746 = vadd.xlane.f32.xlu0 %v10745
        %v10747 = vpop.xlane.xlu0 %10746
        %v10748 = vadd.f32 %v10578, %v10579
        %v10749 = vadd.f32 %v10748, %v10580
        %v10750 = vadd.f32 %v10749, %v10581
        %v10751 = vsel %vm389, %v10582, 0.0
        %v10752 = vadd.f32 %v10750, %v10751
        %10753 = vadd.xlane.f32.xlu0 %v10752
        %v10754 = vpop.xlane.xlu0 %10753
        %v10755 = vadd.f32 %v10583, %v10584
        %v10756 = vadd.f32 %v10755, %v10585
        %v10757 = vadd.f32 %v10756, %v10586
        %v10758 = vsel %vm389, %v10587, 0.0
        %v10759 = vadd.f32 %v10757, %v10758
        %10760 = vadd.xlane.f32.xlu0 %v10759
        %v10761 = vpop.xlane.xlu0 %10760
        %v10762 = vadd.f32 %v10588, %v10589
        %v10763 = vadd.f32 %v10762, %v10590
        %v10764 = vadd.f32 %v10763, %v10591
        %v10765 = vsel %vm389, %v10592, 0.0
        %v10766 = vadd.f32 %v10764, %v10765
        %10767 = vadd.xlane.f32.xlu0 %v10766
        %v10768 = vpop.xlane.xlu0 %10767
        %v10769 = vadd.f32 %v10593, %v10594
        %v10770 = vadd.f32 %v10769, %v10595
        %v10771 = vadd.f32 %v10770, %v10596
        %v10772 = vsel %vm389, %v10597, 0.0
        %v10773 = vadd.f32 %v10771, %v10772
        %10774 = vadd.xlane.f32.xlu0 %v10773
        %v10775 = vpop.xlane.xlu0 %10774
        %v10776 = vadd.f32 %v10598, %v10599
        %v10777 = vadd.f32 %v10776, %v10600
        %v10778 = vadd.f32 %v10777, %v10601
        %v10779 = vsel %vm389, %v10602, 0.0
        %v10780 = vadd.f32 %v10778, %v10779
        %10781 = vadd.xlane.f32.xlu0 %v10780
        %v10782 = vpop.xlane.xlu0 %10781
        %v10783 = vadd.f32 %v10603, %v10604
        %v10784 = vadd.f32 %v10783, %v10605
        %v10785 = vadd.f32 %v10784, %v10606
        %v10786 = vsel %vm389, %v10607, 0.0
        %v10787 = vadd.f32 %v10785, %v10786
        %10788 = vadd.xlane.f32.xlu0 %v10787
        %v10789 = vpop.xlane.xlu0 %10788
        %v10790 = vadd.f32 %v10608, %v10609
        %v10791 = vadd.f32 %v10790, %v10610
        %v10792 = vadd.f32 %v10791, %v10611
        %v10793 = vsel %vm389, %v10612, 0.0
        %v10794 = vadd.f32 %v10792, %v10793
        %10795 = vadd.xlane.f32.xlu0 %v10794
        %v10796 = vpop.xlane.xlu0 %10795
        %v10797 = vadd.f32 %v10613, %v10614
        %v10798 = vadd.f32 %v10797, %v10615
        %v10799 = vadd.f32 %v10798, %v10616
        %v10800 = vsel %vm389, %v10617, 0.0
        %v10801 = vadd.f32 %v10799, %v10800
        %10802 = vadd.xlane.f32.xlu0 %v10801
        %v10803 = vpop.xlane.xlu0 %10802
        %v10804 = vadd.f32 %v10618, %v10619
        %v10805 = vadd.f32 %v10804, %v10620
        %v10806 = vadd.f32 %v10805, %v10621
        %v10807 = vsel %vm389, %v10622, 0.0
        %v10808 = vadd.f32 %v10806, %v10807
        %10809 = vadd.xlane.f32.xlu0 %v10808
        %v10810 = vpop.xlane.xlu0 %10809
        %v10811 = vadd.f32 %v10623, %v10624
        %v10812 = vadd.f32 %v10811, %v10625
        %v10813 = vadd.f32 %v10812, %v10626
        %v10814 = vsel %vm389, %v10627, 0.0
        %v10815 = vadd.f32 %v10813, %v10814
        %10816 = vadd.xlane.f32.xlu0 %v10815
        %v10817 = vpop.xlane.xlu0 %10816
        %v10818 = vadd.f32 %v10628, %v10629
        %v10819 = vadd.f32 %v10818, %v10630
        %v10820 = vadd.f32 %v10819, %v10631
        %v10821 = vsel %vm389, %v10632, 0.0
        %v10822 = vadd.f32 %v10820, %v10821
        %10823 = vadd.xlane.f32.xlu0 %v10822
        %v10824 = vpop.xlane.xlu0 %10823
        %v10825 = vadd.f32 %v10633, %v10634
        %v10826 = vadd.f32 %v10825, %v10635
        %v10827 = vadd.f32 %v10826, %v10636
        %v10828 = vsel %vm389, %v10637, 0.0
        %v10829 = vadd.f32 %v10827, %v10828
        %10830 = vadd.xlane.f32.xlu0 %v10829
        %v10831 = vpop.xlane.xlu0 %10830
        %v10832 = vadd.f32 %v10638, %v10639
        %v10833 = vadd.f32 %v10832, %v10640
        %v10834 = vadd.f32 %v10833, %v10641
        %v10835 = vsel %vm389, %v10642, 0.0
        %v10836 = vadd.f32 %v10834, %v10835
        %10837 = vadd.xlane.f32.xlu0 %v10836
        %v10838 = vpop.xlane.xlu0 %10837
        %v10839 = vadd.f32 %v10643, %v10644
        %v10840 = vadd.f32 %v10839, %v10645
        %v10841 = vadd.f32 %v10840, %v10646
        %v10842 = vsel %vm389, %v10647, 0.0
        %v10843 = vadd.f32 %v10841, %v10842
        %10844 = vadd.xlane.f32.xlu0 %v10843
        %v10845 = vpop.xlane.xlu0 %10844
        %v10846 = vadd.f32 %v10648, %v10649
        %v10847 = vadd.f32 %v10846, %v10650
        %v10848 = vadd.f32 %v10847, %v10651
        %v10849 = vsel %vm389, %v10652, 0.0
        %v10850 = vadd.f32 %v10848, %v10849
        %10851 = vadd.xlane.f32.xlu0 %v10850
        %v10852 = vpop.xlane.xlu0 %10851
        %v10853 = vadd.f32 %v10653, %v10654
        %v10854 = vadd.f32 %v10853, %v10655
        %v10855 = vadd.f32 %v10854, %v10656
        %v10856 = vsel %vm389, %v10657, 0.0
        %v10857 = vadd.f32 %v10855, %v10856
        %10858 = vadd.xlane.f32.xlu0 %v10857
        %v10859 = vpop.xlane.xlu0 %10858
        %v10860 = vadd.f32 %v10658, %v10659
        %v10861 = vadd.f32 %v10860, %v10660
        %v10862 = vadd.f32 %v10861, %v10661
        %v10863 = vsel %vm389, %v10662, 0.0
        %v10864 = vadd.f32 %v10862, %v10863
        %10865 = vadd.xlane.f32.xlu0 %v10864
        %v10866 = vpop.xlane.xlu0 %10865
        %v10867 = vadd.f32 %v10663, %v10664
        %v10868 = vadd.f32 %v10867, %v10665
        %v10869 = vadd.f32 %v10868, %v10666
        %v10870 = vsel %vm389, %v10667, 0.0
        %v10871 = vadd.f32 %v10869, %v10870
        %10872 = vadd.xlane.f32.xlu0 %v10871
        %v10873 = vpop.xlane.xlu0 %10872
        %v10874 = vadd.f32 %v10668, %v10669
        %v10875 = vadd.f32 %v10874, %v10670
        %v10876 = vadd.f32 %v10875, %v10671
        %v10877 = vsel %vm389, %v10672, 0.0
        %v10878 = vadd.f32 %v10876, %v10877
        %10879 = vadd.xlane.f32.xlu0 %v10878
        %v10880 = vpop.xlane.xlu0 %10879
        %v10881 = vadd.f32 %v10673, %v10674
        %v10882 = vadd.f32 %v10881, %v10675
        %v10883 = vadd.f32 %v10882, %v10676
        %v10884 = vsel %vm389, %v10677, 0.0
        %v10885 = vadd.f32 %v10883, %v10884
        %10886 = vadd.xlane.f32.xlu0 %v10885
        %v10887 = vpop.xlane.xlu0 %10886
        %v10888 = vadd.f32 %v10678, %v10679
        %v10889 = vadd.f32 %v10888, %v10680
        %v10890 = vadd.f32 %v10889, %v10681
        %v10891 = vsel %vm389, %v10682, 0.0
        %v10892 = vadd.f32 %v10890, %v10891
        %10893 = vadd.xlane.f32.xlu0 %v10892
        %v10894 = vpop.xlane.xlu0 %10893
        %v10895 = vadd.f32 %v10683, %v10684
        %v10896 = vadd.f32 %v10895, %v10685
        %v10897 = vadd.f32 %v10896, %v10686
        %v10898 = vsel %vm389, %v10687, 0.0
        %v10899 = vadd.f32 %v10897, %v10898
        %10900 = vadd.xlane.f32.xlu0 %v10899
        %v10901 = vpop.xlane.xlu0 %10900
        %v10902 = vadd.f32 %v10688, %v10689
        %v10903 = vadd.f32 %v10902, %v10690
        %v10904 = vadd.f32 %v10903, %v10691
        %v10905 = vsel %vm389, %v10692, 0.0
        %v10906 = vadd.f32 %v10904, %v10905
        %10907 = vadd.xlane.f32.xlu0 %v10906
        %v10908 = vpop.xlane.xlu0 %10907
        %v10909 = vadd.f32 %v10693, %v10694
        %v10910 = vadd.f32 %v10909, %v10695
        %v10911 = vadd.f32 %v10910, %v10696
        %v10912 = vsel %vm389, %v10697, 0.0
        %v10913 = vadd.f32 %v10911, %v10912
        %10914 = vadd.xlane.f32.xlu0 %v10913
        %v10915 = vpop.xlane.xlu0 %10914
        %v10916 = vadd.f32 %v10698, %v10699
        %v10917 = vadd.f32 %v10916, %v10700
        %v10918 = vadd.f32 %v10917, %v10701
        %v10919 = vsel %vm389, %v10702, 0.0
        %v10920 = vadd.f32 %v10918, %v10919
        %10921 = vadd.xlane.f32.xlu0 %v10920
        %v10922 = vpop.xlane.xlu0 %10921
        %v10923 = vadd.f32 %v10703, %v10704
        %v10924 = vadd.f32 %v10923, %v10705
        %v10925 = vadd.f32 %v10924, %v10706
        %v10926 = vsel %vm389, %v10707, 0.0
        %v10927 = vadd.f32 %v10925, %v10926
        %10928 = vadd.xlane.f32.xlu0 %v10927
        %v10929 = vpop.xlane.xlu0 %10928
        %v10930 = vadd.f32 %v10708, %v10709
        %v10931 = vadd.f32 %v10930, %v10710
        %v10932 = vadd.f32 %v10931, %v10711
        %v10933 = vsel %vm389, %v10712, 0.0
        %v10934 = vadd.f32 %v10932, %v10933
        %10935 = vadd.xlane.f32.xlu0 %v10934
        %v10936 = vpop.xlane.xlu0 %10935
        %v10937 = vld [vmem:[#allocation5] sm:$0x1]
        %v10939 = vperm.slane %v10937, 0
        %10940 = vset.pattern.permute.xlu0 0
        %10941 = vperm.xlu0 %10940, %v10939
        %v10942 = vpop.permute.xlu0 %10941
        %v10944 = vadd.f32 %v10719, %v10942
        %v10945 = vadd.f32 %v10726, %v10942
        %v10946 = vadd.f32 %v10733, %v10942
        %v10947 = vadd.f32 %v10740, %v10942
        %v10948 = vadd.f32 %v10747, %v10942
        %v10949 = vadd.f32 %v10754, %v10942
        %v10950 = vadd.f32 %v10761, %v10942
        %v10951 = vadd.f32 %v10768, %v10942
        %v10952 = vadd.f32 %v10775, %v10942
        %v10953 = vadd.f32 %v10782, %v10942
        %v10954 = vadd.f32 %v10789, %v10942
        %v10955 = vadd.f32 %v10796, %v10942
        %v10956 = vadd.f32 %v10803, %v10942
        %v10957 = vadd.f32 %v10810, %v10942
        %v10958 = vadd.f32 %v10817, %v10942
        %v10959 = vadd.f32 %v10824, %v10942
        %v10960 = vadd.f32 %v10831, %v10942
        %v10961 = vadd.f32 %v10838, %v10942
        %v10962 = vadd.f32 %v10845, %v10942
        %v10963 = vadd.f32 %v10852, %v10942
        %v10964 = vadd.f32 %v10859, %v10942
        %v10965 = vadd.f32 %v10866, %v10942
        %v10966 = vadd.f32 %v10873, %v10942
        %v10967 = vadd.f32 %v10880, %v10942
        %v10968 = vadd.f32 %v10887, %v10942
        %v10969 = vadd.f32 %v10894, %v10942
        %v10970 = vadd.f32 %v10901, %v10942
        %v10971 = vadd.f32 %v10908, %v10942
        %v10972 = vadd.f32 %v10915, %v10942
        %v10973 = vadd.f32 %v10922, %v10942
        %v10974 = vadd.f32 %v10929, %v10942
        %v10975 = vadd.f32 %v10936, %v10942
        %v11008 = vlaneseq
        %v11009 = vand.u32 %v11008, 127
        %v11010 = vperm.slane %v10944, %v11009
        %v11011 = vadd.s32 %v11009, 4294967288
        %v11012 = vperm.slane %v10945, %v11011
        %vm11013 = vcmask 130112
        %v11014 = vsel %vm11013, %v11012, %v11010
        %v11015 = vperm.slane %v10946, %v11009
        %v11016 = vperm.slane %v10947, %v11011
        %v11017 = vsel %vm11013, %v11016, %v11015
        %v11018 = vperm.slane %v10948, %v11009
        %v11019 = vperm.slane %v10949, %v11011
        %v11020 = vsel %vm11013, %v11019, %v11018
        %v11021 = vperm.slane %v10950, %v11009
        %v11022 = vperm.slane %v10951, %v11011
        %v11023 = vsel %vm11013, %v11022, %v11021
        %v11024 = vperm.slane %v10952, %v11009
        %v11025 = vperm.slane %v10953, %v11011
        %v11026 = vsel %vm11013, %v11025, %v11024
        %v11027 = vperm.slane %v10954, %v11009
        %v11028 = vperm.slane %v10955, %v11011
        %v11029 = vsel %vm11013, %v11028, %v11027
        %v11030 = vperm.slane %v10956, %v11009
        %v11031 = vperm.slane %v10957, %v11011
        %v11032 = vsel %vm11013, %v11031, %v11030
        %v11033 = vperm.slane %v10958, %v11009
        %v11034 = vperm.slane %v10959, %v11011
        %v11035 = vsel %vm11013, %v11034, %v11033
        %v11036 = vperm.slane %v10960, %v11009
        %v11037 = vperm.slane %v10961, %v11011
        %v11038 = vsel %vm11013, %v11037, %v11036
        %v11039 = vperm.slane %v10962, %v11009
        %v11040 = vperm.slane %v10963, %v11011
        %v11041 = vsel %vm11013, %v11040, %v11039
        %v11042 = vperm.slane %v10964, %v11009
        %v11043 = vperm.slane %v10965, %v11011
        %v11044 = vsel %vm11013, %v11043, %v11042
        %v11045 = vperm.slane %v10966, %v11009
        %v11046 = vperm.slane %v10967, %v11011
        %v11047 = vsel %vm11013, %v11046, %v11045
        %v11048 = vperm.slane %v10968, %v11009
        %v11049 = vperm.slane %v10969, %v11011
        %v11050 = vsel %vm11013, %v11049, %v11048
        %v11051 = vperm.slane %v10970, %v11009
        %v11052 = vperm.slane %v10971, %v11011
        %v11053 = vsel %vm11013, %v11052, %v11051
        %v11054 = vperm.slane %v10972, %v11009
        %v11055 = vperm.slane %v10973, %v11011
        %v11056 = vsel %vm11013, %v11055, %v11054
        %v11057 = vperm.slane %v10974, %v11009
        %v11058 = vperm.slane %v10975, %v11011
        %v11059 = vsel %vm11013, %v11058, %v11057
        %vm11060 = vcmask 1041409
        %v11061 = vsel %vm11060, %v11017, %v11014
        %vm11062 = vcmask 1042434
        %v11063 = vsel %vm11062, %v11020, %v11061
        %vm11064 = vcmask 1043459
        %v11065 = vsel %vm11064, %v11023, %v11063
        %vm11066 = vcmask 1044484
        %v11067 = vsel %vm11066, %v11026, %v11065
        %vm11068 = vcmask 1045509
        %v11069 = vsel %vm11068, %v11029, %v11067
        %vm11070 = vcmask 1046534
        %v11071 = vsel %vm11070, %v11032, %v11069
        %vm11072 = vcmask 1047559
        %v11073 = vsel %vm11072, %v11035, %v11071
        %v11074 = vsel %vm11060, %v11041, %v11038
        %v11075 = vsel %vm11062, %v11044, %v11074
        %v11076 = vsel %vm11064, %v11047, %v11075
        %v11077 = vsel %vm11066, %v11050, %v11076
        %v11078 = vsel %vm11068, %v11053, %v11077
        %v11079 = vsel %vm11070, %v11056, %v11078
        %v11080 = vsel %vm11072, %v11059, %v11079
        %vm11083 = vcmask 130048
        %11084 = vst.msk [vmem:[%s327] sm:$0xff] %vm11083, %v11073
        %11085 = vst.msk [vmem:[%s327 + $0x8] sm:$0xff] %vm11083, %v11080
        %s11086 = sand.u32 %s227, 1
        %s11087 = scalar_lea.sflag [#allocation7], %s11086
        %s11088 = sand.u32 %s227, 1
        %s11089 = smul.addr %s11088, 16
        %s11090 = scalar_lea.vmem [#allocation6], %s11089
        // Predicated region
        $region57: #{tpu_custom_call.1} parent=55 // pred_check
          %p11091 = pneg %p237
        $region58: #{tpu_custom_call.1} parent=55 // pred_check_branch
          %11093 = sbr.rel (%p11091) target = $region60
        $region59: #{tpu_custom_call.1} parent=55 // pred_region
          %11095 = vsyncadd %s11087, 0
          %s11096 = smul.addr %s25, 2
          %s11097 = smul.addr %s11096, 8
          %s11098 = scalar_lea.hbm %s9, %s11097
          %s11099 = sshll.u32 %s11090, 4
          %s11100 = int_to_ptr.vmem [resolvable:$true] %s11099
          %s11101 = sshll.u32 %s11098, 4
          %s11102 = int_to_ptr.hbm [resolvable:$true] %s11101
          %11107 = dma.vmem_to_hbm [thread:$0]  %s11100, 256, %s11102, %s11087, 128, 128, 8
        $region60: #{tpu_custom_call.1} parent=55 // pred_fallthru
          _
      $region56: #{tpu_custom_call.1} parent=5 // pred_fallthru
        _
      %p11108 = scmp.le.s32.totalorder 2, %s20
      // Predicated region
      $region61: #{tpu_custom_call.1} parent=5 // pred_check
        %p11109 = pneg %p11108
      $region62: #{tpu_custom_call.1} parent=5 // pred_check_branch
        %11111 = sbr.rel (%p11109) target = $region64
      $region63: #{tpu_custom_call.1} parent=5 // pred_region
        %s11112 = ssub.s32 %s20, 2
        // Predicated region
        $region65: #{tpu_custom_call.1} parent=63 // pred_check
          %p11113 = pneg %p243
        $region66: #{tpu_custom_call.1} parent=63 // pred_check_branch
          %11115 = sbr.rel (%p11113) target = $region68
        $region67: #{tpu_custom_call.1} parent=63 // pred_region
          %s11116 = sand.u32 %s228, 1
          %s11117 = scalar_lea.sflag [#allocation7], %s11116
          %s11118 = sand.u32 %s228, 1
          %s11119 = smul.addr %s11118, 16
          %s11120 = scalar_lea.vmem [#allocation6], %s11119
          %11122 = dma.done %s11117, 256
        $region68: #{tpu_custom_call.1} parent=63 // pred_fallthru
          _
      $region64: #{tpu_custom_call.1} parent=5 // pred_fallthru
        _
    $region6: #{tpu_custom_call.1} parent=1 // loop_footer
      %s24 = sadd.s32 1, %s20
    $region7: #{tpu_custom_call.1} parent=1 // loop_footer_branch
      %19 = sbr.rel target = $region3
    $region8: #{tpu_custom_call.1} parent=1 // loop_exit
      _
    %11123 = vsyncpa [#allocation7], 1
    %s11124 = scalar_lea.sflag [#allocation7], 1
    %11125 = vsyncpa %s11124, 1

</llo_original>
